<compile_context>
chip_gen: v6e
topology: v6e:2x2x1
jax: 0.10.0
libtpu: 0.0.40
codegen_flags: <defaults>
</compile_context>

<pallas_src>
import math
from functools import partial

import jax
import jax.numpy as jnp
import jax.scipy.special as jsp
from jax import lax
from jax.experimental import pallas as pl
from jax.experimental.pallas import tpu as pltpu


def _round_up(x, m):
    return ((x + m - 1) // m) * m


# ----------------------------------------------------------------------------
# Kernel 1: GCHW_conv — grouped (depthwise) convs along H and along W.
# Inputs are the two channel halves, already zero-padded along their conv axis.
# ----------------------------------------------------------------------------
def _gc_conv_kernel(xh_ref, xw_ref, kh_ref, kw_ref, bh_ref, bw_ref,
                    oh_ref, ow_ref, *, gks):
    H, W, _ = oh_ref.shape
    kh = kh_ref[...].astype(jnp.float32)          # (gks, tc)
    kw = kw_ref[...].astype(jnp.float32)
    bh = bh_ref[...].astype(jnp.float32)          # (1, tc)
    bw = bw_ref[...].astype(jnp.float32)

    # Register accumulation: each tap is a shifted load of the zero-padded
    # input block (leading-axis address offset for the H branch, sublane offset
    # for the W branch).  The accumulator is a jnp value, so the compiler fuses
    # all taps per output vreg and emits a single, full, unmasked store per
    # branch (no per-tap VMEM read-modify-write, no masked partial stores).
    # Bias is folded into the accumulator init.
    acc_h = xh_ref[0:H, :, :].astype(jnp.float32) * kh[0] + bh
    acc_w = xw_ref[:, 0:W, :].astype(jnp.float32) * kw[0] + bw
    for k in range(1, gks):
        acc_h = acc_h + xh_ref[k:k + H, :, :].astype(jnp.float32) * kh[k]
        acc_w = acc_w + xw_ref[:, k:k + W, :].astype(jnp.float32) * kw[k]

    oh_ref[...] = acc_h.astype(oh_ref.dtype)
    ow_ref[...] = acc_w.astype(ow_ref.dtype)


def gc_conv(xh_p, xw_p, kh, kw, bh, bw, *, out_dtype=jnp.bfloat16):
    gks, Ch = kh.shape
    pad = (gks - 1) // 2
    N, Hp, W, _ = xh_p.shape
    _, H, Wp, _ = xw_p.shape
    assert Hp == H + 2 * pad and Wp == W + 2 * pad

    # Channel-tile grid axis (depthwise => no halo needed): caps the per-step
    # VMEM footprint and provides a second "parallel" axis for megacore / v7x.
    if Ch % 256 == 0:
        tc = 256
    elif Ch % 128 == 0:
        tc = 128
    else:
        tc = Ch
    nc = Ch // tc

    in_bytes = (Hp * W + H * Wp) * tc * xh_p.dtype.itemsize
    out_bytes = 2 * H * W * tc * jnp.dtype(out_dtype).itemsize
    vmem = max(2 * (in_bytes + out_bytes) + (4 << 20), 32 << 20)

    kernel = partial(_gc_conv_kernel, gks=gks)
    return pl.pallas_call(
        kernel,
        out_shape=(jax.ShapeDtypeStruct((N, H, W, Ch), out_dtype),
                   jax.ShapeDtypeStruct((N, H, W, Ch), out_dtype)),
        grid=(N, nc),
        in_specs=[
            pl.BlockSpec((None, Hp, W, tc), lambda n, c: (n, 0, 0, c)),  # x H-half (padded H)
            pl.BlockSpec((None, H, Wp, tc), lambda n, c: (n, 0, 0, c)),  # x W-half (padded W)
            pl.BlockSpec((gks, tc), lambda n, c: (0, c)),                # kh
            pl.BlockSpec((gks, tc), lambda n, c: (0, c)),                # kw
            pl.BlockSpec((1, tc), lambda n, c: (0, c)),                  # bh
            pl.BlockSpec((1, tc), lambda n, c: (0, c)),                  # bw
        ],
        out_specs=(
            pl.BlockSpec((None, H, W, tc), lambda n, c: (n, 0, 0, c)),
            pl.BlockSpec((None, H, W, tc), lambda n, c: (n, 0, 0, c)),
        ),
        compiler_params=pltpu.CompilerParams(
            dimension_semantics=("parallel", "parallel"),
            vmem_limit_bytes=int(vmem)),
    )(xh_p, xw_p, kh, kw, bh, bw)


# ----------------------------------------------------------------------------
# Kernel 2: LayerNorm + pwconv1 + GELU + pwconv2 + gamma, row-tiled over pixels.
# Consumes the two bf16 conv halves directly (no channel concat in HBM).
# ----------------------------------------------------------------------------
def _ln_mlp_kernel(yh_ref, yw_ref, lnw_ref, lnb_ref, w1_ref, b1_ref,
                   w2_ref, b2_ref, g_ref, o_ref, *, eps, ch, dc, fuse_k):
    cdim = 2 * ch
    yh = yh_ref[...].astype(jnp.float32)          # (tm, Ch) bf16 -> f32
    yw = yw_ref[...].astype(jnp.float32)
    tm = yh.shape[0]

    # LayerNorm over the full C channels; stats composed from the two halves
    # in f32 (biased variance, matching F.layer_norm).
    inv_c = 1.0 / cdim
    mean = (jnp.sum(yh, axis=-1, keepdims=True)
            + jnp.sum(yw, axis=-1, keepdims=True)) * inv_c
    dh = yh - mean
    dw = yw - mean
    var = (jnp.sum(dh * dh, axis=-1, keepdims=True)
           + jnp.sum(dw * dw, axis=-1, keepdims=True)) * inv_c
    inv = lax.rsqrt(var + eps)                    # EUP

    lnw = lnw_ref[...].astype(jnp.float32)        # (1, C)
    lnb = lnb_ref[...].astype(jnp.float32)
    if fuse_k:
        # Small channel count: one K=C matmul fills the MXU depth better than
        # two K=C/2 matmuls; the concat stays in registers.
        xn_b = (jnp.concatenate([dh, dw], axis=-1) * inv * lnw
                + lnb).astype(jnp.bfloat16)
    else:
        xnh_b = (dh * inv * lnw[:, :ch] + lnb[:, :ch]).astype(jnp.bfloat16)
        xnw_b = (dw * inv * lnw[:, ch:] + lnb[:, ch:]).astype(jnp.bfloat16)

    D = w2_ref.shape[0]
    c0g = math.sqrt(2.0 / math.pi)
    c1g = 0.044715 * c0g

    # Hidden-dim chunking: never materialize the full (tm, 4C) f32 hidden
    # activation; each chunk does pwconv1 -> GELU -> pwconv2-accumulate.
    acc = jnp.zeros((tm, cdim), jnp.float32)
    for c0 in range(0, D, dc):
        b1c = b1_ref[:, c0:c0 + dc].astype(jnp.float32)
        if fuse_k:
            h = jnp.dot(xn_b, w1_ref[:, c0:c0 + dc],
                        preferred_element_type=jnp.float32) + b1c
        else:
            h = (jnp.dot(xnh_b, w1_ref[0:ch, c0:c0 + dc],
                         preferred_element_type=jnp.float32)
                 + jnp.dot(xnw_b, w1_ref[ch:cdim, c0:c0 + dc],
                           preferred_element_type=jnp.float32)
                 + b1c)
        # tanh-GELU (tanh on the EUP), constants pre-combined.  ~1e-3-level
        # deviation from the exact erf nn.GELU, inside the bf16 tolerance.
        t = jnp.tanh(h * (c0g + c1g * (h * h)))
        h = 0.5 * h * (1.0 + t)
        acc = acc + jnp.dot(h.astype(jnp.bfloat16), w2_ref[c0:c0 + dc, :],
                            preferred_element_type=jnp.float32)

    z = (acc + b2_ref[...].astype(jnp.float32)) * g_ref[...].astype(jnp.float32)
    o_ref[...] = z.astype(o_ref.dtype)


def ln_mlp_scaled(yh2, yw2, lnw, lnb, w1, b1, w2, b2, gamma, *, eps=1e-6,
                  out_dtype=jnp.float32):
    M, Ch = yh2.shape
    C, D = w1.shape
    assert C == 2 * Ch and w2.shape == (D, C)
    # Zero-padded tail rows rely on eps > 0 to stay finite (they are sliced off).
    assert eps > 0.0

    # Adaptive row tile: amortize the ~0.35us per-grid-step overhead at small C.
    if C <= 192:
        tm = 1024
    elif C <= 384:
        tm = 512
    else:
        tm = 256
    tm = min(tm, _round_up(M, 8))
    m_pad = _round_up(M, tm)
    if m_pad != M:
        rows = ((0, m_pad - M), (0, 0))
        yh2 = jnp.pad(yh2, rows)
        yw2 = jnp.pad(yw2, rows)

    # Hidden-dim chunk size (static).
    if D % 512 == 0:
        dc = 512
    elif D % 256 == 0:
        dc = 256
    elif D % 128 == 0:
        dc = 128
    else:
        dc = D
    fuse_k = Ch < 128

    act_bytes = 2 * tm * Ch * yh2.dtype.itemsize + tm * C * jnp.dtype(out_dtype).itemsize
    w_bytes = 2 * C * D * w1.dtype.itemsize
    tmp_bytes = tm * (2 * C + 4 * dc) * 4
    vmem = max(2 * act_bytes + 2 * w_bytes + tmp_bytes + (4 << 20), 32 << 20)

    kernel = partial(_ln_mlp_kernel, eps=eps, ch=Ch, dc=dc, fuse_k=fuse_k)
    out = pl.pallas_call(
        kernel,
        out_shape=jax.ShapeDtypeStruct((m_pad, C), out_dtype),
        grid=(m_pad // tm,),
        in_specs=[
            pl.BlockSpec((tm, Ch), lambda i: (i, 0)),   # y, H half (bf16)
            pl.BlockSpec((tm, Ch), lambda i: (i, 0)),   # y, W half (bf16)
            pl.BlockSpec((1, C), lambda i: (0, 0)),     # LN weight
            pl.BlockSpec((1, C), lambda i: (0, 0)),     # LN bias
            pl.BlockSpec((C, D), lambda i: (0, 0)),     # w1 (bf16, resident)
            pl.BlockSpec((1, D), lambda i: (0, 0)),     # b1
            pl.BlockSpec((D, C), lambda i: (0, 0)),     # w2 (bf16, resident)
            pl.BlockSpec((1, C), lambda i: (0, 0)),     # b2
            pl.BlockSpec((1, C), lambda i: (0, 0)),     # gamma
        ],
        out_specs=pl.BlockSpec((tm, C), lambda i: (i, 0)),
        compiler_params=pltpu.CompilerParams(
            dimension_semantics=("parallel",),
            vmem_limit_bytes=int(vmem)),
    )(yh2, yw2, lnw, lnb, w1, b1, w2, b2, gamma)
    return out[:M] if m_pad != M else out


# ----------------------------------------------------------------------------
# Full block wrapper (glue: layout plumbing only).
# ----------------------------------------------------------------------------
def convnext_gc_block(x_nchw, params, *, eps=1e-6):
    N, C, H, W = x_nchw.shape
    Ch = C // 2
    gks = params["kh"].shape[0]
    pad = (gks - 1) // 2

    # NCHW -> NHWC per channel half; the conv zero-padding is fused into this
    # layout pass (XLA transpose + pad), so the kernel never builds padded
    # copies of its own and every tap is a plain shifted load.
    xh_p = jnp.pad(jnp.transpose(x_nchw[:, :Ch], (0, 2, 3, 1)),
                   ((0, 0), (pad, pad), (0, 0), (0, 0)))     # (N, H+2p, W, Ch)
    xw_p = jnp.pad(jnp.transpose(x_nchw[:, Ch:], (0, 2, 3, 1)),
                   ((0, 0), (0, 0), (pad, pad), (0, 0)))     # (N, H, W+2p, Ch)

    # Conv intermediates in bf16: halves the HBM writeback of kernel 1 and the
    # re-read of kernel 2 (LN stats stay in f32 inside kernel 2).
    yh, yw = gc_conv(xh_p, xw_p, params["kh"], params["kw"],
                     params["bh"], params["bw"], out_dtype=jnp.bfloat16)

    M = N * H * W
    z = ln_mlp_scaled(
        yh.reshape(M, Ch), yw.reshape(M, Ch),
        params["ln_w"], params["ln_b"],
        params["w1"].astype(jnp.bfloat16), params["b1"],
        params["w2"].astype(jnp.bfloat16), params["b2"],
        params["gamma"], eps=eps, out_dtype=jnp.float32)

    # Residual add + NHWC->NCHW permute: one fused XLA epilogue.
    # drop_path = 0.0 in the reference module => identity.
    return x_nchw + jnp.transpose(z.reshape(N, H, W, C), (0, 3, 1, 2))


def init_params(key, dim, global_kernel_size=14, layer_scale_init_value=1e-6):
    gks = global_kernel_size - 1 if global_kernel_size % 2 == 0 else global_kernel_size
    Ch = dim // 2
    ks = jax.random.split(key, 10)
    return dict(
        kh=0.1 * jax.random.normal(ks[0], (gks, Ch), jnp.float32),   # gch_conv.weight[c,0,:,0]
        kw=0.1 * jax.random.normal(ks[1], (gks, Ch), jnp.float32),   # gcw_conv.weight[c,0,0,:]
        bh=0.1 * jax.random.normal(ks[2], (1, Ch), jnp.float32),
        bw=0.1 * jax.random.normal(ks[3], (1, Ch), jnp.float32),
        ln_w=1.0 + 0.1 * jax.random.normal(ks[4], (1, dim), jnp.float32),
        ln_b=0.1 * jax.random.normal(ks[5], (1, dim), jnp.float32),
        w1=0.1 * jax.random.normal(ks[6], (dim, 4 * dim), jnp.float32),
        b1=0.1 * jax.random.normal(ks[7], (1, 4 * dim), jnp.float32),
        w2=0.1 * jax.random.normal(ks[8], (4 * dim, dim), jnp.float32),
        b2=0.1 * jax.random.normal(ks[9], (1, dim), jnp.float32),
        gamma=layer_scale_init_value * jnp.ones((1, dim), jnp.float32),
    )


# Pure-JAX reference of the PyTorch module (exact erf GELU, f32 everywhere).
def _reference(x, params, eps=1e-6):
    N, C, H, W = x.shape
    Ch = C // 2
    gks = params["kh"].shape[0]
    pad = (gks - 1) // 2
    xh, xw = x[:, :Ch], x[:, Ch:]
    xh_p = jnp.pad(xh, ((0, 0), (0, 0), (pad, pad), (0, 0)))
    xw_p = jnp.pad(xw, ((0, 0), (0, 0), (0, 0), (pad, pad)))
    kh, kw = params["kh"], params["kw"]
    yh = sum(xh_p[:, :, k:k + H, :] * kh[k][None, :, None, None] for k in range(gks))
    yw = sum(xw_p[:, :, :, k:k + W] * kw[k][None, :, None, None] for k in range(gks))
    yh = yh + params["bh"][0][None, :, None, None]
    yw = yw + params["bw"][0][None, :, None, None]
    y = jnp.concatenate([yh, yw], axis=1)
    t = jnp.transpose(y, (0, 2, 3, 1))
    mean = t.mean(-1, keepdims=True)
    var = ((t - mean) ** 2).mean(-1, keepdims=True)
    t = (t - mean) / jnp.sqrt(var + eps)
    t = t * params["ln_w"][0] + params["ln_b"][0]
    h = t @ params["w1"] + params["b1"][0]
    h = 0.5 * h * (1.0 + jsp.erf(h / jnp.sqrt(2.0)))          # exact GELU
    z = (h @ params["w2"] + params["b2"][0]) * params["gamma"][0]
    return x + jnp.transpose(z, (0, 3, 1, 2))


if __name__ == "__main__":
    key = jax.random.PRNGKey(0)
    kx, kp = jax.random.split(key)
    N, C, H, W = 2, 8, 16, 16                       # dim=8, spatial=16x16
    x = jax.random.normal(kx, (N, C, H, W), jnp.float32)
    # layer_scale_init_value=1.0 so the MLP branch is numerically visible in
    # the check (the module default 1e-6 would scale it below f32 noise).
    params = init_params(kp, C, global_kernel_size=14, layer_scale_init_value=1.0)

    out = jax.jit(convnext_gc_block)(x, params)
    out = jax.block_until_ready(out)
    assert out.shape == (N, C, H, W) and out.dtype == jnp.float32
    assert bool(jnp.all(jnp.isfinite(out)))

    ref = _reference(x, params)
    # bf16 intermediates + tanh-GELU vs the f32/erf reference: ~few e-3 max dev.
    assert jnp.allclose(out, ref, rtol=1e-2, atol=1e-2), \
        float(jnp.max(jnp.abs(out - ref)))
    print("KERNEL_OK")
</pallas_src>

<mosaic_0001>
module attributes {stable_mosaic.version = 11 : i64} {
  func.func @_gc_conv_kernel(%arg0: i32, %arg1: i32, %arg2: memref<1x28x16x4xf32, #tpu.memory_space<vmem>>, %arg3: memref<1x16x28x4xf32, #tpu.memory_space<vmem>>, %arg4: memref<13x4xf32, #tpu.memory_space<vmem>>, %arg5: memref<13x4xf32, #tpu.memory_space<vmem>>, %arg6: memref<1x4xf32, #tpu.memory_space<vmem>>, %arg7: memref<1x4xf32, #tpu.memory_space<vmem>>, %arg8: memref<1x16x16x4xbf16, #tpu.memory_space<vmem>>, %arg9: memref<1x16x16x4xbf16, #tpu.memory_space<vmem>>) attributes {dimension_semantics = [#tpu.dimension_semantics<parallel>, #tpu.dimension_semantics<parallel>], iteration_bounds = array<i64: 2, 1>, scalar_prefetch = 0 : i64, scratch_operands = 0 : i64, tpu.core_type = #tpu.core_type<tc>, window_params = [{transform_indices = @transform_0, window_bounds = array<i64: 1, 28, 16, 4>}, {transform_indices = @transform_1, window_bounds = array<i64: 1, 16, 28, 4>}, {transform_indices = @transform_2, window_bounds = array<i64: 13, 4>}, {transform_indices = @transform_3, window_bounds = array<i64: 13, 4>}, {transform_indices = @transform_4, window_bounds = array<i64: 1, 4>}, {transform_indices = @transform_5, window_bounds = array<i64: 1, 4>}, {transform_indices = @transform_6, window_bounds = array<i64: 1, 16, 16, 4>}, {transform_indices = @transform_7, window_bounds = array<i64: 1, 16, 16, 4>}]} {
    %c0 = arith.constant 0 : index
    %c0_0 = arith.constant 0 : index
    %0 = vector.load %arg4[%c0, %c0_0] : memref<13x4xf32, #tpu.memory_space<vmem>>, vector<13x4xf32>
    %c0_1 = arith.constant 0 : index
    %c0_2 = arith.constant 0 : index
    %1 = vector.load %arg5[%c0_1, %c0_2] : memref<13x4xf32, #tpu.memory_space<vmem>>, vector<13x4xf32>
    %c0_3 = arith.constant 0 : index
    %c0_4 = arith.constant 0 : index
    %2 = vector.load %arg6[%c0_3, %c0_4] : memref<1x4xf32, #tpu.memory_space<vmem>>, vector<1x4xf32>
    %c0_5 = arith.constant 0 : index
    %c0_6 = arith.constant 0 : index
    %3 = vector.load %arg7[%c0_5, %c0_6] : memref<1x4xf32, #tpu.memory_space<vmem>>, vector<1x4xf32>
    %c0_7 = arith.constant 0 : index
    %c0_8 = arith.constant 0 : index
    %c0_9 = arith.constant 0 : index
    %c0_10 = arith.constant 0 : index
    %4 = vector.load %arg2[%c0_7, %c0_8, %c0_9, %c0_10] : memref<1x28x16x4xf32, #tpu.memory_space<vmem>>, vector<1x16x16x4xf32>
    %5 = vector.shape_cast %4 : vector<1x16x16x4xf32> to vector<16x16x4xf32>
    %6 = vector.extract_strided_slice %0 {offsets = [0, 0], sizes = [1, 4], strides = [1, 1]} : vector<13x4xf32> to vector<1x4xf32>
    %7 = vector.shape_cast %6 : vector<1x4xf32> to vector<4xf32>
    %8 = vector.shape_cast %7 : vector<4xf32> to vector<1x1x4xf32>
    %9 = vector.broadcast %8 : vector<1x1x4xf32> to vector<16x16x4xf32>
    %10 = arith.mulf %5, %9 : vector<16x16x4xf32>
    %11 = vector.shape_cast %2 : vector<1x4xf32> to vector<1x1x4xf32>
    %12 = vector.broadcast %11 : vector<1x1x4xf32> to vector<16x16x4xf32>
    %13 = arith.addf %10, %12 : vector<16x16x4xf32>
    %c0_11 = arith.constant 0 : index
    %c0_12 = arith.constant 0 : index
    %c0_13 = arith.constant 0 : index
    %c0_14 = arith.constant 0 : index
    %14 = vector.load %arg3[%c0_11, %c0_12, %c0_13, %c0_14] : memref<1x16x28x4xf32, #tpu.memory_space<vmem>>, vector<1x16x16x4xf32>
    %15 = vector.shape_cast %14 : vector<1x16x16x4xf32> to vector<16x16x4xf32>
    %16 = vector.extract_strided_slice %1 {offsets = [0, 0], sizes = [1, 4], strides = [1, 1]} : vector<13x4xf32> to vector<1x4xf32>
    %17 = vector.shape_cast %16 : vector<1x4xf32> to vector<4xf32>
    %18 = vector.shape_cast %17 : vector<4xf32> to vector<1x1x4xf32>
    %19 = vector.broadcast %18 : vector<1x1x4xf32> to vector<16x16x4xf32>
    %20 = arith.mulf %15, %19 : vector<16x16x4xf32>
    %21 = vector.shape_cast %3 : vector<1x4xf32> to vector<1x1x4xf32>
    %22 = vector.broadcast %21 : vector<1x1x4xf32> to vector<16x16x4xf32>
    %23 = arith.addf %20, %22 : vector<16x16x4xf32>
    %c0_15 = arith.constant 0 : index
    %c1 = arith.constant 1 : index
    %c0_16 = arith.constant 0 : index
    %c0_17 = arith.constant 0 : index
    %24 = vector.load %arg2[%c0_15, %c1, %c0_16, %c0_17] : memref<1x28x16x4xf32, #tpu.memory_space<vmem>>, vector<1x16x16x4xf32>
    %25 = vector.shape_cast %24 : vector<1x16x16x4xf32> to vector<16x16x4xf32>
    %26 = vector.extract_strided_slice %0 {offsets = [1, 0], sizes = [1, 4], strides = [1, 1]} : vector<13x4xf32> to vector<1x4xf32>
    %27 = vector.shape_cast %26 : vector<1x4xf32> to vector<4xf32>
    %28 = vector.shape_cast %27 : vector<4xf32> to vector<1x1x4xf32>
    %29 = vector.broadcast %28 : vector<1x1x4xf32> to vector<16x16x4xf32>
    %30 = arith.mulf %25, %29 : vector<16x16x4xf32>
    %31 = arith.addf %13, %30 : vector<16x16x4xf32>
    %c0_18 = arith.constant 0 : index
    %c0_19 = arith.constant 0 : index
    %c1_20 = arith.constant 1 : index
    %c0_21 = arith.constant 0 : index
    %32 = vector.load %arg3[%c0_18, %c0_19, %c1_20, %c0_21] : memref<1x16x28x4xf32, #tpu.memory_space<vmem>>, vector<1x16x16x4xf32>
    %33 = vector.shape_cast %32 : vector<1x16x16x4xf32> to vector<16x16x4xf32>
    %34 = vector.extract_strided_slice %1 {offsets = [1, 0], sizes = [1, 4], strides = [1, 1]} : vector<13x4xf32> to vector<1x4xf32>
    %35 = vector.shape_cast %34 : vector<1x4xf32> to vector<4xf32>
    %36 = vector.shape_cast %35 : vector<4xf32> to vector<1x1x4xf32>
    %37 = vector.broadcast %36 : vector<1x1x4xf32> to vector<16x16x4xf32>
    %38 = arith.mulf %33, %37 : vector<16x16x4xf32>
    %39 = arith.addf %23, %38 : vector<16x16x4xf32>
    %c0_22 = arith.constant 0 : index
    %c2 = arith.constant 2 : index
    %c0_23 = arith.constant 0 : index
    %c0_24 = arith.constant 0 : index
    %40 = vector.load %arg2[%c0_22, %c2, %c0_23, %c0_24] : memref<1x28x16x4xf32, #tpu.memory_space<vmem>>, vector<1x16x16x4xf32>
    %41 = vector.shape_cast %40 : vector<1x16x16x4xf32> to vector<16x16x4xf32>
    %42 = vector.extract_strided_slice %0 {offsets = [2, 0], sizes = [1, 4], strides = [1, 1]} : vector<13x4xf32> to vector<1x4xf32>
    %43 = vector.shape_cast %42 : vector<1x4xf32> to vector<4xf32>
    %44 = vector.shape_cast %43 : vector<4xf32> to vector<1x1x4xf32>
    %45 = vector.broadcast %44 : vector<1x1x4xf32> to vector<16x16x4xf32>
    %46 = arith.mulf %41, %45 : vector<16x16x4xf32>
    %47 = arith.addf %31, %46 : vector<16x16x4xf32>
    %c0_25 = arith.constant 0 : index
    %c0_26 = arith.constant 0 : index
    %c2_27 = arith.constant 2 : index
    %c0_28 = arith.constant 0 : index
    %48 = vector.load %arg3[%c0_25, %c0_26, %c2_27, %c0_28] : memref<1x16x28x4xf32, #tpu.memory_space<vmem>>, vector<1x16x16x4xf32>
    %49 = vector.shape_cast %48 : vector<1x16x16x4xf32> to vector<16x16x4xf32>
    %50 = vector.extract_strided_slice %1 {offsets = [2, 0], sizes = [1, 4], strides = [1, 1]} : vector<13x4xf32> to vector<1x4xf32>
    %51 = vector.shape_cast %50 : vector<1x4xf32> to vector<4xf32>
    %52 = vector.shape_cast %51 : vector<4xf32> to vector<1x1x4xf32>
    %53 = vector.broadcast %52 : vector<1x1x4xf32> to vector<16x16x4xf32>
    %54 = arith.mulf %49, %53 : vector<16x16x4xf32>
    %55 = arith.addf %39, %54 : vector<16x16x4xf32>
    %c0_29 = arith.constant 0 : index
    %c3 = arith.constant 3 : index
    %c0_30 = arith.constant 0 : index
    %c0_31 = arith.constant 0 : index
    %56 = vector.load %arg2[%c0_29, %c3, %c0_30, %c0_31] : memref<1x28x16x4xf32, #tpu.memory_space<vmem>>, vector<1x16x16x4xf32>
    %57 = vector.shape_cast %56 : vector<1x16x16x4xf32> to vector<16x16x4xf32>
    %58 = vector.extract_strided_slice %0 {offsets = [3, 0], sizes = [1, 4], strides = [1, 1]} : vector<13x4xf32> to vector<1x4xf32>
    %59 = vector.shape_cast %58 : vector<1x4xf32> to vector<4xf32>
    %60 = vector.shape_cast %59 : vector<4xf32> to vector<1x1x4xf32>
    %61 = vector.broadcast %60 : vector<1x1x4xf32> to vector<16x16x4xf32>
    %62 = arith.mulf %57, %61 : vector<16x16x4xf32>
    %63 = arith.addf %47, %62 : vector<16x16x4xf32>
    %c0_32 = arith.constant 0 : index
    %c0_33 = arith.constant 0 : index
    %c3_34 = arith.constant 3 : index
    %c0_35 = arith.constant 0 : index
    %64 = vector.load %arg3[%c0_32, %c0_33, %c3_34, %c0_35] : memref<1x16x28x4xf32, #tpu.memory_space<vmem>>, vector<1x16x16x4xf32>
    %65 = vector.shape_cast %64 : vector<1x16x16x4xf32> to vector<16x16x4xf32>
    %66 = vector.extract_strided_slice %1 {offsets = [3, 0], sizes = [1, 4], strides = [1, 1]} : vector<13x4xf32> to vector<1x4xf32>
    %67 = vector.shape_cast %66 : vector<1x4xf32> to vector<4xf32>
    %68 = vector.shape_cast %67 : vector<4xf32> to vector<1x1x4xf32>
    %69 = vector.broadcast %68 : vector<1x1x4xf32> to vector<16x16x4xf32>
    %70 = arith.mulf %65, %69 : vector<16x16x4xf32>
    %71 = arith.addf %55, %70 : vector<16x16x4xf32>
    %c0_36 = arith.constant 0 : index
    %c4 = arith.constant 4 : index
    %c0_37 = arith.constant 0 : index
    %c0_38 = arith.constant 0 : index
    %72 = vector.load %arg2[%c0_36, %c4, %c0_37, %c0_38] : memref<1x28x16x4xf32, #tpu.memory_space<vmem>>, vector<1x16x16x4xf32>
    %73 = vector.shape_cast %72 : vector<1x16x16x4xf32> to vector<16x16x4xf32>
    %74 = vector.extract_strided_slice %0 {offsets = [4, 0], sizes = [1, 4], strides = [1, 1]} : vector<13x4xf32> to vector<1x4xf32>
    %75 = vector.shape_cast %74 : vector<1x4xf32> to vector<4xf32>
    %76 = vector.shape_cast %75 : vector<4xf32> to vector<1x1x4xf32>
    %77 = vector.broadcast %76 : vector<1x1x4xf32> to vector<16x16x4xf32>
    %78 = arith.mulf %73, %77 : vector<16x16x4xf32>
    %79 = arith.addf %63, %78 : vector<16x16x4xf32>
    %c0_39 = arith.constant 0 : index
    %c0_40 = arith.constant 0 : index
    %c4_41 = arith.constant 4 : index
    %c0_42 = arith.constant 0 : index
    %80 = vector.load %arg3[%c0_39, %c0_40, %c4_41, %c0_42] : memref<1x16x28x4xf32, #tpu.memory_space<vmem>>, vector<1x16x16x4xf32>
    %81 = vector.shape_cast %80 : vector<1x16x16x4xf32> to vector<16x16x4xf32>
    %82 = vector.extract_strided_slice %1 {offsets = [4, 0], sizes = [1, 4], strides = [1, 1]} : vector<13x4xf32> to vector<1x4xf32>
    %83 = vector.shape_cast %82 : vector<1x4xf32> to vector<4xf32>
    %84 = vector.shape_cast %83 : vector<4xf32> to vector<1x1x4xf32>
    %85 = vector.broadcast %84 : vector<1x1x4xf32> to vector<16x16x4xf32>
    %86 = arith.mulf %81, %85 : vector<16x16x4xf32>
    %87 = arith.addf %71, %86 : vector<16x16x4xf32>
    %c0_43 = arith.constant 0 : index
    %c5 = arith.constant 5 : index
    %c0_44 = arith.constant 0 : index
    %c0_45 = arith.constant 0 : index
    %88 = vector.load %arg2[%c0_43, %c5, %c0_44, %c0_45] : memref<1x28x16x4xf32, #tpu.memory_space<vmem>>, vector<1x16x16x4xf32>
    %89 = vector.shape_cast %88 : vector<1x16x16x4xf32> to vector<16x16x4xf32>
    %90 = vector.extract_strided_slice %0 {offsets = [5, 0], sizes = [1, 4], strides = [1, 1]} : vector<13x4xf32> to vector<1x4xf32>
    %91 = vector.shape_cast %90 : vector<1x4xf32> to vector<4xf32>
    %92 = vector.shape_cast %91 : vector<4xf32> to vector<1x1x4xf32>
    %93 = vector.broadcast %92 : vector<1x1x4xf32> to vector<16x16x4xf32>
    %94 = arith.mulf %89, %93 : vector<16x16x4xf32>
    %95 = arith.addf %79, %94 : vector<16x16x4xf32>
    %c0_46 = arith.constant 0 : index
    %c0_47 = arith.constant 0 : index
    %c5_48 = arith.constant 5 : index
    %c0_49 = arith.constant 0 : index
    %96 = vector.load %arg3[%c0_46, %c0_47, %c5_48, %c0_49] : memref<1x16x28x4xf32, #tpu.memory_space<vmem>>, vector<1x16x16x4xf32>
    %97 = vector.shape_cast %96 : vector<1x16x16x4xf32> to vector<16x16x4xf32>
    %98 = vector.extract_strided_slice %1 {offsets = [5, 0], sizes = [1, 4], strides = [1, 1]} : vector<13x4xf32> to vector<1x4xf32>
    %99 = vector.shape_cast %98 : vector<1x4xf32> to vector<4xf32>
    %100 = vector.shape_cast %99 : vector<4xf32> to vector<1x1x4xf32>
    %101 = vector.broadcast %100 : vector<1x1x4xf32> to vector<16x16x4xf32>
    %102 = arith.mulf %97, %101 : vector<16x16x4xf32>
    %103 = arith.addf %87, %102 : vector<16x16x4xf32>
    %c0_50 = arith.constant 0 : index
    %c6 = arith.constant 6 : index
    %c0_51 = arith.constant 0 : index
    %c0_52 = arith.constant 0 : index
    %104 = vector.load %arg2[%c0_50, %c6, %c0_51, %c0_52] : memref<1x28x16x4xf32, #tpu.memory_space<vmem>>, vector<1x16x16x4xf32>
    %105 = vector.shape_cast %104 : vector<1x16x16x4xf32> to vector<16x16x4xf32>
    %106 = vector.extract_strided_slice %0 {offsets = [6, 0], sizes = [1, 4], strides = [1, 1]} : vector<13x4xf32> to vector<1x4xf32>
    %107 = vector.shape_cast %106 : vector<1x4xf32> to vector<4xf32>
    %108 = vector.shape_cast %107 : vector<4xf32> to vector<1x1x4xf32>
    %109 = vector.broadcast %108 : vector<1x1x4xf32> to vector<16x16x4xf32>
    %110 = arith.mulf %105, %109 : vector<16x16x4xf32>
    %111 = arith.addf %95, %110 : vector<16x16x4xf32>
    %c0_53 = arith.constant 0 : index
    %c0_54 = arith.constant 0 : index
    %c6_55 = arith.constant 6 : index
    %c0_56 = arith.constant 0 : index
    %112 = vector.load %arg3[%c0_53, %c0_54, %c6_55, %c0_56] : memref<1x16x28x4xf32, #tpu.memory_space<vmem>>, vector<1x16x16x4xf32>
    %113 = vector.shape_cast %112 : vector<1x16x16x4xf32> to vector<16x16x4xf32>
    %114 = vector.extract_strided_slice %1 {offsets = [6, 0], sizes = [1, 4], strides = [1, 1]} : vector<13x4xf32> to vector<1x4xf32>
    %115 = vector.shape_cast %114 : vector<1x4xf32> to vector<4xf32>
    %116 = vector.shape_cast %115 : vector<4xf32> to vector<1x1x4xf32>
    %117 = vector.broadcast %116 : vector<1x1x4xf32> to vector<16x16x4xf32>
    %118 = arith.mulf %113, %117 : vector<16x16x4xf32>
    %119 = arith.addf %103, %118 : vector<16x16x4xf32>
    %c0_57 = arith.constant 0 : index
    %c7 = arith.constant 7 : index
    %c0_58 = arith.constant 0 : index
    %c0_59 = arith.constant 0 : index
    %120 = vector.load %arg2[%c0_57, %c7, %c0_58, %c0_59] : memref<1x28x16x4xf32, #tpu.memory_space<vmem>>, vector<1x16x16x4xf32>
    %121 = vector.shape_cast %120 : vector<1x16x16x4xf32> to vector<16x16x4xf32>
    %122 = vector.extract_strided_slice %0 {offsets = [7, 0], sizes = [1, 4], strides = [1, 1]} : vector<13x4xf32> to vector<1x4xf32>
    %123 = vector.shape_cast %122 : vector<1x4xf32> to vector<4xf32>
    %124 = vector.shape_cast %123 : vector<4xf32> to vector<1x1x4xf32>
    %125 = vector.broadcast %124 : vector<1x1x4xf32> to vector<16x16x4xf32>
    %126 = arith.mulf %121, %125 : vector<16x16x4xf32>
    %127 = arith.addf %111, %126 : vector<16x16x4xf32>
    %c0_60 = arith.constant 0 : index
    %c0_61 = arith.constant 0 : index
    %c7_62 = arith.constant 7 : index
    %c0_63 = arith.constant 0 : index
    %128 = vector.load %arg3[%c0_60, %c0_61, %c7_62, %c0_63] : memref<1x16x28x4xf32, #tpu.memory_space<vmem>>, vector<1x16x16x4xf32>
    %129 = vector.shape_cast %128 : vector<1x16x16x4xf32> to vector<16x16x4xf32>
    %130 = vector.extract_strided_slice %1 {offsets = [7, 0], sizes = [1, 4], strides = [1, 1]} : vector<13x4xf32> to vector<1x4xf32>
    %131 = vector.shape_cast %130 : vector<1x4xf32> to vector<4xf32>
    %132 = vector.shape_cast %131 : vector<4xf32> to vector<1x1x4xf32>
    %133 = vector.broadcast %132 : vector<1x1x4xf32> to vector<16x16x4xf32>
    %134 = arith.mulf %129, %133 : vector<16x16x4xf32>
    %135 = arith.addf %119, %134 : vector<16x16x4xf32>
    %c0_64 = arith.constant 0 : index
    %c8 = arith.constant 8 : index
    %c0_65 = arith.constant 0 : index
    %c0_66 = arith.constant 0 : index
    %136 = vector.load %arg2[%c0_64, %c8, %c0_65, %c0_66] : memref<1x28x16x4xf32, #tpu.memory_space<vmem>>, vector<1x16x16x4xf32>
    %137 = vector.shape_cast %136 : vector<1x16x16x4xf32> to vector<16x16x4xf32>
    %138 = vector.extract_strided_slice %0 {offsets = [8, 0], sizes = [1, 4], strides = [1, 1]} : vector<13x4xf32> to vector<1x4xf32>
    %139 = vector.shape_cast %138 : vector<1x4xf32> to vector<4xf32>
    %140 = vector.shape_cast %139 : vector<4xf32> to vector<1x1x4xf32>
    %141 = vector.broadcast %140 : vector<1x1x4xf32> to vector<16x16x4xf32>
    %142 = arith.mulf %137, %141 : vector<16x16x4xf32>
    %143 = arith.addf %127, %142 : vector<16x16x4xf32>
    %c0_67 = arith.constant 0 : index
    %c0_68 = arith.constant 0 : index
    %c8_69 = arith.constant 8 : index
    %c0_70 = arith.constant 0 : index
    %144 = vector.load %arg3[%c0_67, %c0_68, %c8_69, %c0_70] : memref<1x16x28x4xf32, #tpu.memory_space<vmem>>, vector<1x16x16x4xf32>
    %145 = vector.shape_cast %144 : vector<1x16x16x4xf32> to vector<16x16x4xf32>
    %146 = vector.extract_strided_slice %1 {offsets = [8, 0], sizes = [1, 4], strides = [1, 1]} : vector<13x4xf32> to vector<1x4xf32>
    %147 = vector.shape_cast %146 : vector<1x4xf32> to vector<4xf32>
    %148 = vector.shape_cast %147 : vector<4xf32> to vector<1x1x4xf32>
    %149 = vector.broadcast %148 : vector<1x1x4xf32> to vector<16x16x4xf32>
    %150 = arith.mulf %145, %149 : vector<16x16x4xf32>
    %151 = arith.addf %135, %150 : vector<16x16x4xf32>
    %c0_71 = arith.constant 0 : index
    %c9 = arith.constant 9 : index
    %c0_72 = arith.constant 0 : index
    %c0_73 = arith.constant 0 : index
    %152 = vector.load %arg2[%c0_71, %c9, %c0_72, %c0_73] : memref<1x28x16x4xf32, #tpu.memory_space<vmem>>, vector<1x16x16x4xf32>
    %153 = vector.shape_cast %152 : vector<1x16x16x4xf32> to vector<16x16x4xf32>
    %154 = vector.extract_strided_slice %0 {offsets = [9, 0], sizes = [1, 4], strides = [1, 1]} : vector<13x4xf32> to vector<1x4xf32>
    %155 = vector.shape_cast %154 : vector<1x4xf32> to vector<4xf32>
    %156 = vector.shape_cast %155 : vector<4xf32> to vector<1x1x4xf32>
    %157 = vector.broadcast %156 : vector<1x1x4xf32> to vector<16x16x4xf32>
    %158 = arith.mulf %153, %157 : vector<16x16x4xf32>
    %159 = arith.addf %143, %158 : vector<16x16x4xf32>
    %c0_74 = arith.constant 0 : index
    %c0_75 = arith.constant 0 : index
    %c9_76 = arith.constant 9 : index
    %c0_77 = arith.constant 0 : index
    %160 = vector.load %arg3[%c0_74, %c0_75, %c9_76, %c0_77] : memref<1x16x28x4xf32, #tpu.memory_space<vmem>>, vector<1x16x16x4xf32>
    %161 = vector.shape_cast %160 : vector<1x16x16x4xf32> to vector<16x16x4xf32>
    %162 = vector.extract_strided_slice %1 {offsets = [9, 0], sizes = [1, 4], strides = [1, 1]} : vector<13x4xf32> to vector<1x4xf32>
    %163 = vector.shape_cast %162 : vector<1x4xf32> to vector<4xf32>
    %164 = vector.shape_cast %163 : vector<4xf32> to vector<1x1x4xf32>
    %165 = vector.broadcast %164 : vector<1x1x4xf32> to vector<16x16x4xf32>
    %166 = arith.mulf %161, %165 : vector<16x16x4xf32>
    %167 = arith.addf %151, %166 : vector<16x16x4xf32>
    %c0_78 = arith.constant 0 : index
    %c10 = arith.constant 10 : index
    %c0_79 = arith.constant 0 : index
    %c0_80 = arith.constant 0 : index
    %168 = vector.load %arg2[%c0_78, %c10, %c0_79, %c0_80] : memref<1x28x16x4xf32, #tpu.memory_space<vmem>>, vector<1x16x16x4xf32>
    %169 = vector.shape_cast %168 : vector<1x16x16x4xf32> to vector<16x16x4xf32>
    %170 = vector.extract_strided_slice %0 {offsets = [10, 0], sizes = [1, 4], strides = [1, 1]} : vector<13x4xf32> to vector<1x4xf32>
    %171 = vector.shape_cast %170 : vector<1x4xf32> to vector<4xf32>
    %172 = vector.shape_cast %171 : vector<4xf32> to vector<1x1x4xf32>
    %173 = vector.broadcast %172 : vector<1x1x4xf32> to vector<16x16x4xf32>
    %174 = arith.mulf %169, %173 : vector<16x16x4xf32>
    %175 = arith.addf %159, %174 : vector<16x16x4xf32>
    %c0_81 = arith.constant 0 : index
    %c0_82 = arith.constant 0 : index
    %c10_83 = arith.constant 10 : index
    %c0_84 = arith.constant 0 : index
    %176 = vector.load %arg3[%c0_81, %c0_82, %c10_83, %c0_84] : memref<1x16x28x4xf32, #tpu.memory_space<vmem>>, vector<1x16x16x4xf32>
    %177 = vector.shape_cast %176 : vector<1x16x16x4xf32> to vector<16x16x4xf32>
    %178 = vector.extract_strided_slice %1 {offsets = [10, 0], sizes = [1, 4], strides = [1, 1]} : vector<13x4xf32> to vector<1x4xf32>
    %179 = vector.shape_cast %178 : vector<1x4xf32> to vector<4xf32>
    %180 = vector.shape_cast %179 : vector<4xf32> to vector<1x1x4xf32>
    %181 = vector.broadcast %180 : vector<1x1x4xf32> to vector<16x16x4xf32>
    %182 = arith.mulf %177, %181 : vector<16x16x4xf32>
    %183 = arith.addf %167, %182 : vector<16x16x4xf32>
    %c0_85 = arith.constant 0 : index
    %c11 = arith.constant 11 : index
    %c0_86 = arith.constant 0 : index
    %c0_87 = arith.constant 0 : index
    %184 = vector.load %arg2[%c0_85, %c11, %c0_86, %c0_87] : memref<1x28x16x4xf32, #tpu.memory_space<vmem>>, vector<1x16x16x4xf32>
    %185 = vector.shape_cast %184 : vector<1x16x16x4xf32> to vector<16x16x4xf32>
    %186 = vector.extract_strided_slice %0 {offsets = [11, 0], sizes = [1, 4], strides = [1, 1]} : vector<13x4xf32> to vector<1x4xf32>
    %187 = vector.shape_cast %186 : vector<1x4xf32> to vector<4xf32>
    %188 = vector.shape_cast %187 : vector<4xf32> to vector<1x1x4xf32>
    %189 = vector.broadcast %188 : vector<1x1x4xf32> to vector<16x16x4xf32>
    %190 = arith.mulf %185, %189 : vector<16x16x4xf32>
    %191 = arith.addf %175, %190 : vector<16x16x4xf32>
    %c0_88 = arith.constant 0 : index
    %c0_89 = arith.constant 0 : index
    %c11_90 = arith.constant 11 : index
    %c0_91 = arith.constant 0 : index
    %192 = vector.load %arg3[%c0_88, %c0_89, %c11_90, %c0_91] : memref<1x16x28x4xf32, #tpu.memory_space<vmem>>, vector<1x16x16x4xf32>
    %193 = vector.shape_cast %192 : vector<1x16x16x4xf32> to vector<16x16x4xf32>
    %194 = vector.extract_strided_slice %1 {offsets = [11, 0], sizes = [1, 4], strides = [1, 1]} : vector<13x4xf32> to vector<1x4xf32>
    %195 = vector.shape_cast %194 : vector<1x4xf32> to vector<4xf32>
    %196 = vector.shape_cast %195 : vector<4xf32> to vector<1x1x4xf32>
    %197 = vector.broadcast %196 : vector<1x1x4xf32> to vector<16x16x4xf32>
    %198 = arith.mulf %193, %197 : vector<16x16x4xf32>
    %199 = arith.addf %183, %198 : vector<16x16x4xf32>
    %c0_92 = arith.constant 0 : index
    %c12 = arith.constant 12 : index
    %c0_93 = arith.constant 0 : index
    %c0_94 = arith.constant 0 : index
    %200 = vector.load %arg2[%c0_92, %c12, %c0_93, %c0_94] : memref<1x28x16x4xf32, #tpu.memory_space<vmem>>, vector<1x16x16x4xf32>
    %201 = vector.shape_cast %200 : vector<1x16x16x4xf32> to vector<16x16x4xf32>
    %202 = vector.extract_strided_slice %0 {offsets = [12, 0], sizes = [1, 4], strides = [1, 1]} : vector<13x4xf32> to vector<1x4xf32>
    %203 = vector.shape_cast %202 : vector<1x4xf32> to vector<4xf32>
    %204 = vector.shape_cast %203 : vector<4xf32> to vector<1x1x4xf32>
    %205 = vector.broadcast %204 : vector<1x1x4xf32> to vector<16x16x4xf32>
    %206 = arith.mulf %201, %205 : vector<16x16x4xf32>
    %207 = arith.addf %191, %206 : vector<16x16x4xf32>
    %c0_95 = arith.constant 0 : index
    %c0_96 = arith.constant 0 : index
    %c12_97 = arith.constant 12 : index
    %c0_98 = arith.constant 0 : index
    %208 = vector.load %arg3[%c0_95, %c0_96, %c12_97, %c0_98] : memref<1x16x28x4xf32, #tpu.memory_space<vmem>>, vector<1x16x16x4xf32>
    %209 = vector.shape_cast %208 : vector<1x16x16x4xf32> to vector<16x16x4xf32>
    %210 = vector.extract_strided_slice %1 {offsets = [12, 0], sizes = [1, 4], strides = [1, 1]} : vector<13x4xf32> to vector<1x4xf32>
    %211 = vector.shape_cast %210 : vector<1x4xf32> to vector<4xf32>
    %212 = vector.shape_cast %211 : vector<4xf32> to vector<1x1x4xf32>
    %213 = vector.broadcast %212 : vector<1x1x4xf32> to vector<16x16x4xf32>
    %214 = arith.mulf %209, %213 : vector<16x16x4xf32>
    %215 = arith.addf %199, %214 : vector<16x16x4xf32>
    %216 = arith.truncf %207 : vector<16x16x4xf32> to vector<16x16x4xbf16>
    %c0_99 = arith.constant 0 : index
    %c0_100 = arith.constant 0 : index
    %c0_101 = arith.constant 0 : index
    %c0_102 = arith.constant 0 : index
    %217 = vector.load %arg8[%c0_99, %c0_100, %c0_101, %c0_102] : memref<1x16x16x4xbf16, #tpu.memory_space<vmem>>, vector<1x16x16x4xbf16>
    %218 = vector.shape_cast %217 : vector<1x16x16x4xbf16> to vector<16x16x4xbf16>
    %219 = vector.shape_cast %216 : vector<16x16x4xbf16> to vector<1x16x16x4xbf16>
    tpu.vector_store %arg8[%c0_99, %c0_100, %c0_101, %c0_102], %219 {strides = array<i32>} : memref<1x16x16x4xbf16, #tpu.memory_space<vmem>>, vector<1x16x16x4xbf16>,
    %220 = arith.truncf %215 : vector<16x16x4xf32> to vector<16x16x4xbf16>
    %c0_103 = arith.constant 0 : index
    %c0_104 = arith.constant 0 : index
    %c0_105 = arith.constant 0 : index
    %c0_106 = arith.constant 0 : index
    %221 = vector.load %arg9[%c0_103, %c0_104, %c0_105, %c0_106] : memref<1x16x16x4xbf16, #tpu.memory_space<vmem>>, vector<1x16x16x4xbf16>
    %222 = vector.shape_cast %221 : vector<1x16x16x4xbf16> to vector<16x16x4xbf16>
    %223 = vector.shape_cast %220 : vector<16x16x4xbf16> to vector<1x16x16x4xbf16>
    tpu.vector_store %arg9[%c0_103, %c0_104, %c0_105, %c0_106], %223 {strides = array<i32>} : memref<1x16x16x4xbf16, #tpu.memory_space<vmem>>, vector<1x16x16x4xbf16>,
    return
  }
  func.func @transform_0(%arg0: i32, %arg1: i32) -> (i32, i32, i32, i32) {
    %c0_i32 = arith.constant 0 : i32
    %c0_i32_0 = arith.constant 0 : i32
    %c0_i32_1 = arith.constant 0 : i32
    return %arg0, %c0_i32, %c0_i32_0, %arg1 : i32, i32, i32, i32
  }
  func.func @transform_1(%arg0: i32, %arg1: i32) -> (i32, i32, i32, i32) {
    %c0_i32 = arith.constant 0 : i32
    %c0_i32_0 = arith.constant 0 : i32
    %c0_i32_1 = arith.constant 0 : i32
    return %arg0, %c0_i32, %c0_i32_0, %arg1 : i32, i32, i32, i32
  }
  func.func @transform_2(%arg0: i32, %arg1: i32) -> (i32, i32) {
    %c0_i32 = arith.constant 0 : i32
    %c0_i32_0 = arith.constant 0 : i32
    return %c0_i32, %arg1 : i32, i32
  }
  func.func @transform_3(%arg0: i32, %arg1: i32) -> (i32, i32) {
    %c0_i32 = arith.constant 0 : i32
    %c0_i32_0 = arith.constant 0 : i32
    return %c0_i32, %arg1 : i32, i32
  }
  func.func @transform_4(%arg0: i32, %arg1: i32) -> (i32, i32) {
    %c0_i32 = arith.constant 0 : i32
    %c0_i32_0 = arith.constant 0 : i32
    return %c0_i32, %arg1 : i32, i32
  }
  func.func @transform_5(%arg0: i32, %arg1: i32) -> (i32, i32) {
    %c0_i32 = arith.constant 0 : i32
    %c0_i32_0 = arith.constant 0 : i32
    return %c0_i32, %arg1 : i32, i32
  }
  func.func @transform_6(%arg0: i32, %arg1: i32) -> (i32, i32, i32, i32) {
    %c0_i32 = arith.constant 0 : i32
    %c0_i32_0 = arith.constant 0 : i32
    %c0_i32_1 = arith.constant 0 : i32
    return %arg0, %c0_i32, %c0_i32_0, %arg1 : i32, i32, i32, i32
  }
  func.func @transform_7(%arg0: i32, %arg1: i32) -> (i32, i32, i32, i32) {
    %c0_i32 = arith.constant 0 : i32
    %c0_i32_0 = arith.constant 0 : i32
    %c0_i32_1 = arith.constant 0 : i32
    return %arg0, %c0_i32, %c0_i32_0, %arg1 : i32, i32, i32, i32
  }
}

module attributes {stable_mosaic.version = 11 : i64} {
  func.func @_ln_mlp_kernel(%arg0: i32, %arg1: memref<512x4xbf16, #tpu.memory_space<vmem>>, %arg2: memref<512x4xbf16, #tpu.memory_space<vmem>>, %arg3: memref<1x8xf32, #tpu.memory_space<vmem>>, %arg4: memref<1x8xf32, #tpu.memory_space<vmem>>, %arg5: memref<8x32xbf16, #tpu.memory_space<vmem>>, %arg6: memref<1x32xf32, #tpu.memory_space<vmem>>, %arg7: memref<32x8xbf16, #tpu.memory_space<vmem>>, %arg8: memref<1x8xf32, #tpu.memory_space<vmem>>, %arg9: memref<1x8xf32, #tpu.memory_space<vmem>>, %arg10: memref<512x8xf32, #tpu.memory_space<vmem>>) attributes {dimension_semantics = [#tpu.dimension_semantics<parallel>], iteration_bounds = array<i64: 1>, scalar_prefetch = 0 : i64, scratch_operands = 0 : i64, tpu.core_type = #tpu.core_type<tc>, window_params = [{transform_indices = @transform_0, window_bounds = array<i64: 512, 4>}, {transform_indices = @transform_1, window_bounds = array<i64: 512, 4>}, {pipeline_mode = #tpu.pipeline_mode<synchronous>, transform_indices = @transform_2, window_bounds = array<i64: 1, 8>}, {pipeline_mode = #tpu.pipeline_mode<synchronous>, transform_indices = @transform_3, window_bounds = array<i64: 1, 8>}, {pipeline_mode = #tpu.pipeline_mode<synchronous>, transform_indices = @transform_4, window_bounds = array<i64: 8, 32>}, {pipeline_mode = #tpu.pipeline_mode<synchronous>, transform_indices = @transform_5, window_bounds = array<i64: 1, 32>}, {pipeline_mode = #tpu.pipeline_mode<synchronous>, transform_indices = @transform_6, window_bounds = array<i64: 32, 8>}, {pipeline_mode = #tpu.pipeline_mode<synchronous>, transform_indices = @transform_7, window_bounds = array<i64: 1, 8>}, {pipeline_mode = #tpu.pipeline_mode<synchronous>, transform_indices = @transform_8, window_bounds = array<i64: 1, 8>}, {transform_indices = @transform_9, window_bounds = array<i64: 512, 8>}]} {
    %c0 = arith.constant 0 : index
    %c0_0 = arith.constant 0 : index
    %0 = vector.load %arg1[%c0, %c0_0] : memref<512x4xbf16, #tpu.memory_space<vmem>>, vector<512x4xbf16>
    %1 = arith.extf %0 : vector<512x4xbf16> to vector<512x4xf32>
    %c0_1 = arith.constant 0 : index
    %c0_2 = arith.constant 0 : index
    %2 = vector.load %arg2[%c0_1, %c0_2] : memref<512x4xbf16, #tpu.memory_space<vmem>>, vector<512x4xbf16>
    %3 = arith.extf %2 : vector<512x4xbf16> to vector<512x4xf32>
    %cst = arith.constant dense<0.000000e+00> : vector<512xf32>
    %4 = vector.multi_reduction <add>, %1, %cst [1] : vector<512x4xf32> to vector<512xf32>
    %5 = vector.shape_cast %4 : vector<512xf32> to vector<512x1xf32>
    %cst_3 = arith.constant dense<0.000000e+00> : vector<512xf32>
    %6 = vector.multi_reduction <add>, %3, %cst_3 [1] : vector<512x4xf32> to vector<512xf32>
    %7 = vector.shape_cast %6 : vector<512xf32> to vector<512x1xf32>
    %8 = arith.addf %5, %7 : vector<512x1xf32>
    %cst_4 = arith.constant 1.250000e-01 : f32
    %9 = vector.broadcast %cst_4 : f32 to vector<512x1xf32>
    %10 = arith.mulf %8, %9 : vector<512x1xf32>
    %11 = vector.broadcast %10 : vector<512x1xf32> to vector<512x4xf32>
    %12 = arith.subf %1, %11 : vector<512x4xf32>
    %13 = vector.broadcast %10 : vector<512x1xf32> to vector<512x4xf32>
    %14 = arith.subf %3, %13 : vector<512x4xf32>
    %15 = arith.mulf %12, %12 : vector<512x4xf32>
    %cst_5 = arith.constant dense<0.000000e+00> : vector<512xf32>
    %16 = vector.multi_reduction <add>, %15, %cst_5 [1] : vector<512x4xf32> to vector<512xf32>
    %17 = vector.shape_cast %16 : vector<512xf32> to vector<512x1xf32>
    %18 = arith.mulf %14, %14 : vector<512x4xf32>
    %cst_6 = arith.constant dense<0.000000e+00> : vector<512xf32>
    %19 = vector.multi_reduction <add>, %18, %cst_6 [1] : vector<512x4xf32> to vector<512xf32>
    %20 = vector.shape_cast %19 : vector<512xf32> to vector<512x1xf32>
    %21 = arith.addf %17, %20 : vector<512x1xf32>
    %cst_7 = arith.constant 1.250000e-01 : f32
    %22 = vector.broadcast %cst_7 : f32 to vector<512x1xf32>
    %23 = arith.mulf %21, %22 : vector<512x1xf32>
    %cst_8 = arith.constant 9.99999997E-7 : f32
    %24 = vector.broadcast %cst_8 : f32 to vector<512x1xf32>
    %25 = arith.addf %23, %24 : vector<512x1xf32>
    %26 = math.rsqrt %25 : vector<512x1xf32>
    %c0_9 = arith.constant 0 : index
    %c0_10 = arith.constant 0 : index
    %27 = vector.load %arg3[%c0_9, %c0_10] : memref<1x8xf32, #tpu.memory_space<vmem>>, vector<1x8xf32>
    %c0_11 = arith.constant 0 : index
    %c0_12 = arith.constant 0 : index
    %28 = vector.load %arg4[%c0_11, %c0_12] : memref<1x8xf32, #tpu.memory_space<vmem>>, vector<1x8xf32>
    %29 = tpu.concatenate %12, %14 in 1 : vector<512x4xf32>, vector<512x4xf32> -> vector<512x8xf32>
    %30 = vector.broadcast %26 : vector<512x1xf32> to vector<512x8xf32>
    %31 = arith.mulf %29, %30 : vector<512x8xf32>
    %32 = vector.broadcast %27 : vector<1x8xf32> to vector<512x8xf32>
    %33 = arith.mulf %31, %32 : vector<512x8xf32>
    %34 = vector.broadcast %28 : vector<1x8xf32> to vector<512x8xf32>
    %35 = arith.addf %33, %34 : vector<512x8xf32>
    %36 = arith.truncf %35 : vector<512x8xf32> to vector<512x8xbf16>
    %cst_13 = arith.constant 0.000000e+00 : f32
    %37 = vector.broadcast %cst_13 : f32 to vector<512x8xf32>
    %c0_14 = arith.constant 0 : index
    %c0_15 = arith.constant 0 : index
    %38 = vector.load %arg6[%c0_14, %c0_15] : memref<1x32xf32, #tpu.memory_space<vmem>>, vector<1x32xf32>
    %c0_16 = arith.constant 0 : index
    %c0_17 = arith.constant 0 : index
    %39 = vector.load %arg5[%c0_16, %c0_17] : memref<8x32xbf16, #tpu.memory_space<vmem>>, vector<8x32xbf16>
    %cst_18 = arith.constant dense<0.000000e+00> : vector<512x32xf32>
    %40 = tpu.matmul %36, %39, %cst_18 {dimension_numbers = #tpu.dot_dimension_numbers<[1], [0], [0], [1], [0, 0, 1, 1], [], []>} : vector<512x8xbf16>, vector<8x32xbf16>, vector<512x32xf32> -> vector<512x32xf32>
    %41 = vector.broadcast %38 : vector<1x32xf32> to vector<512x32xf32>
    %42 = arith.addf %40, %41 : vector<512x32xf32>
    %43 = arith.mulf %42, %42 : vector<512x32xf32>
    %cst_19 = arith.constant 0.0356774069 : f32
    %44 = vector.broadcast %cst_19 : f32 to vector<512x32xf32>
    %45 = arith.mulf %44, %43 : vector<512x32xf32>
    %cst_20 = arith.constant 0.797884583 : f32
    %46 = vector.broadcast %cst_20 : f32 to vector<512x32xf32>
    %47 = arith.addf %46, %45 : vector<512x32xf32>
    %48 = arith.mulf %42, %47 : vector<512x32xf32>
    %49 = math.tanh %48 : vector<512x32xf32>
    %cst_21 = arith.constant 5.000000e-01 : f32
    %50 = vector.broadcast %cst_21 : f32 to vector<512x32xf32>
    %51 = arith.mulf %50, %42 : vector<512x32xf32>
    %cst_22 = arith.constant 1.000000e+00 : f32
    %52 = vector.broadcast %cst_22 : f32 to vector<512x32xf32>
    %53 = arith.addf %52, %49 : vector<512x32xf32>
    %54 = arith.mulf %51, %53 : vector<512x32xf32>
    %55 = arith.truncf %54 : vector<512x32xf32> to vector<512x32xbf16>
    %c0_23 = arith.constant 0 : index
    %c0_24 = arith.constant 0 : index
    %56 = vector.load %arg7[%c0_23, %c0_24] : memref<32x8xbf16, #tpu.memory_space<vmem>>, vector<32x8xbf16>
    %cst_25 = arith.constant dense<0.000000e+00> : vector<512x8xf32>
    %57 = tpu.matmul %55, %56, %cst_25 {dimension_numbers = #tpu.dot_dimension_numbers<[1], [0], [0], [1], [0, 0, 1, 1], [], []>} : vector<512x32xbf16>, vector<32x8xbf16>, vector<512x8xf32> -> vector<512x8xf32>
    %58 = arith.addf %37, %57 : vector<512x8xf32>
    %c0_26 = arith.constant 0 : index
    %c0_27 = arith.constant 0 : index
    %59 = vector.load %arg8[%c0_26, %c0_27] : memref<1x8xf32, #tpu.memory_space<vmem>>, vector<1x8xf32>
    %60 = vector.broadcast %59 : vector<1x8xf32> to vector<512x8xf32>
    %61 = arith.addf %58, %60 : vector<512x8xf32>
    %c0_28 = arith.constant 0 : index
    %c0_29 = arith.constant 0 : index
    %62 = vector.load %arg9[%c0_28, %c0_29] : memref<1x8xf32, #tpu.memory_space<vmem>>, vector<1x8xf32>
    %63 = vector.broadcast %62 : vector<1x8xf32> to vector<512x8xf32>
    %64 = arith.mulf %61, %63 : vector<512x8xf32>
    %c0_30 = arith.constant 0 : index
    %c0_31 = arith.constant 0 : index
    %65 = vector.load %arg10[%c0_30, %c0_31] : memref<512x8xf32, #tpu.memory_space<vmem>>, vector<512x8xf32>
    tpu.vector_store %arg10[%c0_30, %c0_31], %64 {strides = array<i32>} : memref<512x8xf32, #tpu.memory_space<vmem>>, vector<512x8xf32>,
    return
  }
  func.func @transform_0(%arg0: i32) -> (i32, i32) {
    %c0_i32 = arith.constant 0 : i32
    %c0_i32_0 = arith.constant 0 : i32
    return %arg0, %c0_i32 : i32, i32
  }
  func.func @transform_1(%arg0: i32) -> (i32, i32) {
    %c0_i32 = arith.constant 0 : i32
    %c0_i32_0 = arith.constant 0 : i32
    return %arg0, %c0_i32 : i32, i32
  }
  func.func @transform_2(%arg0: i32) -> (i32, i32) {
    %c0_i32 = arith.constant 0 : i32
    %c0_i32_0 = arith.constant 0 : i32
    %c0_i32_1 = arith.constant 0 : i32
    return %c0_i32, %c0_i32_0 : i32, i32
  }
  func.func @transform_3(%arg0: i32) -> (i32, i32) {
    %c0_i32 = arith.constant 0 : i32
    %c0_i32_0 = arith.constant 0 : i32
    %c0_i32_1 = arith.constant 0 : i32
    return %c0_i32, %c0_i32_0 : i32, i32
  }
  func.func @transform_4(%arg0: i32) -> (i32, i32) {
    %c0_i32 = arith.constant 0 : i32
    %c0_i32_0 = arith.constant 0 : i32
    %c0_i32_1 = arith.constant 0 : i32
    return %c0_i32, %c0_i32_0 : i32, i32
  }
  func.func @transform_5(%arg0: i32) -> (i32, i32) {
    %c0_i32 = arith.constant 0 : i32
    %c0_i32_0 = arith.constant 0 : i32
    %c0_i32_1 = arith.constant 0 : i32
    return %c0_i32, %c0_i32_0 : i32, i32
  }
  func.func @transform_6(%arg0: i32) -> (i32, i32) {
    %c0_i32 = arith.constant 0 : i32
    %c0_i32_0 = arith.constant 0 : i32
    %c0_i32_1 = arith.constant 0 : i32
    return %c0_i32, %c0_i32_0 : i32, i32
  }
  func.func @transform_7(%arg0: i32) -> (i32, i32) {
    %c0_i32 = arith.constant 0 : i32
    %c0_i32_0 = arith.constant 0 : i32
    %c0_i32_1 = arith.constant 0 : i32
    return %c0_i32, %c0_i32_0 : i32, i32
  }
  func.func @transform_8(%arg0: i32) -> (i32, i32) {
    %c0_i32 = arith.constant 0 : i32
    %c0_i32_0 = arith.constant 0 : i32
    %c0_i32_1 = arith.constant 0 : i32
    return %c0_i32, %c0_i32_0 : i32, i32
  }
  func.func @transform_9(%arg0: i32) -> (i32, i32) {
    %c0_i32 = arith.constant 0 : i32
    %c0_i32_0 = arith.constant 0 : i32
    return %arg0, %c0_i32 : i32, i32
  }
}

</mosaic_0001>

<llo_original>
// kernel: convnext_gc_block.3
$region0: #{convnext_gc_block.3}
  #allocation0 [shape = 'u32[]', space=smem, size = 0x4, offset = 0x4, fixed_abs, tag = 'smem constant byte address 0x4 - core index']
  #allocation1 [shape = 'u32[144,128]{1,0:T(1,128)}', space=vmem, size = 0x12000, scoped, tag = 'internal scratch']
  %s0 = inlined_call_operand.vmem [shape: bf16[512,4], index: 0, kind: input, shape index: {}]
  %s1 = inlined_call_operand.vmem [shape: bf16[512,4], index: 1, kind: input, shape index: {}]
  %s2 = inlined_call_operand.vmem [shape: f32[1,8], index: 2, kind: input, shape index: {}]
  %s3 = inlined_call_operand.vmem [shape: f32[1,8], index: 3, kind: input, shape index: {}]
  %s4 = inlined_call_operand.vmem [shape: bf16[8,32], index: 4, kind: input, shape index: {}]
  %s5 = inlined_call_operand.vmem [shape: f32[1,32], index: 5, kind: input, shape index: {}]
  %s6 = inlined_call_operand.vmem [shape: bf16[32,8], index: 6, kind: input, shape index: {}]
  %s7 = inlined_call_operand.vmem [shape: f32[1,8], index: 7, kind: input, shape index: {}]
  %s8 = inlined_call_operand.vmem [shape: f32[1,8], index: 8, kind: input, shape index: {}]
  %s9 = inlined_call_operand.vmem [shape: f32[512,8], index: 9, kind: output, shape index: {}]
  %s10 = sld [smem:[#allocation0]]
  $region46: #{convnext_gc_block.3} parent=0
    _
  %s12 = ssub.s32 1, %s10
  %s13 = scalar_select 0, %s12, %s10
  // Predicated region
  $region2: #{convnext_gc_block.3} parent=0 // pred_check
    _
  $region3: #{convnext_gc_block.3} parent=0 // pred_check_branch
    %15 = sbr.rel (0) target = $region5
  $region4: #{convnext_gc_block.3} parent=0 // pred_region
    _
  $region5: #{convnext_gc_block.3} parent=0 // pred_fallthru
    _
  // Predicated region
  $region6: #{convnext_gc_block.3} parent=0 // pred_check
    _
  $region7: #{convnext_gc_block.3} parent=0 // pred_check_branch
    %17 = sbr.rel (0) target = $region9
  $region8: #{convnext_gc_block.3} parent=0 // pred_region
    _
  $region9: #{convnext_gc_block.3} parent=0 // pred_fallthru
    _
  // Predicated region
  $region10: #{convnext_gc_block.3} parent=0 // pred_check
    _
  $region11: #{convnext_gc_block.3} parent=0 // pred_check_branch
    %19 = sbr.rel (0) target = $region13
  $region12: #{convnext_gc_block.3} parent=0 // pred_region
    _
  $region13: #{convnext_gc_block.3} parent=0 // pred_fallthru
    _
  // Predicated region
  $region14: #{convnext_gc_block.3} parent=0 // pred_check
    _
  $region15: #{convnext_gc_block.3} parent=0 // pred_check_branch
    %21 = sbr.rel (0) target = $region17
  $region16: #{convnext_gc_block.3} parent=0 // pred_region
    _
  $region17: #{convnext_gc_block.3} parent=0 // pred_fallthru
    _
  // Predicated region
  $region18: #{convnext_gc_block.3} parent=0 // pred_check
    _
  $region19: #{convnext_gc_block.3} parent=0 // pred_check_branch
    %23 = sbr.rel (0) target = $region21
  $region20: #{convnext_gc_block.3} parent=0 // pred_region
    _
  $region21: #{convnext_gc_block.3} parent=0 // pred_fallthru
    _
  // Predicated region
  $region22: #{convnext_gc_block.3} parent=0 // pred_check
    _
  $region23: #{convnext_gc_block.3} parent=0 // pred_check_branch
    %25 = sbr.rel (0) target = $region25
  $region24: #{convnext_gc_block.3} parent=0 // pred_region
    _
  $region25: #{convnext_gc_block.3} parent=0 // pred_fallthru
    _
  // Predicated region
  $region26: #{convnext_gc_block.3} parent=0 // pred_check
    _
  $region27: #{convnext_gc_block.3} parent=0 // pred_check_branch
    %27 = sbr.rel (0) target = $region29
  $region28: #{convnext_gc_block.3} parent=0 // pred_region
    _
  $region29: #{convnext_gc_block.3} parent=0 // pred_fallthru
    _
  // Predicated region
  $region30: #{convnext_gc_block.3} parent=0 // pred_check
    _
  $region31: #{convnext_gc_block.3} parent=0 // pred_check_branch
    %29 = sbr.rel (0) target = $region33
  $region32: #{convnext_gc_block.3} parent=0 // pred_region
    _
  $region33: #{convnext_gc_block.3} parent=0 // pred_fallthru
    _
  // Predicated region
  $region34: #{convnext_gc_block.3} parent=0 // pred_check
    _
  $region35: #{convnext_gc_block.3} parent=0 // pred_check_branch
    %31 = sbr.rel (0) target = $region37
  $region36: #{convnext_gc_block.3} parent=0 // pred_region
    _
  $region37: #{convnext_gc_block.3} parent=0 // pred_fallthru
    _
  %v33 = vld [vmem:[%s0] sm:$0xf]
  %v34 = vld [vmem:[%s0 + $0x4] sm:$0xf]
  %v35 = vld [vmem:[%s0 + $0x8] sm:$0xf]
  %v36 = vld [vmem:[%s0 + $0xc] sm:$0xf]
  %v37 = vld [vmem:[%s0 + $0x10] sm:$0xf]
  %v38 = vld [vmem:[%s0 + $0x14] sm:$0xf]
  %v39 = vld [vmem:[%s0 + $0x18] sm:$0xf]
  %v40 = vld [vmem:[%s0 + $0x1c] sm:$0xf]
  %v41 = vld [vmem:[%s0 + $0x20] sm:$0xf]
  %v42 = vld [vmem:[%s0 + $0x24] sm:$0xf]
  %v43 = vld [vmem:[%s0 + $0x28] sm:$0xf]
  %v44 = vld [vmem:[%s0 + $0x2c] sm:$0xf]
  %v45 = vld [vmem:[%s0 + $0x30] sm:$0xf]
  %v46 = vld [vmem:[%s0 + $0x34] sm:$0xf]
  %v47 = vld [vmem:[%s0 + $0x38] sm:$0xf]
  %v48 = vld [vmem:[%s0 + $0x3c] sm:$0xf]
  %v49 = vld [vmem:[%s0 + $0x40] sm:$0xf]
  %v50 = vld [vmem:[%s0 + $0x44] sm:$0xf]
  %v51 = vld [vmem:[%s0 + $0x48] sm:$0xf]
  %v52 = vld [vmem:[%s0 + $0x4c] sm:$0xf]
  %v53 = vld [vmem:[%s0 + $0x50] sm:$0xf]
  %v54 = vld [vmem:[%s0 + $0x54] sm:$0xf]
  %v55 = vld [vmem:[%s0 + $0x58] sm:$0xf]
  %v56 = vld [vmem:[%s0 + $0x5c] sm:$0xf]
  %v57 = vld [vmem:[%s0 + $0x60] sm:$0xf]
  %v58 = vld [vmem:[%s0 + $0x64] sm:$0xf]
  %v59 = vld [vmem:[%s0 + $0x68] sm:$0xf]
  %v60 = vld [vmem:[%s0 + $0x6c] sm:$0xf]
  %v61 = vld [vmem:[%s0 + $0x70] sm:$0xf]
  %v62 = vld [vmem:[%s0 + $0x74] sm:$0xf]
  %v63 = vld [vmem:[%s0 + $0x78] sm:$0xf]
  %v64 = vld [vmem:[%s0 + $0x7c] sm:$0xf]
  %v65 = vld [vmem:[%s0 + $0x80] sm:$0xf]
  %v66 = vld [vmem:[%s0 + $0x84] sm:$0xf]
  %v67 = vld [vmem:[%s0 + $0x88] sm:$0xf]
  %v68 = vld [vmem:[%s0 + $0x8c] sm:$0xf]
  %v69 = vld [vmem:[%s0 + $0x90] sm:$0xf]
  %v70 = vld [vmem:[%s0 + $0x94] sm:$0xf]
  %v71 = vld [vmem:[%s0 + $0x98] sm:$0xf]
  %v72 = vld [vmem:[%s0 + $0x9c] sm:$0xf]
  %v73 = vld [vmem:[%s0 + $0xa0] sm:$0xf]
  %v74 = vld [vmem:[%s0 + $0xa4] sm:$0xf]
  %v75 = vld [vmem:[%s0 + $0xa8] sm:$0xf]
  %v76 = vld [vmem:[%s0 + $0xac] sm:$0xf]
  %v77 = vld [vmem:[%s0 + $0xb0] sm:$0xf]
  %v78 = vld [vmem:[%s0 + $0xb4] sm:$0xf]
  %v79 = vld [vmem:[%s0 + $0xb8] sm:$0xf]
  %v80 = vld [vmem:[%s0 + $0xbc] sm:$0xf]
  %v81 = vld [vmem:[%s0 + $0xc0] sm:$0xf]
  %v82 = vld [vmem:[%s0 + $0xc4] sm:$0xf]
  %v83 = vld [vmem:[%s0 + $0xc8] sm:$0xf]
  %v84 = vld [vmem:[%s0 + $0xcc] sm:$0xf]
  %v85 = vld [vmem:[%s0 + $0xd0] sm:$0xf]
  %v86 = vld [vmem:[%s0 + $0xd4] sm:$0xf]
  %v87 = vld [vmem:[%s0 + $0xd8] sm:$0xf]
  %v88 = vld [vmem:[%s0 + $0xdc] sm:$0xf]
  %v89 = vld [vmem:[%s0 + $0xe0] sm:$0xf]
  %v90 = vld [vmem:[%s0 + $0xe4] sm:$0xf]
  %v91 = vld [vmem:[%s0 + $0xe8] sm:$0xf]
  %v92 = vld [vmem:[%s0 + $0xec] sm:$0xf]
  %v93 = vld [vmem:[%s0 + $0xf0] sm:$0xf]
  %v94 = vld [vmem:[%s0 + $0xf4] sm:$0xf]
  %v95 = vld [vmem:[%s0 + $0xf8] sm:$0xf]
  %v96 = vld [vmem:[%s0 + $0xfc] sm:$0xf]
  %v97 = vunpack.c.l.bf16 %v33
  %v98 = vunpack.c.l.bf16 %v34
  %v99 = vunpack.c.l.bf16 %v35
  %v100 = vunpack.c.l.bf16 %v36
  %v101 = vunpack.c.l.bf16 %v37
  %v102 = vunpack.c.l.bf16 %v38
  %v103 = vunpack.c.l.bf16 %v39
  %v104 = vunpack.c.l.bf16 %v40
  %v105 = vunpack.c.l.bf16 %v41
  %v106 = vunpack.c.l.bf16 %v42
  %v107 = vunpack.c.l.bf16 %v43
  %v108 = vunpack.c.l.bf16 %v44
  %v109 = vunpack.c.l.bf16 %v45
  %v110 = vunpack.c.l.bf16 %v46
  %v111 = vunpack.c.l.bf16 %v47
  %v112 = vunpack.c.l.bf16 %v48
  %v113 = vunpack.c.l.bf16 %v49
  %v114 = vunpack.c.l.bf16 %v50
  %v115 = vunpack.c.l.bf16 %v51
  %v116 = vunpack.c.l.bf16 %v52
  %v117 = vunpack.c.l.bf16 %v53
  %v118 = vunpack.c.l.bf16 %v54
  %v119 = vunpack.c.l.bf16 %v55
  %v120 = vunpack.c.l.bf16 %v56
  %v121 = vunpack.c.l.bf16 %v57
  %v122 = vunpack.c.l.bf16 %v58
  %v123 = vunpack.c.l.bf16 %v59
  %v124 = vunpack.c.l.bf16 %v60
  %v125 = vunpack.c.l.bf16 %v61
  %v126 = vunpack.c.l.bf16 %v62
  %v127 = vunpack.c.l.bf16 %v63
  %v128 = vunpack.c.l.bf16 %v64
  %v129 = vunpack.c.l.bf16 %v65
  %v130 = vunpack.c.l.bf16 %v66
  %v131 = vunpack.c.l.bf16 %v67
  %v132 = vunpack.c.l.bf16 %v68
  %v133 = vunpack.c.l.bf16 %v69
  %v134 = vunpack.c.l.bf16 %v70
  %v135 = vunpack.c.l.bf16 %v71
  %v136 = vunpack.c.l.bf16 %v72
  %v137 = vunpack.c.l.bf16 %v73
  %v138 = vunpack.c.l.bf16 %v74
  %v139 = vunpack.c.l.bf16 %v75
  %v140 = vunpack.c.l.bf16 %v76
  %v141 = vunpack.c.l.bf16 %v77
  %v142 = vunpack.c.l.bf16 %v78
  %v143 = vunpack.c.l.bf16 %v79
  %v144 = vunpack.c.l.bf16 %v80
  %v145 = vunpack.c.l.bf16 %v81
  %v146 = vunpack.c.l.bf16 %v82
  %v147 = vunpack.c.l.bf16 %v83
  %v148 = vunpack.c.l.bf16 %v84
  %v149 = vunpack.c.l.bf16 %v85
  %v150 = vunpack.c.l.bf16 %v86
  %v151 = vunpack.c.l.bf16 %v87
  %v152 = vunpack.c.l.bf16 %v88
  %v153 = vunpack.c.l.bf16 %v89
  %v154 = vunpack.c.l.bf16 %v90
  %v155 = vunpack.c.l.bf16 %v91
  %v156 = vunpack.c.l.bf16 %v92
  %v157 = vunpack.c.l.bf16 %v93
  %v158 = vunpack.c.l.bf16 %v94
  %v159 = vunpack.c.l.bf16 %v95
  %v160 = vunpack.c.l.bf16 %v96
  %v161 = vld [vmem:[%s1] sm:$0xf]
  %v162 = vld [vmem:[%s1 + $0x4] sm:$0xf]
  %v163 = vld [vmem:[%s1 + $0x8] sm:$0xf]
  %v164 = vld [vmem:[%s1 + $0xc] sm:$0xf]
  %v165 = vld [vmem:[%s1 + $0x10] sm:$0xf]
  %v166 = vld [vmem:[%s1 + $0x14] sm:$0xf]
  %v167 = vld [vmem:[%s1 + $0x18] sm:$0xf]
  %v168 = vld [vmem:[%s1 + $0x1c] sm:$0xf]
  %v169 = vld [vmem:[%s1 + $0x20] sm:$0xf]
  %v170 = vld [vmem:[%s1 + $0x24] sm:$0xf]
  %v171 = vld [vmem:[%s1 + $0x28] sm:$0xf]
  %v172 = vld [vmem:[%s1 + $0x2c] sm:$0xf]
  %v173 = vld [vmem:[%s1 + $0x30] sm:$0xf]
  %v174 = vld [vmem:[%s1 + $0x34] sm:$0xf]
  %v175 = vld [vmem:[%s1 + $0x38] sm:$0xf]
  %v176 = vld [vmem:[%s1 + $0x3c] sm:$0xf]
  %v177 = vld [vmem:[%s1 + $0x40] sm:$0xf]
  %v178 = vld [vmem:[%s1 + $0x44] sm:$0xf]
  %v179 = vld [vmem:[%s1 + $0x48] sm:$0xf]
  %v180 = vld [vmem:[%s1 + $0x4c] sm:$0xf]
  %v181 = vld [vmem:[%s1 + $0x50] sm:$0xf]
  %v182 = vld [vmem:[%s1 + $0x54] sm:$0xf]
  %v183 = vld [vmem:[%s1 + $0x58] sm:$0xf]
  %v184 = vld [vmem:[%s1 + $0x5c] sm:$0xf]
  %v185 = vld [vmem:[%s1 + $0x60] sm:$0xf]
  %v186 = vld [vmem:[%s1 + $0x64] sm:$0xf]
  %v187 = vld [vmem:[%s1 + $0x68] sm:$0xf]
  %v188 = vld [vmem:[%s1 + $0x6c] sm:$0xf]
  %v189 = vld [vmem:[%s1 + $0x70] sm:$0xf]
  %v190 = vld [vmem:[%s1 + $0x74] sm:$0xf]
  %v191 = vld [vmem:[%s1 + $0x78] sm:$0xf]
  %v192 = vld [vmem:[%s1 + $0x7c] sm:$0xf]
  %v193 = vld [vmem:[%s1 + $0x80] sm:$0xf]
  %v194 = vld [vmem:[%s1 + $0x84] sm:$0xf]
  %v195 = vld [vmem:[%s1 + $0x88] sm:$0xf]
  %v196 = vld [vmem:[%s1 + $0x8c] sm:$0xf]
  %v197 = vld [vmem:[%s1 + $0x90] sm:$0xf]
  %v198 = vld [vmem:[%s1 + $0x94] sm:$0xf]
  %v199 = vld [vmem:[%s1 + $0x98] sm:$0xf]
  %v200 = vld [vmem:[%s1 + $0x9c] sm:$0xf]
  %v201 = vld [vmem:[%s1 + $0xa0] sm:$0xf]
  %v202 = vld [vmem:[%s1 + $0xa4] sm:$0xf]
  %v203 = vld [vmem:[%s1 + $0xa8] sm:$0xf]
  %v204 = vld [vmem:[%s1 + $0xac] sm:$0xf]
  %v205 = vld [vmem:[%s1 + $0xb0] sm:$0xf]
  %v206 = vld [vmem:[%s1 + $0xb4] sm:$0xf]
  %v207 = vld [vmem:[%s1 + $0xb8] sm:$0xf]
  %v208 = vld [vmem:[%s1 + $0xbc] sm:$0xf]
  %v209 = vld [vmem:[%s1 + $0xc0] sm:$0xf]
  %v210 = vld [vmem:[%s1 + $0xc4] sm:$0xf]
  %v211 = vld [vmem:[%s1 + $0xc8] sm:$0xf]
  %v212 = vld [vmem:[%s1 + $0xcc] sm:$0xf]
  %v213 = vld [vmem:[%s1 + $0xd0] sm:$0xf]
  %v214 = vld [vmem:[%s1 + $0xd4] sm:$0xf]
  %v215 = vld [vmem:[%s1 + $0xd8] sm:$0xf]
  %v216 = vld [vmem:[%s1 + $0xdc] sm:$0xf]
  %v217 = vld [vmem:[%s1 + $0xe0] sm:$0xf]
  %v218 = vld [vmem:[%s1 + $0xe4] sm:$0xf]
  %v219 = vld [vmem:[%s1 + $0xe8] sm:$0xf]
  %v220 = vld [vmem:[%s1 + $0xec] sm:$0xf]
  %v221 = vld [vmem:[%s1 + $0xf0] sm:$0xf]
  %v222 = vld [vmem:[%s1 + $0xf4] sm:$0xf]
  %v223 = vld [vmem:[%s1 + $0xf8] sm:$0xf]
  %v224 = vld [vmem:[%s1 + $0xfc] sm:$0xf]
  %v225 = vunpack.c.l.bf16 %v161
  %v226 = vunpack.c.l.bf16 %v162
  %v227 = vunpack.c.l.bf16 %v163
  %v228 = vunpack.c.l.bf16 %v164
  %v229 = vunpack.c.l.bf16 %v165
  %v230 = vunpack.c.l.bf16 %v166
  %v231 = vunpack.c.l.bf16 %v167
  %v232 = vunpack.c.l.bf16 %v168
  %v233 = vunpack.c.l.bf16 %v169
  %v234 = vunpack.c.l.bf16 %v170
  %v235 = vunpack.c.l.bf16 %v171
  %v236 = vunpack.c.l.bf16 %v172
  %v237 = vunpack.c.l.bf16 %v173
  %v238 = vunpack.c.l.bf16 %v174
  %v239 = vunpack.c.l.bf16 %v175
  %v240 = vunpack.c.l.bf16 %v176
  %v241 = vunpack.c.l.bf16 %v177
  %v242 = vunpack.c.l.bf16 %v178
  %v243 = vunpack.c.l.bf16 %v179
  %v244 = vunpack.c.l.bf16 %v180
  %v245 = vunpack.c.l.bf16 %v181
  %v246 = vunpack.c.l.bf16 %v182
  %v247 = vunpack.c.l.bf16 %v183
  %v248 = vunpack.c.l.bf16 %v184
  %v249 = vunpack.c.l.bf16 %v185
  %v250 = vunpack.c.l.bf16 %v186
  %v251 = vunpack.c.l.bf16 %v187
  %v252 = vunpack.c.l.bf16 %v188
  %v253 = vunpack.c.l.bf16 %v189
  %v254 = vunpack.c.l.bf16 %v190
  %v255 = vunpack.c.l.bf16 %v191
  %v256 = vunpack.c.l.bf16 %v192
  %v257 = vunpack.c.l.bf16 %v193
  %v258 = vunpack.c.l.bf16 %v194
  %v259 = vunpack.c.l.bf16 %v195
  %v260 = vunpack.c.l.bf16 %v196
  %v261 = vunpack.c.l.bf16 %v197
  %v262 = vunpack.c.l.bf16 %v198
  %v263 = vunpack.c.l.bf16 %v199
  %v264 = vunpack.c.l.bf16 %v200
  %v265 = vunpack.c.l.bf16 %v201
  %v266 = vunpack.c.l.bf16 %v202
  %v267 = vunpack.c.l.bf16 %v203
  %v268 = vunpack.c.l.bf16 %v204
  %v269 = vunpack.c.l.bf16 %v205
  %v270 = vunpack.c.l.bf16 %v206
  %v271 = vunpack.c.l.bf16 %v207
  %v272 = vunpack.c.l.bf16 %v208
  %v273 = vunpack.c.l.bf16 %v209
  %v274 = vunpack.c.l.bf16 %v210
  %v275 = vunpack.c.l.bf16 %v211
  %v276 = vunpack.c.l.bf16 %v212
  %v277 = vunpack.c.l.bf16 %v213
  %v278 = vunpack.c.l.bf16 %v214
  %v279 = vunpack.c.l.bf16 %v215
  %v280 = vunpack.c.l.bf16 %v216
  %v281 = vunpack.c.l.bf16 %v217
  %v282 = vunpack.c.l.bf16 %v218
  %v283 = vunpack.c.l.bf16 %v219
  %v284 = vunpack.c.l.bf16 %v220
  %v285 = vunpack.c.l.bf16 %v221
  %v286 = vunpack.c.l.bf16 %v222
  %v287 = vunpack.c.l.bf16 %v223
  %v288 = vunpack.c.l.bf16 %v224
  %vm289 = vcmask 31744
  %v290 = vsel %vm289, %v97, 0.0
  %291 = vadd.xlane.f32.xlu0 %v290
  %v292 = vpop.xlane.xlu0 %291
  %v293 = vsel %vm289, %v98, 0.0
  %294 = vadd.xlane.f32.xlu0 %v293
  %v295 = vpop.xlane.xlu0 %294
  %v296 = vsel %vm289, %v99, 0.0
  %297 = vadd.xlane.f32.xlu0 %v296
  %v298 = vpop.xlane.xlu0 %297
  %v299 = vsel %vm289, %v100, 0.0
  %300 = vadd.xlane.f32.xlu0 %v299
  %v301 = vpop.xlane.xlu0 %300
  %v302 = vsel %vm289, %v101, 0.0
  %303 = vadd.xlane.f32.xlu0 %v302
  %v304 = vpop.xlane.xlu0 %303
  %v305 = vsel %vm289, %v102, 0.0
  %306 = vadd.xlane.f32.xlu0 %v305
  %v307 = vpop.xlane.xlu0 %306
  %v308 = vsel %vm289, %v103, 0.0
  %309 = vadd.xlane.f32.xlu0 %v308
  %v310 = vpop.xlane.xlu0 %309
  %v311 = vsel %vm289, %v104, 0.0
  %312 = vadd.xlane.f32.xlu0 %v311
  %v313 = vpop.xlane.xlu0 %312
  %v314 = vsel %vm289, %v105, 0.0
  %315 = vadd.xlane.f32.xlu0 %v314
  %v316 = vpop.xlane.xlu0 %315
  %v317 = vsel %vm289, %v106, 0.0
  %318 = vadd.xlane.f32.xlu0 %v317
  %v319 = vpop.xlane.xlu0 %318
  %v320 = vsel %vm289, %v107, 0.0
  %321 = vadd.xlane.f32.xlu0 %v320
  %v322 = vpop.xlane.xlu0 %321
  %v323 = vsel %vm289, %v108, 0.0
  %324 = vadd.xlane.f32.xlu0 %v323
  %v325 = vpop.xlane.xlu0 %324
  %v326 = vsel %vm289, %v109, 0.0
  %327 = vadd.xlane.f32.xlu0 %v326
  %v328 = vpop.xlane.xlu0 %327
  %v329 = vsel %vm289, %v110, 0.0
  %330 = vadd.xlane.f32.xlu0 %v329
  %v331 = vpop.xlane.xlu0 %330
  %v332 = vsel %vm289, %v111, 0.0
  %333 = vadd.xlane.f32.xlu0 %v332
  %v334 = vpop.xlane.xlu0 %333
  %v335 = vsel %vm289, %v112, 0.0
  %336 = vadd.xlane.f32.xlu0 %v335
  %v337 = vpop.xlane.xlu0 %336
  %v338 = vsel %vm289, %v113, 0.0
  %339 = vadd.xlane.f32.xlu0 %v338
  %v340 = vpop.xlane.xlu0 %339
  %v341 = vsel %vm289, %v114, 0.0
  %342 = vadd.xlane.f32.xlu0 %v341
  %v343 = vpop.xlane.xlu0 %342
  %v344 = vsel %vm289, %v115, 0.0
  %345 = vadd.xlane.f32.xlu0 %v344
  %v346 = vpop.xlane.xlu0 %345
  %v347 = vsel %vm289, %v116, 0.0
  %348 = vadd.xlane.f32.xlu0 %v347
  %v349 = vpop.xlane.xlu0 %348
  %v350 = vsel %vm289, %v117, 0.0
  %351 = vadd.xlane.f32.xlu0 %v350
  %v352 = vpop.xlane.xlu0 %351
  %v353 = vsel %vm289, %v118, 0.0
  %354 = vadd.xlane.f32.xlu0 %v353
  %v355 = vpop.xlane.xlu0 %354
  %v356 = vsel %vm289, %v119, 0.0
  %357 = vadd.xlane.f32.xlu0 %v356
  %v358 = vpop.xlane.xlu0 %357
  %v359 = vsel %vm289, %v120, 0.0
  %360 = vadd.xlane.f32.xlu0 %v359
  %v361 = vpop.xlane.xlu0 %360
  %v362 = vsel %vm289, %v121, 0.0
  %363 = vadd.xlane.f32.xlu0 %v362
  %v364 = vpop.xlane.xlu0 %363
  %v365 = vsel %vm289, %v122, 0.0
  %366 = vadd.xlane.f32.xlu0 %v365
  %v367 = vpop.xlane.xlu0 %366
  %v368 = vsel %vm289, %v123, 0.0
  %369 = vadd.xlane.f32.xlu0 %v368
  %v370 = vpop.xlane.xlu0 %369
  %v371 = vsel %vm289, %v124, 0.0
  %372 = vadd.xlane.f32.xlu0 %v371
  %v373 = vpop.xlane.xlu0 %372
  %v374 = vsel %vm289, %v125, 0.0
  %375 = vadd.xlane.f32.xlu0 %v374
  %v376 = vpop.xlane.xlu0 %375
  %v377 = vsel %vm289, %v126, 0.0
  %378 = vadd.xlane.f32.xlu0 %v377
  %v379 = vpop.xlane.xlu0 %378
  %v380 = vsel %vm289, %v127, 0.0
  %381 = vadd.xlane.f32.xlu0 %v380
  %v382 = vpop.xlane.xlu0 %381
  %v383 = vsel %vm289, %v128, 0.0
  %384 = vadd.xlane.f32.xlu0 %v383
  %v385 = vpop.xlane.xlu0 %384
  %v386 = vsel %vm289, %v129, 0.0
  %387 = vadd.xlane.f32.xlu0 %v386
  %v388 = vpop.xlane.xlu0 %387
  %v389 = vsel %vm289, %v130, 0.0
  %390 = vadd.xlane.f32.xlu0 %v389
  %v391 = vpop.xlane.xlu0 %390
  %v392 = vsel %vm289, %v131, 0.0
  %393 = vadd.xlane.f32.xlu0 %v392
  %v394 = vpop.xlane.xlu0 %393
  %v395 = vsel %vm289, %v132, 0.0
  %396 = vadd.xlane.f32.xlu0 %v395
  %v397 = vpop.xlane.xlu0 %396
  %v398 = vsel %vm289, %v133, 0.0
  %399 = vadd.xlane.f32.xlu0 %v398
  %v400 = vpop.xlane.xlu0 %399
  %v401 = vsel %vm289, %v134, 0.0
  %402 = vadd.xlane.f32.xlu0 %v401
  %v403 = vpop.xlane.xlu0 %402
  %v404 = vsel %vm289, %v135, 0.0
  %405 = vadd.xlane.f32.xlu0 %v404
  %v406 = vpop.xlane.xlu0 %405
  %v407 = vsel %vm289, %v136, 0.0
  %408 = vadd.xlane.f32.xlu0 %v407
  %v409 = vpop.xlane.xlu0 %408
  %v410 = vsel %vm289, %v137, 0.0
  %411 = vadd.xlane.f32.xlu0 %v410
  %v412 = vpop.xlane.xlu0 %411
  %v413 = vsel %vm289, %v138, 0.0
  %414 = vadd.xlane.f32.xlu0 %v413
  %v415 = vpop.xlane.xlu0 %414
  %v416 = vsel %vm289, %v139, 0.0
  %417 = vadd.xlane.f32.xlu0 %v416
  %v418 = vpop.xlane.xlu0 %417
  %v419 = vsel %vm289, %v140, 0.0
  %420 = vadd.xlane.f32.xlu0 %v419
  %v421 = vpop.xlane.xlu0 %420
  %v422 = vsel %vm289, %v141, 0.0
  %423 = vadd.xlane.f32.xlu0 %v422
  %v424 = vpop.xlane.xlu0 %423
  %v425 = vsel %vm289, %v142, 0.0
  %426 = vadd.xlane.f32.xlu0 %v425
  %v427 = vpop.xlane.xlu0 %426
  %v428 = vsel %vm289, %v143, 0.0
  %429 = vadd.xlane.f32.xlu0 %v428
  %v430 = vpop.xlane.xlu0 %429
  %v431 = vsel %vm289, %v144, 0.0
  %432 = vadd.xlane.f32.xlu0 %v431
  %v433 = vpop.xlane.xlu0 %432
  %v434 = vsel %vm289, %v145, 0.0
  %435 = vadd.xlane.f32.xlu0 %v434
  %v436 = vpop.xlane.xlu0 %435
  %v437 = vsel %vm289, %v146, 0.0
  %438 = vadd.xlane.f32.xlu0 %v437
  %v439 = vpop.xlane.xlu0 %438
  %v440 = vsel %vm289, %v147, 0.0
  %441 = vadd.xlane.f32.xlu0 %v440
  %v442 = vpop.xlane.xlu0 %441
  %v443 = vsel %vm289, %v148, 0.0
  %444 = vadd.xlane.f32.xlu0 %v443
  %v445 = vpop.xlane.xlu0 %444
  %v446 = vsel %vm289, %v149, 0.0
  %447 = vadd.xlane.f32.xlu0 %v446
  %v448 = vpop.xlane.xlu0 %447
  %v449 = vsel %vm289, %v150, 0.0
  %450 = vadd.xlane.f32.xlu0 %v449
  %v451 = vpop.xlane.xlu0 %450
  %v452 = vsel %vm289, %v151, 0.0
  %453 = vadd.xlane.f32.xlu0 %v452
  %v454 = vpop.xlane.xlu0 %453
  %v455 = vsel %vm289, %v152, 0.0
  %456 = vadd.xlane.f32.xlu0 %v455
  %v457 = vpop.xlane.xlu0 %456
  %v458 = vsel %vm289, %v153, 0.0
  %459 = vadd.xlane.f32.xlu0 %v458
  %v460 = vpop.xlane.xlu0 %459
  %v461 = vsel %vm289, %v154, 0.0
  %462 = vadd.xlane.f32.xlu0 %v461
  %v463 = vpop.xlane.xlu0 %462
  %v464 = vsel %vm289, %v155, 0.0
  %465 = vadd.xlane.f32.xlu0 %v464
  %v466 = vpop.xlane.xlu0 %465
  %v467 = vsel %vm289, %v156, 0.0
  %468 = vadd.xlane.f32.xlu0 %v467
  %v469 = vpop.xlane.xlu0 %468
  %v470 = vsel %vm289, %v157, 0.0
  %471 = vadd.xlane.f32.xlu0 %v470
  %v472 = vpop.xlane.xlu0 %471
  %v473 = vsel %vm289, %v158, 0.0
  %474 = vadd.xlane.f32.xlu0 %v473
  %v475 = vpop.xlane.xlu0 %474
  %v476 = vsel %vm289, %v159, 0.0
  %477 = vadd.xlane.f32.xlu0 %v476
  %v478 = vpop.xlane.xlu0 %477
  %v479 = vsel %vm289, %v160, 0.0
  %480 = vadd.xlane.f32.xlu0 %v479
  %v481 = vpop.xlane.xlu0 %480
  %v482 = vsel %vm289, %v225, 0.0
  %483 = vadd.xlane.f32.xlu0 %v482
  %v484 = vpop.xlane.xlu0 %483
  %v485 = vsel %vm289, %v226, 0.0
  %486 = vadd.xlane.f32.xlu0 %v485
  %v487 = vpop.xlane.xlu0 %486
  %v488 = vsel %vm289, %v227, 0.0
  %489 = vadd.xlane.f32.xlu0 %v488
  %v490 = vpop.xlane.xlu0 %489
  %v491 = vsel %vm289, %v228, 0.0
  %492 = vadd.xlane.f32.xlu0 %v491
  %v493 = vpop.xlane.xlu0 %492
  %v494 = vsel %vm289, %v229, 0.0
  %495 = vadd.xlane.f32.xlu0 %v494
  %v496 = vpop.xlane.xlu0 %495
  %v497 = vsel %vm289, %v230, 0.0
  %498 = vadd.xlane.f32.xlu0 %v497
  %v499 = vpop.xlane.xlu0 %498
  %v500 = vsel %vm289, %v231, 0.0
  %501 = vadd.xlane.f32.xlu0 %v500
  %v502 = vpop.xlane.xlu0 %501
  %v503 = vsel %vm289, %v232, 0.0
  %504 = vadd.xlane.f32.xlu0 %v503
  %v505 = vpop.xlane.xlu0 %504
  %v506 = vsel %vm289, %v233, 0.0
  %507 = vadd.xlane.f32.xlu0 %v506
  %v508 = vpop.xlane.xlu0 %507
  %v509 = vsel %vm289, %v234, 0.0
  %510 = vadd.xlane.f32.xlu0 %v509
  %v511 = vpop.xlane.xlu0 %510
  %v512 = vsel %vm289, %v235, 0.0
  %513 = vadd.xlane.f32.xlu0 %v512
  %v514 = vpop.xlane.xlu0 %513
  %v515 = vsel %vm289, %v236, 0.0
  %516 = vadd.xlane.f32.xlu0 %v515
  %v517 = vpop.xlane.xlu0 %516
  %v518 = vsel %vm289, %v237, 0.0
  %519 = vadd.xlane.f32.xlu0 %v518
  %v520 = vpop.xlane.xlu0 %519
  %v521 = vsel %vm289, %v238, 0.0
  %522 = vadd.xlane.f32.xlu0 %v521
  %v523 = vpop.xlane.xlu0 %522
  %v524 = vsel %vm289, %v239, 0.0
  %525 = vadd.xlane.f32.xlu0 %v524
  %v526 = vpop.xlane.xlu0 %525
  %v527 = vsel %vm289, %v240, 0.0
  %528 = vadd.xlane.f32.xlu0 %v527
  %v529 = vpop.xlane.xlu0 %528
  %v530 = vsel %vm289, %v241, 0.0
  %531 = vadd.xlane.f32.xlu0 %v530
  %v532 = vpop.xlane.xlu0 %531
  %v533 = vsel %vm289, %v242, 0.0
  %534 = vadd.xlane.f32.xlu0 %v533
  %v535 = vpop.xlane.xlu0 %534
  %v536 = vsel %vm289, %v243, 0.0
  %537 = vadd.xlane.f32.xlu0 %v536
  %v538 = vpop.xlane.xlu0 %537
  %v539 = vsel %vm289, %v244, 0.0
  %540 = vadd.xlane.f32.xlu0 %v539
  %v541 = vpop.xlane.xlu0 %540
  %v542 = vsel %vm289, %v245, 0.0
  %543 = vadd.xlane.f32.xlu0 %v542
  %v544 = vpop.xlane.xlu0 %543
  %v545 = vsel %vm289, %v246, 0.0
  %546 = vadd.xlane.f32.xlu0 %v545
  %v547 = vpop.xlane.xlu0 %546
  %v548 = vsel %vm289, %v247, 0.0
  %549 = vadd.xlane.f32.xlu0 %v548
  %v550 = vpop.xlane.xlu0 %549
  %v551 = vsel %vm289, %v248, 0.0
  %552 = vadd.xlane.f32.xlu0 %v551
  %v553 = vpop.xlane.xlu0 %552
  %v554 = vsel %vm289, %v249, 0.0
  %555 = vadd.xlane.f32.xlu0 %v554
  %v556 = vpop.xlane.xlu0 %555
  %v557 = vsel %vm289, %v250, 0.0
  %558 = vadd.xlane.f32.xlu0 %v557
  %v559 = vpop.xlane.xlu0 %558
  %v560 = vsel %vm289, %v251, 0.0
  %561 = vadd.xlane.f32.xlu0 %v560
  %v562 = vpop.xlane.xlu0 %561
  %v563 = vsel %vm289, %v252, 0.0
  %564 = vadd.xlane.f32.xlu0 %v563
  %v565 = vpop.xlane.xlu0 %564
  %v566 = vsel %vm289, %v253, 0.0
  %567 = vadd.xlane.f32.xlu0 %v566
  %v568 = vpop.xlane.xlu0 %567
  %v569 = vsel %vm289, %v254, 0.0
  %570 = vadd.xlane.f32.xlu0 %v569
  %v571 = vpop.xlane.xlu0 %570
  %v572 = vsel %vm289, %v255, 0.0
  %573 = vadd.xlane.f32.xlu0 %v572
  %v574 = vpop.xlane.xlu0 %573
  %v575 = vsel %vm289, %v256, 0.0
  %576 = vadd.xlane.f32.xlu0 %v575
  %v577 = vpop.xlane.xlu0 %576
  %v578 = vsel %vm289, %v257, 0.0
  %579 = vadd.xlane.f32.xlu0 %v578
  %v580 = vpop.xlane.xlu0 %579
  %v581 = vsel %vm289, %v258, 0.0
  %582 = vadd.xlane.f32.xlu0 %v581
  %v583 = vpop.xlane.xlu0 %582
  %v584 = vsel %vm289, %v259, 0.0
  %585 = vadd.xlane.f32.xlu0 %v584
  %v586 = vpop.xlane.xlu0 %585
  %v587 = vsel %vm289, %v260, 0.0
  %588 = vadd.xlane.f32.xlu0 %v587
  %v589 = vpop.xlane.xlu0 %588
  %v590 = vsel %vm289, %v261, 0.0
  %591 = vadd.xlane.f32.xlu0 %v590
  %v592 = vpop.xlane.xlu0 %591
  %v593 = vsel %vm289, %v262, 0.0
  %594 = vadd.xlane.f32.xlu0 %v593
  %v595 = vpop.xlane.xlu0 %594
  %v596 = vsel %vm289, %v263, 0.0
  %597 = vadd.xlane.f32.xlu0 %v596
  %v598 = vpop.xlane.xlu0 %597
  %v599 = vsel %vm289, %v264, 0.0
  %600 = vadd.xlane.f32.xlu0 %v599
  %v601 = vpop.xlane.xlu0 %600
  %v602 = vsel %vm289, %v265, 0.0
  %603 = vadd.xlane.f32.xlu0 %v602
  %v604 = vpop.xlane.xlu0 %603
  %v605 = vsel %vm289, %v266, 0.0
  %606 = vadd.xlane.f32.xlu0 %v605
  %v607 = vpop.xlane.xlu0 %606
  %v608 = vsel %vm289, %v267, 0.0
  %609 = vadd.xlane.f32.xlu0 %v608
  %v610 = vpop.xlane.xlu0 %609
  %v611 = vsel %vm289, %v268, 0.0
  %612 = vadd.xlane.f32.xlu0 %v611
  %v613 = vpop.xlane.xlu0 %612
  %v614 = vsel %vm289, %v269, 0.0
  %615 = vadd.xlane.f32.xlu0 %v614
  %v616 = vpop.xlane.xlu0 %615
  %v617 = vsel %vm289, %v270, 0.0
  %618 = vadd.xlane.f32.xlu0 %v617
  %v619 = vpop.xlane.xlu0 %618
  %v620 = vsel %vm289, %v271, 0.0
  %621 = vadd.xlane.f32.xlu0 %v620
  %v622 = vpop.xlane.xlu0 %621
  %v623 = vsel %vm289, %v272, 0.0
  %624 = vadd.xlane.f32.xlu0 %v623
  %v625 = vpop.xlane.xlu0 %624
  %v626 = vsel %vm289, %v273, 0.0
  %627 = vadd.xlane.f32.xlu0 %v626
  %v628 = vpop.xlane.xlu0 %627
  %v629 = vsel %vm289, %v274, 0.0
  %630 = vadd.xlane.f32.xlu0 %v629
  %v631 = vpop.xlane.xlu0 %630
  %v632 = vsel %vm289, %v275, 0.0
  %633 = vadd.xlane.f32.xlu0 %v632
  %v634 = vpop.xlane.xlu0 %633
  %v635 = vsel %vm289, %v276, 0.0
  %636 = vadd.xlane.f32.xlu0 %v635
  %v637 = vpop.xlane.xlu0 %636
  %v638 = vsel %vm289, %v277, 0.0
  %639 = vadd.xlane.f32.xlu0 %v638
  %v640 = vpop.xlane.xlu0 %639
  %v641 = vsel %vm289, %v278, 0.0
  %642 = vadd.xlane.f32.xlu0 %v641
  %v643 = vpop.xlane.xlu0 %642
  %v644 = vsel %vm289, %v279, 0.0
  %645 = vadd.xlane.f32.xlu0 %v644
  %v646 = vpop.xlane.xlu0 %645
  %v647 = vsel %vm289, %v280, 0.0
  %648 = vadd.xlane.f32.xlu0 %v647
  %v649 = vpop.xlane.xlu0 %648
  %v650 = vsel %vm289, %v281, 0.0
  %651 = vadd.xlane.f32.xlu0 %v650
  %v652 = vpop.xlane.xlu0 %651
  %v653 = vsel %vm289, %v282, 0.0
  %654 = vadd.xlane.f32.xlu0 %v653
  %v655 = vpop.xlane.xlu0 %654
  %v656 = vsel %vm289, %v283, 0.0
  %657 = vadd.xlane.f32.xlu0 %v656
  %v658 = vpop.xlane.xlu0 %657
  %v659 = vsel %vm289, %v284, 0.0
  %660 = vadd.xlane.f32.xlu0 %v659
  %v661 = vpop.xlane.xlu0 %660
  %v662 = vsel %vm289, %v285, 0.0
  %663 = vadd.xlane.f32.xlu0 %v662
  %v664 = vpop.xlane.xlu0 %663
  %v665 = vsel %vm289, %v286, 0.0
  %666 = vadd.xlane.f32.xlu0 %v665
  %v667 = vpop.xlane.xlu0 %666
  %v668 = vsel %vm289, %v287, 0.0
  %669 = vadd.xlane.f32.xlu0 %v668
  %v670 = vpop.xlane.xlu0 %669
  %v671 = vsel %vm289, %v288, 0.0
  %672 = vadd.xlane.f32.xlu0 %v671
  %v673 = vpop.xlane.xlu0 %672
  %v674 = vadd.f32 %v292, %v484
  %v675 = vadd.f32 %v295, %v487
  %v676 = vadd.f32 %v298, %v490
  %v677 = vadd.f32 %v301, %v493
  %v678 = vadd.f32 %v304, %v496
  %v679 = vadd.f32 %v307, %v499
  %v680 = vadd.f32 %v310, %v502
  %v681 = vadd.f32 %v313, %v505
  %v682 = vadd.f32 %v316, %v508
  %v683 = vadd.f32 %v319, %v511
  %v684 = vadd.f32 %v322, %v514
  %v685 = vadd.f32 %v325, %v517
  %v686 = vadd.f32 %v328, %v520
  %v687 = vadd.f32 %v331, %v523
  %v688 = vadd.f32 %v334, %v526
  %v689 = vadd.f32 %v337, %v529
  %v690 = vadd.f32 %v340, %v532
  %v691 = vadd.f32 %v343, %v535
  %v692 = vadd.f32 %v346, %v538
  %v693 = vadd.f32 %v349, %v541
  %v694 = vadd.f32 %v352, %v544
  %v695 = vadd.f32 %v355, %v547
  %v696 = vadd.f32 %v358, %v550
  %v697 = vadd.f32 %v361, %v553
  %v698 = vadd.f32 %v364, %v556
  %v699 = vadd.f32 %v367, %v559
  %v700 = vadd.f32 %v370, %v562
  %v701 = vadd.f32 %v373, %v565
  %v702 = vadd.f32 %v376, %v568
  %v703 = vadd.f32 %v379, %v571
  %v704 = vadd.f32 %v382, %v574
  %v705 = vadd.f32 %v385, %v577
  %v706 = vadd.f32 %v388, %v580
  %v707 = vadd.f32 %v391, %v583
  %v708 = vadd.f32 %v394, %v586
  %v709 = vadd.f32 %v397, %v589
  %v710 = vadd.f32 %v400, %v592
  %v711 = vadd.f32 %v403, %v595
  %v712 = vadd.f32 %v406, %v598
  %v713 = vadd.f32 %v409, %v601
  %v714 = vadd.f32 %v412, %v604
  %v715 = vadd.f32 %v415, %v607
  %v716 = vadd.f32 %v418, %v610
  %v717 = vadd.f32 %v421, %v613
  %v718 = vadd.f32 %v424, %v616
  %v719 = vadd.f32 %v427, %v619
  %v720 = vadd.f32 %v430, %v622
  %v721 = vadd.f32 %v433, %v625
  %v722 = vadd.f32 %v436, %v628
  %v723 = vadd.f32 %v439, %v631
  %v724 = vadd.f32 %v442, %v634
  %v725 = vadd.f32 %v445, %v637
  %v726 = vadd.f32 %v448, %v640
  %v727 = vadd.f32 %v451, %v643
  %v728 = vadd.f32 %v454, %v646
  %v729 = vadd.f32 %v457, %v649
  %v730 = vadd.f32 %v460, %v652
  %v731 = vadd.f32 %v463, %v655
  %v732 = vadd.f32 %v466, %v658
  %v733 = vadd.f32 %v469, %v661
  %v734 = vadd.f32 %v472, %v664
  %v735 = vadd.f32 %v475, %v667
  %v736 = vadd.f32 %v478, %v670
  %v737 = vadd.f32 %v481, %v673
  %v738 = vmul.f32 %v674, 0.125
  %v739 = vmul.f32 %v675, 0.125
  %v740 = vmul.f32 %v676, 0.125
  %v741 = vmul.f32 %v677, 0.125
  %v742 = vmul.f32 %v678, 0.125
  %v743 = vmul.f32 %v679, 0.125
  %v744 = vmul.f32 %v680, 0.125
  %v745 = vmul.f32 %v681, 0.125
  %v746 = vmul.f32 %v682, 0.125
  %v747 = vmul.f32 %v683, 0.125
  %v748 = vmul.f32 %v684, 0.125
  %v749 = vmul.f32 %v685, 0.125
  %v750 = vmul.f32 %v686, 0.125
  %v751 = vmul.f32 %v687, 0.125
  %v752 = vmul.f32 %v688, 0.125
  %v753 = vmul.f32 %v689, 0.125
  %v754 = vmul.f32 %v690, 0.125
  %v755 = vmul.f32 %v691, 0.125
  %v756 = vmul.f32 %v692, 0.125
  %v757 = vmul.f32 %v693, 0.125
  %v758 = vmul.f32 %v694, 0.125
  %v759 = vmul.f32 %v695, 0.125
  %v760 = vmul.f32 %v696, 0.125
  %v761 = vmul.f32 %v697, 0.125
  %v762 = vmul.f32 %v698, 0.125
  %v763 = vmul.f32 %v699, 0.125
  %v764 = vmul.f32 %v700, 0.125
  %v765 = vmul.f32 %v701, 0.125
  %v766 = vmul.f32 %v702, 0.125
  %v767 = vmul.f32 %v703, 0.125
  %v768 = vmul.f32 %v704, 0.125
  %v769 = vmul.f32 %v705, 0.125
  %v770 = vmul.f32 %v706, 0.125
  %v771 = vmul.f32 %v707, 0.125
  %v772 = vmul.f32 %v708, 0.125
  %v773 = vmul.f32 %v709, 0.125
  %v774 = vmul.f32 %v710, 0.125
  %v775 = vmul.f32 %v711, 0.125
  %v776 = vmul.f32 %v712, 0.125
  %v777 = vmul.f32 %v713, 0.125
  %v778 = vmul.f32 %v714, 0.125
  %v779 = vmul.f32 %v715, 0.125
  %v780 = vmul.f32 %v716, 0.125
  %v781 = vmul.f32 %v717, 0.125
  %v782 = vmul.f32 %v718, 0.125
  %v783 = vmul.f32 %v719, 0.125
  %v784 = vmul.f32 %v720, 0.125
  %v785 = vmul.f32 %v721, 0.125
  %v786 = vmul.f32 %v722, 0.125
  %v787 = vmul.f32 %v723, 0.125
  %v788 = vmul.f32 %v724, 0.125
  %v789 = vmul.f32 %v725, 0.125
  %v790 = vmul.f32 %v726, 0.125
  %v791 = vmul.f32 %v727, 0.125
  %v792 = vmul.f32 %v728, 0.125
  %v793 = vmul.f32 %v729, 0.125
  %v794 = vmul.f32 %v730, 0.125
  %v795 = vmul.f32 %v731, 0.125
  %v796 = vmul.f32 %v732, 0.125
  %v797 = vmul.f32 %v733, 0.125
  %v798 = vmul.f32 %v734, 0.125
  %v799 = vmul.f32 %v735, 0.125
  %v800 = vmul.f32 %v736, 0.125
  %v801 = vmul.f32 %v737, 0.125
  %v802 = vsub.f32 %v97, %v738
  %v803 = vsub.f32 %v98, %v739
  %v804 = vsub.f32 %v99, %v740
  %v805 = vsub.f32 %v100, %v741
  %v806 = vsub.f32 %v101, %v742
  %v807 = vsub.f32 %v102, %v743
  %v808 = vsub.f32 %v103, %v744
  %v809 = vsub.f32 %v104, %v745
  %v810 = vsub.f32 %v105, %v746
  %v811 = vsub.f32 %v106, %v747
  %v812 = vsub.f32 %v107, %v748
  %v813 = vsub.f32 %v108, %v749
  %v814 = vsub.f32 %v109, %v750
  %v815 = vsub.f32 %v110, %v751
  %v816 = vsub.f32 %v111, %v752
  %v817 = vsub.f32 %v112, %v753
  %v818 = vsub.f32 %v113, %v754
  %v819 = vsub.f32 %v114, %v755
  %v820 = vsub.f32 %v115, %v756
  %v821 = vsub.f32 %v116, %v757
  %v822 = vsub.f32 %v117, %v758
  %v823 = vsub.f32 %v118, %v759
  %v824 = vsub.f32 %v119, %v760
  %v825 = vsub.f32 %v120, %v761
  %v826 = vsub.f32 %v121, %v762
  %v827 = vsub.f32 %v122, %v763
  %v828 = vsub.f32 %v123, %v764
  %v829 = vsub.f32 %v124, %v765
  %v830 = vsub.f32 %v125, %v766
  %v831 = vsub.f32 %v126, %v767
  %v832 = vsub.f32 %v127, %v768
  %v833 = vsub.f32 %v128, %v769
  %v834 = vsub.f32 %v129, %v770
  %v835 = vsub.f32 %v130, %v771
  %v836 = vsub.f32 %v131, %v772
  %v837 = vsub.f32 %v132, %v773
  %v838 = vsub.f32 %v133, %v774
  %v839 = vsub.f32 %v134, %v775
  %v840 = vsub.f32 %v135, %v776
  %v841 = vsub.f32 %v136, %v777
  %v842 = vsub.f32 %v137, %v778
  %v843 = vsub.f32 %v138, %v779
  %v844 = vsub.f32 %v139, %v780
  %v845 = vsub.f32 %v140, %v781
  %v846 = vsub.f32 %v141, %v782
  %v847 = vsub.f32 %v142, %v783
  %v848 = vsub.f32 %v143, %v784
  %v849 = vsub.f32 %v144, %v785
  %v850 = vsub.f32 %v145, %v786
  %v851 = vsub.f32 %v146, %v787
  %v852 = vsub.f32 %v147, %v788
  %v853 = vsub.f32 %v148, %v789
  %v854 = vsub.f32 %v149, %v790
  %v855 = vsub.f32 %v150, %v791
  %v856 = vsub.f32 %v151, %v792
  %v857 = vsub.f32 %v152, %v793
  %v858 = vsub.f32 %v153, %v794
  %v859 = vsub.f32 %v154, %v795
  %v860 = vsub.f32 %v155, %v796
  %v861 = vsub.f32 %v156, %v797
  %v862 = vsub.f32 %v157, %v798
  %v863 = vsub.f32 %v158, %v799
  %v864 = vsub.f32 %v159, %v800
  %v865 = vsub.f32 %v160, %v801
  %v866 = vsub.f32 %v225, %v738
  %v867 = vsub.f32 %v226, %v739
  %v868 = vsub.f32 %v227, %v740
  %v869 = vsub.f32 %v228, %v741
  %v870 = vsub.f32 %v229, %v742
  %v871 = vsub.f32 %v230, %v743
  %v872 = vsub.f32 %v231, %v744
  %v873 = vsub.f32 %v232, %v745
  %v874 = vsub.f32 %v233, %v746
  %v875 = vsub.f32 %v234, %v747
  %v876 = vsub.f32 %v235, %v748
  %v877 = vsub.f32 %v236, %v749
  %v878 = vsub.f32 %v237, %v750
  %v879 = vsub.f32 %v238, %v751
  %v880 = vsub.f32 %v239, %v752
  %v881 = vsub.f32 %v240, %v753
  %v882 = vsub.f32 %v241, %v754
  %v883 = vsub.f32 %v242, %v755
  %v884 = vsub.f32 %v243, %v756
  %v885 = vsub.f32 %v244, %v757
  %v886 = vsub.f32 %v245, %v758
  %v887 = vsub.f32 %v246, %v759
  %v888 = vsub.f32 %v247, %v760
  %v889 = vsub.f32 %v248, %v761
  %v890 = vsub.f32 %v249, %v762
  %v891 = vsub.f32 %v250, %v763
  %v892 = vsub.f32 %v251, %v764
  %v893 = vsub.f32 %v252, %v765
  %v894 = vsub.f32 %v253, %v766
  %v895 = vsub.f32 %v254, %v767
  %v896 = vsub.f32 %v255, %v768
  %v897 = vsub.f32 %v256, %v769
  %v898 = vsub.f32 %v257, %v770
  %v899 = vsub.f32 %v258, %v771
  %v900 = vsub.f32 %v259, %v772
  %v901 = vsub.f32 %v260, %v773
  %v902 = vsub.f32 %v261, %v774
  %v903 = vsub.f32 %v262, %v775
  %v904 = vsub.f32 %v263, %v776
  %v905 = vsub.f32 %v264, %v777
  %v906 = vsub.f32 %v265, %v778
  %v907 = vsub.f32 %v266, %v779
  %v908 = vsub.f32 %v267, %v780
  %v909 = vsub.f32 %v268, %v781
  %v910 = vsub.f32 %v269, %v782
  %v911 = vsub.f32 %v270, %v783
  %v912 = vsub.f32 %v271, %v784
  %v913 = vsub.f32 %v272, %v785
  %v914 = vsub.f32 %v273, %v786
  %v915 = vsub.f32 %v274, %v787
  %v916 = vsub.f32 %v275, %v788
  %v917 = vsub.f32 %v276, %v789
  %v918 = vsub.f32 %v277, %v790
  %v919 = vsub.f32 %v278, %v791
  %v920 = vsub.f32 %v279, %v792
  %v921 = vsub.f32 %v280, %v793
  %v922 = vsub.f32 %v281, %v794
  %v923 = vsub.f32 %v282, %v795
  %v924 = vsub.f32 %v283, %v796
  %v925 = vsub.f32 %v284, %v797
  %v926 = vsub.f32 %v285, %v798
  %v927 = vsub.f32 %v286, %v799
  %v928 = vsub.f32 %v287, %v800
  %v929 = vsub.f32 %v288, %v801
  %v930 = vmul.f32 %v802, %v802
  %v931 = vmul.f32 %v803, %v803
  %v932 = vmul.f32 %v804, %v804
  %v933 = vmul.f32 %v805, %v805
  %v934 = vmul.f32 %v806, %v806
  %v935 = vmul.f32 %v807, %v807
  %v936 = vmul.f32 %v808, %v808
  %v937 = vmul.f32 %v809, %v809
  %v938 = vmul.f32 %v810, %v810
  %v939 = vmul.f32 %v811, %v811
  %v940 = vmul.f32 %v812, %v812
  %v941 = vmul.f32 %v813, %v813
  %v942 = vmul.f32 %v814, %v814
  %v943 = vmul.f32 %v815, %v815
  %v944 = vmul.f32 %v816, %v816
  %v945 = vmul.f32 %v817, %v817
  %v946 = vmul.f32 %v818, %v818
  %v947 = vmul.f32 %v819, %v819
  %v948 = vmul.f32 %v820, %v820
  %v949 = vmul.f32 %v821, %v821
  %v950 = vmul.f32 %v822, %v822
  %v951 = vmul.f32 %v823, %v823
  %v952 = vmul.f32 %v824, %v824
  %v953 = vmul.f32 %v825, %v825
  %v954 = vmul.f32 %v826, %v826
  %v955 = vmul.f32 %v827, %v827
  %v956 = vmul.f32 %v828, %v828
  %v957 = vmul.f32 %v829, %v829
  %v958 = vmul.f32 %v830, %v830
  %v959 = vmul.f32 %v831, %v831
  %v960 = vmul.f32 %v832, %v832
  %v961 = vmul.f32 %v833, %v833
  %v962 = vmul.f32 %v834, %v834
  %v963 = vmul.f32 %v835, %v835
  %v964 = vmul.f32 %v836, %v836
  %v965 = vmul.f32 %v837, %v837
  %v966 = vmul.f32 %v838, %v838
  %v967 = vmul.f32 %v839, %v839
  %v968 = vmul.f32 %v840, %v840
  %v969 = vmul.f32 %v841, %v841
  %v970 = vmul.f32 %v842, %v842
  %v971 = vmul.f32 %v843, %v843
  %v972 = vmul.f32 %v844, %v844
  %v973 = vmul.f32 %v845, %v845
  %v974 = vmul.f32 %v846, %v846
  %v975 = vmul.f32 %v847, %v847
  %v976 = vmul.f32 %v848, %v848
  %v977 = vmul.f32 %v849, %v849
  %v978 = vmul.f32 %v850, %v850
  %v979 = vmul.f32 %v851, %v851
  %v980 = vmul.f32 %v852, %v852
  %v981 = vmul.f32 %v853, %v853
  %v982 = vmul.f32 %v854, %v854
  %v983 = vmul.f32 %v855, %v855
  %v984 = vmul.f32 %v856, %v856
  %v985 = vmul.f32 %v857, %v857
  %v986 = vmul.f32 %v858, %v858
  %v987 = vmul.f32 %v859, %v859
  %v988 = vmul.f32 %v860, %v860
  %v989 = vmul.f32 %v861, %v861
  %v990 = vmul.f32 %v862, %v862
  %v991 = vmul.f32 %v863, %v863
  %v992 = vmul.f32 %v864, %v864
  %v993 = vmul.f32 %v865, %v865
  %v994 = vsel %vm289, %v930, 0.0
  %995 = vadd.xlane.f32.xlu0 %v994
  %v996 = vpop.xlane.xlu0 %995
  %v997 = vsel %vm289, %v931, 0.0
  %998 = vadd.xlane.f32.xlu0 %v997
  %v999 = vpop.xlane.xlu0 %998
  %v1000 = vsel %vm289, %v932, 0.0
  %1001 = vadd.xlane.f32.xlu0 %v1000
  %v1002 = vpop.xlane.xlu0 %1001
  %v1003 = vsel %vm289, %v933, 0.0
  %1004 = vadd.xlane.f32.xlu0 %v1003
  %v1005 = vpop.xlane.xlu0 %1004
  %v1006 = vsel %vm289, %v934, 0.0
  %1007 = vadd.xlane.f32.xlu0 %v1006
  %v1008 = vpop.xlane.xlu0 %1007
  %v1009 = vsel %vm289, %v935, 0.0
  %1010 = vadd.xlane.f32.xlu0 %v1009
  %v1011 = vpop.xlane.xlu0 %1010
  %v1012 = vsel %vm289, %v936, 0.0
  %1013 = vadd.xlane.f32.xlu0 %v1012
  %v1014 = vpop.xlane.xlu0 %1013
  %v1015 = vsel %vm289, %v937, 0.0
  %1016 = vadd.xlane.f32.xlu0 %v1015
  %v1017 = vpop.xlane.xlu0 %1016
  %v1018 = vsel %vm289, %v938, 0.0
  %1019 = vadd.xlane.f32.xlu0 %v1018
  %v1020 = vpop.xlane.xlu0 %1019
  %v1021 = vsel %vm289, %v939, 0.0
  %1022 = vadd.xlane.f32.xlu0 %v1021
  %v1023 = vpop.xlane.xlu0 %1022
  %v1024 = vsel %vm289, %v940, 0.0
  %1025 = vadd.xlane.f32.xlu0 %v1024
  %v1026 = vpop.xlane.xlu0 %1025
  %v1027 = vsel %vm289, %v941, 0.0
  %1028 = vadd.xlane.f32.xlu0 %v1027
  %v1029 = vpop.xlane.xlu0 %1028
  %v1030 = vsel %vm289, %v942, 0.0
  %1031 = vadd.xlane.f32.xlu0 %v1030
  %v1032 = vpop.xlane.xlu0 %1031
  %v1033 = vsel %vm289, %v943, 0.0
  %1034 = vadd.xlane.f32.xlu0 %v1033
  %v1035 = vpop.xlane.xlu0 %1034
  %v1036 = vsel %vm289, %v944, 0.0
  %1037 = vadd.xlane.f32.xlu0 %v1036
  %v1038 = vpop.xlane.xlu0 %1037
  %v1039 = vsel %vm289, %v945, 0.0
  %1040 = vadd.xlane.f32.xlu0 %v1039
  %v1041 = vpop.xlane.xlu0 %1040
  %v1042 = vsel %vm289, %v946, 0.0
  %1043 = vadd.xlane.f32.xlu0 %v1042
  %v1044 = vpop.xlane.xlu0 %1043
  %v1045 = vsel %vm289, %v947, 0.0
  %1046 = vadd.xlane.f32.xlu0 %v1045
  %v1047 = vpop.xlane.xlu0 %1046
  %v1048 = vsel %vm289, %v948, 0.0
  %1049 = vadd.xlane.f32.xlu0 %v1048
  %v1050 = vpop.xlane.xlu0 %1049
  %v1051 = vsel %vm289, %v949, 0.0
  %1052 = vadd.xlane.f32.xlu0 %v1051
  %v1053 = vpop.xlane.xlu0 %1052
  %v1054 = vsel %vm289, %v950, 0.0
  %1055 = vadd.xlane.f32.xlu0 %v1054
  %v1056 = vpop.xlane.xlu0 %1055
  %v1057 = vsel %vm289, %v951, 0.0
  %1058 = vadd.xlane.f32.xlu0 %v1057
  %v1059 = vpop.xlane.xlu0 %1058
  %v1060 = vsel %vm289, %v952, 0.0
  %1061 = vadd.xlane.f32.xlu0 %v1060
  %v1062 = vpop.xlane.xlu0 %1061
  %v1063 = vsel %vm289, %v953, 0.0
  %1064 = vadd.xlane.f32.xlu0 %v1063
  %v1065 = vpop.xlane.xlu0 %1064
  %v1066 = vsel %vm289, %v954, 0.0
  %1067 = vadd.xlane.f32.xlu0 %v1066
  %v1068 = vpop.xlane.xlu0 %1067
  %v1069 = vsel %vm289, %v955, 0.0
  %1070 = vadd.xlane.f32.xlu0 %v1069
  %v1071 = vpop.xlane.xlu0 %1070
  %v1072 = vsel %vm289, %v956, 0.0
  %1073 = vadd.xlane.f32.xlu0 %v1072
  %v1074 = vpop.xlane.xlu0 %1073
  %v1075 = vsel %vm289, %v957, 0.0
  %1076 = vadd.xlane.f32.xlu0 %v1075
  %v1077 = vpop.xlane.xlu0 %1076
  %v1078 = vsel %vm289, %v958, 0.0
  %1079 = vadd.xlane.f32.xlu0 %v1078
  %v1080 = vpop.xlane.xlu0 %1079
  %v1081 = vsel %vm289, %v959, 0.0
  %1082 = vadd.xlane.f32.xlu0 %v1081
  %v1083 = vpop.xlane.xlu0 %1082
  %v1084 = vsel %vm289, %v960, 0.0
  %1085 = vadd.xlane.f32.xlu0 %v1084
  %v1086 = vpop.xlane.xlu0 %1085
  %v1087 = vsel %vm289, %v961, 0.0
  %1088 = vadd.xlane.f32.xlu0 %v1087
  %v1089 = vpop.xlane.xlu0 %1088
  %v1090 = vsel %vm289, %v962, 0.0
  %1091 = vadd.xlane.f32.xlu0 %v1090
  %v1092 = vpop.xlane.xlu0 %1091
  %v1093 = vsel %vm289, %v963, 0.0
  %1094 = vadd.xlane.f32.xlu0 %v1093
  %v1095 = vpop.xlane.xlu0 %1094
  %v1096 = vsel %vm289, %v964, 0.0
  %1097 = vadd.xlane.f32.xlu0 %v1096
  %v1098 = vpop.xlane.xlu0 %1097
  %v1099 = vsel %vm289, %v965, 0.0
  %1100 = vadd.xlane.f32.xlu0 %v1099
  %v1101 = vpop.xlane.xlu0 %1100
  %v1102 = vsel %vm289, %v966, 0.0
  %1103 = vadd.xlane.f32.xlu0 %v1102
  %v1104 = vpop.xlane.xlu0 %1103
  %v1105 = vsel %vm289, %v967, 0.0
  %1106 = vadd.xlane.f32.xlu0 %v1105
  %v1107 = vpop.xlane.xlu0 %1106
  %v1108 = vsel %vm289, %v968, 0.0
  %1109 = vadd.xlane.f32.xlu0 %v1108
  %v1110 = vpop.xlane.xlu0 %1109
  %v1111 = vsel %vm289, %v969, 0.0
  %1112 = vadd.xlane.f32.xlu0 %v1111
  %v1113 = vpop.xlane.xlu0 %1112
  %v1114 = vsel %vm289, %v970, 0.0
  %1115 = vadd.xlane.f32.xlu0 %v1114
  %v1116 = vpop.xlane.xlu0 %1115
  %v1117 = vsel %vm289, %v971, 0.0
  %1118 = vadd.xlane.f32.xlu0 %v1117
  %v1119 = vpop.xlane.xlu0 %1118
  %v1120 = vsel %vm289, %v972, 0.0
  %1121 = vadd.xlane.f32.xlu0 %v1120
  %v1122 = vpop.xlane.xlu0 %1121
  %v1123 = vsel %vm289, %v973, 0.0
  %1124 = vadd.xlane.f32.xlu0 %v1123
  %v1125 = vpop.xlane.xlu0 %1124
  %v1126 = vsel %vm289, %v974, 0.0
  %1127 = vadd.xlane.f32.xlu0 %v1126
  %v1128 = vpop.xlane.xlu0 %1127
  %v1129 = vsel %vm289, %v975, 0.0
  %1130 = vadd.xlane.f32.xlu0 %v1129
  %v1131 = vpop.xlane.xlu0 %1130
  %v1132 = vsel %vm289, %v976, 0.0
  %1133 = vadd.xlane.f32.xlu0 %v1132
  %v1134 = vpop.xlane.xlu0 %1133
  %v1135 = vsel %vm289, %v977, 0.0
  %1136 = vadd.xlane.f32.xlu0 %v1135
  %v1137 = vpop.xlane.xlu0 %1136
  %v1138 = vsel %vm289, %v978, 0.0
  %1139 = vadd.xlane.f32.xlu0 %v1138
  %v1140 = vpop.xlane.xlu0 %1139
  %v1141 = vsel %vm289, %v979, 0.0
  %1142 = vadd.xlane.f32.xlu0 %v1141
  %v1143 = vpop.xlane.xlu0 %1142
  %v1144 = vsel %vm289, %v980, 0.0
  %1145 = vadd.xlane.f32.xlu0 %v1144
  %v1146 = vpop.xlane.xlu0 %1145
  %v1147 = vsel %vm289, %v981, 0.0
  %1148 = vadd.xlane.f32.xlu0 %v1147
  %v1149 = vpop.xlane.xlu0 %1148
  %v1150 = vsel %vm289, %v982, 0.0
  %1151 = vadd.xlane.f32.xlu0 %v1150
  %v1152 = vpop.xlane.xlu0 %1151
  %v1153 = vsel %vm289, %v983, 0.0
  %1154 = vadd.xlane.f32.xlu0 %v1153
  %v1155 = vpop.xlane.xlu0 %1154
  %v1156 = vsel %vm289, %v984, 0.0
  %1157 = vadd.xlane.f32.xlu0 %v1156
  %v1158 = vpop.xlane.xlu0 %1157
  %v1159 = vsel %vm289, %v985, 0.0
  %1160 = vadd.xlane.f32.xlu0 %v1159
  %v1161 = vpop.xlane.xlu0 %1160
  %v1162 = vsel %vm289, %v986, 0.0
  %1163 = vadd.xlane.f32.xlu0 %v1162
  %v1164 = vpop.xlane.xlu0 %1163
  %v1165 = vsel %vm289, %v987, 0.0
  %1166 = vadd.xlane.f32.xlu0 %v1165
  %v1167 = vpop.xlane.xlu0 %1166
  %v1168 = vsel %vm289, %v988, 0.0
  %1169 = vadd.xlane.f32.xlu0 %v1168
  %v1170 = vpop.xlane.xlu0 %1169
  %v1171 = vsel %vm289, %v989, 0.0
  %1172 = vadd.xlane.f32.xlu0 %v1171
  %v1173 = vpop.xlane.xlu0 %1172
  %v1174 = vsel %vm289, %v990, 0.0
  %1175 = vadd.xlane.f32.xlu0 %v1174
  %v1176 = vpop.xlane.xlu0 %1175
  %v1177 = vsel %vm289, %v991, 0.0
  %1178 = vadd.xlane.f32.xlu0 %v1177
  %v1179 = vpop.xlane.xlu0 %1178
  %v1180 = vsel %vm289, %v992, 0.0
  %1181 = vadd.xlane.f32.xlu0 %v1180
  %v1182 = vpop.xlane.xlu0 %1181
  %v1183 = vsel %vm289, %v993, 0.0
  %1184 = vadd.xlane.f32.xlu0 %v1183
  %v1185 = vpop.xlane.xlu0 %1184
  %v1186 = vmul.f32 %v866, %v866
  %v1187 = vmul.f32 %v867, %v867
  %v1188 = vmul.f32 %v868, %v868
  %v1189 = vmul.f32 %v869, %v869
  %v1190 = vmul.f32 %v870, %v870
  %v1191 = vmul.f32 %v871, %v871
  %v1192 = vmul.f32 %v872, %v872
  %v1193 = vmul.f32 %v873, %v873
  %v1194 = vmul.f32 %v874, %v874
  %v1195 = vmul.f32 %v875, %v875
  %v1196 = vmul.f32 %v876, %v876
  %v1197 = vmul.f32 %v877, %v877
  %v1198 = vmul.f32 %v878, %v878
  %v1199 = vmul.f32 %v879, %v879
  %v1200 = vmul.f32 %v880, %v880
  %v1201 = vmul.f32 %v881, %v881
  %v1202 = vmul.f32 %v882, %v882
  %v1203 = vmul.f32 %v883, %v883
  %v1204 = vmul.f32 %v884, %v884
  %v1205 = vmul.f32 %v885, %v885
  %v1206 = vmul.f32 %v886, %v886
  %v1207 = vmul.f32 %v887, %v887
  %v1208 = vmul.f32 %v888, %v888
  %v1209 = vmul.f32 %v889, %v889
  %v1210 = vmul.f32 %v890, %v890
  %v1211 = vmul.f32 %v891, %v891
  %v1212 = vmul.f32 %v892, %v892
  %v1213 = vmul.f32 %v893, %v893
  %v1214 = vmul.f32 %v894, %v894
  %v1215 = vmul.f32 %v895, %v895
  %v1216 = vmul.f32 %v896, %v896
  %v1217 = vmul.f32 %v897, %v897
  %v1218 = vmul.f32 %v898, %v898
  %v1219 = vmul.f32 %v899, %v899
  %v1220 = vmul.f32 %v900, %v900
  %v1221 = vmul.f32 %v901, %v901
  %v1222 = vmul.f32 %v902, %v902
  %v1223 = vmul.f32 %v903, %v903
  %v1224 = vmul.f32 %v904, %v904
  %v1225 = vmul.f32 %v905, %v905
  %v1226 = vmul.f32 %v906, %v906
  %v1227 = vmul.f32 %v907, %v907
  %v1228 = vmul.f32 %v908, %v908
  %v1229 = vmul.f32 %v909, %v909
  %v1230 = vmul.f32 %v910, %v910
  %v1231 = vmul.f32 %v911, %v911
  %v1232 = vmul.f32 %v912, %v912
  %v1233 = vmul.f32 %v913, %v913
  %v1234 = vmul.f32 %v914, %v914
  %v1235 = vmul.f32 %v915, %v915
  %v1236 = vmul.f32 %v916, %v916
  %v1237 = vmul.f32 %v917, %v917
  %v1238 = vmul.f32 %v918, %v918
  %v1239 = vmul.f32 %v919, %v919
  %v1240 = vmul.f32 %v920, %v920
  %v1241 = vmul.f32 %v921, %v921
  %v1242 = vmul.f32 %v922, %v922
  %v1243 = vmul.f32 %v923, %v923
  %v1244 = vmul.f32 %v924, %v924
  %v1245 = vmul.f32 %v925, %v925
  %v1246 = vmul.f32 %v926, %v926
  %v1247 = vmul.f32 %v927, %v927
  %v1248 = vmul.f32 %v928, %v928
  %v1249 = vmul.f32 %v929, %v929
  %v1250 = vsel %vm289, %v1186, 0.0
  %1251 = vadd.xlane.f32.xlu0 %v1250
  %v1252 = vpop.xlane.xlu0 %1251
  %v1253 = vsel %vm289, %v1187, 0.0
  %1254 = vadd.xlane.f32.xlu0 %v1253
  %v1255 = vpop.xlane.xlu0 %1254
  %v1256 = vsel %vm289, %v1188, 0.0
  %1257 = vadd.xlane.f32.xlu0 %v1256
  %v1258 = vpop.xlane.xlu0 %1257
  %v1259 = vsel %vm289, %v1189, 0.0
  %1260 = vadd.xlane.f32.xlu0 %v1259
  %v1261 = vpop.xlane.xlu0 %1260
  %v1262 = vsel %vm289, %v1190, 0.0
  %1263 = vadd.xlane.f32.xlu0 %v1262
  %v1264 = vpop.xlane.xlu0 %1263
  %v1265 = vsel %vm289, %v1191, 0.0
  %1266 = vadd.xlane.f32.xlu0 %v1265
  %v1267 = vpop.xlane.xlu0 %1266
  %v1268 = vsel %vm289, %v1192, 0.0
  %1269 = vadd.xlane.f32.xlu0 %v1268
  %v1270 = vpop.xlane.xlu0 %1269
  %v1271 = vsel %vm289, %v1193, 0.0
  %1272 = vadd.xlane.f32.xlu0 %v1271
  %v1273 = vpop.xlane.xlu0 %1272
  %v1274 = vsel %vm289, %v1194, 0.0
  %1275 = vadd.xlane.f32.xlu0 %v1274
  %v1276 = vpop.xlane.xlu0 %1275
  %v1277 = vsel %vm289, %v1195, 0.0
  %1278 = vadd.xlane.f32.xlu0 %v1277
  %v1279 = vpop.xlane.xlu0 %1278
  %v1280 = vsel %vm289, %v1196, 0.0
  %1281 = vadd.xlane.f32.xlu0 %v1280
  %v1282 = vpop.xlane.xlu0 %1281
  %v1283 = vsel %vm289, %v1197, 0.0
  %1284 = vadd.xlane.f32.xlu0 %v1283
  %v1285 = vpop.xlane.xlu0 %1284
  %v1286 = vsel %vm289, %v1198, 0.0
  %1287 = vadd.xlane.f32.xlu0 %v1286
  %v1288 = vpop.xlane.xlu0 %1287
  %v1289 = vsel %vm289, %v1199, 0.0
  %1290 = vadd.xlane.f32.xlu0 %v1289
  %v1291 = vpop.xlane.xlu0 %1290
  %v1292 = vsel %vm289, %v1200, 0.0
  %1293 = vadd.xlane.f32.xlu0 %v1292
  %v1294 = vpop.xlane.xlu0 %1293
  %v1295 = vsel %vm289, %v1201, 0.0
  %1296 = vadd.xlane.f32.xlu0 %v1295
  %v1297 = vpop.xlane.xlu0 %1296
  %v1298 = vsel %vm289, %v1202, 0.0
  %1299 = vadd.xlane.f32.xlu0 %v1298
  %v1300 = vpop.xlane.xlu0 %1299
  %v1301 = vsel %vm289, %v1203, 0.0
  %1302 = vadd.xlane.f32.xlu0 %v1301
  %v1303 = vpop.xlane.xlu0 %1302
  %v1304 = vsel %vm289, %v1204, 0.0
  %1305 = vadd.xlane.f32.xlu0 %v1304
  %v1306 = vpop.xlane.xlu0 %1305
  %v1307 = vsel %vm289, %v1205, 0.0
  %1308 = vadd.xlane.f32.xlu0 %v1307
  %v1309 = vpop.xlane.xlu0 %1308
  %v1310 = vsel %vm289, %v1206, 0.0
  %1311 = vadd.xlane.f32.xlu0 %v1310
  %v1312 = vpop.xlane.xlu0 %1311
  %v1313 = vsel %vm289, %v1207, 0.0
  %1314 = vadd.xlane.f32.xlu0 %v1313
  %v1315 = vpop.xlane.xlu0 %1314
  %v1316 = vsel %vm289, %v1208, 0.0
  %1317 = vadd.xlane.f32.xlu0 %v1316
  %v1318 = vpop.xlane.xlu0 %1317
  %v1319 = vsel %vm289, %v1209, 0.0
  %1320 = vadd.xlane.f32.xlu0 %v1319
  %v1321 = vpop.xlane.xlu0 %1320
  %v1322 = vsel %vm289, %v1210, 0.0
  %1323 = vadd.xlane.f32.xlu0 %v1322
  %v1324 = vpop.xlane.xlu0 %1323
  %v1325 = vsel %vm289, %v1211, 0.0
  %1326 = vadd.xlane.f32.xlu0 %v1325
  %v1327 = vpop.xlane.xlu0 %1326
  %v1328 = vsel %vm289, %v1212, 0.0
  %1329 = vadd.xlane.f32.xlu0 %v1328
  %v1330 = vpop.xlane.xlu0 %1329
  %v1331 = vsel %vm289, %v1213, 0.0
  %1332 = vadd.xlane.f32.xlu0 %v1331
  %v1333 = vpop.xlane.xlu0 %1332
  %v1334 = vsel %vm289, %v1214, 0.0
  %1335 = vadd.xlane.f32.xlu0 %v1334
  %v1336 = vpop.xlane.xlu0 %1335
  %v1337 = vsel %vm289, %v1215, 0.0
  %1338 = vadd.xlane.f32.xlu0 %v1337
  %v1339 = vpop.xlane.xlu0 %1338
  %v1340 = vsel %vm289, %v1216, 0.0
  %1341 = vadd.xlane.f32.xlu0 %v1340
  %v1342 = vpop.xlane.xlu0 %1341
  %v1343 = vsel %vm289, %v1217, 0.0
  %1344 = vadd.xlane.f32.xlu0 %v1343
  %v1345 = vpop.xlane.xlu0 %1344
  %v1346 = vsel %vm289, %v1218, 0.0
  %1347 = vadd.xlane.f32.xlu0 %v1346
  %v1348 = vpop.xlane.xlu0 %1347
  %v1349 = vsel %vm289, %v1219, 0.0
  %1350 = vadd.xlane.f32.xlu0 %v1349
  %v1351 = vpop.xlane.xlu0 %1350
  %v1352 = vsel %vm289, %v1220, 0.0
  %1353 = vadd.xlane.f32.xlu0 %v1352
  %v1354 = vpop.xlane.xlu0 %1353
  %v1355 = vsel %vm289, %v1221, 0.0
  %1356 = vadd.xlane.f32.xlu0 %v1355
  %v1357 = vpop.xlane.xlu0 %1356
  %v1358 = vsel %vm289, %v1222, 0.0
  %1359 = vadd.xlane.f32.xlu0 %v1358
  %v1360 = vpop.xlane.xlu0 %1359
  %v1361 = vsel %vm289, %v1223, 0.0
  %1362 = vadd.xlane.f32.xlu0 %v1361
  %v1363 = vpop.xlane.xlu0 %1362
  %v1364 = vsel %vm289, %v1224, 0.0
  %1365 = vadd.xlane.f32.xlu0 %v1364
  %v1366 = vpop.xlane.xlu0 %1365
  %v1367 = vsel %vm289, %v1225, 0.0
  %1368 = vadd.xlane.f32.xlu0 %v1367
  %v1369 = vpop.xlane.xlu0 %1368
  %v1370 = vsel %vm289, %v1226, 0.0
  %1371 = vadd.xlane.f32.xlu0 %v1370
  %v1372 = vpop.xlane.xlu0 %1371
  %v1373 = vsel %vm289, %v1227, 0.0
  %1374 = vadd.xlane.f32.xlu0 %v1373
  %v1375 = vpop.xlane.xlu0 %1374
  %v1376 = vsel %vm289, %v1228, 0.0
  %1377 = vadd.xlane.f32.xlu0 %v1376
  %v1378 = vpop.xlane.xlu0 %1377
  %v1379 = vsel %vm289, %v1229, 0.0
  %1380 = vadd.xlane.f32.xlu0 %v1379
  %v1381 = vpop.xlane.xlu0 %1380
  %v1382 = vsel %vm289, %v1230, 0.0
  %1383 = vadd.xlane.f32.xlu0 %v1382
  %v1384 = vpop.xlane.xlu0 %1383
  %v1385 = vsel %vm289, %v1231, 0.0
  %1386 = vadd.xlane.f32.xlu0 %v1385
  %v1387 = vpop.xlane.xlu0 %1386
  %v1388 = vsel %vm289, %v1232, 0.0
  %1389 = vadd.xlane.f32.xlu0 %v1388
  %v1390 = vpop.xlane.xlu0 %1389
  %v1391 = vsel %vm289, %v1233, 0.0
  %1392 = vadd.xlane.f32.xlu0 %v1391
  %v1393 = vpop.xlane.xlu0 %1392
  %v1394 = vsel %vm289, %v1234, 0.0
  %1395 = vadd.xlane.f32.xlu0 %v1394
  %v1396 = vpop.xlane.xlu0 %1395
  %v1397 = vsel %vm289, %v1235, 0.0
  %1398 = vadd.xlane.f32.xlu0 %v1397
  %v1399 = vpop.xlane.xlu0 %1398
  %v1400 = vsel %vm289, %v1236, 0.0
  %1401 = vadd.xlane.f32.xlu0 %v1400
  %v1402 = vpop.xlane.xlu0 %1401
  %v1403 = vsel %vm289, %v1237, 0.0
  %1404 = vadd.xlane.f32.xlu0 %v1403
  %v1405 = vpop.xlane.xlu0 %1404
  %v1406 = vsel %vm289, %v1238, 0.0
  %1407 = vadd.xlane.f32.xlu0 %v1406
  %v1408 = vpop.xlane.xlu0 %1407
  %v1409 = vsel %vm289, %v1239, 0.0
  %1410 = vadd.xlane.f32.xlu0 %v1409
  %v1411 = vpop.xlane.xlu0 %1410
  %v1412 = vsel %vm289, %v1240, 0.0
  %1413 = vadd.xlane.f32.xlu0 %v1412
  %v1414 = vpop.xlane.xlu0 %1413
  %v1415 = vsel %vm289, %v1241, 0.0
  %1416 = vadd.xlane.f32.xlu0 %v1415
  %v1417 = vpop.xlane.xlu0 %1416
  %v1418 = vsel %vm289, %v1242, 0.0
  %1419 = vadd.xlane.f32.xlu0 %v1418
  %v1420 = vpop.xlane.xlu0 %1419
  %v1421 = vsel %vm289, %v1243, 0.0
  %1422 = vadd.xlane.f32.xlu0 %v1421
  %v1423 = vpop.xlane.xlu0 %1422
  %v1424 = vsel %vm289, %v1244, 0.0
  %1425 = vadd.xlane.f32.xlu0 %v1424
  %v1426 = vpop.xlane.xlu0 %1425
  %v1427 = vsel %vm289, %v1245, 0.0
  %1428 = vadd.xlane.f32.xlu0 %v1427
  %v1429 = vpop.xlane.xlu0 %1428
  %v1430 = vsel %vm289, %v1246, 0.0
  %1431 = vadd.xlane.f32.xlu0 %v1430
  %v1432 = vpop.xlane.xlu0 %1431
  %v1433 = vsel %vm289, %v1247, 0.0
  %1434 = vadd.xlane.f32.xlu0 %v1433
  %v1435 = vpop.xlane.xlu0 %1434
  %v1436 = vsel %vm289, %v1248, 0.0
  %1437 = vadd.xlane.f32.xlu0 %v1436
  %v1438 = vpop.xlane.xlu0 %1437
  %v1439 = vsel %vm289, %v1249, 0.0
  %1440 = vadd.xlane.f32.xlu0 %v1439
  %v1441 = vpop.xlane.xlu0 %1440
  %v1442 = vadd.f32 %v996, %v1252
  %v1443 = vadd.f32 %v999, %v1255
  %v1444 = vadd.f32 %v1002, %v1258
  %v1445 = vadd.f32 %v1005, %v1261
  %v1446 = vadd.f32 %v1008, %v1264
  %v1447 = vadd.f32 %v1011, %v1267
  %v1448 = vadd.f32 %v1014, %v1270
  %v1449 = vadd.f32 %v1017, %v1273
  %v1450 = vadd.f32 %v1020, %v1276
  %v1451 = vadd.f32 %v1023, %v1279
  %v1452 = vadd.f32 %v1026, %v1282
  %v1453 = vadd.f32 %v1029, %v1285
  %v1454 = vadd.f32 %v1032, %v1288
  %v1455 = vadd.f32 %v1035, %v1291
  %v1456 = vadd.f32 %v1038, %v1294
  %v1457 = vadd.f32 %v1041, %v1297
  %v1458 = vadd.f32 %v1044, %v1300
  %v1459 = vadd.f32 %v1047, %v1303
  %v1460 = vadd.f32 %v1050, %v1306
  %v1461 = vadd.f32 %v1053, %v1309
  %v1462 = vadd.f32 %v1056, %v1312
  %v1463 = vadd.f32 %v1059, %v1315
  %v1464 = vadd.f32 %v1062, %v1318
  %v1465 = vadd.f32 %v1065, %v1321
  %v1466 = vadd.f32 %v1068, %v1324
  %v1467 = vadd.f32 %v1071, %v1327
  %v1468 = vadd.f32 %v1074, %v1330
  %v1469 = vadd.f32 %v1077, %v1333
  %v1470 = vadd.f32 %v1080, %v1336
  %v1471 = vadd.f32 %v1083, %v1339
  %v1472 = vadd.f32 %v1086, %v1342
  %v1473 = vadd.f32 %v1089, %v1345
  %v1474 = vadd.f32 %v1092, %v1348
  %v1475 = vadd.f32 %v1095, %v1351
  %v1476 = vadd.f32 %v1098, %v1354
  %v1477 = vadd.f32 %v1101, %v1357
  %v1478 = vadd.f32 %v1104, %v1360
  %v1479 = vadd.f32 %v1107, %v1363
  %v1480 = vadd.f32 %v1110, %v1366
  %v1481 = vadd.f32 %v1113, %v1369
  %v1482 = vadd.f32 %v1116, %v1372
  %v1483 = vadd.f32 %v1119, %v1375
  %v1484 = vadd.f32 %v1122, %v1378
  %v1485 = vadd.f32 %v1125, %v1381
  %v1486 = vadd.f32 %v1128, %v1384
  %v1487 = vadd.f32 %v1131, %v1387
  %v1488 = vadd.f32 %v1134, %v1390
  %v1489 = vadd.f32 %v1137, %v1393
  %v1490 = vadd.f32 %v1140, %v1396
  %v1491 = vadd.f32 %v1143, %v1399
  %v1492 = vadd.f32 %v1146, %v1402
  %v1493 = vadd.f32 %v1149, %v1405
  %v1494 = vadd.f32 %v1152, %v1408
  %v1495 = vadd.f32 %v1155, %v1411
  %v1496 = vadd.f32 %v1158, %v1414
  %v1497 = vadd.f32 %v1161, %v1417
  %v1498 = vadd.f32 %v1164, %v1420
  %v1499 = vadd.f32 %v1167, %v1423
  %v1500 = vadd.f32 %v1170, %v1426
  %v1501 = vadd.f32 %v1173, %v1429
  %v1502 = vadd.f32 %v1176, %v1432
  %v1503 = vadd.f32 %v1179, %v1435
  %v1504 = vadd.f32 %v1182, %v1438
  %v1505 = vadd.f32 %v1185, %v1441
  %v1506 = vmul.f32 %v1442, 0.125
  %v1507 = vmul.f32 %v1443, 0.125
  %v1508 = vmul.f32 %v1444, 0.125
  %v1509 = vmul.f32 %v1445, 0.125
  %v1510 = vmul.f32 %v1446, 0.125
  %v1511 = vmul.f32 %v1447, 0.125
  %v1512 = vmul.f32 %v1448, 0.125
  %v1513 = vmul.f32 %v1449, 0.125
  %v1514 = vmul.f32 %v1450, 0.125
  %v1515 = vmul.f32 %v1451, 0.125
  %v1516 = vmul.f32 %v1452, 0.125
  %v1517 = vmul.f32 %v1453, 0.125
  %v1518 = vmul.f32 %v1454, 0.125
  %v1519 = vmul.f32 %v1455, 0.125
  %v1520 = vmul.f32 %v1456, 0.125
  %v1521 = vmul.f32 %v1457, 0.125
  %v1522 = vmul.f32 %v1458, 0.125
  %v1523 = vmul.f32 %v1459, 0.125
  %v1524 = vmul.f32 %v1460, 0.125
  %v1525 = vmul.f32 %v1461, 0.125
  %v1526 = vmul.f32 %v1462, 0.125
  %v1527 = vmul.f32 %v1463, 0.125
  %v1528 = vmul.f32 %v1464, 0.125
  %v1529 = vmul.f32 %v1465, 0.125
  %v1530 = vmul.f32 %v1466, 0.125
  %v1531 = vmul.f32 %v1467, 0.125
  %v1532 = vmul.f32 %v1468, 0.125
  %v1533 = vmul.f32 %v1469, 0.125
  %v1534 = vmul.f32 %v1470, 0.125
  %v1535 = vmul.f32 %v1471, 0.125
  %v1536 = vmul.f32 %v1472, 0.125
  %v1537 = vmul.f32 %v1473, 0.125
  %v1538 = vmul.f32 %v1474, 0.125
  %v1539 = vmul.f32 %v1475, 0.125
  %v1540 = vmul.f32 %v1476, 0.125
  %v1541 = vmul.f32 %v1477, 0.125
  %v1542 = vmul.f32 %v1478, 0.125
  %v1543 = vmul.f32 %v1479, 0.125
  %v1544 = vmul.f32 %v1480, 0.125
  %v1545 = vmul.f32 %v1481, 0.125
  %v1546 = vmul.f32 %v1482, 0.125
  %v1547 = vmul.f32 %v1483, 0.125
  %v1548 = vmul.f32 %v1484, 0.125
  %v1549 = vmul.f32 %v1485, 0.125
  %v1550 = vmul.f32 %v1486, 0.125
  %v1551 = vmul.f32 %v1487, 0.125
  %v1552 = vmul.f32 %v1488, 0.125
  %v1553 = vmul.f32 %v1489, 0.125
  %v1554 = vmul.f32 %v1490, 0.125
  %v1555 = vmul.f32 %v1491, 0.125
  %v1556 = vmul.f32 %v1492, 0.125
  %v1557 = vmul.f32 %v1493, 0.125
  %v1558 = vmul.f32 %v1494, 0.125
  %v1559 = vmul.f32 %v1495, 0.125
  %v1560 = vmul.f32 %v1496, 0.125
  %v1561 = vmul.f32 %v1497, 0.125
  %v1562 = vmul.f32 %v1498, 0.125
  %v1563 = vmul.f32 %v1499, 0.125
  %v1564 = vmul.f32 %v1500, 0.125
  %v1565 = vmul.f32 %v1501, 0.125
  %v1566 = vmul.f32 %v1502, 0.125
  %v1567 = vmul.f32 %v1503, 0.125
  %v1568 = vmul.f32 %v1504, 0.125
  %v1569 = vmul.f32 %v1505, 0.125
  %v1570 = vadd.f32 %v1506, 1e-06
  %v1571 = vadd.f32 %v1507, 1e-06
  %v1572 = vadd.f32 %v1508, 1e-06
  %v1573 = vadd.f32 %v1509, 1e-06
  %v1574 = vadd.f32 %v1510, 1e-06
  %v1575 = vadd.f32 %v1511, 1e-06
  %v1576 = vadd.f32 %v1512, 1e-06
  %v1577 = vadd.f32 %v1513, 1e-06
  %v1578 = vadd.f32 %v1514, 1e-06
  %v1579 = vadd.f32 %v1515, 1e-06
  %v1580 = vadd.f32 %v1516, 1e-06
  %v1581 = vadd.f32 %v1517, 1e-06
  %v1582 = vadd.f32 %v1518, 1e-06
  %v1583 = vadd.f32 %v1519, 1e-06
  %v1584 = vadd.f32 %v1520, 1e-06
  %v1585 = vadd.f32 %v1521, 1e-06
  %v1586 = vadd.f32 %v1522, 1e-06
  %v1587 = vadd.f32 %v1523, 1e-06
  %v1588 = vadd.f32 %v1524, 1e-06
  %v1589 = vadd.f32 %v1525, 1e-06
  %v1590 = vadd.f32 %v1526, 1e-06
  %v1591 = vadd.f32 %v1527, 1e-06
  %v1592 = vadd.f32 %v1528, 1e-06
  %v1593 = vadd.f32 %v1529, 1e-06
  %v1594 = vadd.f32 %v1530, 1e-06
  %v1595 = vadd.f32 %v1531, 1e-06
  %v1596 = vadd.f32 %v1532, 1e-06
  %v1597 = vadd.f32 %v1533, 1e-06
  %v1598 = vadd.f32 %v1534, 1e-06
  %v1599 = vadd.f32 %v1535, 1e-06
  %v1600 = vadd.f32 %v1536, 1e-06
  %v1601 = vadd.f32 %v1537, 1e-06
  %v1602 = vadd.f32 %v1538, 1e-06
  %v1603 = vadd.f32 %v1539, 1e-06
  %v1604 = vadd.f32 %v1540, 1e-06
  %v1605 = vadd.f32 %v1541, 1e-06
  %v1606 = vadd.f32 %v1542, 1e-06
  %v1607 = vadd.f32 %v1543, 1e-06
  %v1608 = vadd.f32 %v1544, 1e-06
  %v1609 = vadd.f32 %v1545, 1e-06
  %v1610 = vadd.f32 %v1546, 1e-06
  %v1611 = vadd.f32 %v1547, 1e-06
  %v1612 = vadd.f32 %v1548, 1e-06
  %v1613 = vadd.f32 %v1549, 1e-06
  %v1614 = vadd.f32 %v1550, 1e-06
  %v1615 = vadd.f32 %v1551, 1e-06
  %v1616 = vadd.f32 %v1552, 1e-06
  %v1617 = vadd.f32 %v1553, 1e-06
  %v1618 = vadd.f32 %v1554, 1e-06
  %v1619 = vadd.f32 %v1555, 1e-06
  %v1620 = vadd.f32 %v1556, 1e-06
  %v1621 = vadd.f32 %v1557, 1e-06
  %v1622 = vadd.f32 %v1558, 1e-06
  %v1623 = vadd.f32 %v1559, 1e-06
  %v1624 = vadd.f32 %v1560, 1e-06
  %v1625 = vadd.f32 %v1561, 1e-06
  %v1626 = vadd.f32 %v1562, 1e-06
  %v1627 = vadd.f32 %v1563, 1e-06
  %v1628 = vadd.f32 %v1564, 1e-06
  %v1629 = vadd.f32 %v1565, 1e-06
  %v1630 = vadd.f32 %v1566, 1e-06
  %v1631 = vadd.f32 %v1567, 1e-06
  %v1632 = vadd.f32 %v1568, 1e-06
  %v1633 = vadd.f32 %v1569, 1e-06
  %v1634 = vrsqrt.pop %v1570
  %v1635 = vrsqrt.pop %v1571
  %v1636 = vrsqrt.pop %v1572
  %v1637 = vrsqrt.pop %v1573
  %v1638 = vrsqrt.pop %v1574
  %v1639 = vrsqrt.pop %v1575
  %v1640 = vrsqrt.pop %v1576
  %v1641 = vrsqrt.pop %v1577
  %v1642 = vrsqrt.pop %v1578
  %v1643 = vrsqrt.pop %v1579
  %v1644 = vrsqrt.pop %v1580
  %v1645 = vrsqrt.pop %v1581
  %v1646 = vrsqrt.pop %v1582
  %v1647 = vrsqrt.pop %v1583
  %v1648 = vrsqrt.pop %v1584
  %v1649 = vrsqrt.pop %v1585
  %v1650 = vrsqrt.pop %v1586
  %v1651 = vrsqrt.pop %v1587
  %v1652 = vrsqrt.pop %v1588
  %v1653 = vrsqrt.pop %v1589
  %v1654 = vrsqrt.pop %v1590
  %v1655 = vrsqrt.pop %v1591
  %v1656 = vrsqrt.pop %v1592
  %v1657 = vrsqrt.pop %v1593
  %v1658 = vrsqrt.pop %v1594
  %v1659 = vrsqrt.pop %v1595
  %v1660 = vrsqrt.pop %v1596
  %v1661 = vrsqrt.pop %v1597
  %v1662 = vrsqrt.pop %v1598
  %v1663 = vrsqrt.pop %v1599
  %v1664 = vrsqrt.pop %v1600
  %v1665 = vrsqrt.pop %v1601
  %v1666 = vrsqrt.pop %v1602
  %v1667 = vrsqrt.pop %v1603
  %v1668 = vrsqrt.pop %v1604
  %v1669 = vrsqrt.pop %v1605
  %v1670 = vrsqrt.pop %v1606
  %v1671 = vrsqrt.pop %v1607
  %v1672 = vrsqrt.pop %v1608
  %v1673 = vrsqrt.pop %v1609
  %v1674 = vrsqrt.pop %v1610
  %v1675 = vrsqrt.pop %v1611
  %v1676 = vrsqrt.pop %v1612
  %v1677 = vrsqrt.pop %v1613
  %v1678 = vrsqrt.pop %v1614
  %v1679 = vrsqrt.pop %v1615
  %v1680 = vrsqrt.pop %v1616
  %v1681 = vrsqrt.pop %v1617
  %v1682 = vrsqrt.pop %v1618
  %v1683 = vrsqrt.pop %v1619
  %v1684 = vrsqrt.pop %v1620
  %v1685 = vrsqrt.pop %v1621
  %v1686 = vrsqrt.pop %v1622
  %v1687 = vrsqrt.pop %v1623
  %v1688 = vrsqrt.pop %v1624
  %v1689 = vrsqrt.pop %v1625
  %v1690 = vrsqrt.pop %v1626
  %v1691 = vrsqrt.pop %v1627
  %v1692 = vrsqrt.pop %v1628
  %v1693 = vrsqrt.pop %v1629
  %v1694 = vrsqrt.pop %v1630
  %v1695 = vrsqrt.pop %v1631
  %v1696 = vrsqrt.pop %v1632
  %v1697 = vrsqrt.pop %v1633
  %v1698 = vld [vmem:[%s2] sm:$0x1]
  %v1699 = vld [vmem:[%s3] sm:$0x1]
  %1764 = vrot.lane.b32.xlu0 %v866, 4
  %v1765 = vpop.permute.xlu0 %1764
  %1766 = vrot.lane.b32.xlu0 %v867, 4
  %v1767 = vpop.permute.xlu0 %1766
  %1768 = vrot.lane.b32.xlu0 %v868, 4
  %v1769 = vpop.permute.xlu0 %1768
  %1770 = vrot.lane.b32.xlu0 %v869, 4
  %v1771 = vpop.permute.xlu0 %1770
  %1772 = vrot.lane.b32.xlu0 %v870, 4
  %v1773 = vpop.permute.xlu0 %1772
  %1774 = vrot.lane.b32.xlu0 %v871, 4
  %v1775 = vpop.permute.xlu0 %1774
  %1776 = vrot.lane.b32.xlu0 %v872, 4
  %v1777 = vpop.permute.xlu0 %1776
  %1778 = vrot.lane.b32.xlu0 %v873, 4
  %v1779 = vpop.permute.xlu0 %1778
  %1780 = vrot.lane.b32.xlu0 %v874, 4
  %v1781 = vpop.permute.xlu0 %1780
  %1782 = vrot.lane.b32.xlu0 %v875, 4
  %v1783 = vpop.permute.xlu0 %1782
  %1784 = vrot.lane.b32.xlu0 %v876, 4
  %v1785 = vpop.permute.xlu0 %1784
  %1786 = vrot.lane.b32.xlu0 %v877, 4
  %v1787 = vpop.permute.xlu0 %1786
  %1788 = vrot.lane.b32.xlu0 %v878, 4
  %v1789 = vpop.permute.xlu0 %1788
  %1790 = vrot.lane.b32.xlu0 %v879, 4
  %v1791 = vpop.permute.xlu0 %1790
  %1792 = vrot.lane.b32.xlu0 %v880, 4
  %v1793 = vpop.permute.xlu0 %1792
  %1794 = vrot.lane.b32.xlu0 %v881, 4
  %v1795 = vpop.permute.xlu0 %1794
  %1796 = vrot.lane.b32.xlu0 %v882, 4
  %v1797 = vpop.permute.xlu0 %1796
  %1798 = vrot.lane.b32.xlu0 %v883, 4
  %v1799 = vpop.permute.xlu0 %1798
  %1800 = vrot.lane.b32.xlu0 %v884, 4
  %v1801 = vpop.permute.xlu0 %1800
  %1802 = vrot.lane.b32.xlu0 %v885, 4
  %v1803 = vpop.permute.xlu0 %1802
  %1804 = vrot.lane.b32.xlu0 %v886, 4
  %v1805 = vpop.permute.xlu0 %1804
  %1806 = vrot.lane.b32.xlu0 %v887, 4
  %v1807 = vpop.permute.xlu0 %1806
  %1808 = vrot.lane.b32.xlu0 %v888, 4
  %v1809 = vpop.permute.xlu0 %1808
  %1810 = vrot.lane.b32.xlu0 %v889, 4
  %v1811 = vpop.permute.xlu0 %1810
  %1812 = vrot.lane.b32.xlu0 %v890, 4
  %v1813 = vpop.permute.xlu0 %1812
  %1814 = vrot.lane.b32.xlu0 %v891, 4
  %v1815 = vpop.permute.xlu0 %1814
  %1816 = vrot.lane.b32.xlu0 %v892, 4
  %v1817 = vpop.permute.xlu0 %1816
  %1818 = vrot.lane.b32.xlu0 %v893, 4
  %v1819 = vpop.permute.xlu0 %1818
  %1820 = vrot.lane.b32.xlu0 %v894, 4
  %v1821 = vpop.permute.xlu0 %1820
  %1822 = vrot.lane.b32.xlu0 %v895, 4
  %v1823 = vpop.permute.xlu0 %1822
  %1824 = vrot.lane.b32.xlu0 %v896, 4
  %v1825 = vpop.permute.xlu0 %1824
  %1826 = vrot.lane.b32.xlu0 %v897, 4
  %v1827 = vpop.permute.xlu0 %1826
  %1828 = vrot.lane.b32.xlu0 %v898, 4
  %v1829 = vpop.permute.xlu0 %1828
  %1830 = vrot.lane.b32.xlu0 %v899, 4
  %v1831 = vpop.permute.xlu0 %1830
  %1832 = vrot.lane.b32.xlu0 %v900, 4
  %v1833 = vpop.permute.xlu0 %1832
  %1834 = vrot.lane.b32.xlu0 %v901, 4
  %v1835 = vpop.permute.xlu0 %1834
  %1836 = vrot.lane.b32.xlu0 %v902, 4
  %v1837 = vpop.permute.xlu0 %1836
  %1838 = vrot.lane.b32.xlu0 %v903, 4
  %v1839 = vpop.permute.xlu0 %1838
  %1840 = vrot.lane.b32.xlu0 %v904, 4
  %v1841 = vpop.permute.xlu0 %1840
  %1842 = vrot.lane.b32.xlu0 %v905, 4
  %v1843 = vpop.permute.xlu0 %1842
  %1844 = vrot.lane.b32.xlu0 %v906, 4
  %v1845 = vpop.permute.xlu0 %1844
  %1846 = vrot.lane.b32.xlu0 %v907, 4
  %v1847 = vpop.permute.xlu0 %1846
  %1848 = vrot.lane.b32.xlu0 %v908, 4
  %v1849 = vpop.permute.xlu0 %1848
  %1850 = vrot.lane.b32.xlu0 %v909, 4
  %v1851 = vpop.permute.xlu0 %1850
  %1852 = vrot.lane.b32.xlu0 %v910, 4
  %v1853 = vpop.permute.xlu0 %1852
  %1854 = vrot.lane.b32.xlu0 %v911, 4
  %v1855 = vpop.permute.xlu0 %1854
  %1856 = vrot.lane.b32.xlu0 %v912, 4
  %v1857 = vpop.permute.xlu0 %1856
  %1858 = vrot.lane.b32.xlu0 %v913, 4
  %v1859 = vpop.permute.xlu0 %1858
  %1860 = vrot.lane.b32.xlu0 %v914, 4
  %v1861 = vpop.permute.xlu0 %1860
  %1862 = vrot.lane.b32.xlu0 %v915, 4
  %v1863 = vpop.permute.xlu0 %1862
  %1864 = vrot.lane.b32.xlu0 %v916, 4
  %v1865 = vpop.permute.xlu0 %1864
  %1866 = vrot.lane.b32.xlu0 %v917, 4
  %v1867 = vpop.permute.xlu0 %1866
  %1868 = vrot.lane.b32.xlu0 %v918, 4
  %v1869 = vpop.permute.xlu0 %1868
  %1870 = vrot.lane.b32.xlu0 %v919, 4
  %v1871 = vpop.permute.xlu0 %1870
  %1872 = vrot.lane.b32.xlu0 %v920, 4
  %v1873 = vpop.permute.xlu0 %1872
  %1874 = vrot.lane.b32.xlu0 %v921, 4
  %v1875 = vpop.permute.xlu0 %1874
  %1876 = vrot.lane.b32.xlu0 %v922, 4
  %v1877 = vpop.permute.xlu0 %1876
  %1878 = vrot.lane.b32.xlu0 %v923, 4
  %v1879 = vpop.permute.xlu0 %1878
  %1880 = vrot.lane.b32.xlu0 %v924, 4
  %v1881 = vpop.permute.xlu0 %1880
  %1882 = vrot.lane.b32.xlu0 %v925, 4
  %v1883 = vpop.permute.xlu0 %1882
  %1884 = vrot.lane.b32.xlu0 %v926, 4
  %v1885 = vpop.permute.xlu0 %1884
  %1886 = vrot.lane.b32.xlu0 %v927, 4
  %v1887 = vpop.permute.xlu0 %1886
  %1888 = vrot.lane.b32.xlu0 %v928, 4
  %v1889 = vpop.permute.xlu0 %1888
  %1890 = vrot.lane.b32.xlu0 %v929, 4
  %v1891 = vpop.permute.xlu0 %1890
  %v1956 = vsel %vm289, %v802, %v1765
  %v1957 = vsel %vm289, %v803, %v1767
  %v1958 = vsel %vm289, %v804, %v1769
  %v1959 = vsel %vm289, %v805, %v1771
  %v1960 = vsel %vm289, %v806, %v1773
  %v1961 = vsel %vm289, %v807, %v1775
  %v1962 = vsel %vm289, %v808, %v1777
  %v1963 = vsel %vm289, %v809, %v1779
  %v1964 = vsel %vm289, %v810, %v1781
  %v1965 = vsel %vm289, %v811, %v1783
  %v1966 = vsel %vm289, %v812, %v1785
  %v1967 = vsel %vm289, %v813, %v1787
  %v1968 = vsel %vm289, %v814, %v1789
  %v1969 = vsel %vm289, %v815, %v1791
  %v1970 = vsel %vm289, %v816, %v1793
  %v1971 = vsel %vm289, %v817, %v1795
  %v1972 = vsel %vm289, %v818, %v1797
  %v1973 = vsel %vm289, %v819, %v1799
  %v1974 = vsel %vm289, %v820, %v1801
  %v1975 = vsel %vm289, %v821, %v1803
  %v1976 = vsel %vm289, %v822, %v1805
  %v1977 = vsel %vm289, %v823, %v1807
  %v1978 = vsel %vm289, %v824, %v1809
  %v1979 = vsel %vm289, %v825, %v1811
  %v1980 = vsel %vm289, %v826, %v1813
  %v1981 = vsel %vm289, %v827, %v1815
  %v1982 = vsel %vm289, %v828, %v1817
  %v1983 = vsel %vm289, %v829, %v1819
  %v1984 = vsel %vm289, %v830, %v1821
  %v1985 = vsel %vm289, %v831, %v1823
  %v1986 = vsel %vm289, %v832, %v1825
  %v1987 = vsel %vm289, %v833, %v1827
  %v1988 = vsel %vm289, %v834, %v1829
  %v1989 = vsel %vm289, %v835, %v1831
  %v1990 = vsel %vm289, %v836, %v1833
  %v1991 = vsel %vm289, %v837, %v1835
  %v1992 = vsel %vm289, %v838, %v1837
  %v1993 = vsel %vm289, %v839, %v1839
  %v1994 = vsel %vm289, %v840, %v1841
  %v1995 = vsel %vm289, %v841, %v1843
  %v1996 = vsel %vm289, %v842, %v1845
  %v1997 = vsel %vm289, %v843, %v1847
  %v1998 = vsel %vm289, %v844, %v1849
  %v1999 = vsel %vm289, %v845, %v1851
  %v2000 = vsel %vm289, %v846, %v1853
  %v2001 = vsel %vm289, %v847, %v1855
  %v2002 = vsel %vm289, %v848, %v1857
  %v2003 = vsel %vm289, %v849, %v1859
  %v2004 = vsel %vm289, %v850, %v1861
  %v2005 = vsel %vm289, %v851, %v1863
  %v2006 = vsel %vm289, %v852, %v1865
  %v2007 = vsel %vm289, %v853, %v1867
  %v2008 = vsel %vm289, %v854, %v1869
  %v2009 = vsel %vm289, %v855, %v1871
  %v2010 = vsel %vm289, %v856, %v1873
  %v2011 = vsel %vm289, %v857, %v1875
  %v2012 = vsel %vm289, %v858, %v1877
  %v2013 = vsel %vm289, %v859, %v1879
  %v2014 = vsel %vm289, %v860, %v1881
  %v2015 = vsel %vm289, %v861, %v1883
  %v2016 = vsel %vm289, %v862, %v1885
  %v2017 = vsel %vm289, %v863, %v1887
  %v2018 = vsel %vm289, %v864, %v1889
  %v2019 = vsel %vm289, %v865, %v1891
  %v2020 = vmul.f32 %v1956, %v1634
  %v2021 = vmul.f32 %v1957, %v1635
  %v2022 = vmul.f32 %v1958, %v1636
  %v2023 = vmul.f32 %v1959, %v1637
  %v2024 = vmul.f32 %v1960, %v1638
  %v2025 = vmul.f32 %v1961, %v1639
  %v2026 = vmul.f32 %v1962, %v1640
  %v2027 = vmul.f32 %v1963, %v1641
  %v2028 = vmul.f32 %v1964, %v1642
  %v2029 = vmul.f32 %v1965, %v1643
  %v2030 = vmul.f32 %v1966, %v1644
  %v2031 = vmul.f32 %v1967, %v1645
  %v2032 = vmul.f32 %v1968, %v1646
  %v2033 = vmul.f32 %v1969, %v1647
  %v2034 = vmul.f32 %v1970, %v1648
  %v2035 = vmul.f32 %v1971, %v1649
  %v2036 = vmul.f32 %v1972, %v1650
  %v2037 = vmul.f32 %v1973, %v1651
  %v2038 = vmul.f32 %v1974, %v1652
  %v2039 = vmul.f32 %v1975, %v1653
  %v2040 = vmul.f32 %v1976, %v1654
  %v2041 = vmul.f32 %v1977, %v1655
  %v2042 = vmul.f32 %v1978, %v1656
  %v2043 = vmul.f32 %v1979, %v1657
  %v2044 = vmul.f32 %v1980, %v1658
  %v2045 = vmul.f32 %v1981, %v1659
  %v2046 = vmul.f32 %v1982, %v1660
  %v2047 = vmul.f32 %v1983, %v1661
  %v2048 = vmul.f32 %v1984, %v1662
  %v2049 = vmul.f32 %v1985, %v1663
  %v2050 = vmul.f32 %v1986, %v1664
  %v2051 = vmul.f32 %v1987, %v1665
  %v2052 = vmul.f32 %v1988, %v1666
  %v2053 = vmul.f32 %v1989, %v1667
  %v2054 = vmul.f32 %v1990, %v1668
  %v2055 = vmul.f32 %v1991, %v1669
  %v2056 = vmul.f32 %v1992, %v1670
  %v2057 = vmul.f32 %v1993, %v1671
  %v2058 = vmul.f32 %v1994, %v1672
  %v2059 = vmul.f32 %v1995, %v1673
  %v2060 = vmul.f32 %v1996, %v1674
  %v2061 = vmul.f32 %v1997, %v1675
  %v2062 = vmul.f32 %v1998, %v1676
  %v2063 = vmul.f32 %v1999, %v1677
  %v2064 = vmul.f32 %v2000, %v1678
  %v2065 = vmul.f32 %v2001, %v1679
  %v2066 = vmul.f32 %v2002, %v1680
  %v2067 = vmul.f32 %v2003, %v1681
  %v2068 = vmul.f32 %v2004, %v1682
  %v2069 = vmul.f32 %v2005, %v1683
  %v2070 = vmul.f32 %v2006, %v1684
  %v2071 = vmul.f32 %v2007, %v1685
  %v2072 = vmul.f32 %v2008, %v1686
  %v2073 = vmul.f32 %v2009, %v1687
  %v2074 = vmul.f32 %v2010, %v1688
  %v2075 = vmul.f32 %v2011, %v1689
  %v2076 = vmul.f32 %v2012, %v1690
  %v2077 = vmul.f32 %v2013, %v1691
  %v2078 = vmul.f32 %v2014, %v1692
  %v2079 = vmul.f32 %v2015, %v1693
  %v2080 = vmul.f32 %v2016, %v1694
  %v2081 = vmul.f32 %v2017, %v1695
  %v2082 = vmul.f32 %v2018, %v1696
  %v2083 = vmul.f32 %v2019, %v1697
  %v2085 = vlaneseq
  %v2086 = vshrl.u32 %v2085, 7
  %v2087 = vsub.s32 0, %v2086
  %v2088 = vrot.slane %v1698, %v2087
  %v2090 = vmul.f32 %v2020, %v2088
  %v2091 = vmul.f32 %v2021, %v2088
  %v2092 = vmul.f32 %v2022, %v2088
  %v2093 = vmul.f32 %v2023, %v2088
  %v2094 = vmul.f32 %v2024, %v2088
  %v2095 = vmul.f32 %v2025, %v2088
  %v2096 = vmul.f32 %v2026, %v2088
  %v2097 = vmul.f32 %v2027, %v2088
  %v2098 = vmul.f32 %v2028, %v2088
  %v2099 = vmul.f32 %v2029, %v2088
  %v2100 = vmul.f32 %v2030, %v2088
  %v2101 = vmul.f32 %v2031, %v2088
  %v2102 = vmul.f32 %v2032, %v2088
  %v2103 = vmul.f32 %v2033, %v2088
  %v2104 = vmul.f32 %v2034, %v2088
  %v2105 = vmul.f32 %v2035, %v2088
  %v2106 = vmul.f32 %v2036, %v2088
  %v2107 = vmul.f32 %v2037, %v2088
  %v2108 = vmul.f32 %v2038, %v2088
  %v2109 = vmul.f32 %v2039, %v2088
  %v2110 = vmul.f32 %v2040, %v2088
  %v2111 = vmul.f32 %v2041, %v2088
  %v2112 = vmul.f32 %v2042, %v2088
  %v2113 = vmul.f32 %v2043, %v2088
  %v2114 = vmul.f32 %v2044, %v2088
  %v2115 = vmul.f32 %v2045, %v2088
  %v2116 = vmul.f32 %v2046, %v2088
  %v2117 = vmul.f32 %v2047, %v2088
  %v2118 = vmul.f32 %v2048, %v2088
  %v2119 = vmul.f32 %v2049, %v2088
  %v2120 = vmul.f32 %v2050, %v2088
  %v2121 = vmul.f32 %v2051, %v2088
  %v2122 = vmul.f32 %v2052, %v2088
  %v2123 = vmul.f32 %v2053, %v2088
  %v2124 = vmul.f32 %v2054, %v2088
  %v2125 = vmul.f32 %v2055, %v2088
  %v2126 = vmul.f32 %v2056, %v2088
  %v2127 = vmul.f32 %v2057, %v2088
  %v2128 = vmul.f32 %v2058, %v2088
  %v2129 = vmul.f32 %v2059, %v2088
  %v2130 = vmul.f32 %v2060, %v2088
  %v2131 = vmul.f32 %v2061, %v2088
  %v2132 = vmul.f32 %v2062, %v2088
  %v2133 = vmul.f32 %v2063, %v2088
  %v2134 = vmul.f32 %v2064, %v2088
  %v2135 = vmul.f32 %v2065, %v2088
  %v2136 = vmul.f32 %v2066, %v2088
  %v2137 = vmul.f32 %v2067, %v2088
  %v2138 = vmul.f32 %v2068, %v2088
  %v2139 = vmul.f32 %v2069, %v2088
  %v2140 = vmul.f32 %v2070, %v2088
  %v2141 = vmul.f32 %v2071, %v2088
  %v2142 = vmul.f32 %v2072, %v2088
  %v2143 = vmul.f32 %v2073, %v2088
  %v2144 = vmul.f32 %v2074, %v2088
  %v2145 = vmul.f32 %v2075, %v2088
  %v2146 = vmul.f32 %v2076, %v2088
  %v2147 = vmul.f32 %v2077, %v2088
  %v2148 = vmul.f32 %v2078, %v2088
  %v2149 = vmul.f32 %v2079, %v2088
  %v2150 = vmul.f32 %v2080, %v2088
  %v2151 = vmul.f32 %v2081, %v2088
  %v2152 = vmul.f32 %v2082, %v2088
  %v2153 = vmul.f32 %v2083, %v2088
  %v2155 = vlaneseq
  %v2156 = vshrl.u32 %v2155, 7
  %v2157 = vsub.s32 0, %v2156
  %v2158 = vrot.slane %v1699, %v2157
  %v2160 = vadd.f32 %v2090, %v2158
  %v2161 = vadd.f32 %v2091, %v2158
  %v2162 = vadd.f32 %v2092, %v2158
  %v2163 = vadd.f32 %v2093, %v2158
  %v2164 = vadd.f32 %v2094, %v2158
  %v2165 = vadd.f32 %v2095, %v2158
  %v2166 = vadd.f32 %v2096, %v2158
  %v2167 = vadd.f32 %v2097, %v2158
  %v2168 = vadd.f32 %v2098, %v2158
  %v2169 = vadd.f32 %v2099, %v2158
  %v2170 = vadd.f32 %v2100, %v2158
  %v2171 = vadd.f32 %v2101, %v2158
  %v2172 = vadd.f32 %v2102, %v2158
  %v2173 = vadd.f32 %v2103, %v2158
  %v2174 = vadd.f32 %v2104, %v2158
  %v2175 = vadd.f32 %v2105, %v2158
  %v2176 = vadd.f32 %v2106, %v2158
  %v2177 = vadd.f32 %v2107, %v2158
  %v2178 = vadd.f32 %v2108, %v2158
  %v2179 = vadd.f32 %v2109, %v2158
  %v2180 = vadd.f32 %v2110, %v2158
  %v2181 = vadd.f32 %v2111, %v2158
  %v2182 = vadd.f32 %v2112, %v2158
  %v2183 = vadd.f32 %v2113, %v2158
  %v2184 = vadd.f32 %v2114, %v2158
  %v2185 = vadd.f32 %v2115, %v2158
  %v2186 = vadd.f32 %v2116, %v2158
  %v2187 = vadd.f32 %v2117, %v2158
  %v2188 = vadd.f32 %v2118, %v2158
  %v2189 = vadd.f32 %v2119, %v2158
  %v2190 = vadd.f32 %v2120, %v2158
  %v2191 = vadd.f32 %v2121, %v2158
  %v2192 = vadd.f32 %v2122, %v2158
  %v2193 = vadd.f32 %v2123, %v2158
  %v2194 = vadd.f32 %v2124, %v2158
  %v2195 = vadd.f32 %v2125, %v2158
  %v2196 = vadd.f32 %v2126, %v2158
  %v2197 = vadd.f32 %v2127, %v2158
  %v2198 = vadd.f32 %v2128, %v2158
  %v2199 = vadd.f32 %v2129, %v2158
  %v2200 = vadd.f32 %v2130, %v2158
  %v2201 = vadd.f32 %v2131, %v2158
  %v2202 = vadd.f32 %v2132, %v2158
  %v2203 = vadd.f32 %v2133, %v2158
  %v2204 = vadd.f32 %v2134, %v2158
  %v2205 = vadd.f32 %v2135, %v2158
  %v2206 = vadd.f32 %v2136, %v2158
  %v2207 = vadd.f32 %v2137, %v2158
  %v2208 = vadd.f32 %v2138, %v2158
  %v2209 = vadd.f32 %v2139, %v2158
  %v2210 = vadd.f32 %v2140, %v2158
  %v2211 = vadd.f32 %v2141, %v2158
  %v2212 = vadd.f32 %v2142, %v2158
  %v2213 = vadd.f32 %v2143, %v2158
  %v2214 = vadd.f32 %v2144, %v2158
  %v2215 = vadd.f32 %v2145, %v2158
  %v2216 = vadd.f32 %v2146, %v2158
  %v2217 = vadd.f32 %v2147, %v2158
  %v2218 = vadd.f32 %v2148, %v2158
  %v2219 = vadd.f32 %v2149, %v2158
  %v2220 = vadd.f32 %v2150, %v2158
  %v2221 = vadd.f32 %v2151, %v2158
  %v2222 = vadd.f32 %v2152, %v2158
  %v2223 = vadd.f32 %v2153, %v2158
  %v2224 = vpack.c.bf16 %v2161, %v2160
  %v2225 = vpack.c.bf16 %v2163, %v2162
  %v2226 = vpack.c.bf16 %v2165, %v2164
  %v2227 = vpack.c.bf16 %v2167, %v2166
  %v2228 = vpack.c.bf16 %v2169, %v2168
  %v2229 = vpack.c.bf16 %v2171, %v2170
  %v2230 = vpack.c.bf16 %v2173, %v2172
  %v2231 = vpack.c.bf16 %v2175, %v2174
  %v2232 = vpack.c.bf16 %v2177, %v2176
  %v2233 = vpack.c.bf16 %v2179, %v2178
  %v2234 = vpack.c.bf16 %v2181, %v2180
  %v2235 = vpack.c.bf16 %v2183, %v2182
  %v2236 = vpack.c.bf16 %v2185, %v2184
  %v2237 = vpack.c.bf16 %v2187, %v2186
  %v2238 = vpack.c.bf16 %v2189, %v2188
  %v2239 = vpack.c.bf16 %v2191, %v2190
  %v2240 = vpack.c.bf16 %v2193, %v2192
  %v2241 = vpack.c.bf16 %v2195, %v2194
  %v2242 = vpack.c.bf16 %v2197, %v2196
  %v2243 = vpack.c.bf16 %v2199, %v2198
  %v2244 = vpack.c.bf16 %v2201, %v2200
  %v2245 = vpack.c.bf16 %v2203, %v2202
  %v2246 = vpack.c.bf16 %v2205, %v2204
  %v2247 = vpack.c.bf16 %v2207, %v2206
  %v2248 = vpack.c.bf16 %v2209, %v2208
  %v2249 = vpack.c.bf16 %v2211, %v2210
  %v2250 = vpack.c.bf16 %v2213, %v2212
  %v2251 = vpack.c.bf16 %v2215, %v2214
  %v2252 = vpack.c.bf16 %v2217, %v2216
  %v2253 = vpack.c.bf16 %v2219, %v2218
  %v2254 = vpack.c.bf16 %v2221, %v2220
  %v2255 = vpack.c.bf16 %v2223, %v2222
  %v2256 = vld [vmem:[%s5] sm:$0x1]
  %v2257 = vld [vmem:[%s4] sm:$0xf]
  %v2259 = vlaneseq
  %v2260 = vshrl.u32 %v2259, 7
  %v2261 = vsub.s32 0, %v2260
  %v2262 = vrot.slane %v2256, %v2261
  %vm2264 = vcmask 64512
  %v2266 = vsel %vm2264, %v2224, 0
  %v2269 = vsel %vm2264, %v2225, 0
  %v2272 = vsel %vm2264, %v2226, 0
  %v2275 = vsel %vm2264, %v2227, 0
  %v2278 = vsel %vm2264, %v2228, 0
  %v2281 = vsel %vm2264, %v2229, 0
  %v2284 = vsel %vm2264, %v2230, 0
  %v2287 = vsel %vm2264, %v2231, 0
  %v2290 = vsel %vm2264, %v2232, 0
  %v2293 = vsel %vm2264, %v2233, 0
  %v2296 = vsel %vm2264, %v2234, 0
  %v2299 = vsel %vm2264, %v2235, 0
  %v2302 = vsel %vm2264, %v2236, 0
  %v2305 = vsel %vm2264, %v2237, 0
  %v2308 = vsel %vm2264, %v2238, 0
  %v2311 = vsel %vm2264, %v2239, 0
  %v2314 = vsel %vm2264, %v2240, 0
  %v2317 = vsel %vm2264, %v2241, 0
  %v2320 = vsel %vm2264, %v2242, 0
  %v2323 = vsel %vm2264, %v2243, 0
  %v2326 = vsel %vm2264, %v2244, 0
  %v2329 = vsel %vm2264, %v2245, 0
  %v2332 = vsel %vm2264, %v2246, 0
  %v2335 = vsel %vm2264, %v2247, 0
  %v2338 = vsel %vm2264, %v2248, 0
  %v2341 = vsel %vm2264, %v2249, 0
  %v2344 = vsel %vm2264, %v2250, 0
  %v2347 = vsel %vm2264, %v2251, 0
  %v2350 = vsel %vm2264, %v2252, 0
  %v2353 = vsel %vm2264, %v2253, 0
  %v2356 = vsel %vm2264, %v2254, 0
  %v2359 = vsel %vm2264, %v2255, 0
  %vm2361 = vcmask 1043456
  %v2363 = vsel %vm2361, %v2257, 0
  %2365 = vmatprep.subr.bf16.mxu0 0
  %2366 = vmatpush1.bf16.msra.mxu0 0
  %2367 = vmatprep.subr.bf16.mxu0 0
  %2368 = vmatpush1.bf16.msra.mxu0 0
  %2369 = vmatprep.subr.bf16.mxu0 0
  %2370 = vmatpush1.bf16.msra.mxu0 0
  %2371 = vmatprep.subr.bf16.mxu0 0
  %2372 = vmatpush1.bf16.msra.mxu0 0
  %2373 = vmatprep.subr.bf16.mxu0 0
  %2374 = vmatpush1.bf16.msra.mxu0 0
  %2375 = vmatprep.subr.bf16.mxu0 0
  %2376 = vmatpush1.bf16.msra.mxu0 0
  %2377 = vmatprep.subr.bf16.mxu0 0
  %2378 = vmatpush1.bf16.msra.mxu0 0
  %2379 = vmatprep.subr.bf16.mxu0 0
  %2380 = vmatpush1.bf16.msra.mxu0 %v2363
  %2381 = vmatprep.subr.bf16.mxu0 0
  %2382 = vmatpush2.bf16.msra.mxu0 0
  %2383 = vmatprep.subr.bf16.mxu0 0
  %2384 = vmatpush2.bf16.msra.mxu0 0
  %2385 = vmatprep.subr.bf16.mxu0 0
  %2386 = vmatpush2.bf16.msra.mxu0 0
  %2387 = vmatprep.subr.bf16.mxu0 0
  %2388 = vmatpush2.bf16.msra.mxu0 0
  %2389 = vmatprep.subr.bf16.mxu0 0
  %2390 = vmatpush2.bf16.msra.mxu0 0
  %2391 = vmatprep.subr.bf16.mxu0 0
  %2392 = vmatpush2.bf16.msra.mxu0 0
  %2393 = vmatprep.subr.bf16.mxu0 0
  %2394 = vmatpush2.bf16.msra.mxu0 0
  %2395 = vmatprep.subr.bf16.mxu0 0
  %2396 = vmatpush2.bf16.msra.mxu0 0
  %2397 = vmatprep.mubr.bf16.mxu0 0
  %2398 = vmatmul.mubr.bf16.gmra.mxu0 %v2266
  %v2399 = vpop.f32.mrf.mxu0
  %v2400 = vadd.f32 %v2262, %v2399
  %v2401 = vpop.f32.mrf.mxu0
  %v2402 = vpop.f32.mrf.mxu0
  %v2403 = vadd.f32 %v2262, %v2402
  %v2404 = vpop.f32.mrf.mxu0
  %2405 = vmatprep.mubr.bf16.mxu0 0
  %2406 = vmatmul.mubr.bf16.gmra.mxu0 %v2269
  %v2407 = vpop.f32.mrf.mxu0
  %v2408 = vadd.f32 %v2262, %v2407
  %v2409 = vpop.f32.mrf.mxu0
  %v2410 = vpop.f32.mrf.mxu0
  %v2411 = vadd.f32 %v2262, %v2410
  %v2412 = vpop.f32.mrf.mxu0
  %2413 = vmatprep.mubr.bf16.mxu0 0
  %2414 = vmatmul.mubr.bf16.gmra.mxu0 %v2272
  %v2415 = vpop.f32.mrf.mxu0
  %v2416 = vadd.f32 %v2262, %v2415
  %v2417 = vpop.f32.mrf.mxu0
  %v2418 = vpop.f32.mrf.mxu0
  %v2419 = vadd.f32 %v2262, %v2418
  %v2420 = vpop.f32.mrf.mxu0
  %2421 = vmatprep.mubr.bf16.mxu0 0
  %2422 = vmatmul.mubr.bf16.gmra.mxu0 %v2275
  %v2423 = vpop.f32.mrf.mxu0
  %v2424 = vadd.f32 %v2262, %v2423
  %v2425 = vpop.f32.mrf.mxu0
  %v2426 = vpop.f32.mrf.mxu0
  %v2427 = vadd.f32 %v2262, %v2426
  %v2428 = vpop.f32.mrf.mxu0
  %2429 = vmatprep.mubr.bf16.mxu0 0
  %2430 = vmatmul.mubr.bf16.gmra.mxu0 %v2278
  %v2431 = vpop.f32.mrf.mxu0
  %v2432 = vadd.f32 %v2262, %v2431
  %v2433 = vpop.f32.mrf.mxu0
  %v2434 = vpop.f32.mrf.mxu0
  %v2435 = vadd.f32 %v2262, %v2434
  %v2436 = vpop.f32.mrf.mxu0
  %2437 = vmatprep.mubr.bf16.mxu0 0
  %2438 = vmatmul.mubr.bf16.gmra.mxu0 %v2281
  %v2439 = vpop.f32.mrf.mxu0
  %v2440 = vadd.f32 %v2262, %v2439
  %v2441 = vpop.f32.mrf.mxu0
  %v2442 = vpop.f32.mrf.mxu0
  %v2443 = vadd.f32 %v2262, %v2442
  %v2444 = vpop.f32.mrf.mxu0
  %2445 = vmatprep.mubr.bf16.mxu0 0
  %2446 = vmatmul.mubr.bf16.gmra.mxu0 %v2284
  %v2447 = vpop.f32.mrf.mxu0
  %v2448 = vadd.f32 %v2262, %v2447
  %v2449 = vpop.f32.mrf.mxu0
  %v2450 = vpop.f32.mrf.mxu0
  %v2451 = vadd.f32 %v2262, %v2450
  %v2452 = vpop.f32.mrf.mxu0
  %2453 = vmatprep.mubr.bf16.mxu0 0
  %2454 = vmatmul.mubr.bf16.gmra.mxu0 %v2287
  %v2455 = vpop.f32.mrf.mxu0
  %v2456 = vadd.f32 %v2262, %v2455
  %v2457 = vpop.f32.mrf.mxu0
  %v2458 = vpop.f32.mrf.mxu0
  %v2459 = vadd.f32 %v2262, %v2458
  %v2460 = vpop.f32.mrf.mxu0
  %2461 = vmatprep.mubr.bf16.mxu0 0
  %2462 = vmatmul.mubr.bf16.gmra.mxu0 %v2290
  %v2463 = vpop.f32.mrf.mxu0
  %v2464 = vadd.f32 %v2262, %v2463
  %v2465 = vpop.f32.mrf.mxu0
  %v2466 = vpop.f32.mrf.mxu0
  %v2467 = vadd.f32 %v2262, %v2466
  %v2468 = vpop.f32.mrf.mxu0
  %2469 = vmatprep.mubr.bf16.mxu0 0
  %2470 = vmatmul.mubr.bf16.gmra.mxu0 %v2293
  %v2471 = vpop.f32.mrf.mxu0
  %v2472 = vadd.f32 %v2262, %v2471
  %v2473 = vpop.f32.mrf.mxu0
  %v2474 = vpop.f32.mrf.mxu0
  %v2475 = vadd.f32 %v2262, %v2474
  %v2476 = vpop.f32.mrf.mxu0
  %2477 = vmatprep.mubr.bf16.mxu0 0
  %2478 = vmatmul.mubr.bf16.gmra.mxu0 %v2296
  %v2479 = vpop.f32.mrf.mxu0
  %v2480 = vadd.f32 %v2262, %v2479
  %v2481 = vpop.f32.mrf.mxu0
  %v2482 = vpop.f32.mrf.mxu0
  %v2483 = vadd.f32 %v2262, %v2482
  %v2484 = vpop.f32.mrf.mxu0
  %2485 = vmatprep.mubr.bf16.mxu0 0
  %2486 = vmatmul.mubr.bf16.gmra.mxu0 %v2299
  %v2487 = vpop.f32.mrf.mxu0
  %v2488 = vadd.f32 %v2262, %v2487
  %v2489 = vpop.f32.mrf.mxu0
  %v2490 = vpop.f32.mrf.mxu0
  %v2491 = vadd.f32 %v2262, %v2490
  %v2492 = vpop.f32.mrf.mxu0
  %2493 = vmatprep.mubr.bf16.mxu0 0
  %2494 = vmatmul.mubr.bf16.gmra.mxu0 %v2302
  %v2495 = vpop.f32.mrf.mxu0
  %v2496 = vadd.f32 %v2262, %v2495
  %v2497 = vpop.f32.mrf.mxu0
  %v2498 = vpop.f32.mrf.mxu0
  %v2499 = vadd.f32 %v2262, %v2498
  %v2500 = vpop.f32.mrf.mxu0
  %2501 = vmatprep.mubr.bf16.mxu0 0
  %2502 = vmatmul.mubr.bf16.gmra.mxu0 %v2305
  %v2503 = vpop.f32.mrf.mxu0
  %v2504 = vadd.f32 %v2262, %v2503
  %v2505 = vpop.f32.mrf.mxu0
  %v2506 = vpop.f32.mrf.mxu0
  %v2507 = vadd.f32 %v2262, %v2506
  %v2508 = vpop.f32.mrf.mxu0
  %2509 = vmatprep.mubr.bf16.mxu0 0
  %2510 = vmatmul.mubr.bf16.gmra.mxu0 %v2308
  %v2511 = vpop.f32.mrf.mxu0
  %v2512 = vadd.f32 %v2262, %v2511
  %v2513 = vpop.f32.mrf.mxu0
  %v2514 = vpop.f32.mrf.mxu0
  %v2515 = vadd.f32 %v2262, %v2514
  %v2516 = vpop.f32.mrf.mxu0
  %2517 = vmatprep.mubr.bf16.mxu0 0
  %2518 = vmatmul.mubr.bf16.gmra.mxu0 %v2311
  %v2519 = vpop.f32.mrf.mxu0
  %v2520 = vadd.f32 %v2262, %v2519
  %v2521 = vpop.f32.mrf.mxu0
  %v2522 = vpop.f32.mrf.mxu0
  %v2523 = vadd.f32 %v2262, %v2522
  %v2524 = vpop.f32.mrf.mxu0
  %2525 = vmatprep.mubr.bf16.mxu0 0
  %2526 = vmatmul.mubr.bf16.gmra.mxu0 %v2314
  %v2527 = vpop.f32.mrf.mxu0
  %v2528 = vadd.f32 %v2262, %v2527
  %v2529 = vpop.f32.mrf.mxu0
  %v2530 = vpop.f32.mrf.mxu0
  %v2531 = vadd.f32 %v2262, %v2530
  %v2532 = vpop.f32.mrf.mxu0
  %2533 = vmatprep.mubr.bf16.mxu0 0
  %2534 = vmatmul.mubr.bf16.gmra.mxu0 %v2317
  %v2535 = vpop.f32.mrf.mxu0
  %v2536 = vadd.f32 %v2262, %v2535
  %v2537 = vpop.f32.mrf.mxu0
  %v2538 = vpop.f32.mrf.mxu0
  %v2539 = vadd.f32 %v2262, %v2538
  %v2540 = vpop.f32.mrf.mxu0
  %2541 = vmatprep.mubr.bf16.mxu0 0
  %2542 = vmatmul.mubr.bf16.gmra.mxu0 %v2320
  %v2543 = vpop.f32.mrf.mxu0
  %v2544 = vadd.f32 %v2262, %v2543
  %v2545 = vpop.f32.mrf.mxu0
  %v2546 = vpop.f32.mrf.mxu0
  %v2547 = vadd.f32 %v2262, %v2546
  %v2548 = vpop.f32.mrf.mxu0
  %2549 = vmatprep.mubr.bf16.mxu0 0
  %2550 = vmatmul.mubr.bf16.gmra.mxu0 %v2323
  %v2551 = vpop.f32.mrf.mxu0
  %v2552 = vadd.f32 %v2262, %v2551
  %v2553 = vpop.f32.mrf.mxu0
  %v2554 = vpop.f32.mrf.mxu0
  %v2555 = vadd.f32 %v2262, %v2554
  %v2556 = vpop.f32.mrf.mxu0
  %2557 = vmatprep.mubr.bf16.mxu0 0
  %2558 = vmatmul.mubr.bf16.gmra.mxu0 %v2326
  %v2559 = vpop.f32.mrf.mxu0
  %v2560 = vadd.f32 %v2262, %v2559
  %v2561 = vpop.f32.mrf.mxu0
  %v2562 = vpop.f32.mrf.mxu0
  %v2563 = vadd.f32 %v2262, %v2562
  %v2564 = vpop.f32.mrf.mxu0
  %2565 = vmatprep.mubr.bf16.mxu0 0
  %2566 = vmatmul.mubr.bf16.gmra.mxu0 %v2329
  %v2567 = vpop.f32.mrf.mxu0
  %v2568 = vadd.f32 %v2262, %v2567
  %v2569 = vpop.f32.mrf.mxu0
  %v2570 = vpop.f32.mrf.mxu0
  %v2571 = vadd.f32 %v2262, %v2570
  %v2572 = vpop.f32.mrf.mxu0
  %2573 = vmatprep.mubr.bf16.mxu0 0
  %2574 = vmatmul.mubr.bf16.gmra.mxu0 %v2332
  %v2575 = vpop.f32.mrf.mxu0
  %v2576 = vadd.f32 %v2262, %v2575
  %v2577 = vpop.f32.mrf.mxu0
  %v2578 = vpop.f32.mrf.mxu0
  %v2579 = vadd.f32 %v2262, %v2578
  %v2580 = vpop.f32.mrf.mxu0
  %2581 = vmatprep.mubr.bf16.mxu0 0
  %2582 = vmatmul.mubr.bf16.gmra.mxu0 %v2335
  %v2583 = vpop.f32.mrf.mxu0
  %v2584 = vadd.f32 %v2262, %v2583
  %v2585 = vpop.f32.mrf.mxu0
  %v2586 = vpop.f32.mrf.mxu0
  %v2587 = vadd.f32 %v2262, %v2586
  %v2588 = vpop.f32.mrf.mxu0
  %2589 = vmatprep.mubr.bf16.mxu0 0
  %2590 = vmatmul.mubr.bf16.gmra.mxu0 %v2338
  %v2591 = vpop.f32.mrf.mxu0
  %v2592 = vadd.f32 %v2262, %v2591
  %v2593 = vpop.f32.mrf.mxu0
  %v2594 = vpop.f32.mrf.mxu0
  %v2595 = vadd.f32 %v2262, %v2594
  %v2596 = vpop.f32.mrf.mxu0
  %2597 = vmatprep.mubr.bf16.mxu0 0
  %2598 = vmatmul.mubr.bf16.gmra.mxu0 %v2341
  %v2599 = vpop.f32.mrf.mxu0
  %v2600 = vadd.f32 %v2262, %v2599
  %v2601 = vpop.f32.mrf.mxu0
  %v2602 = vpop.f32.mrf.mxu0
  %v2603 = vadd.f32 %v2262, %v2602
  %v2604 = vpop.f32.mrf.mxu0
  %2605 = vmatprep.mubr.bf16.mxu0 0
  %2606 = vmatmul.mubr.bf16.gmra.mxu0 %v2344
  %v2607 = vpop.f32.mrf.mxu0
  %v2608 = vadd.f32 %v2262, %v2607
  %v2609 = vpop.f32.mrf.mxu0
  %v2610 = vpop.f32.mrf.mxu0
  %v2611 = vadd.f32 %v2262, %v2610
  %v2612 = vpop.f32.mrf.mxu0
  %2613 = vmatprep.mubr.bf16.mxu0 0
  %2614 = vmatmul.mubr.bf16.gmra.mxu0 %v2347
  %v2615 = vpop.f32.mrf.mxu0
  %v2616 = vadd.f32 %v2262, %v2615
  %v2617 = vpop.f32.mrf.mxu0
  %v2618 = vpop.f32.mrf.mxu0
  %v2619 = vadd.f32 %v2262, %v2618
  %v2620 = vpop.f32.mrf.mxu0
  %2621 = vmatprep.mubr.bf16.mxu0 0
  %2622 = vmatmul.mubr.bf16.gmra.mxu0 %v2350
  %v2623 = vpop.f32.mrf.mxu0
  %v2624 = vadd.f32 %v2262, %v2623
  %v2625 = vpop.f32.mrf.mxu0
  %v2626 = vpop.f32.mrf.mxu0
  %v2627 = vadd.f32 %v2262, %v2626
  %v2628 = vpop.f32.mrf.mxu0
  %2629 = vmatprep.mubr.bf16.mxu0 0
  %2630 = vmatmul.mubr.bf16.gmra.mxu0 %v2353
  %v2631 = vpop.f32.mrf.mxu0
  %v2632 = vadd.f32 %v2262, %v2631
  %v2633 = vpop.f32.mrf.mxu0
  %v2634 = vpop.f32.mrf.mxu0
  %v2635 = vadd.f32 %v2262, %v2634
  %v2636 = vpop.f32.mrf.mxu0
  %2637 = vmatprep.mubr.bf16.mxu0 0
  %2638 = vmatmul.mubr.bf16.gmra.mxu0 %v2356
  %v2639 = vpop.f32.mrf.mxu0
  %v2640 = vadd.f32 %v2262, %v2639
  %v2641 = vpop.f32.mrf.mxu0
  %v2642 = vpop.f32.mrf.mxu0
  %v2643 = vadd.f32 %v2262, %v2642
  %v2644 = vpop.f32.mrf.mxu0
  %2645 = vmatprep.mubr.bf16.mxu0 0
  %2646 = vmatmul.mubr.bf16.gmra.mxu0 %v2359
  %v2647 = vpop.f32.mrf.mxu0
  %v2648 = vadd.f32 %v2262, %v2647
  %v2649 = vpop.f32.mrf.mxu0
  %v2650 = vpop.f32.mrf.mxu0
  %v2651 = vadd.f32 %v2262, %v2650
  %v2652 = vpop.f32.mrf.mxu0
  %2653 = vdwg.mxu0
  %v2654 = vmul.f32 %v2400, %v2400
  %v2655 = vmul.f32 %v2403, %v2403
  %v2656 = vmul.f32 %v2408, %v2408
  %v2657 = vmul.f32 %v2411, %v2411
  %v2658 = vmul.f32 %v2416, %v2416
  %v2659 = vmul.f32 %v2419, %v2419
  %v2660 = vmul.f32 %v2424, %v2424
  %v2661 = vmul.f32 %v2427, %v2427
  %v2662 = vmul.f32 %v2432, %v2432
  %v2663 = vmul.f32 %v2435, %v2435
  %v2664 = vmul.f32 %v2440, %v2440
  %v2665 = vmul.f32 %v2443, %v2443
  %v2666 = vmul.f32 %v2448, %v2448
  %v2667 = vmul.f32 %v2451, %v2451
  %v2668 = vmul.f32 %v2456, %v2456
  %v2669 = vmul.f32 %v2459, %v2459
  %v2670 = vmul.f32 %v2464, %v2464
  %v2671 = vmul.f32 %v2467, %v2467
  %v2672 = vmul.f32 %v2472, %v2472
  %v2673 = vmul.f32 %v2475, %v2475
  %v2674 = vmul.f32 %v2480, %v2480
  %v2675 = vmul.f32 %v2483, %v2483
  %v2676 = vmul.f32 %v2488, %v2488
  %v2677 = vmul.f32 %v2491, %v2491
  %v2678 = vmul.f32 %v2496, %v2496
  %v2679 = vmul.f32 %v2499, %v2499
  %v2680 = vmul.f32 %v2504, %v2504
  %v2681 = vmul.f32 %v2507, %v2507
  %v2682 = vmul.f32 %v2512, %v2512
  %v2683 = vmul.f32 %v2515, %v2515
  %v2684 = vmul.f32 %v2520, %v2520
  %v2685 = vmul.f32 %v2523, %v2523
  %v2686 = vmul.f32 %v2528, %v2528
  %v2687 = vmul.f32 %v2531, %v2531
  %v2688 = vmul.f32 %v2536, %v2536
  %v2689 = vmul.f32 %v2539, %v2539
  %v2690 = vmul.f32 %v2544, %v2544
  %v2691 = vmul.f32 %v2547, %v2547
  %v2692 = vmul.f32 %v2552, %v2552
  %v2693 = vmul.f32 %v2555, %v2555
  %v2694 = vmul.f32 %v2560, %v2560
  %v2695 = vmul.f32 %v2563, %v2563
  %v2696 = vmul.f32 %v2568, %v2568
  %v2697 = vmul.f32 %v2571, %v2571
  %v2698 = vmul.f32 %v2576, %v2576
  %v2699 = vmul.f32 %v2579, %v2579
  %v2700 = vmul.f32 %v2584, %v2584
  %v2701 = vmul.f32 %v2587, %v2587
  %v2702 = vmul.f32 %v2592, %v2592
  %v2703 = vmul.f32 %v2595, %v2595
  %v2704 = vmul.f32 %v2600, %v2600
  %v2705 = vmul.f32 %v2603, %v2603
  %v2706 = vmul.f32 %v2608, %v2608
  %v2707 = vmul.f32 %v2611, %v2611
  %v2708 = vmul.f32 %v2616, %v2616
  %v2709 = vmul.f32 %v2619, %v2619
  %v2710 = vmul.f32 %v2624, %v2624
  %v2711 = vmul.f32 %v2627, %v2627
  %v2712 = vmul.f32 %v2632, %v2632
  %v2713 = vmul.f32 %v2635, %v2635
  %v2714 = vmul.f32 %v2640, %v2640
  %v2715 = vmul.f32 %v2643, %v2643
  %v2716 = vmul.f32 %v2648, %v2648
  %v2717 = vmul.f32 %v2651, %v2651
  %v2718 = vmul.f32 %v2654, 0.035677407
  %v2719 = vmul.f32 %v2655, 0.035677407
  %v2720 = vmul.f32 %v2656, 0.035677407
  %v2721 = vmul.f32 %v2657, 0.035677407
  %v2722 = vmul.f32 %v2658, 0.035677407
  %v2723 = vmul.f32 %v2659, 0.035677407
  %v2724 = vmul.f32 %v2660, 0.035677407
  %v2725 = vmul.f32 %v2661, 0.035677407
  %v2726 = vmul.f32 %v2662, 0.035677407
  %v2727 = vmul.f32 %v2663, 0.035677407
  %v2728 = vmul.f32 %v2664, 0.035677407
  %v2729 = vmul.f32 %v2665, 0.035677407
  %v2730 = vmul.f32 %v2666, 0.035677407
  %v2731 = vmul.f32 %v2667, 0.035677407
  %v2732 = vmul.f32 %v2668, 0.035677407
  %v2733 = vmul.f32 %v2669, 0.035677407
  %v2734 = vmul.f32 %v2670, 0.035677407
  %v2735 = vmul.f32 %v2671, 0.035677407
  %v2736 = vmul.f32 %v2672, 0.035677407
  %v2737 = vmul.f32 %v2673, 0.035677407
  %v2738 = vmul.f32 %v2674, 0.035677407
  %v2739 = vmul.f32 %v2675, 0.035677407
  %v2740 = vmul.f32 %v2676, 0.035677407
  %v2741 = vmul.f32 %v2677, 0.035677407
  %v2742 = vmul.f32 %v2678, 0.035677407
  %v2743 = vmul.f32 %v2679, 0.035677407
  %v2744 = vmul.f32 %v2680, 0.035677407
  %v2745 = vmul.f32 %v2681, 0.035677407
  %v2746 = vmul.f32 %v2682, 0.035677407
  %v2747 = vmul.f32 %v2683, 0.035677407
  %v2748 = vmul.f32 %v2684, 0.035677407
  %v2749 = vmul.f32 %v2685, 0.035677407
  %v2750 = vmul.f32 %v2686, 0.035677407
  %v2751 = vmul.f32 %v2687, 0.035677407
  %v2752 = vmul.f32 %v2688, 0.035677407
  %v2753 = vmul.f32 %v2689, 0.035677407
  %v2754 = vmul.f32 %v2690, 0.035677407
  %v2755 = vmul.f32 %v2691, 0.035677407
  %v2756 = vmul.f32 %v2692, 0.035677407
  %v2757 = vmul.f32 %v2693, 0.035677407
  %v2758 = vmul.f32 %v2694, 0.035677407
  %v2759 = vmul.f32 %v2695, 0.035677407
  %v2760 = vmul.f32 %v2696, 0.035677407
  %v2761 = vmul.f32 %v2697, 0.035677407
  %v2762 = vmul.f32 %v2698, 0.035677407
  %v2763 = vmul.f32 %v2699, 0.035677407
  %v2764 = vmul.f32 %v2700, 0.035677407
  %v2765 = vmul.f32 %v2701, 0.035677407
  %v2766 = vmul.f32 %v2702, 0.035677407
  %v2767 = vmul.f32 %v2703, 0.035677407
  %v2768 = vmul.f32 %v2704, 0.035677407
  %v2769 = vmul.f32 %v2705, 0.035677407
  %v2770 = vmul.f32 %v2706, 0.035677407
  %v2771 = vmul.f32 %v2707, 0.035677407
  %v2772 = vmul.f32 %v2708, 0.035677407
  %v2773 = vmul.f32 %v2709, 0.035677407
  %v2774 = vmul.f32 %v2710, 0.035677407
  %v2775 = vmul.f32 %v2711, 0.035677407
  %v2776 = vmul.f32 %v2712, 0.035677407
  %v2777 = vmul.f32 %v2713, 0.035677407
  %v2778 = vmul.f32 %v2714, 0.035677407
  %v2779 = vmul.f32 %v2715, 0.035677407
  %v2780 = vmul.f32 %v2716, 0.035677407
  %v2781 = vmul.f32 %v2717, 0.035677407
  %v2782 = vadd.f32 %v2718, 0.7978846
  %v2783 = vadd.f32 %v2719, 0.7978846
  %v2784 = vadd.f32 %v2720, 0.7978846
  %v2785 = vadd.f32 %v2721, 0.7978846
  %v2786 = vadd.f32 %v2722, 0.7978846
  %v2787 = vadd.f32 %v2723, 0.7978846
  %v2788 = vadd.f32 %v2724, 0.7978846
  %v2789 = vadd.f32 %v2725, 0.7978846
  %v2790 = vadd.f32 %v2726, 0.7978846
  %v2791 = vadd.f32 %v2727, 0.7978846
  %v2792 = vadd.f32 %v2728, 0.7978846
  %v2793 = vadd.f32 %v2729, 0.7978846
  %v2794 = vadd.f32 %v2730, 0.7978846
  %v2795 = vadd.f32 %v2731, 0.7978846
  %v2796 = vadd.f32 %v2732, 0.7978846
  %v2797 = vadd.f32 %v2733, 0.7978846
  %v2798 = vadd.f32 %v2734, 0.7978846
  %v2799 = vadd.f32 %v2735, 0.7978846
  %v2800 = vadd.f32 %v2736, 0.7978846
  %v2801 = vadd.f32 %v2737, 0.7978846
  %v2802 = vadd.f32 %v2738, 0.7978846
  %v2803 = vadd.f32 %v2739, 0.7978846
  %v2804 = vadd.f32 %v2740, 0.7978846
  %v2805 = vadd.f32 %v2741, 0.7978846
  %v2806 = vadd.f32 %v2742, 0.7978846
  %v2807 = vadd.f32 %v2743, 0.7978846
  %v2808 = vadd.f32 %v2744, 0.7978846
  %v2809 = vadd.f32 %v2745, 0.7978846
  %v2810 = vadd.f32 %v2746, 0.7978846
  %v2811 = vadd.f32 %v2747, 0.7978846
  %v2812 = vadd.f32 %v2748, 0.7978846
  %v2813 = vadd.f32 %v2749, 0.7978846
  %v2814 = vadd.f32 %v2750, 0.7978846
  %v2815 = vadd.f32 %v2751, 0.7978846
  %v2816 = vadd.f32 %v2752, 0.7978846
  %v2817 = vadd.f32 %v2753, 0.7978846
  %v2818 = vadd.f32 %v2754, 0.7978846
  %v2819 = vadd.f32 %v2755, 0.7978846
  %v2820 = vadd.f32 %v2756, 0.7978846
  %v2821 = vadd.f32 %v2757, 0.7978846
  %v2822 = vadd.f32 %v2758, 0.7978846
  %v2823 = vadd.f32 %v2759, 0.7978846
  %v2824 = vadd.f32 %v2760, 0.7978846
  %v2825 = vadd.f32 %v2761, 0.7978846
  %v2826 = vadd.f32 %v2762, 0.7978846
  %v2827 = vadd.f32 %v2763, 0.7978846
  %v2828 = vadd.f32 %v2764, 0.7978846
  %v2829 = vadd.f32 %v2765, 0.7978846
  %v2830 = vadd.f32 %v2766, 0.7978846
  %v2831 = vadd.f32 %v2767, 0.7978846
  %v2832 = vadd.f32 %v2768, 0.7978846
  %v2833 = vadd.f32 %v2769, 0.7978846
  %v2834 = vadd.f32 %v2770, 0.7978846
  %v2835 = vadd.f32 %v2771, 0.7978846
  %v2836 = vadd.f32 %v2772, 0.7978846
  %v2837 = vadd.f32 %v2773, 0.7978846
  %v2838 = vadd.f32 %v2774, 0.7978846
  %v2839 = vadd.f32 %v2775, 0.7978846
  %v2840 = vadd.f32 %v2776, 0.7978846
  %v2841 = vadd.f32 %v2777, 0.7978846
  %v2842 = vadd.f32 %v2778, 0.7978846
  %v2843 = vadd.f32 %v2779, 0.7978846
  %v2844 = vadd.f32 %v2780, 0.7978846
  %v2845 = vadd.f32 %v2781, 0.7978846
  %v2846 = vmul.f32 %v2400, %v2782
  %v2847 = vmul.f32 %v2403, %v2783
  %v2848 = vmul.f32 %v2408, %v2784
  %v2849 = vmul.f32 %v2411, %v2785
  %v2850 = vmul.f32 %v2416, %v2786
  %v2851 = vmul.f32 %v2419, %v2787
  %v2852 = vmul.f32 %v2424, %v2788
  %v2853 = vmul.f32 %v2427, %v2789
  %v2854 = vmul.f32 %v2432, %v2790
  %v2855 = vmul.f32 %v2435, %v2791
  %v2856 = vmul.f32 %v2440, %v2792
  %v2857 = vmul.f32 %v2443, %v2793
  %v2858 = vmul.f32 %v2448, %v2794
  %v2859 = vmul.f32 %v2451, %v2795
  %v2860 = vmul.f32 %v2456, %v2796
  %v2861 = vmul.f32 %v2459, %v2797
  %v2862 = vmul.f32 %v2464, %v2798
  %v2863 = vmul.f32 %v2467, %v2799
  %v2864 = vmul.f32 %v2472, %v2800
  %v2865 = vmul.f32 %v2475, %v2801
  %v2866 = vmul.f32 %v2480, %v2802
  %v2867 = vmul.f32 %v2483, %v2803
  %v2868 = vmul.f32 %v2488, %v2804
  %v2869 = vmul.f32 %v2491, %v2805
  %v2870 = vmul.f32 %v2496, %v2806
  %v2871 = vmul.f32 %v2499, %v2807
  %v2872 = vmul.f32 %v2504, %v2808
  %v2873 = vmul.f32 %v2507, %v2809
  %v2874 = vmul.f32 %v2512, %v2810
  %v2875 = vmul.f32 %v2515, %v2811
  %v2876 = vmul.f32 %v2520, %v2812
  %v2877 = vmul.f32 %v2523, %v2813
  %v2878 = vmul.f32 %v2528, %v2814
  %v2879 = vmul.f32 %v2531, %v2815
  %v2880 = vmul.f32 %v2536, %v2816
  %v2881 = vmul.f32 %v2539, %v2817
  %v2882 = vmul.f32 %v2544, %v2818
  %v2883 = vmul.f32 %v2547, %v2819
  %v2884 = vmul.f32 %v2552, %v2820
  %v2885 = vmul.f32 %v2555, %v2821
  %v2886 = vmul.f32 %v2560, %v2822
  %v2887 = vmul.f32 %v2563, %v2823
  %v2888 = vmul.f32 %v2568, %v2824
  %v2889 = vmul.f32 %v2571, %v2825
  %v2890 = vmul.f32 %v2576, %v2826
  %v2891 = vmul.f32 %v2579, %v2827
  %v2892 = vmul.f32 %v2584, %v2828
  %v2893 = vmul.f32 %v2587, %v2829
  %v2894 = vmul.f32 %v2592, %v2830
  %v2895 = vmul.f32 %v2595, %v2831
  %v2896 = vmul.f32 %v2600, %v2832
  %v2897 = vmul.f32 %v2603, %v2833
  %v2898 = vmul.f32 %v2608, %v2834
  %v2899 = vmul.f32 %v2611, %v2835
  %v2900 = vmul.f32 %v2616, %v2836
  %v2901 = vmul.f32 %v2619, %v2837
  %v2902 = vmul.f32 %v2624, %v2838
  %v2903 = vmul.f32 %v2627, %v2839
  %v2904 = vmul.f32 %v2632, %v2840
  %v2905 = vmul.f32 %v2635, %v2841
  %v2906 = vmul.f32 %v2640, %v2842
  %v2907 = vmul.f32 %v2643, %v2843
  %v2908 = vmul.f32 %v2648, %v2844
  %v2909 = vmul.f32 %v2651, %v2845
  %v2910 = vtanh.pop %v2846
  %v2911 = vtanh.pop %v2847
  %v2912 = vtanh.pop %v2848
  %v2913 = vtanh.pop %v2849
  %v2914 = vtanh.pop %v2850
  %v2915 = vtanh.pop %v2851
  %v2916 = vtanh.pop %v2852
  %v2917 = vtanh.pop %v2853
  %v2918 = vtanh.pop %v2854
  %v2919 = vtanh.pop %v2855
  %v2920 = vtanh.pop %v2856
  %v2921 = vtanh.pop %v2857
  %v2922 = vtanh.pop %v2858
  %v2923 = vtanh.pop %v2859
  %v2924 = vtanh.pop %v2860
  %v2925 = vtanh.pop %v2861
  %v2926 = vtanh.pop %v2862
  %v2927 = vtanh.pop %v2863
  %v2928 = vtanh.pop %v2864
  %v2929 = vtanh.pop %v2865
  %v2930 = vtanh.pop %v2866
  %v2931 = vtanh.pop %v2867
  %v2932 = vtanh.pop %v2868
  %v2933 = vtanh.pop %v2869
  %v2934 = vtanh.pop %v2870
  %v2935 = vtanh.pop %v2871
  %v2936 = vtanh.pop %v2872
  %v2937 = vtanh.pop %v2873
  %v2938 = vtanh.pop %v2874
  %v2939 = vtanh.pop %v2875
  %v2940 = vtanh.pop %v2876
  %v2941 = vtanh.pop %v2877
  %v2942 = vtanh.pop %v2878
  %v2943 = vtanh.pop %v2879
  %v2944 = vtanh.pop %v2880
  %v2945 = vtanh.pop %v2881
  %v2946 = vtanh.pop %v2882
  %v2947 = vtanh.pop %v2883
  %v2948 = vtanh.pop %v2884
  %v2949 = vtanh.pop %v2885
  %v2950 = vtanh.pop %v2886
  %v2951 = vtanh.pop %v2887
  %v2952 = vtanh.pop %v2888
  %v2953 = vtanh.pop %v2889
  %v2954 = vtanh.pop %v2890
  %v2955 = vtanh.pop %v2891
  %v2956 = vtanh.pop %v2892
  %v2957 = vtanh.pop %v2893
  %v2958 = vtanh.pop %v2894
  %v2959 = vtanh.pop %v2895
  %v2960 = vtanh.pop %v2896
  %v2961 = vtanh.pop %v2897
  %v2962 = vtanh.pop %v2898
  %v2963 = vtanh.pop %v2899
  %v2964 = vtanh.pop %v2900
  %v2965 = vtanh.pop %v2901
  %v2966 = vtanh.pop %v2902
  %v2967 = vtanh.pop %v2903
  %v2968 = vtanh.pop %v2904
  %v2969 = vtanh.pop %v2905
  %v2970 = vtanh.pop %v2906
  %v2971 = vtanh.pop %v2907
  %v2972 = vtanh.pop %v2908
  %v2973 = vtanh.pop %v2909
  %v2974 = vmul.f32 %v2400, 0.5
  %v2975 = vmul.f32 %v2403, 0.5
  %v2976 = vmul.f32 %v2408, 0.5
  %v2977 = vmul.f32 %v2411, 0.5
  %v2978 = vmul.f32 %v2416, 0.5
  %v2979 = vmul.f32 %v2419, 0.5
  %v2980 = vmul.f32 %v2424, 0.5
  %v2981 = vmul.f32 %v2427, 0.5
  %v2982 = vmul.f32 %v2432, 0.5
  %v2983 = vmul.f32 %v2435, 0.5
  %v2984 = vmul.f32 %v2440, 0.5
  %v2985 = vmul.f32 %v2443, 0.5
  %v2986 = vmul.f32 %v2448, 0.5
  %v2987 = vmul.f32 %v2451, 0.5
  %v2988 = vmul.f32 %v2456, 0.5
  %v2989 = vmul.f32 %v2459, 0.5
  %v2990 = vmul.f32 %v2464, 0.5
  %v2991 = vmul.f32 %v2467, 0.5
  %v2992 = vmul.f32 %v2472, 0.5
  %v2993 = vmul.f32 %v2475, 0.5
  %v2994 = vmul.f32 %v2480, 0.5
  %v2995 = vmul.f32 %v2483, 0.5
  %v2996 = vmul.f32 %v2488, 0.5
  %v2997 = vmul.f32 %v2491, 0.5
  %v2998 = vmul.f32 %v2496, 0.5
  %v2999 = vmul.f32 %v2499, 0.5
  %v3000 = vmul.f32 %v2504, 0.5
  %v3001 = vmul.f32 %v2507, 0.5
  %v3002 = vmul.f32 %v2512, 0.5
  %v3003 = vmul.f32 %v2515, 0.5
  %v3004 = vmul.f32 %v2520, 0.5
  %v3005 = vmul.f32 %v2523, 0.5
  %v3006 = vmul.f32 %v2528, 0.5
  %v3007 = vmul.f32 %v2531, 0.5
  %v3008 = vmul.f32 %v2536, 0.5
  %v3009 = vmul.f32 %v2539, 0.5
  %v3010 = vmul.f32 %v2544, 0.5
  %v3011 = vmul.f32 %v2547, 0.5
  %v3012 = vmul.f32 %v2552, 0.5
  %v3013 = vmul.f32 %v2555, 0.5
  %v3014 = vmul.f32 %v2560, 0.5
  %v3015 = vmul.f32 %v2563, 0.5
  %v3016 = vmul.f32 %v2568, 0.5
  %v3017 = vmul.f32 %v2571, 0.5
  %v3018 = vmul.f32 %v2576, 0.5
  %v3019 = vmul.f32 %v2579, 0.5
  %v3020 = vmul.f32 %v2584, 0.5
  %v3021 = vmul.f32 %v2587, 0.5
  %v3022 = vmul.f32 %v2592, 0.5
  %v3023 = vmul.f32 %v2595, 0.5
  %v3024 = vmul.f32 %v2600, 0.5
  %v3025 = vmul.f32 %v2603, 0.5
  %v3026 = vmul.f32 %v2608, 0.5
  %v3027 = vmul.f32 %v2611, 0.5
  %v3028 = vmul.f32 %v2616, 0.5
  %v3029 = vmul.f32 %v2619, 0.5
  %v3030 = vmul.f32 %v2624, 0.5
  %v3031 = vmul.f32 %v2627, 0.5
  %v3032 = vmul.f32 %v2632, 0.5
  %v3033 = vmul.f32 %v2635, 0.5
  %v3034 = vmul.f32 %v2640, 0.5
  %v3035 = vmul.f32 %v2643, 0.5
  %v3036 = vmul.f32 %v2648, 0.5
  %v3037 = vmul.f32 %v2651, 0.5
  %v3038 = vadd.f32 %v2910, 1.0
  %v3039 = vadd.f32 %v2911, 1.0
  %v3040 = vadd.f32 %v2912, 1.0
  %v3041 = vadd.f32 %v2913, 1.0
  %v3042 = vadd.f32 %v2914, 1.0
  %v3043 = vadd.f32 %v2915, 1.0
  %v3044 = vadd.f32 %v2916, 1.0
  %v3045 = vadd.f32 %v2917, 1.0
  %v3046 = vadd.f32 %v2918, 1.0
  %v3047 = vadd.f32 %v2919, 1.0
  %v3048 = vadd.f32 %v2920, 1.0
  %v3049 = vadd.f32 %v2921, 1.0
  %v3050 = vadd.f32 %v2922, 1.0
  %v3051 = vadd.f32 %v2923, 1.0
  %v3052 = vadd.f32 %v2924, 1.0
  %v3053 = vadd.f32 %v2925, 1.0
  %v3054 = vadd.f32 %v2926, 1.0
  %v3055 = vadd.f32 %v2927, 1.0
  %v3056 = vadd.f32 %v2928, 1.0
  %v3057 = vadd.f32 %v2929, 1.0
  %v3058 = vadd.f32 %v2930, 1.0
  %v3059 = vadd.f32 %v2931, 1.0
  %v3060 = vadd.f32 %v2932, 1.0
  %v3061 = vadd.f32 %v2933, 1.0
  %v3062 = vadd.f32 %v2934, 1.0
  %v3063 = vadd.f32 %v2935, 1.0
  %v3064 = vadd.f32 %v2936, 1.0
  %v3065 = vadd.f32 %v2937, 1.0
  %v3066 = vadd.f32 %v2938, 1.0
  %v3067 = vadd.f32 %v2939, 1.0
  %v3068 = vadd.f32 %v2940, 1.0
  %v3069 = vadd.f32 %v2941, 1.0
  %v3070 = vadd.f32 %v2942, 1.0
  %v3071 = vadd.f32 %v2943, 1.0
  %v3072 = vadd.f32 %v2944, 1.0
  %v3073 = vadd.f32 %v2945, 1.0
  %v3074 = vadd.f32 %v2946, 1.0
  %v3075 = vadd.f32 %v2947, 1.0
  %v3076 = vadd.f32 %v2948, 1.0
  %v3077 = vadd.f32 %v2949, 1.0
  %v3078 = vadd.f32 %v2950, 1.0
  %v3079 = vadd.f32 %v2951, 1.0
  %v3080 = vadd.f32 %v2952, 1.0
  %v3081 = vadd.f32 %v2953, 1.0
  %v3082 = vadd.f32 %v2954, 1.0
  %v3083 = vadd.f32 %v2955, 1.0
  %v3084 = vadd.f32 %v2956, 1.0
  %v3085 = vadd.f32 %v2957, 1.0
  %v3086 = vadd.f32 %v2958, 1.0
  %v3087 = vadd.f32 %v2959, 1.0
  %v3088 = vadd.f32 %v2960, 1.0
  %v3089 = vadd.f32 %v2961, 1.0
  %v3090 = vadd.f32 %v2962, 1.0
  %v3091 = vadd.f32 %v2963, 1.0
  %v3092 = vadd.f32 %v2964, 1.0
  %v3093 = vadd.f32 %v2965, 1.0
  %v3094 = vadd.f32 %v2966, 1.0
  %v3095 = vadd.f32 %v2967, 1.0
  %v3096 = vadd.f32 %v2968, 1.0
  %v3097 = vadd.f32 %v2969, 1.0
  %v3098 = vadd.f32 %v2970, 1.0
  %v3099 = vadd.f32 %v2971, 1.0
  %v3100 = vadd.f32 %v2972, 1.0
  %v3101 = vadd.f32 %v2973, 1.0
  %v3102 = vmul.f32 %v2974, %v3038
  %v3103 = vmul.f32 %v2975, %v3039
  %v3104 = vmul.f32 %v2976, %v3040
  %v3105 = vmul.f32 %v2977, %v3041
  %v3106 = vmul.f32 %v2978, %v3042
  %v3107 = vmul.f32 %v2979, %v3043
  %v3108 = vmul.f32 %v2980, %v3044
  %v3109 = vmul.f32 %v2981, %v3045
  %v3110 = vmul.f32 %v2982, %v3046
  %v3111 = vmul.f32 %v2983, %v3047
  %v3112 = vmul.f32 %v2984, %v3048
  %v3113 = vmul.f32 %v2985, %v3049
  %v3114 = vmul.f32 %v2986, %v3050
  %v3115 = vmul.f32 %v2987, %v3051
  %v3116 = vmul.f32 %v2988, %v3052
  %v3117 = vmul.f32 %v2989, %v3053
  %v3118 = vmul.f32 %v2990, %v3054
  %v3119 = vmul.f32 %v2991, %v3055
  %v3120 = vmul.f32 %v2992, %v3056
  %v3121 = vmul.f32 %v2993, %v3057
  %v3122 = vmul.f32 %v2994, %v3058
  %v3123 = vmul.f32 %v2995, %v3059
  %v3124 = vmul.f32 %v2996, %v3060
  %v3125 = vmul.f32 %v2997, %v3061
  %v3126 = vmul.f32 %v2998, %v3062
  %v3127 = vmul.f32 %v2999, %v3063
  %v3128 = vmul.f32 %v3000, %v3064
  %v3129 = vmul.f32 %v3001, %v3065
  %v3130 = vmul.f32 %v3002, %v3066
  %v3131 = vmul.f32 %v3003, %v3067
  %v3132 = vmul.f32 %v3004, %v3068
  %v3133 = vmul.f32 %v3005, %v3069
  %v3134 = vmul.f32 %v3006, %v3070
  %v3135 = vmul.f32 %v3007, %v3071
  %v3136 = vmul.f32 %v3008, %v3072
  %v3137 = vmul.f32 %v3009, %v3073
  %v3138 = vmul.f32 %v3010, %v3074
  %v3139 = vmul.f32 %v3011, %v3075
  %v3140 = vmul.f32 %v3012, %v3076
  %v3141 = vmul.f32 %v3013, %v3077
  %v3142 = vmul.f32 %v3014, %v3078
  %v3143 = vmul.f32 %v3015, %v3079
  %v3144 = vmul.f32 %v3016, %v3080
  %v3145 = vmul.f32 %v3017, %v3081
  %v3146 = vmul.f32 %v3018, %v3082
  %v3147 = vmul.f32 %v3019, %v3083
  %v3148 = vmul.f32 %v3020, %v3084
  %v3149 = vmul.f32 %v3021, %v3085
  %v3150 = vmul.f32 %v3022, %v3086
  %v3151 = vmul.f32 %v3023, %v3087
  %v3152 = vmul.f32 %v3024, %v3088
  %v3153 = vmul.f32 %v3025, %v3089
  %v3154 = vmul.f32 %v3026, %v3090
  %v3155 = vmul.f32 %v3027, %v3091
  %v3156 = vmul.f32 %v3028, %v3092
  %v3157 = vmul.f32 %v3029, %v3093
  %v3158 = vmul.f32 %v3030, %v3094
  %v3159 = vmul.f32 %v3031, %v3095
  %v3160 = vmul.f32 %v3032, %v3096
  %v3161 = vmul.f32 %v3033, %v3097
  %v3162 = vmul.f32 %v3034, %v3098
  %v3163 = vmul.f32 %v3035, %v3099
  %v3164 = vmul.f32 %v3036, %v3100
  %v3165 = vmul.f32 %v3037, %v3101
  %v3166 = vpack.c.bf16 %v3103, %v3102
  %v3167 = vpack.c.bf16 %v3105, %v3104
  %v3168 = vpack.c.bf16 %v3107, %v3106
  %v3169 = vpack.c.bf16 %v3109, %v3108
  %v3170 = vpack.c.bf16 %v3111, %v3110
  %v3171 = vpack.c.bf16 %v3113, %v3112
  %v3172 = vpack.c.bf16 %v3115, %v3114
  %v3173 = vpack.c.bf16 %v3117, %v3116
  %v3174 = vpack.c.bf16 %v3119, %v3118
  %v3175 = vpack.c.bf16 %v3121, %v3120
  %v3176 = vpack.c.bf16 %v3123, %v3122
  %v3177 = vpack.c.bf16 %v3125, %v3124
  %v3178 = vpack.c.bf16 %v3127, %v3126
  %v3179 = vpack.c.bf16 %v3129, %v3128
  %v3180 = vpack.c.bf16 %v3131, %v3130
  %v3181 = vpack.c.bf16 %v3133, %v3132
  %v3182 = vpack.c.bf16 %v3135, %v3134
  %v3183 = vpack.c.bf16 %v3137, %v3136
  %v3184 = vpack.c.bf16 %v3139, %v3138
  %v3185 = vpack.c.bf16 %v3141, %v3140
  %v3186 = vpack.c.bf16 %v3143, %v3142
  %v3187 = vpack.c.bf16 %v3145, %v3144
  %v3188 = vpack.c.bf16 %v3147, %v3146
  %v3189 = vpack.c.bf16 %v3149, %v3148
  %v3190 = vpack.c.bf16 %v3151, %v3150
  %v3191 = vpack.c.bf16 %v3153, %v3152
  %v3192 = vpack.c.bf16 %v3155, %v3154
  %v3193 = vpack.c.bf16 %v3157, %v3156
  %v3194 = vpack.c.bf16 %v3159, %v3158
  %v3195 = vpack.c.bf16 %v3161, %v3160
  %v3196 = vpack.c.bf16 %v3163, %v3162
  %v3197 = vpack.c.bf16 %v3165, %v3164
  %v3198 = vld [vmem:[%s6] sm:$0xf]
  %v3199 = vld [vmem:[%s6 + $0x4] sm:$0xf]
  %v3200 = vld [vmem:[%s6 + $0x8] sm:$0xf]
  %v3201 = vld [vmem:[%s6 + $0xc] sm:$0xf]
  %v3202 = vld [vmem:[%s7] sm:$0x1]
  %v3204 = vlaneseq
  %v3205 = vshrl.u32 %v3204, 7
  %v3206 = vsub.s32 0, %v3205
  %v3207 = vrot.slane %v3202, %v3206
  %v3213 = vunpack.c.l.b16 %v3198
  %v3214 = vunpack.c.l.b16 %v3199
  %v3215 = vunpack.c.l.b16 %v3200
  %v3216 = vunpack.c.l.b16 %v3201
  %v3217 = vpack.c.b16 %v3214, %v3213
  %v3218 = vpack.c.b16 %v3216, %v3215
  %vm3221 = vcmask 261120
  %v3223 = vsel %vm3221, %v3166, 0
  %v3226 = vsel %vm3221, %v3167, 0
  %v3229 = vsel %vm3221, %v3168, 0
  %v3232 = vsel %vm3221, %v3169, 0
  %v3235 = vsel %vm3221, %v3170, 0
  %v3238 = vsel %vm3221, %v3171, 0
  %v3241 = vsel %vm3221, %v3172, 0
  %v3244 = vsel %vm3221, %v3173, 0
  %v3247 = vsel %vm3221, %v3174, 0
  %v3250 = vsel %vm3221, %v3175, 0
  %v3253 = vsel %vm3221, %v3176, 0
  %v3256 = vsel %vm3221, %v3177, 0
  %v3259 = vsel %vm3221, %v3178, 0
  %v3262 = vsel %vm3221, %v3179, 0
  %v3265 = vsel %vm3221, %v3180, 0
  %v3268 = vsel %vm3221, %v3181, 0
  %v3271 = vsel %vm3221, %v3182, 0
  %v3274 = vsel %vm3221, %v3183, 0
  %v3277 = vsel %vm3221, %v3184, 0
  %v3280 = vsel %vm3221, %v3185, 0
  %v3283 = vsel %vm3221, %v3186, 0
  %v3286 = vsel %vm3221, %v3187, 0
  %v3289 = vsel %vm3221, %v3188, 0
  %v3292 = vsel %vm3221, %v3189, 0
  %v3295 = vsel %vm3221, %v3190, 0
  %v3298 = vsel %vm3221, %v3191, 0
  %v3301 = vsel %vm3221, %v3192, 0
  %v3304 = vsel %vm3221, %v3193, 0
  %v3307 = vsel %vm3221, %v3194, 0
  %v3310 = vsel %vm3221, %v3195, 0
  %v3313 = vsel %vm3221, %v3196, 0
  %v3316 = vsel %vm3221, %v3197, 0
  %3318 = vmatprep.subr.bf16.mxu0 0
  %3319 = vmatpush1.bf16.msra.mxu0 0
  %3320 = vmatprep.subr.bf16.mxu0 0
  %3321 = vmatpush1.bf16.msra.mxu0 0
  %3322 = vmatprep.subr.bf16.mxu0 0
  %3323 = vmatpush1.bf16.msra.mxu0 0
  %3324 = vmatprep.subr.bf16.mxu0 0
  %3325 = vmatpush1.bf16.msra.mxu0 0
  %3326 = vmatprep.subr.bf16.mxu0 0
  %3327 = vmatpush1.bf16.msra.mxu0 0
  %3328 = vmatprep.subr.bf16.mxu0 0
  %3329 = vmatpush1.bf16.msra.mxu0 0
  %3330 = vmatprep.subr.bf16.mxu0 0
  %3331 = vmatpush1.bf16.msra.mxu0 %v3218
  %3332 = vmatprep.subr.bf16.mxu0 0
  %3333 = vmatpush1.bf16.msra.mxu0 %v3217
  %3334 = vmatprep.subr.bf16.mxu0 0
  %3335 = vmatpush2.bf16.msra.mxu0 0
  %3336 = vmatprep.subr.bf16.mxu0 0
  %3337 = vmatpush2.bf16.msra.mxu0 0
  %3338 = vmatprep.subr.bf16.mxu0 0
  %3339 = vmatpush2.bf16.msra.mxu0 0
  %3340 = vmatprep.subr.bf16.mxu0 0
  %3341 = vmatpush2.bf16.msra.mxu0 0
  %3342 = vmatprep.subr.bf16.mxu0 0
  %3343 = vmatpush2.bf16.msra.mxu0 0
  %3344 = vmatprep.subr.bf16.mxu0 0
  %3345 = vmatpush2.bf16.msra.mxu0 0
  %3346 = vmatprep.subr.bf16.mxu0 0
  %3347 = vmatpush2.bf16.msra.mxu0 0
  %3348 = vmatprep.subr.bf16.mxu0 0
  %3349 = vmatpush2.bf16.msra.mxu0 0
  %3350 = vmatprep.mubr.bf16.mxu0 0
  %3351 = vmatmul.mubr.bf16.gmra.mxu0 %v3223
  %v3352 = vpop.f32.mrf.mxu0
  %v3353 = vadd.f32 %v3207, %v3352
  %v3354 = vpop.f32.mrf.mxu0
  %v3355 = vpop.f32.mrf.mxu0
  %v3356 = vadd.f32 %v3207, %v3355
  %v3357 = vpop.f32.mrf.mxu0
  %3358 = vmatprep.mubr.bf16.mxu0 0
  %3359 = vmatmul.mubr.bf16.gmra.mxu0 %v3226
  %v3360 = vpop.f32.mrf.mxu0
  %v3361 = vadd.f32 %v3207, %v3360
  %v3362 = vpop.f32.mrf.mxu0
  %v3363 = vpop.f32.mrf.mxu0
  %v3364 = vadd.f32 %v3207, %v3363
  %v3365 = vpop.f32.mrf.mxu0
  %3366 = vmatprep.mubr.bf16.mxu0 0
  %3367 = vmatmul.mubr.bf16.gmra.mxu0 %v3229
  %v3368 = vpop.f32.mrf.mxu0
  %v3369 = vadd.f32 %v3207, %v3368
  %v3370 = vpop.f32.mrf.mxu0
  %v3371 = vpop.f32.mrf.mxu0
  %v3372 = vadd.f32 %v3207, %v3371
  %v3373 = vpop.f32.mrf.mxu0
  %3374 = vmatprep.mubr.bf16.mxu0 0
  %3375 = vmatmul.mubr.bf16.gmra.mxu0 %v3232
  %v3376 = vpop.f32.mrf.mxu0
  %v3377 = vadd.f32 %v3207, %v3376
  %v3378 = vpop.f32.mrf.mxu0
  %v3379 = vpop.f32.mrf.mxu0
  %v3380 = vadd.f32 %v3207, %v3379
  %v3381 = vpop.f32.mrf.mxu0
  %3382 = vmatprep.mubr.bf16.mxu0 0
  %3383 = vmatmul.mubr.bf16.gmra.mxu0 %v3235
  %v3384 = vpop.f32.mrf.mxu0
  %v3385 = vadd.f32 %v3207, %v3384
  %v3386 = vpop.f32.mrf.mxu0
  %v3387 = vpop.f32.mrf.mxu0
  %v3388 = vadd.f32 %v3207, %v3387
  %v3389 = vpop.f32.mrf.mxu0
  %3390 = vmatprep.mubr.bf16.mxu0 0
  %3391 = vmatmul.mubr.bf16.gmra.mxu0 %v3238
  %v3392 = vpop.f32.mrf.mxu0
  %v3393 = vadd.f32 %v3207, %v3392
  %v3394 = vpop.f32.mrf.mxu0
  %v3395 = vpop.f32.mrf.mxu0
  %v3396 = vadd.f32 %v3207, %v3395
  %v3397 = vpop.f32.mrf.mxu0
  %3398 = vmatprep.mubr.bf16.mxu0 0
  %3399 = vmatmul.mubr.bf16.gmra.mxu0 %v3241
  %v3400 = vpop.f32.mrf.mxu0
  %v3401 = vadd.f32 %v3207, %v3400
  %v3402 = vpop.f32.mrf.mxu0
  %v3403 = vpop.f32.mrf.mxu0
  %v3404 = vadd.f32 %v3207, %v3403
  %v3405 = vpop.f32.mrf.mxu0
  %3406 = vmatprep.mubr.bf16.mxu0 0
  %3407 = vmatmul.mubr.bf16.gmra.mxu0 %v3244
  %v3408 = vpop.f32.mrf.mxu0
  %v3409 = vadd.f32 %v3207, %v3408
  %v3410 = vpop.f32.mrf.mxu0
  %v3411 = vpop.f32.mrf.mxu0
  %v3412 = vadd.f32 %v3207, %v3411
  %v3413 = vpop.f32.mrf.mxu0
  %3414 = vmatprep.mubr.bf16.mxu0 0
  %3415 = vmatmul.mubr.bf16.gmra.mxu0 %v3247
  %v3416 = vpop.f32.mrf.mxu0
  %v3417 = vadd.f32 %v3207, %v3416
  %v3418 = vpop.f32.mrf.mxu0
  %v3419 = vpop.f32.mrf.mxu0
  %v3420 = vadd.f32 %v3207, %v3419
  %v3421 = vpop.f32.mrf.mxu0
  %3422 = vmatprep.mubr.bf16.mxu0 0
  %3423 = vmatmul.mubr.bf16.gmra.mxu0 %v3250
  %v3424 = vpop.f32.mrf.mxu0
  %v3425 = vadd.f32 %v3207, %v3424
  %v3426 = vpop.f32.mrf.mxu0
  %v3427 = vpop.f32.mrf.mxu0
  %v3428 = vadd.f32 %v3207, %v3427
  %v3429 = vpop.f32.mrf.mxu0
  %3430 = vmatprep.mubr.bf16.mxu0 0
  %3431 = vmatmul.mubr.bf16.gmra.mxu0 %v3253
  %v3432 = vpop.f32.mrf.mxu0
  %v3433 = vadd.f32 %v3207, %v3432
  %v3434 = vpop.f32.mrf.mxu0
  %v3435 = vpop.f32.mrf.mxu0
  %v3436 = vadd.f32 %v3207, %v3435
  %v3437 = vpop.f32.mrf.mxu0
  %3438 = vmatprep.mubr.bf16.mxu0 0
  %3439 = vmatmul.mubr.bf16.gmra.mxu0 %v3256
  %v3440 = vpop.f32.mrf.mxu0
  %v3441 = vadd.f32 %v3207, %v3440
  %v3442 = vpop.f32.mrf.mxu0
  %v3443 = vpop.f32.mrf.mxu0
  %v3444 = vadd.f32 %v3207, %v3443
  %v3445 = vpop.f32.mrf.mxu0
  %3446 = vmatprep.mubr.bf16.mxu0 0
  %3447 = vmatmul.mubr.bf16.gmra.mxu0 %v3259
  %v3448 = vpop.f32.mrf.mxu0
  %v3449 = vadd.f32 %v3207, %v3448
  %v3450 = vpop.f32.mrf.mxu0
  %v3451 = vpop.f32.mrf.mxu0
  %v3452 = vadd.f32 %v3207, %v3451
  %v3453 = vpop.f32.mrf.mxu0
  %3454 = vmatprep.mubr.bf16.mxu0 0
  %3455 = vmatmul.mubr.bf16.gmra.mxu0 %v3262
  %v3456 = vpop.f32.mrf.mxu0
  %v3457 = vadd.f32 %v3207, %v3456
  %v3458 = vpop.f32.mrf.mxu0
  %v3459 = vpop.f32.mrf.mxu0
  %v3460 = vadd.f32 %v3207, %v3459
  %v3461 = vpop.f32.mrf.mxu0
  %3462 = vmatprep.mubr.bf16.mxu0 0
  %3463 = vmatmul.mubr.bf16.gmra.mxu0 %v3265
  %v3464 = vpop.f32.mrf.mxu0
  %v3465 = vadd.f32 %v3207, %v3464
  %v3466 = vpop.f32.mrf.mxu0
  %v3467 = vpop.f32.mrf.mxu0
  %v3468 = vadd.f32 %v3207, %v3467
  %v3469 = vpop.f32.mrf.mxu0
  %3470 = vmatprep.mubr.bf16.mxu0 0
  %3471 = vmatmul.mubr.bf16.gmra.mxu0 %v3268
  %v3472 = vpop.f32.mrf.mxu0
  %v3473 = vadd.f32 %v3207, %v3472
  %v3474 = vpop.f32.mrf.mxu0
  %v3475 = vpop.f32.mrf.mxu0
  %v3476 = vadd.f32 %v3207, %v3475
  %v3477 = vpop.f32.mrf.mxu0
  %3478 = vmatprep.mubr.bf16.mxu0 0
  %3479 = vmatmul.mubr.bf16.gmra.mxu0 %v3271
  %v3480 = vpop.f32.mrf.mxu0
  %v3481 = vadd.f32 %v3207, %v3480
  %v3482 = vpop.f32.mrf.mxu0
  %v3483 = vpop.f32.mrf.mxu0
  %v3484 = vadd.f32 %v3207, %v3483
  %v3485 = vpop.f32.mrf.mxu0
  %3486 = vmatprep.mubr.bf16.mxu0 0
  %3487 = vmatmul.mubr.bf16.gmra.mxu0 %v3274
  %v3488 = vpop.f32.mrf.mxu0
  %v3489 = vadd.f32 %v3207, %v3488
  %v3490 = vpop.f32.mrf.mxu0
  %v3491 = vpop.f32.mrf.mxu0
  %v3492 = vadd.f32 %v3207, %v3491
  %v3493 = vpop.f32.mrf.mxu0
  %3494 = vmatprep.mubr.bf16.mxu0 0
  %3495 = vmatmul.mubr.bf16.gmra.mxu0 %v3277
  %v3496 = vpop.f32.mrf.mxu0
  %v3497 = vadd.f32 %v3207, %v3496
  %v3498 = vpop.f32.mrf.mxu0
  %v3499 = vpop.f32.mrf.mxu0
  %v3500 = vadd.f32 %v3207, %v3499
  %v3501 = vpop.f32.mrf.mxu0
  %3502 = vmatprep.mubr.bf16.mxu0 0
  %3503 = vmatmul.mubr.bf16.gmra.mxu0 %v3280
  %v3504 = vpop.f32.mrf.mxu0
  %v3505 = vadd.f32 %v3207, %v3504
  %v3506 = vpop.f32.mrf.mxu0
  %v3507 = vpop.f32.mrf.mxu0
  %v3508 = vadd.f32 %v3207, %v3507
  %v3509 = vpop.f32.mrf.mxu0
  %3510 = vmatprep.mubr.bf16.mxu0 0
  %3511 = vmatmul.mubr.bf16.gmra.mxu0 %v3283
  %v3512 = vpop.f32.mrf.mxu0
  %v3513 = vadd.f32 %v3207, %v3512
  %v3514 = vpop.f32.mrf.mxu0
  %v3515 = vpop.f32.mrf.mxu0
  %v3516 = vadd.f32 %v3207, %v3515
  %v3517 = vpop.f32.mrf.mxu0
  %3518 = vmatprep.mubr.bf16.mxu0 0
  %3519 = vmatmul.mubr.bf16.gmra.mxu0 %v3286
  %v3520 = vpop.f32.mrf.mxu0
  %v3521 = vadd.f32 %v3207, %v3520
  %v3522 = vpop.f32.mrf.mxu0
  %v3523 = vpop.f32.mrf.mxu0
  %v3524 = vadd.f32 %v3207, %v3523
  %v3525 = vpop.f32.mrf.mxu0
  %3526 = vmatprep.mubr.bf16.mxu0 0
  %3527 = vmatmul.mubr.bf16.gmra.mxu0 %v3289
  %v3528 = vpop.f32.mrf.mxu0
  %v3529 = vadd.f32 %v3207, %v3528
  %v3530 = vpop.f32.mrf.mxu0
  %v3531 = vpop.f32.mrf.mxu0
  %v3532 = vadd.f32 %v3207, %v3531
  %v3533 = vpop.f32.mrf.mxu0
  %3534 = vmatprep.mubr.bf16.mxu0 0
  %3535 = vmatmul.mubr.bf16.gmra.mxu0 %v3292
  %v3536 = vpop.f32.mrf.mxu0
  %v3537 = vadd.f32 %v3207, %v3536
  %v3538 = vpop.f32.mrf.mxu0
  %v3539 = vpop.f32.mrf.mxu0
  %v3540 = vadd.f32 %v3207, %v3539
  %v3541 = vpop.f32.mrf.mxu0
  %3542 = vmatprep.mubr.bf16.mxu0 0
  %3543 = vmatmul.mubr.bf16.gmra.mxu0 %v3295
  %v3544 = vpop.f32.mrf.mxu0
  %v3545 = vadd.f32 %v3207, %v3544
  %v3546 = vpop.f32.mrf.mxu0
  %v3547 = vpop.f32.mrf.mxu0
  %v3548 = vadd.f32 %v3207, %v3547
  %v3549 = vpop.f32.mrf.mxu0
  %3550 = vmatprep.mubr.bf16.mxu0 0
  %3551 = vmatmul.mubr.bf16.gmra.mxu0 %v3298
  %v3552 = vpop.f32.mrf.mxu0
  %v3553 = vadd.f32 %v3207, %v3552
  %v3554 = vpop.f32.mrf.mxu0
  %v3555 = vpop.f32.mrf.mxu0
  %v3556 = vadd.f32 %v3207, %v3555
  %v3557 = vpop.f32.mrf.mxu0
  %3558 = vmatprep.mubr.bf16.mxu0 0
  %3559 = vmatmul.mubr.bf16.gmra.mxu0 %v3301
  %v3560 = vpop.f32.mrf.mxu0
  %v3561 = vadd.f32 %v3207, %v3560
  %v3562 = vpop.f32.mrf.mxu0
  %v3563 = vpop.f32.mrf.mxu0
  %v3564 = vadd.f32 %v3207, %v3563
  %v3565 = vpop.f32.mrf.mxu0
  %3566 = vmatprep.mubr.bf16.mxu0 0
  %3567 = vmatmul.mubr.bf16.gmra.mxu0 %v3304
  %v3568 = vpop.f32.mrf.mxu0
  %v3569 = vadd.f32 %v3207, %v3568
  %v3570 = vpop.f32.mrf.mxu0
  %v3571 = vpop.f32.mrf.mxu0
  %v3572 = vadd.f32 %v3207, %v3571
  %v3573 = vpop.f32.mrf.mxu0
  %3574 = vmatprep.mubr.bf16.mxu0 0
  %3575 = vmatmul.mubr.bf16.gmra.mxu0 %v3307
  %v3576 = vpop.f32.mrf.mxu0
  %v3577 = vadd.f32 %v3207, %v3576
  %v3578 = vpop.f32.mrf.mxu0
  %v3579 = vpop.f32.mrf.mxu0
  %v3580 = vadd.f32 %v3207, %v3579
  %v3581 = vpop.f32.mrf.mxu0
  %3582 = vmatprep.mubr.bf16.mxu0 0
  %3583 = vmatmul.mubr.bf16.gmra.mxu0 %v3310
  %v3584 = vpop.f32.mrf.mxu0
  %v3585 = vadd.f32 %v3207, %v3584
  %v3586 = vpop.f32.mrf.mxu0
  %v3587 = vpop.f32.mrf.mxu0
  %v3588 = vadd.f32 %v3207, %v3587
  %v3589 = vpop.f32.mrf.mxu0
  %3590 = vmatprep.mubr.bf16.mxu0 0
  %3591 = vmatmul.mubr.bf16.gmra.mxu0 %v3313
  %v3592 = vpop.f32.mrf.mxu0
  %v3593 = vadd.f32 %v3207, %v3592
  %v3594 = vpop.f32.mrf.mxu0
  %v3595 = vpop.f32.mrf.mxu0
  %v3596 = vadd.f32 %v3207, %v3595
  %v3597 = vpop.f32.mrf.mxu0
  %3598 = vmatprep.mubr.bf16.mxu0 0
  %3599 = vmatmul.mubr.bf16.gmra.mxu0 %v3316
  %v3600 = vpop.f32.mrf.mxu0
  %v3601 = vadd.f32 %v3207, %v3600
  %v3602 = vpop.f32.mrf.mxu0
  %v3603 = vpop.f32.mrf.mxu0
  %v3604 = vadd.f32 %v3207, %v3603
  %v3605 = vpop.f32.mrf.mxu0
  %3606 = vdwg.mxu0
  %v3607 = vld [vmem:[%s8] sm:$0x1]
  %v3609 = vlaneseq
  %v3610 = vshrl.u32 %v3609, 7
  %v3611 = vsub.s32 0, %v3610
  %v3612 = vrot.slane %v3607, %v3611
  %v3614 = vmul.f32 %v3353, %v3612
  %v3615 = vmul.f32 %v3356, %v3612
  %v3616 = vmul.f32 %v3361, %v3612
  %v3617 = vmul.f32 %v3364, %v3612
  %v3618 = vmul.f32 %v3369, %v3612
  %v3619 = vmul.f32 %v3372, %v3612
  %v3620 = vmul.f32 %v3377, %v3612
  %v3621 = vmul.f32 %v3380, %v3612
  %v3622 = vmul.f32 %v3385, %v3612
  %v3623 = vmul.f32 %v3388, %v3612
  %v3624 = vmul.f32 %v3393, %v3612
  %v3625 = vmul.f32 %v3396, %v3612
  %v3626 = vmul.f32 %v3401, %v3612
  %v3627 = vmul.f32 %v3404, %v3612
  %v3628 = vmul.f32 %v3409, %v3612
  %v3629 = vmul.f32 %v3412, %v3612
  %v3630 = vmul.f32 %v3417, %v3612
  %v3631 = vmul.f32 %v3420, %v3612
  %v3632 = vmul.f32 %v3425, %v3612
  %v3633 = vmul.f32 %v3428, %v3612
  %v3634 = vmul.f32 %v3433, %v3612
  %v3635 = vmul.f32 %v3436, %v3612
  %v3636 = vmul.f32 %v3441, %v3612
  %v3637 = vmul.f32 %v3444, %v3612
  %v3638 = vmul.f32 %v3449, %v3612
  %v3639 = vmul.f32 %v3452, %v3612
  %v3640 = vmul.f32 %v3457, %v3612
  %v3641 = vmul.f32 %v3460, %v3612
  %v3642 = vmul.f32 %v3465, %v3612
  %v3643 = vmul.f32 %v3468, %v3612
  %v3644 = vmul.f32 %v3473, %v3612
  %v3645 = vmul.f32 %v3476, %v3612
  %v3646 = vmul.f32 %v3481, %v3612
  %v3647 = vmul.f32 %v3484, %v3612
  %v3648 = vmul.f32 %v3489, %v3612
  %v3649 = vmul.f32 %v3492, %v3612
  %v3650 = vmul.f32 %v3497, %v3612
  %v3651 = vmul.f32 %v3500, %v3612
  %v3652 = vmul.f32 %v3505, %v3612
  %v3653 = vmul.f32 %v3508, %v3612
  %v3654 = vmul.f32 %v3513, %v3612
  %v3655 = vmul.f32 %v3516, %v3612
  %v3656 = vmul.f32 %v3521, %v3612
  %v3657 = vmul.f32 %v3524, %v3612
  %v3658 = vmul.f32 %v3529, %v3612
  %v3659 = vmul.f32 %v3532, %v3612
  %v3660 = vmul.f32 %v3537, %v3612
  %v3661 = vmul.f32 %v3540, %v3612
  %v3662 = vmul.f32 %v3545, %v3612
  %v3663 = vmul.f32 %v3548, %v3612
  %v3664 = vmul.f32 %v3553, %v3612
  %v3665 = vmul.f32 %v3556, %v3612
  %v3666 = vmul.f32 %v3561, %v3612
  %v3667 = vmul.f32 %v3564, %v3612
  %v3668 = vmul.f32 %v3569, %v3612
  %v3669 = vmul.f32 %v3572, %v3612
  %v3670 = vmul.f32 %v3577, %v3612
  %v3671 = vmul.f32 %v3580, %v3612
  %v3672 = vmul.f32 %v3585, %v3612
  %v3673 = vmul.f32 %v3588, %v3612
  %v3674 = vmul.f32 %v3593, %v3612
  %v3675 = vmul.f32 %v3596, %v3612
  %v3676 = vmul.f32 %v3601, %v3612
  %v3677 = vmul.f32 %v3604, %v3612
  %3678 = vst.msk [vmem:[%s9] sm:$0xff] %vm2264, %v3614
  %3679 = vst.msk [vmem:[%s9 + $0x8] sm:$0xff] %vm2264, %v3615
  %3680 = vst.msk [vmem:[%s9 + $0x10] sm:$0xff] %vm2264, %v3616
  %3681 = vst.msk [vmem:[%s9 + $0x18] sm:$0xff] %vm2264, %v3617
  %3682 = vst.msk [vmem:[%s9 + $0x20] sm:$0xff] %vm2264, %v3618
  %3683 = vst.msk [vmem:[%s9 + $0x28] sm:$0xff] %vm2264, %v3619
  %3684 = vst.msk [vmem:[%s9 + $0x30] sm:$0xff] %vm2264, %v3620
  %3685 = vst.msk [vmem:[%s9 + $0x38] sm:$0xff] %vm2264, %v3621
  %3686 = vst.msk [vmem:[%s9 + $0x40] sm:$0xff] %vm2264, %v3622
  %3687 = vst.msk [vmem:[%s9 + $0x48] sm:$0xff] %vm2264, %v3623
  %3688 = vst.msk [vmem:[%s9 + $0x50] sm:$0xff] %vm2264, %v3624
  %3689 = vst.msk [vmem:[%s9 + $0x58] sm:$0xff] %vm2264, %v3625
  %3690 = vst.msk [vmem:[%s9 + $0x60] sm:$0xff] %vm2264, %v3626
  %3691 = vst.msk [vmem:[%s9 + $0x68] sm:$0xff] %vm2264, %v3627
  %3692 = vst.msk [vmem:[%s9 + $0x70] sm:$0xff] %vm2264, %v3628
  %3693 = vst.msk [vmem:[%s9 + $0x78] sm:$0xff] %vm2264, %v3629
  %3694 = vst.msk [vmem:[%s9 + $0x80] sm:$0xff] %vm2264, %v3630
  %3695 = vst.msk [vmem:[%s9 + $0x88] sm:$0xff] %vm2264, %v3631
  %3696 = vst.msk [vmem:[%s9 + $0x90] sm:$0xff] %vm2264, %v3632
  %3697 = vst.msk [vmem:[%s9 + $0x98] sm:$0xff] %vm2264, %v3633
  %3698 = vst.msk [vmem:[%s9 + $0xa0] sm:$0xff] %vm2264, %v3634
  %3699 = vst.msk [vmem:[%s9 + $0xa8] sm:$0xff] %vm2264, %v3635
  %3700 = vst.msk [vmem:[%s9 + $0xb0] sm:$0xff] %vm2264, %v3636
  %3701 = vst.msk [vmem:[%s9 + $0xb8] sm:$0xff] %vm2264, %v3637
  %3702 = vst.msk [vmem:[%s9 + $0xc0] sm:$0xff] %vm2264, %v3638
  %3703 = vst.msk [vmem:[%s9 + $0xc8] sm:$0xff] %vm2264, %v3639
  %3704 = vst.msk [vmem:[%s9 + $0xd0] sm:$0xff] %vm2264, %v3640
  %3705 = vst.msk [vmem:[%s9 + $0xd8] sm:$0xff] %vm2264, %v3641
  %3706 = vst.msk [vmem:[%s9 + $0xe0] sm:$0xff] %vm2264, %v3642
  %3707 = vst.msk [vmem:[%s9 + $0xe8] sm:$0xff] %vm2264, %v3643
  %3708 = vst.msk [vmem:[%s9 + $0xf0] sm:$0xff] %vm2264, %v3644
  %3709 = vst.msk [vmem:[%s9 + $0xf8] sm:$0xff] %vm2264, %v3645
  %3710 = vst.msk [vmem:[%s9 + $0x100] sm:$0xff] %vm2264, %v3646
  %3711 = vst.msk [vmem:[%s9 + $0x108] sm:$0xff] %vm2264, %v3647
  %3712 = vst.msk [vmem:[%s9 + $0x110] sm:$0xff] %vm2264, %v3648
  %3713 = vst.msk [vmem:[%s9 + $0x118] sm:$0xff] %vm2264, %v3649
  %3714 = vst.msk [vmem:[%s9 + $0x120] sm:$0xff] %vm2264, %v3650
  %3715 = vst.msk [vmem:[%s9 + $0x128] sm:$0xff] %vm2264, %v3651
  %3716 = vst.msk [vmem:[%s9 + $0x130] sm:$0xff] %vm2264, %v3652
  %3717 = vst.msk [vmem:[%s9 + $0x138] sm:$0xff] %vm2264, %v3653
  %3718 = vst.msk [vmem:[%s9 + $0x140] sm:$0xff] %vm2264, %v3654
  %3719 = vst.msk [vmem:[%s9 + $0x148] sm:$0xff] %vm2264, %v3655
  %3720 = vst.msk [vmem:[%s9 + $0x150] sm:$0xff] %vm2264, %v3656
  %3721 = vst.msk [vmem:[%s9 + $0x158] sm:$0xff] %vm2264, %v3657
  %3722 = vst.msk [vmem:[%s9 + $0x160] sm:$0xff] %vm2264, %v3658
  %3723 = vst.msk [vmem:[%s9 + $0x168] sm:$0xff] %vm2264, %v3659
  %3724 = vst.msk [vmem:[%s9 + $0x170] sm:$0xff] %vm2264, %v3660
  %3725 = vst.msk [vmem:[%s9 + $0x178] sm:$0xff] %vm2264, %v3661
  %3726 = vst.msk [vmem:[%s9 + $0x180] sm:$0xff] %vm2264, %v3662
  %3727 = vst.msk [vmem:[%s9 + $0x188] sm:$0xff] %vm2264, %v3663
  %3728 = vst.msk [vmem:[%s9 + $0x190] sm:$0xff] %vm2264, %v3664
  %3729 = vst.msk [vmem:[%s9 + $0x198] sm:$0xff] %vm2264, %v3665
  %3730 = vst.msk [vmem:[%s9 + $0x1a0] sm:$0xff] %vm2264, %v3666
  %3731 = vst.msk [vmem:[%s9 + $0x1a8] sm:$0xff] %vm2264, %v3667
  %3732 = vst.msk [vmem:[%s9 + $0x1b0] sm:$0xff] %vm2264, %v3668
  %3733 = vst.msk [vmem:[%s9 + $0x1b8] sm:$0xff] %vm2264, %v3669
  %3734 = vst.msk [vmem:[%s9 + $0x1c0] sm:$0xff] %vm2264, %v3670
  %3735 = vst.msk [vmem:[%s9 + $0x1c8] sm:$0xff] %vm2264, %v3671
  %3736 = vst.msk [vmem:[%s9 + $0x1d0] sm:$0xff] %vm2264, %v3672
  %3737 = vst.msk [vmem:[%s9 + $0x1d8] sm:$0xff] %vm2264, %v3673
  %3738 = vst.msk [vmem:[%s9 + $0x1e0] sm:$0xff] %vm2264, %v3674
  %3739 = vst.msk [vmem:[%s9 + $0x1e8] sm:$0xff] %vm2264, %v3675
  %3740 = vst.msk [vmem:[%s9 + $0x1f0] sm:$0xff] %vm2264, %v3676
  %3741 = vst.msk [vmem:[%s9 + $0x1f8] sm:$0xff] %vm2264, %v3677
  // Predicated region
  $region38: #{convnext_gc_block.3} parent=0 // pred_check
    _
  $region39: #{convnext_gc_block.3} parent=0 // pred_check_branch
    %3743 = sbr.rel (0) target = $region41
  $region40: #{convnext_gc_block.3} parent=0 // pred_region
    _
  $region41: #{convnext_gc_block.3} parent=0 // pred_fallthru
    _
  // Predicated region
  $region42: #{convnext_gc_block.3} parent=0 // pred_check
    _
  $region43: #{convnext_gc_block.3} parent=0 // pred_check_branch
    %3745 = sbr.rel (0) target = $region45
  $region44: #{convnext_gc_block.3} parent=0 // pred_region
    _
  $region45: #{convnext_gc_block.3} parent=0 // pred_fallthru
    _

// kernel: convnext_gc_block.2
$region0: #{convnext_gc_block.2}
  #allocation0 [shape = 'u32[]', space=smem, size = 0x4, offset = 0x4, fixed_abs, tag = 'smem constant byte address 0x4 - core index']
  #allocation1 [shape = 'u32[144,128]{1,0:T(1,128)}', space=vmem, size = 0x12000, scoped, tag = 'internal scratch']
  %s0 = inlined_call_operand.vmem [shape: f32[2,28,16,4], index: 0, kind: input, shape index: {}]
  %s1 = inlined_call_operand.vmem [shape: f32[2,16,28,4], index: 1, kind: input, shape index: {}]
  %s2 = inlined_call_operand.vmem [shape: f32[13,4], index: 2, kind: input, shape index: {}]
  %s3 = inlined_call_operand.vmem [shape: f32[13,4], index: 3, kind: input, shape index: {}]
  %s4 = inlined_call_operand.vmem [shape: f32[1,4], index: 4, kind: input, shape index: {}]
  %s5 = inlined_call_operand.vmem [shape: f32[1,4], index: 5, kind: input, shape index: {}]
  %s6 = inlined_call_operand.vmem [shape: bf16[2,16,16,4], index: 6, kind: output, shape index: {0}]
  %s7 = inlined_call_operand.vmem [shape: bf16[2,16,16,4], index: 7, kind: output, shape index: {1}]
  %8 = xla_tuple %s6, %s7
  %s9 = sld [smem:[#allocation0]]
  $region65: #{convnext_gc_block.2} parent=0
    _
  %s11 = ssub.s32 1, %s9
  %s12 = scalar_select 0, %s11, %s9
  loop: start=0, step=1, limit=4
  $region2: #{convnext_gc_block.2} parent=0 // loop_pre_header
    _
  $region3: #{convnext_gc_block.2} parent=0 // loop_header
    %s14 = sphi 0, %s18
    %p15 = scmp.ge.s32.totalorder %s14, 4
    %s21 = sphi 0, %s33
    %s22 = sphi 0, %s29
    %s23 = sphi 0, %s21
    %s24 = sphi 0, %s22
    %s25 = sphi 0, %s23
    %s26 = sphi 0, %s24
    %s38 = sphi 0, %s40
    %s41 = sphi 0, %s38
    %s42 = sphi 0, %s41
    %s58 = sphi 0, %s42
    %s66 = sphi 0, %s68
    %s69 = sphi 0, %s66
    %s70 = sphi 0, %s69
    %s86 = sphi 0, %s70
    %s92 = sphi 0, %s94
    %s95 = sphi 0, %s92
    %s96 = sphi 0, %s95
    %s112 = sphi 0, %s96
    %s118 = sphi 0, %s120
    %s121 = sphi 0, %s118
    %s122 = sphi 0, %s121
    %s138 = sphi 0, %s122
    %s144 = sphi 0, %s146
    %s147 = sphi 0, %s144
    %s148 = sphi 0, %s147
    %s164 = sphi 0, %s148
    %s170 = sphi 0, %s172
    %s173 = sphi 0, %s170
    %s174 = sphi 0, %s173
    %s190 = sphi 0, %s174
    %s198 = sphi 0, %s200
    %s201 = sphi 0, %s198
    %s202 = sphi 0, %s201
    %s218 = sphi 0, %s202
    %s226 = sphi 0, %s228
    %s229 = sphi 0, %s226
    %s230 = sphi 0, %s229
    %s246 = sphi 0, %s230
  $region4: #{convnext_gc_block.2} parent=0 // loop_header_branch
    %17 = sbr.rel (%p15) target = $region8
  $region5: #{convnext_gc_block.2} parent=0 // loop_body
    %s19 = ssub.s32 %s14, 1
    %s20 = ssub.s32 %s14, 2
    %s27 = sadd.s32 1, %s22
    %p28 = scmp.ge.s32.totalorder %s27, 1
    %s29 = scalar_select %p28, 0, %s27
    %s30 = sadd.s32 1, %s21
    %s31 = scalar_select %p28, %s30, %s21
    %p32 = scmp.ge.s32.totalorder %s31, 2
    %s33 = scalar_select %p32, 0, %s31
    %s34 = ssub.s32 %s21, %s33
    %s35 = ssub.s32 %s22, %s29
    %s36 = sor.u32 %s34, %s35
    %p37 = scmp.eq.s32.totalorder %s36, 0
    %s39 = sadd.s32 %s38, 1
    %s40 = scalar_select %p37, %s38, %s39
    %p43 = pneg %p37
    %p44 = scmp.eq.s32.totalorder %s14, 1
    %p45 = por %p43, %p44
    %p46 = scmp.ne.s32.totalorder %s38, %s41
    %p47 = scmp.eq.s32.totalorder %s14, 0
    %p48 = por %p46, %p47
    %p49 = scmp.ne.s32.totalorder %s38, %s41
    %p50 = scmp.eq.s32.totalorder %s19, 1
    %p51 = por %p49, %p50
    %p52 = scmp.ne.s32.totalorder %s41, %s42
    %p53 = scmp.eq.s32.totalorder %s19, 0
    %p54 = por %p52, %p53
    %p55 = scmp.ne.s32.totalorder %s41, %s42
    %p56 = scmp.eq.s32.totalorder %s20, 1
    %p57 = por %p55, %p56
    %p59 = scmp.ne.s32.totalorder %s42, %s58
    %p60 = scmp.eq.s32.totalorder %s20, 0
    %p61 = por %p59, %p60
    %s62 = ssub.s32 %s21, %s33
    %s63 = ssub.s32 %s22, %s29
    %s64 = sor.u32 %s62, %s63
    %p65 = scmp.eq.s32.totalorder %s64, 0
    %s67 = sadd.s32 %s66, 1
    %s68 = scalar_select %p65, %s66, %s67
    %p71 = pneg %p65
    %p72 = scmp.eq.s32.totalorder %s14, 1
    %p73 = por %p71, %p72
    %p74 = scmp.ne.s32.totalorder %s66, %s69
    %p75 = scmp.eq.s32.totalorder %s14, 0
    %p76 = por %p74, %p75
    %p77 = scmp.ne.s32.totalorder %s66, %s69
    %p78 = scmp.eq.s32.totalorder %s19, 1
    %p79 = por %p77, %p78
    %p80 = scmp.ne.s32.totalorder %s69, %s70
    %p81 = scmp.eq.s32.totalorder %s19, 0
    %p82 = por %p80, %p81
    %p83 = scmp.ne.s32.totalorder %s69, %s70
    %p84 = scmp.eq.s32.totalorder %s20, 1
    %p85 = por %p83, %p84
    %p87 = scmp.ne.s32.totalorder %s70, %s86
    %p88 = scmp.eq.s32.totalorder %s20, 0
    %p89 = por %p87, %p88
    %s90 = ssub.s32 %s22, %s29
    %p91 = scmp.eq.s32.totalorder %s90, 0
    %s93 = sadd.s32 %s92, 1
    %s94 = scalar_select %p91, %s92, %s93
    %p97 = pneg %p91
    %p98 = scmp.eq.s32.totalorder %s14, 1
    %p99 = por %p97, %p98
    %p100 = scmp.ne.s32.totalorder %s92, %s95
    %p101 = scmp.eq.s32.totalorder %s14, 0
    %p102 = por %p100, %p101
    %p103 = scmp.ne.s32.totalorder %s92, %s95
    %p104 = scmp.eq.s32.totalorder %s19, 1
    %p105 = por %p103, %p104
    %p106 = scmp.ne.s32.totalorder %s95, %s96
    %p107 = scmp.eq.s32.totalorder %s19, 0
    %p108 = por %p106, %p107
    %p109 = scmp.ne.s32.totalorder %s95, %s96
    %p110 = scmp.eq.s32.totalorder %s20, 1
    %p111 = por %p109, %p110
    %p113 = scmp.ne.s32.totalorder %s96, %s112
    %p114 = scmp.eq.s32.totalorder %s20, 0
    %p115 = por %p113, %p114
    %s116 = ssub.s32 %s22, %s29
    %p117 = scmp.eq.s32.totalorder %s116, 0
    %s119 = sadd.s32 %s118, 1
    %s120 = scalar_select %p117, %s118, %s119
    %p123 = pneg %p117
    %p124 = scmp.eq.s32.totalorder %s14, 1
    %p125 = por %p123, %p124
    %p126 = scmp.ne.s32.totalorder %s118, %s121
    %p127 = scmp.eq.s32.totalorder %s14, 0
    %p128 = por %p126, %p127
    %p129 = scmp.ne.s32.totalorder %s118, %s121
    %p130 = scmp.eq.s32.totalorder %s19, 1
    %p131 = por %p129, %p130
    %p132 = scmp.ne.s32.totalorder %s121, %s122
    %p133 = scmp.eq.s32.totalorder %s19, 0
    %p134 = por %p132, %p133
    %p135 = scmp.ne.s32.totalorder %s121, %s122
    %p136 = scmp.eq.s32.totalorder %s20, 1
    %p137 = por %p135, %p136
    %p139 = scmp.ne.s32.totalorder %s122, %s138
    %p140 = scmp.eq.s32.totalorder %s20, 0
    %p141 = por %p139, %p140
    %s142 = ssub.s32 %s22, %s29
    %p143 = scmp.eq.s32.totalorder %s142, 0
    %s145 = sadd.s32 %s144, 1
    %s146 = scalar_select %p143, %s144, %s145
    %p149 = pneg %p143
    %p150 = scmp.eq.s32.totalorder %s14, 1
    %p151 = por %p149, %p150
    %p152 = scmp.ne.s32.totalorder %s144, %s147
    %p153 = scmp.eq.s32.totalorder %s14, 0
    %p154 = por %p152, %p153
    %p155 = scmp.ne.s32.totalorder %s144, %s147
    %p156 = scmp.eq.s32.totalorder %s19, 1
    %p157 = por %p155, %p156
    %p158 = scmp.ne.s32.totalorder %s147, %s148
    %p159 = scmp.eq.s32.totalorder %s19, 0
    %p160 = por %p158, %p159
    %p161 = scmp.ne.s32.totalorder %s147, %s148
    %p162 = scmp.eq.s32.totalorder %s20, 1
    %p163 = por %p161, %p162
    %p165 = scmp.ne.s32.totalorder %s148, %s164
    %p166 = scmp.eq.s32.totalorder %s20, 0
    %p167 = por %p165, %p166
    %s168 = ssub.s32 %s22, %s29
    %p169 = scmp.eq.s32.totalorder %s168, 0
    %s171 = sadd.s32 %s170, 1
    %s172 = scalar_select %p169, %s170, %s171
    %p175 = pneg %p169
    %p176 = scmp.eq.s32.totalorder %s14, 1
    %p177 = por %p175, %p176
    %p178 = scmp.ne.s32.totalorder %s170, %s173
    %p179 = scmp.eq.s32.totalorder %s14, 0
    %p180 = por %p178, %p179
    %p181 = scmp.ne.s32.totalorder %s170, %s173
    %p182 = scmp.eq.s32.totalorder %s19, 1
    %p183 = por %p181, %p182
    %p184 = scmp.ne.s32.totalorder %s173, %s174
    %p185 = scmp.eq.s32.totalorder %s19, 0
    %p186 = por %p184, %p185
    %p187 = scmp.ne.s32.totalorder %s173, %s174
    %p188 = scmp.eq.s32.totalorder %s20, 1
    %p189 = por %p187, %p188
    %p191 = scmp.ne.s32.totalorder %s174, %s190
    %p192 = scmp.eq.s32.totalorder %s20, 0
    %p193 = por %p191, %p192
    %s194 = ssub.s32 %s21, %s33
    %s195 = ssub.s32 %s22, %s29
    %s196 = sor.u32 %s194, %s195
    %p197 = scmp.eq.s32.totalorder %s196, 0
    %s199 = sadd.s32 %s198, 1
    %s200 = scalar_select %p197, %s198, %s199
    %p203 = pneg %p197
    %p204 = scmp.eq.s32.totalorder %s14, 1
    %p205 = por %p203, %p204
    %p206 = scmp.ne.s32.totalorder %s198, %s201
    %p207 = scmp.eq.s32.totalorder %s14, 0
    %p208 = por %p206, %p207
    %p209 = scmp.ne.s32.totalorder %s198, %s201
    %p210 = scmp.eq.s32.totalorder %s19, 1
    %p211 = por %p209, %p210
    %p212 = scmp.ne.s32.totalorder %s201, %s202
    %p213 = scmp.eq.s32.totalorder %s19, 0
    %p214 = por %p212, %p213
    %p215 = scmp.ne.s32.totalorder %s201, %s202
    %p216 = scmp.eq.s32.totalorder %s20, 1
    %p217 = por %p215, %p216
    %p219 = scmp.ne.s32.totalorder %s202, %s218
    %p220 = scmp.eq.s32.totalorder %s20, 0
    %p221 = por %p219, %p220
    %s222 = ssub.s32 %s21, %s33
    %s223 = ssub.s32 %s22, %s29
    %s224 = sor.u32 %s222, %s223
    %p225 = scmp.eq.s32.totalorder %s224, 0
    %s227 = sadd.s32 %s226, 1
    %s228 = scalar_select %p225, %s226, %s227
    %p231 = pneg %p225
    %p232 = scmp.eq.s32.totalorder %s14, 1
    %p233 = por %p231, %p232
    %p234 = scmp.ne.s32.totalorder %s226, %s229
    %p235 = scmp.eq.s32.totalorder %s14, 0
    %p236 = por %p234, %p235
    %p237 = scmp.ne.s32.totalorder %s226, %s229
    %p238 = scmp.eq.s32.totalorder %s19, 1
    %p239 = por %p237, %p238
    %p240 = scmp.ne.s32.totalorder %s229, %s230
    %p241 = scmp.eq.s32.totalorder %s19, 0
    %p242 = por %p240, %p241
    %p243 = scmp.ne.s32.totalorder %s229, %s230
    %p244 = scmp.eq.s32.totalorder %s20, 1
    %p245 = por %p243, %p244
    %p247 = scmp.ne.s32.totalorder %s230, %s246
    %p248 = scmp.eq.s32.totalorder %s20, 0
    %p249 = por %p247, %p248
    %p250 = scmp.le.s32.totalorder 1, %s14
    %p251 = scmp.lt.s32.totalorder %s14, 3
    %p252 = pnand %p250, %p251
    %p253 = pneg %p252
    // Predicated region
    $region9: #{convnext_gc_block.2} parent=5 // pred_check
      _
    $region10: #{convnext_gc_block.2} parent=5 // pred_check_branch
      %255 = sbr.rel (%p252) target = $region12
    $region11: #{convnext_gc_block.2} parent=5 // pred_region
      %s256 = ssub.s32 %s14, 1
      // Predicated region
      $region13: #{convnext_gc_block.2} parent=11 // pred_check
        %p257 = pneg %p108
      $region14: #{convnext_gc_block.2} parent=11 // pred_check_branch
        %259 = sbr.rel (%p257) target = $region16
      $region15: #{convnext_gc_block.2} parent=11 // pred_region
        %p260 = scmp.lt.s32.totalorder %s24, 0
        %s261 = scalar_select %p260, %s24, 0
        %s262 = smul.addr %s261, 8
        %s263 = scalar_lea.vmem %s2, %s262
      $region16: #{convnext_gc_block.2} parent=11 // pred_fallthru
        _
      // Predicated region
      $region17: #{convnext_gc_block.2} parent=11 // pred_check
        %p264 = pneg %p134
      $region18: #{convnext_gc_block.2} parent=11 // pred_check_branch
        %266 = sbr.rel (%p264) target = $region20
      $region19: #{convnext_gc_block.2} parent=11 // pred_region
        %p267 = scmp.lt.s32.totalorder %s24, 0
        %s268 = scalar_select %p267, %s24, 0
        %s269 = smul.addr %s268, 8
        %s270 = scalar_lea.vmem %s3, %s269
      $region20: #{convnext_gc_block.2} parent=11 // pred_fallthru
        _
      // Predicated region
      $region21: #{convnext_gc_block.2} parent=11 // pred_check
        %p271 = pneg %p160
      $region22: #{convnext_gc_block.2} parent=11 // pred_check_branch
        %273 = sbr.rel (%p271) target = $region24
      $region23: #{convnext_gc_block.2} parent=11 // pred_region
        %p274 = scmp.lt.s32.totalorder %s24, 0
        %s275 = scalar_select %p274, %s24, 0
        %s276 = scalar_lea.vmem %s4, %s275
      $region24: #{convnext_gc_block.2} parent=11 // pred_fallthru
        _
      // Predicated region
      $region25: #{convnext_gc_block.2} parent=11 // pred_check
        %p277 = pneg %p186
      $region26: #{convnext_gc_block.2} parent=11 // pred_check_branch
        %279 = sbr.rel (%p277) target = $region28
      $region27: #{convnext_gc_block.2} parent=11 // pred_region
        %p280 = scmp.lt.s32.totalorder %s24, 0
        %s281 = scalar_select %p280, %s24, 0
        %s282 = scalar_lea.vmem %s5, %s281
      $region28: #{convnext_gc_block.2} parent=11 // pred_fallthru
        _
    $region12: #{convnext_gc_block.2} parent=5 // pred_fallthru
      _
    %p283 = scmp.lt.s32.totalorder %s14, 2
    // Predicated region
    $region29: #{convnext_gc_block.2} parent=5 // pred_check
      %p284 = pneg %p283
    $region30: #{convnext_gc_block.2} parent=5 // pred_check_branch
      %286 = sbr.rel (%p284) target = $region32
    $region31: #{convnext_gc_block.2} parent=5 // pred_region
      // Predicated region
      $region33: #{convnext_gc_block.2} parent=31 // pred_check
        %p287 = pneg %p48
      $region34: #{convnext_gc_block.2} parent=31 // pred_check_branch
        %289 = sbr.rel (%p287) target = $region36
      $region35: #{convnext_gc_block.2} parent=31 // pred_region
        %p290 = scmp.lt.s32.totalorder %s21, 1
        %s291 = scalar_select %p290, %s21, 1
        %p292 = scmp.lt.s32.totalorder %s22, 0
        %s293 = scalar_select %p292, %s22, 0
        %s294 = smul.addr %s291, 56
        %s295 = sadd.s32 %s293, %s294
        %s296 = smul.addr %s295, 8
        %s297 = scalar_lea.vmem %s0, %s296
      $region36: #{convnext_gc_block.2} parent=31 // pred_fallthru
        _
      // Predicated region
      $region37: #{convnext_gc_block.2} parent=31 // pred_check
        %p298 = pneg %p76
      $region38: #{convnext_gc_block.2} parent=31 // pred_check_branch
        %300 = sbr.rel (%p298) target = $region40
      $region39: #{convnext_gc_block.2} parent=31 // pred_region
        %p301 = scmp.lt.s32.totalorder %s21, 1
        %s302 = scalar_select %p301, %s21, 1
        %p303 = scmp.lt.s32.totalorder %s22, 0
        %s304 = scalar_select %p303, %s22, 0
        %s305 = smul.addr %s302, 64
        %s306 = sadd.s32 %s304, %s305
        %s307 = smul.addr %s306, 8
        %s308 = scalar_lea.vmem %s1, %s307
      $region40: #{convnext_gc_block.2} parent=31 // pred_fallthru
        _
    $region32: #{convnext_gc_block.2} parent=5 // pred_fallthru
      _
    %p309 = scmp.le.s32.totalorder 1, %s14
    %p310 = scmp.lt.s32.totalorder %s14, 3
    %p311 = pnand %p309, %p310
    %p312 = pneg %p311
    // Predicated region
    $region41: #{convnext_gc_block.2} parent=5 // pred_check
      _
    $region42: #{convnext_gc_block.2} parent=5 // pred_check_branch
      %314 = sbr.rel (%p311) target = $region44
    $region43: #{convnext_gc_block.2} parent=5 // pred_region
      %s315 = ssub.s32 %s14, 1
      %p316 = scmp.lt.s32.totalorder %s23, 1
      %s317 = scalar_select %p316, %s23, 1
      %p318 = scmp.lt.s32.totalorder %s24, 0
      %s319 = scalar_select %p318, %s24, 0
      %s320 = smul.addr %s317, 56
      %s321 = sadd.s32 %s319, %s320
      %s322 = smul.addr %s321, 8
      %s323 = scalar_lea.vmem %s0, %s322
      %p324 = pneg %p54
      %p325 = pneg %p51
      %p326 = scmp.lt.s32.totalorder %s23, 1
      %s327 = scalar_select %p326, %s23, 1
      %p328 = scmp.lt.s32.totalorder %s24, 0
      %s329 = scalar_select %p328, %s24, 0
      %s330 = smul.addr %s327, 64
      %s331 = sadd.s32 %s329, %s330
      %s332 = smul.addr %s331, 8
      %s333 = scalar_lea.vmem %s1, %s332
      %p334 = pneg %p82
      %p335 = pneg %p79
      %p336 = scmp.lt.s32.totalorder %s24, 0
      %s337 = scalar_select %p336, %s24, 0
      %s338 = smul.addr %s337, 8
      %s339 = scalar_lea.vmem %s2, %s338
      %p340 = pneg %p108
      %p341 = pneg %p105
      %p342 = scmp.lt.s32.totalorder %s24, 0
      %s343 = scalar_select %p342, %s24, 0
      %s344 = smul.addr %s343, 8
      %s345 = scalar_lea.vmem %s3, %s344
      %p346 = pneg %p134
      %p347 = pneg %p131
      %p348 = scmp.lt.s32.totalorder %s24, 0
      %s349 = scalar_select %p348, %s24, 0
      %s350 = scalar_lea.vmem %s4, %s349
      %p351 = pneg %p160
      %p352 = pneg %p157
      %p353 = scmp.lt.s32.totalorder %s24, 0
      %s354 = scalar_select %p353, %s24, 0
      %s355 = scalar_lea.vmem %s5, %s354
      %p356 = pneg %p186
      %p357 = pneg %p183
      %p358 = pneg %p214
      %p359 = pneg %p211
      %p360 = scmp.lt.s32.totalorder %s23, 1
      %s361 = scalar_select %p360, %s23, 1
      %p362 = scmp.lt.s32.totalorder %s24, 0
      %s363 = scalar_select %p362, %s24, 0
      %s364 = smul.addr %s361, 32
      %s365 = sadd.s32 %s363, %s364
      %s366 = smul.addr %s365, 4
      %s367 = scalar_lea.vmem %s6, %s366
      %p368 = pneg %p242
      %p369 = pneg %p239
      %p370 = scmp.lt.s32.totalorder %s23, 1
      %s371 = scalar_select %p370, %s23, 1
      %p372 = scmp.lt.s32.totalorder %s24, 0
      %s373 = scalar_select %p372, %s24, 0
      %s374 = smul.addr %s371, 32
      %s375 = sadd.s32 %s373, %s374
      %s376 = smul.addr %s375, 4
      %s377 = scalar_lea.vmem %s7, %s376
      %p378 = scmp.lt.s32.totalorder %s23, 1
      %s379 = scalar_select %p378, %s23, 1
      %p380 = scmp.lt.s32.totalorder %s24, 0
      %s381 = scalar_select %p380, %s24, 0
      %s382 = smul.addr %s379, 56
      %s383 = sadd.s32 %s381, %s382
      %s384 = smul.addr %s383, 8
      %s385 = scalar_lea.vmem %s0, %s384
      %p386 = scmp.lt.s32.totalorder %s23, 1
      %s387 = scalar_select %p386, %s23, 1
      %p388 = scmp.lt.s32.totalorder %s24, 0
      %s389 = scalar_select %p388, %s24, 0
      %s390 = smul.addr %s387, 64
      %s391 = sadd.s32 %s389, %s390
      %s392 = smul.addr %s391, 8
      %s393 = scalar_lea.vmem %s1, %s392
      %p394 = scmp.lt.s32.totalorder %s24, 0
      %s395 = scalar_select %p394, %s24, 0
      %s396 = smul.addr %s395, 8
      %s397 = scalar_lea.vmem %s2, %s396
      %p398 = scmp.lt.s32.totalorder %s24, 0
      %s399 = scalar_select %p398, %s24, 0
      %s400 = smul.addr %s399, 8
      %s401 = scalar_lea.vmem %s3, %s400
      %p402 = scmp.lt.s32.totalorder %s24, 0
      %s403 = scalar_select %p402, %s24, 0
      %s404 = scalar_lea.vmem %s4, %s403
      %p405 = scmp.lt.s32.totalorder %s24, 0
      %s406 = scalar_select %p405, %s24, 0
      %s407 = scalar_lea.vmem %s5, %s406
      %p408 = scmp.lt.s32.totalorder %s23, 1
      %s409 = scalar_select %p408, %s23, 1
      %p410 = scmp.lt.s32.totalorder %s24, 0
      %s411 = scalar_select %p410, %s24, 0
      %s412 = smul.addr %s409, 32
      %s413 = sadd.s32 %s411, %s412
      %s414 = smul.addr %s413, 4
      %s415 = scalar_lea.vmem %s6, %s414
      %p416 = scmp.lt.s32.totalorder %s23, 1
      %s417 = scalar_select %p416, %s23, 1
      %p418 = scmp.lt.s32.totalorder %s24, 0
      %s419 = scalar_select %p418, %s24, 0
      %s420 = smul.addr %s417, 32
      %s421 = sadd.s32 %s419, %s420
      %s422 = smul.addr %s421, 4
      %s423 = scalar_lea.vmem %s7, %s422
      %v424 = vld [vmem:[%s397] sm:$0xff]
      %v425 = vld [vmem:[%s397 + $0x8] sm:$0x1f]
      %v426 = vld [vmem:[%s401] sm:$0xff]
      %v427 = vld [vmem:[%s401 + $0x8] sm:$0x1f]
      %v428 = vld [vmem:[%s404] sm:$0x1]
      %v429 = vld [vmem:[%s407] sm:$0x1]
      %v430 = vld [vmem:[%s385] sm:$0xff]
      %v431 = vld [vmem:[%s385 + $0x8] sm:$0xff]
      %v432 = vld [vmem:[%s385 + $0x10] sm:$0xff]
      %v433 = vld [vmem:[%s385 + $0x18] sm:$0xff]
      %v434 = vld [vmem:[%s385 + $0x20] sm:$0xff]
      %v435 = vld [vmem:[%s385 + $0x28] sm:$0xff]
      %v436 = vld [vmem:[%s385 + $0x30] sm:$0xff]
      %v437 = vld [vmem:[%s385 + $0x38] sm:$0xff]
      %v438 = vld [vmem:[%s385 + $0x40] sm:$0xff]
      %v439 = vld [vmem:[%s385 + $0x48] sm:$0xff]
      %v440 = vld [vmem:[%s385 + $0x50] sm:$0xff]
      %v441 = vld [vmem:[%s385 + $0x58] sm:$0xff]
      %v442 = vld [vmem:[%s385 + $0x60] sm:$0xff]
      %v443 = vld [vmem:[%s385 + $0x68] sm:$0xff]
      %v444 = vld [vmem:[%s385 + $0x70] sm:$0xff]
      %v445 = vld [vmem:[%s385 + $0x78] sm:$0xff]
      %v446 = vld [vmem:[%s385 + $0x80] sm:$0xff]
      %v447 = vld [vmem:[%s385 + $0x88] sm:$0xff]
      %v448 = vld [vmem:[%s385 + $0x90] sm:$0xff]
      %v449 = vld [vmem:[%s385 + $0x98] sm:$0xff]
      %v450 = vld [vmem:[%s385 + $0xa0] sm:$0xff]
      %v451 = vld [vmem:[%s385 + $0xa8] sm:$0xff]
      %v452 = vld [vmem:[%s385 + $0xb0] sm:$0xff]
      %v453 = vld [vmem:[%s385 + $0xb8] sm:$0xff]
      %v454 = vld [vmem:[%s385 + $0xc0] sm:$0xff]
      %v455 = vld [vmem:[%s385 + $0xc8] sm:$0xff]
      %v456 = vld [vmem:[%s385 + $0xd0] sm:$0xff]
      %v457 = vld [vmem:[%s385 + $0xd8] sm:$0xff]
      %v458 = vld [vmem:[%s385 + $0xe0] sm:$0xff]
      %v459 = vld [vmem:[%s385 + $0xe8] sm:$0xff]
      %v460 = vld [vmem:[%s385 + $0xf0] sm:$0xff]
      %v461 = vld [vmem:[%s385 + $0xf8] sm:$0xff]
      %v462 = vlaneseq
      %v463 = vshrl.u32 %v462, 7
      %v464 = vsub.s32 0, %v463
      %v465 = vrot.slane %v424, %v464
      %v466 = vmul.f32 %v430, %v465
      %v467 = vmul.f32 %v431, %v465
      %v468 = vmul.f32 %v432, %v465
      %v469 = vmul.f32 %v433, %v465
      %v470 = vmul.f32 %v434, %v465
      %v471 = vmul.f32 %v435, %v465
      %v472 = vmul.f32 %v436, %v465
      %v473 = vmul.f32 %v437, %v465
      %v474 = vmul.f32 %v438, %v465
      %v475 = vmul.f32 %v439, %v465
      %v476 = vmul.f32 %v440, %v465
      %v477 = vmul.f32 %v441, %v465
      %v478 = vmul.f32 %v442, %v465
      %v479 = vmul.f32 %v443, %v465
      %v480 = vmul.f32 %v444, %v465
      %v481 = vmul.f32 %v445, %v465
      %v482 = vmul.f32 %v446, %v465
      %v483 = vmul.f32 %v447, %v465
      %v484 = vmul.f32 %v448, %v465
      %v485 = vmul.f32 %v449, %v465
      %v486 = vmul.f32 %v450, %v465
      %v487 = vmul.f32 %v451, %v465
      %v488 = vmul.f32 %v452, %v465
      %v489 = vmul.f32 %v453, %v465
      %v490 = vmul.f32 %v454, %v465
      %v491 = vmul.f32 %v455, %v465
      %v492 = vmul.f32 %v456, %v465
      %v493 = vmul.f32 %v457, %v465
      %v494 = vmul.f32 %v458, %v465
      %v495 = vmul.f32 %v459, %v465
      %v496 = vmul.f32 %v460, %v465
      %v497 = vmul.f32 %v461, %v465
      %v499 = vlaneseq
      %v500 = vshrl.u32 %v499, 7
      %v501 = vsub.s32 0, %v500
      %v502 = vrot.slane %v428, %v501
      %v504 = vadd.f32 %v466, %v502
      %v505 = vadd.f32 %v467, %v502
      %v506 = vadd.f32 %v468, %v502
      %v507 = vadd.f32 %v469, %v502
      %v508 = vadd.f32 %v470, %v502
      %v509 = vadd.f32 %v471, %v502
      %v510 = vadd.f32 %v472, %v502
      %v511 = vadd.f32 %v473, %v502
      %v512 = vadd.f32 %v474, %v502
      %v513 = vadd.f32 %v475, %v502
      %v514 = vadd.f32 %v476, %v502
      %v515 = vadd.f32 %v477, %v502
      %v516 = vadd.f32 %v478, %v502
      %v517 = vadd.f32 %v479, %v502
      %v518 = vadd.f32 %v480, %v502
      %v519 = vadd.f32 %v481, %v502
      %v520 = vadd.f32 %v482, %v502
      %v521 = vadd.f32 %v483, %v502
      %v522 = vadd.f32 %v484, %v502
      %v523 = vadd.f32 %v485, %v502
      %v524 = vadd.f32 %v486, %v502
      %v525 = vadd.f32 %v487, %v502
      %v526 = vadd.f32 %v488, %v502
      %v527 = vadd.f32 %v489, %v502
      %v528 = vadd.f32 %v490, %v502
      %v529 = vadd.f32 %v491, %v502
      %v530 = vadd.f32 %v492, %v502
      %v531 = vadd.f32 %v493, %v502
      %v532 = vadd.f32 %v494, %v502
      %v533 = vadd.f32 %v495, %v502
      %v534 = vadd.f32 %v496, %v502
      %v535 = vadd.f32 %v497, %v502
      %v536 = vld [vmem:[%s393] sm:$0xff]
      %v537 = vld [vmem:[%s393 + $0x8] sm:$0xff]
      %v538 = vld [vmem:[%s393 + $0x20] sm:$0xff]
      %v539 = vld [vmem:[%s393 + $0x28] sm:$0xff]
      %v540 = vld [vmem:[%s393 + $0x40] sm:$0xff]
      %v541 = vld [vmem:[%s393 + $0x48] sm:$0xff]
      %v542 = vld [vmem:[%s393 + $0x60] sm:$0xff]
      %v543 = vld [vmem:[%s393 + $0x68] sm:$0xff]
      %v544 = vld [vmem:[%s393 + $0x80] sm:$0xff]
      %v545 = vld [vmem:[%s393 + $0x88] sm:$0xff]
      %v546 = vld [vmem:[%s393 + $0xa0] sm:$0xff]
      %v547 = vld [vmem:[%s393 + $0xa8] sm:$0xff]
      %v548 = vld [vmem:[%s393 + $0xc0] sm:$0xff]
      %v549 = vld [vmem:[%s393 + $0xc8] sm:$0xff]
      %v550 = vld [vmem:[%s393 + $0xe0] sm:$0xff]
      %v551 = vld [vmem:[%s393 + $0xe8] sm:$0xff]
      %v552 = vld [vmem:[%s393 + $0x100] sm:$0xff]
      %v553 = vld [vmem:[%s393 + $0x108] sm:$0xff]
      %v554 = vld [vmem:[%s393 + $0x120] sm:$0xff]
      %v555 = vld [vmem:[%s393 + $0x128] sm:$0xff]
      %v556 = vld [vmem:[%s393 + $0x140] sm:$0xff]
      %v557 = vld [vmem:[%s393 + $0x148] sm:$0xff]
      %v558 = vld [vmem:[%s393 + $0x160] sm:$0xff]
      %v559 = vld [vmem:[%s393 + $0x168] sm:$0xff]
      %v560 = vld [vmem:[%s393 + $0x180] sm:$0xff]
      %v561 = vld [vmem:[%s393 + $0x188] sm:$0xff]
      %v562 = vld [vmem:[%s393 + $0x1a0] sm:$0xff]
      %v563 = vld [vmem:[%s393 + $0x1a8] sm:$0xff]
      %v564 = vld [vmem:[%s393 + $0x1c0] sm:$0xff]
      %v565 = vld [vmem:[%s393 + $0x1c8] sm:$0xff]
      %v566 = vld [vmem:[%s393 + $0x1e0] sm:$0xff]
      %v567 = vld [vmem:[%s393 + $0x1e8] sm:$0xff]
      %v568 = vlaneseq
      %v569 = vshrl.u32 %v568, 7
      %v570 = vsub.s32 0, %v569
      %v571 = vrot.slane %v426, %v570
      %v572 = vmul.f32 %v536, %v571
      %v573 = vmul.f32 %v537, %v571
      %v574 = vmul.f32 %v538, %v571
      %v575 = vmul.f32 %v539, %v571
      %v576 = vmul.f32 %v540, %v571
      %v577 = vmul.f32 %v541, %v571
      %v578 = vmul.f32 %v542, %v571
      %v579 = vmul.f32 %v543, %v571
      %v580 = vmul.f32 %v544, %v571
      %v581 = vmul.f32 %v545, %v571
      %v582 = vmul.f32 %v546, %v571
      %v583 = vmul.f32 %v547, %v571
      %v584 = vmul.f32 %v548, %v571
      %v585 = vmul.f32 %v549, %v571
      %v586 = vmul.f32 %v550, %v571
      %v587 = vmul.f32 %v551, %v571
      %v588 = vmul.f32 %v552, %v571
      %v589 = vmul.f32 %v553, %v571
      %v590 = vmul.f32 %v554, %v571
      %v591 = vmul.f32 %v555, %v571
      %v592 = vmul.f32 %v556, %v571
      %v593 = vmul.f32 %v557, %v571
      %v594 = vmul.f32 %v558, %v571
      %v595 = vmul.f32 %v559, %v571
      %v596 = vmul.f32 %v560, %v571
      %v597 = vmul.f32 %v561, %v571
      %v598 = vmul.f32 %v562, %v571
      %v599 = vmul.f32 %v563, %v571
      %v600 = vmul.f32 %v564, %v571
      %v601 = vmul.f32 %v565, %v571
      %v602 = vmul.f32 %v566, %v571
      %v603 = vmul.f32 %v567, %v571
      %v605 = vlaneseq
      %v606 = vshrl.u32 %v605, 7
      %v607 = vsub.s32 0, %v606
      %v608 = vrot.slane %v429, %v607
      %v610 = vadd.f32 %v572, %v608
      %v611 = vadd.f32 %v573, %v608
      %v612 = vadd.f32 %v574, %v608
      %v613 = vadd.f32 %v575, %v608
      %v614 = vadd.f32 %v576, %v608
      %v615 = vadd.f32 %v577, %v608
      %v616 = vadd.f32 %v578, %v608
      %v617 = vadd.f32 %v579, %v608
      %v618 = vadd.f32 %v580, %v608
      %v619 = vadd.f32 %v581, %v608
      %v620 = vadd.f32 %v582, %v608
      %v621 = vadd.f32 %v583, %v608
      %v622 = vadd.f32 %v584, %v608
      %v623 = vadd.f32 %v585, %v608
      %v624 = vadd.f32 %v586, %v608
      %v625 = vadd.f32 %v587, %v608
      %v626 = vadd.f32 %v588, %v608
      %v627 = vadd.f32 %v589, %v608
      %v628 = vadd.f32 %v590, %v608
      %v629 = vadd.f32 %v591, %v608
      %v630 = vadd.f32 %v592, %v608
      %v631 = vadd.f32 %v593, %v608
      %v632 = vadd.f32 %v594, %v608
      %v633 = vadd.f32 %v595, %v608
      %v634 = vadd.f32 %v596, %v608
      %v635 = vadd.f32 %v597, %v608
      %v636 = vadd.f32 %v598, %v608
      %v637 = vadd.f32 %v599, %v608
      %v638 = vadd.f32 %v600, %v608
      %v639 = vadd.f32 %v601, %v608
      %v640 = vadd.f32 %v602, %v608
      %v641 = vadd.f32 %v603, %v608
      %s642 = scalar_lea.vmem %s385, 16
      %v643 = vld [vmem:[%s642] sm:$0xff]
      %v644 = vld [vmem:[%s642 + $0x8] sm:$0xff]
      %v645 = vld [vmem:[%s642 + $0x10] sm:$0xff]
      %v646 = vld [vmem:[%s642 + $0x18] sm:$0xff]
      %v647 = vld [vmem:[%s642 + $0x20] sm:$0xff]
      %v648 = vld [vmem:[%s642 + $0x28] sm:$0xff]
      %v649 = vld [vmem:[%s642 + $0x30] sm:$0xff]
      %v650 = vld [vmem:[%s642 + $0x38] sm:$0xff]
      %v651 = vld [vmem:[%s642 + $0x40] sm:$0xff]
      %v652 = vld [vmem:[%s642 + $0x48] sm:$0xff]
      %v653 = vld [vmem:[%s642 + $0x50] sm:$0xff]
      %v654 = vld [vmem:[%s642 + $0x58] sm:$0xff]
      %v655 = vld [vmem:[%s642 + $0x60] sm:$0xff]
      %v656 = vld [vmem:[%s642 + $0x68] sm:$0xff]
      %v657 = vld [vmem:[%s642 + $0x70] sm:$0xff]
      %v658 = vld [vmem:[%s642 + $0x78] sm:$0xff]
      %v659 = vld [vmem:[%s642 + $0x80] sm:$0xff]
      %v660 = vld [vmem:[%s642 + $0x88] sm:$0xff]
      %v661 = vld [vmem:[%s642 + $0x90] sm:$0xff]
      %v662 = vld [vmem:[%s642 + $0x98] sm:$0xff]
      %v663 = vld [vmem:[%s642 + $0xa0] sm:$0xff]
      %v664 = vld [vmem:[%s642 + $0xa8] sm:$0xff]
      %v665 = vld [vmem:[%s642 + $0xb0] sm:$0xff]
      %v666 = vld [vmem:[%s642 + $0xb8] sm:$0xff]
      %v667 = vld [vmem:[%s642 + $0xc0] sm:$0xff]
      %v668 = vld [vmem:[%s642 + $0xc8] sm:$0xff]
      %v669 = vld [vmem:[%s642 + $0xd0] sm:$0xff]
      %v670 = vld [vmem:[%s642 + $0xd8] sm:$0xff]
      %v671 = vld [vmem:[%s642 + $0xe0] sm:$0xff]
      %v672 = vld [vmem:[%s642 + $0xe8] sm:$0xff]
      %v673 = vld [vmem:[%s642 + $0xf0] sm:$0xff]
      %v674 = vld [vmem:[%s642 + $0xf8] sm:$0xff]
      %v675 = vlaneseq
      %v676 = vshrl.u32 %v675, 7
      %v677 = vsub.s32 1, %v676
      %v678 = vrot.slane %v424, %v677
      %v679 = vmul.f32 %v643, %v678
      %v680 = vmul.f32 %v644, %v678
      %v681 = vmul.f32 %v645, %v678
      %v682 = vmul.f32 %v646, %v678
      %v683 = vmul.f32 %v647, %v678
      %v684 = vmul.f32 %v648, %v678
      %v685 = vmul.f32 %v649, %v678
      %v686 = vmul.f32 %v650, %v678
      %v687 = vmul.f32 %v651, %v678
      %v688 = vmul.f32 %v652, %v678
      %v689 = vmul.f32 %v653, %v678
      %v690 = vmul.f32 %v654, %v678
      %v691 = vmul.f32 %v655, %v678
      %v692 = vmul.f32 %v656, %v678
      %v693 = vmul.f32 %v657, %v678
      %v694 = vmul.f32 %v658, %v678
      %v695 = vmul.f32 %v659, %v678
      %v696 = vmul.f32 %v660, %v678
      %v697 = vmul.f32 %v661, %v678
      %v698 = vmul.f32 %v662, %v678
      %v699 = vmul.f32 %v663, %v678
      %v700 = vmul.f32 %v664, %v678
      %v701 = vmul.f32 %v665, %v678
      %v702 = vmul.f32 %v666, %v678
      %v703 = vmul.f32 %v667, %v678
      %v704 = vmul.f32 %v668, %v678
      %v705 = vmul.f32 %v669, %v678
      %v706 = vmul.f32 %v670, %v678
      %v707 = vmul.f32 %v671, %v678
      %v708 = vmul.f32 %v672, %v678
      %v709 = vmul.f32 %v673, %v678
      %v710 = vmul.f32 %v674, %v678
      %v711 = vadd.f32 %v504, %v679
      %v712 = vadd.f32 %v505, %v680
      %v713 = vadd.f32 %v506, %v681
      %v714 = vadd.f32 %v507, %v682
      %v715 = vadd.f32 %v508, %v683
      %v716 = vadd.f32 %v509, %v684
      %v717 = vadd.f32 %v510, %v685
      %v718 = vadd.f32 %v511, %v686
      %v719 = vadd.f32 %v512, %v687
      %v720 = vadd.f32 %v513, %v688
      %v721 = vadd.f32 %v514, %v689
      %v722 = vadd.f32 %v515, %v690
      %v723 = vadd.f32 %v516, %v691
      %v724 = vadd.f32 %v517, %v692
      %v725 = vadd.f32 %v518, %v693
      %v726 = vadd.f32 %v519, %v694
      %v727 = vadd.f32 %v520, %v695
      %v728 = vadd.f32 %v521, %v696
      %v729 = vadd.f32 %v522, %v697
      %v730 = vadd.f32 %v523, %v698
      %v731 = vadd.f32 %v524, %v699
      %v732 = vadd.f32 %v525, %v700
      %v733 = vadd.f32 %v526, %v701
      %v734 = vadd.f32 %v527, %v702
      %v735 = vadd.f32 %v528, %v703
      %v736 = vadd.f32 %v529, %v704
      %v737 = vadd.f32 %v530, %v705
      %v738 = vadd.f32 %v531, %v706
      %v739 = vadd.f32 %v532, %v707
      %v740 = vadd.f32 %v533, %v708
      %v741 = vadd.f32 %v534, %v709
      %v742 = vadd.f32 %v535, %v710
      %v743 = vld [vmem:[%s393 + $0x1] sm:$0xff]
      %v744 = vld [vmem:[%s393 + $0x9] sm:$0xff]
      %v745 = vld [vmem:[%s393 + $0x21] sm:$0xff]
      %v746 = vld [vmem:[%s393 + $0x29] sm:$0xff]
      %v747 = vld [vmem:[%s393 + $0x41] sm:$0xff]
      %v748 = vld [vmem:[%s393 + $0x49] sm:$0xff]
      %v749 = vld [vmem:[%s393 + $0x61] sm:$0xff]
      %v750 = vld [vmem:[%s393 + $0x69] sm:$0xff]
      %v751 = vld [vmem:[%s393 + $0x81] sm:$0xff]
      %v752 = vld [vmem:[%s393 + $0x89] sm:$0xff]
      %v753 = vld [vmem:[%s393 + $0xa1] sm:$0xff]
      %v754 = vld [vmem:[%s393 + $0xa9] sm:$0xff]
      %v755 = vld [vmem:[%s393 + $0xc1] sm:$0xff]
      %v756 = vld [vmem:[%s393 + $0xc9] sm:$0xff]
      %v757 = vld [vmem:[%s393 + $0xe1] sm:$0xff]
      %v758 = vld [vmem:[%s393 + $0xe9] sm:$0xff]
      %v759 = vld [vmem:[%s393 + $0x101] sm:$0xff]
      %v760 = vld [vmem:[%s393 + $0x109] sm:$0xff]
      %v761 = vld [vmem:[%s393 + $0x121] sm:$0xff]
      %v762 = vld [vmem:[%s393 + $0x129] sm:$0xff]
      %v763 = vld [vmem:[%s393 + $0x141] sm:$0xff]
      %v764 = vld [vmem:[%s393 + $0x149] sm:$0xff]
      %v765 = vld [vmem:[%s393 + $0x161] sm:$0xff]
      %v766 = vld [vmem:[%s393 + $0x169] sm:$0xff]
      %v767 = vld [vmem:[%s393 + $0x181] sm:$0xff]
      %v768 = vld [vmem:[%s393 + $0x189] sm:$0xff]
      %v769 = vld [vmem:[%s393 + $0x1a1] sm:$0xff]
      %v770 = vld [vmem:[%s393 + $0x1a9] sm:$0xff]
      %v771 = vld [vmem:[%s393 + $0x1c1] sm:$0xff]
      %v772 = vld [vmem:[%s393 + $0x1c9] sm:$0xff]
      %v773 = vld [vmem:[%s393 + $0x1e1] sm:$0xff]
      %v774 = vld [vmem:[%s393 + $0x1e9] sm:$0xff]
      %v775 = vlaneseq
      %v776 = vshrl.u32 %v775, 7
      %v777 = vsub.s32 1, %v776
      %v778 = vrot.slane %v426, %v777
      %v779 = vmul.f32 %v743, %v778
      %v780 = vmul.f32 %v744, %v778
      %v781 = vmul.f32 %v745, %v778
      %v782 = vmul.f32 %v746, %v778
      %v783 = vmul.f32 %v747, %v778
      %v784 = vmul.f32 %v748, %v778
      %v785 = vmul.f32 %v749, %v778
      %v786 = vmul.f32 %v750, %v778
      %v787 = vmul.f32 %v751, %v778
      %v788 = vmul.f32 %v752, %v778
      %v789 = vmul.f32 %v753, %v778
      %v790 = vmul.f32 %v754, %v778
      %v791 = vmul.f32 %v755, %v778
      %v792 = vmul.f32 %v756, %v778
      %v793 = vmul.f32 %v757, %v778
      %v794 = vmul.f32 %v758, %v778
      %v795 = vmul.f32 %v759, %v778
      %v796 = vmul.f32 %v760, %v778
      %v797 = vmul.f32 %v761, %v778
      %v798 = vmul.f32 %v762, %v778
      %v799 = vmul.f32 %v763, %v778
      %v800 = vmul.f32 %v764, %v778
      %v801 = vmul.f32 %v765, %v778
      %v802 = vmul.f32 %v766, %v778
      %v803 = vmul.f32 %v767, %v778
      %v804 = vmul.f32 %v768, %v778
      %v805 = vmul.f32 %v769, %v778
      %v806 = vmul.f32 %v770, %v778
      %v807 = vmul.f32 %v771, %v778
      %v808 = vmul.f32 %v772, %v778
      %v809 = vmul.f32 %v773, %v778
      %v810 = vmul.f32 %v774, %v778
      %v811 = vadd.f32 %v610, %v779
      %v812 = vadd.f32 %v611, %v780
      %v813 = vadd.f32 %v612, %v781
      %v814 = vadd.f32 %v613, %v782
      %v815 = vadd.f32 %v614, %v783
      %v816 = vadd.f32 %v615, %v784
      %v817 = vadd.f32 %v616, %v785
      %v818 = vadd.f32 %v617, %v786
      %v819 = vadd.f32 %v618, %v787
      %v820 = vadd.f32 %v619, %v788
      %v821 = vadd.f32 %v620, %v789
      %v822 = vadd.f32 %v621, %v790
      %v823 = vadd.f32 %v622, %v791
      %v824 = vadd.f32 %v623, %v792
      %v825 = vadd.f32 %v624, %v793
      %v826 = vadd.f32 %v625, %v794
      %v827 = vadd.f32 %v626, %v795
      %v828 = vadd.f32 %v627, %v796
      %v829 = vadd.f32 %v628, %v797
      %v830 = vadd.f32 %v629, %v798
      %v831 = vadd.f32 %v630, %v799
      %v832 = vadd.f32 %v631, %v800
      %v833 = vadd.f32 %v632, %v801
      %v834 = vadd.f32 %v633, %v802
      %v835 = vadd.f32 %v634, %v803
      %v836 = vadd.f32 %v635, %v804
      %v837 = vadd.f32 %v636, %v805
      %v838 = vadd.f32 %v637, %v806
      %v839 = vadd.f32 %v638, %v807
      %v840 = vadd.f32 %v639, %v808
      %v841 = vadd.f32 %v640, %v809
      %v842 = vadd.f32 %v641, %v810
      %s843 = scalar_lea.vmem %s385, 32
      %v844 = vld [vmem:[%s843] sm:$0xff]
      %v845 = vld [vmem:[%s843 + $0x8] sm:$0xff]
      %v846 = vld [vmem:[%s843 + $0x10] sm:$0xff]
      %v847 = vld [vmem:[%s843 + $0x18] sm:$0xff]
      %v848 = vld [vmem:[%s843 + $0x20] sm:$0xff]
      %v849 = vld [vmem:[%s843 + $0x28] sm:$0xff]
      %v850 = vld [vmem:[%s843 + $0x30] sm:$0xff]
      %v851 = vld [vmem:[%s843 + $0x38] sm:$0xff]
      %v852 = vld [vmem:[%s843 + $0x40] sm:$0xff]
      %v853 = vld [vmem:[%s843 + $0x48] sm:$0xff]
      %v854 = vld [vmem:[%s843 + $0x50] sm:$0xff]
      %v855 = vld [vmem:[%s843 + $0x58] sm:$0xff]
      %v856 = vld [vmem:[%s843 + $0x60] sm:$0xff]
      %v857 = vld [vmem:[%s843 + $0x68] sm:$0xff]
      %v858 = vld [vmem:[%s843 + $0x70] sm:$0xff]
      %v859 = vld [vmem:[%s843 + $0x78] sm:$0xff]
      %v860 = vld [vmem:[%s843 + $0x80] sm:$0xff]
      %v861 = vld [vmem:[%s843 + $0x88] sm:$0xff]
      %v862 = vld [vmem:[%s843 + $0x90] sm:$0xff]
      %v863 = vld [vmem:[%s843 + $0x98] sm:$0xff]
      %v864 = vld [vmem:[%s843 + $0xa0] sm:$0xff]
      %v865 = vld [vmem:[%s843 + $0xa8] sm:$0xff]
      %v866 = vld [vmem:[%s843 + $0xb0] sm:$0xff]
      %v867 = vld [vmem:[%s843 + $0xb8] sm:$0xff]
      %v868 = vld [vmem:[%s843 + $0xc0] sm:$0xff]
      %v869 = vld [vmem:[%s843 + $0xc8] sm:$0xff]
      %v870 = vld [vmem:[%s843 + $0xd0] sm:$0xff]
      %v871 = vld [vmem:[%s843 + $0xd8] sm:$0xff]
      %v872 = vld [vmem:[%s843 + $0xe0] sm:$0xff]
      %v873 = vld [vmem:[%s843 + $0xe8] sm:$0xff]
      %v874 = vld [vmem:[%s843 + $0xf0] sm:$0xff]
      %v875 = vld [vmem:[%s843 + $0xf8] sm:$0xff]
      %v876 = vlaneseq
      %v877 = vshrl.u32 %v876, 7
      %v878 = vsub.s32 2, %v877
      %v879 = vrot.slane %v424, %v878
      %v880 = vmul.f32 %v844, %v879
      %v881 = vmul.f32 %v845, %v879
      %v882 = vmul.f32 %v846, %v879
      %v883 = vmul.f32 %v847, %v879
      %v884 = vmul.f32 %v848, %v879
      %v885 = vmul.f32 %v849, %v879
      %v886 = vmul.f32 %v850, %v879
      %v887 = vmul.f32 %v851, %v879
      %v888 = vmul.f32 %v852, %v879
      %v889 = vmul.f32 %v853, %v879
      %v890 = vmul.f32 %v854, %v879
      %v891 = vmul.f32 %v855, %v879
      %v892 = vmul.f32 %v856, %v879
      %v893 = vmul.f32 %v857, %v879
      %v894 = vmul.f32 %v858, %v879
      %v895 = vmul.f32 %v859, %v879
      %v896 = vmul.f32 %v860, %v879
      %v897 = vmul.f32 %v861, %v879
      %v898 = vmul.f32 %v862, %v879
      %v899 = vmul.f32 %v863, %v879
      %v900 = vmul.f32 %v864, %v879
      %v901 = vmul.f32 %v865, %v879
      %v902 = vmul.f32 %v866, %v879
      %v903 = vmul.f32 %v867, %v879
      %v904 = vmul.f32 %v868, %v879
      %v905 = vmul.f32 %v869, %v879
      %v906 = vmul.f32 %v870, %v879
      %v907 = vmul.f32 %v871, %v879
      %v908 = vmul.f32 %v872, %v879
      %v909 = vmul.f32 %v873, %v879
      %v910 = vmul.f32 %v874, %v879
      %v911 = vmul.f32 %v875, %v879
      %v912 = vadd.f32 %v711, %v880
      %v913 = vadd.f32 %v712, %v881
      %v914 = vadd.f32 %v713, %v882
      %v915 = vadd.f32 %v714, %v883
      %v916 = vadd.f32 %v715, %v884
      %v917 = vadd.f32 %v716, %v885
      %v918 = vadd.f32 %v717, %v886
      %v919 = vadd.f32 %v718, %v887
      %v920 = vadd.f32 %v719, %v888
      %v921 = vadd.f32 %v720, %v889
      %v922 = vadd.f32 %v721, %v890
      %v923 = vadd.f32 %v722, %v891
      %v924 = vadd.f32 %v723, %v892
      %v925 = vadd.f32 %v724, %v893
      %v926 = vadd.f32 %v725, %v894
      %v927 = vadd.f32 %v726, %v895
      %v928 = vadd.f32 %v727, %v896
      %v929 = vadd.f32 %v728, %v897
      %v930 = vadd.f32 %v729, %v898
      %v931 = vadd.f32 %v730, %v899
      %v932 = vadd.f32 %v731, %v900
      %v933 = vadd.f32 %v732, %v901
      %v934 = vadd.f32 %v733, %v902
      %v935 = vadd.f32 %v734, %v903
      %v936 = vadd.f32 %v735, %v904
      %v937 = vadd.f32 %v736, %v905
      %v938 = vadd.f32 %v737, %v906
      %v939 = vadd.f32 %v738, %v907
      %v940 = vadd.f32 %v739, %v908
      %v941 = vadd.f32 %v740, %v909
      %v942 = vadd.f32 %v741, %v910
      %v943 = vadd.f32 %v742, %v911
      %v944 = vld [vmem:[%s393 + $0x2] sm:$0xff]
      %v945 = vld [vmem:[%s393 + $0xa] sm:$0xff]
      %v946 = vld [vmem:[%s393 + $0x22] sm:$0xff]
      %v947 = vld [vmem:[%s393 + $0x2a] sm:$0xff]
      %v948 = vld [vmem:[%s393 + $0x42] sm:$0xff]
      %v949 = vld [vmem:[%s393 + $0x4a] sm:$0xff]
      %v950 = vld [vmem:[%s393 + $0x62] sm:$0xff]
      %v951 = vld [vmem:[%s393 + $0x6a] sm:$0xff]
      %v952 = vld [vmem:[%s393 + $0x82] sm:$0xff]
      %v953 = vld [vmem:[%s393 + $0x8a] sm:$0xff]
      %v954 = vld [vmem:[%s393 + $0xa2] sm:$0xff]
      %v955 = vld [vmem:[%s393 + $0xaa] sm:$0xff]
      %v956 = vld [vmem:[%s393 + $0xc2] sm:$0xff]
      %v957 = vld [vmem:[%s393 + $0xca] sm:$0xff]
      %v958 = vld [vmem:[%s393 + $0xe2] sm:$0xff]
      %v959 = vld [vmem:[%s393 + $0xea] sm:$0xff]
      %v960 = vld [vmem:[%s393 + $0x102] sm:$0xff]
      %v961 = vld [vmem:[%s393 + $0x10a] sm:$0xff]
      %v962 = vld [vmem:[%s393 + $0x122] sm:$0xff]
      %v963 = vld [vmem:[%s393 + $0x12a] sm:$0xff]
      %v964 = vld [vmem:[%s393 + $0x142] sm:$0xff]
      %v965 = vld [vmem:[%s393 + $0x14a] sm:$0xff]
      %v966 = vld [vmem:[%s393 + $0x162] sm:$0xff]
      %v967 = vld [vmem:[%s393 + $0x16a] sm:$0xff]
      %v968 = vld [vmem:[%s393 + $0x182] sm:$0xff]
      %v969 = vld [vmem:[%s393 + $0x18a] sm:$0xff]
      %v970 = vld [vmem:[%s393 + $0x1a2] sm:$0xff]
      %v971 = vld [vmem:[%s393 + $0x1aa] sm:$0xff]
      %v972 = vld [vmem:[%s393 + $0x1c2] sm:$0xff]
      %v973 = vld [vmem:[%s393 + $0x1ca] sm:$0xff]
      %v974 = vld [vmem:[%s393 + $0x1e2] sm:$0xff]
      %v975 = vld [vmem:[%s393 + $0x1ea] sm:$0xff]
      %v976 = vlaneseq
      %v977 = vshrl.u32 %v976, 7
      %v978 = vsub.s32 2, %v977
      %v979 = vrot.slane %v426, %v978
      %v980 = vmul.f32 %v944, %v979
      %v981 = vmul.f32 %v945, %v979
      %v982 = vmul.f32 %v946, %v979
      %v983 = vmul.f32 %v947, %v979
      %v984 = vmul.f32 %v948, %v979
      %v985 = vmul.f32 %v949, %v979
      %v986 = vmul.f32 %v950, %v979
      %v987 = vmul.f32 %v951, %v979
      %v988 = vmul.f32 %v952, %v979
      %v989 = vmul.f32 %v953, %v979
      %v990 = vmul.f32 %v954, %v979
      %v991 = vmul.f32 %v955, %v979
      %v992 = vmul.f32 %v956, %v979
      %v993 = vmul.f32 %v957, %v979
      %v994 = vmul.f32 %v958, %v979
      %v995 = vmul.f32 %v959, %v979
      %v996 = vmul.f32 %v960, %v979
      %v997 = vmul.f32 %v961, %v979
      %v998 = vmul.f32 %v962, %v979
      %v999 = vmul.f32 %v963, %v979
      %v1000 = vmul.f32 %v964, %v979
      %v1001 = vmul.f32 %v965, %v979
      %v1002 = vmul.f32 %v966, %v979
      %v1003 = vmul.f32 %v967, %v979
      %v1004 = vmul.f32 %v968, %v979
      %v1005 = vmul.f32 %v969, %v979
      %v1006 = vmul.f32 %v970, %v979
      %v1007 = vmul.f32 %v971, %v979
      %v1008 = vmul.f32 %v972, %v979
      %v1009 = vmul.f32 %v973, %v979
      %v1010 = vmul.f32 %v974, %v979
      %v1011 = vmul.f32 %v975, %v979
      %v1012 = vadd.f32 %v811, %v980
      %v1013 = vadd.f32 %v812, %v981
      %v1014 = vadd.f32 %v813, %v982
      %v1015 = vadd.f32 %v814, %v983
      %v1016 = vadd.f32 %v815, %v984
      %v1017 = vadd.f32 %v816, %v985
      %v1018 = vadd.f32 %v817, %v986
      %v1019 = vadd.f32 %v818, %v987
      %v1020 = vadd.f32 %v819, %v988
      %v1021 = vadd.f32 %v820, %v989
      %v1022 = vadd.f32 %v821, %v990
      %v1023 = vadd.f32 %v822, %v991
      %v1024 = vadd.f32 %v823, %v992
      %v1025 = vadd.f32 %v824, %v993
      %v1026 = vadd.f32 %v825, %v994
      %v1027 = vadd.f32 %v826, %v995
      %v1028 = vadd.f32 %v827, %v996
      %v1029 = vadd.f32 %v828, %v997
      %v1030 = vadd.f32 %v829, %v998
      %v1031 = vadd.f32 %v830, %v999
      %v1032 = vadd.f32 %v831, %v1000
      %v1033 = vadd.f32 %v832, %v1001
      %v1034 = vadd.f32 %v833, %v1002
      %v1035 = vadd.f32 %v834, %v1003
      %v1036 = vadd.f32 %v835, %v1004
      %v1037 = vadd.f32 %v836, %v1005
      %v1038 = vadd.f32 %v837, %v1006
      %v1039 = vadd.f32 %v838, %v1007
      %v1040 = vadd.f32 %v839, %v1008
      %v1041 = vadd.f32 %v840, %v1009
      %v1042 = vadd.f32 %v841, %v1010
      %v1043 = vadd.f32 %v842, %v1011
      %s1044 = scalar_lea.vmem %s385, 48
      %v1045 = vld [vmem:[%s1044] sm:$0xff]
      %v1046 = vld [vmem:[%s1044 + $0x8] sm:$0xff]
      %v1047 = vld [vmem:[%s1044 + $0x10] sm:$0xff]
      %v1048 = vld [vmem:[%s1044 + $0x18] sm:$0xff]
      %v1049 = vld [vmem:[%s1044 + $0x20] sm:$0xff]
      %v1050 = vld [vmem:[%s1044 + $0x28] sm:$0xff]
      %v1051 = vld [vmem:[%s1044 + $0x30] sm:$0xff]
      %v1052 = vld [vmem:[%s1044 + $0x38] sm:$0xff]
      %v1053 = vld [vmem:[%s1044 + $0x40] sm:$0xff]
      %v1054 = vld [vmem:[%s1044 + $0x48] sm:$0xff]
      %v1055 = vld [vmem:[%s1044 + $0x50] sm:$0xff]
      %v1056 = vld [vmem:[%s1044 + $0x58] sm:$0xff]
      %v1057 = vld [vmem:[%s1044 + $0x60] sm:$0xff]
      %v1058 = vld [vmem:[%s1044 + $0x68] sm:$0xff]
      %v1059 = vld [vmem:[%s1044 + $0x70] sm:$0xff]
      %v1060 = vld [vmem:[%s1044 + $0x78] sm:$0xff]
      %v1061 = vld [vmem:[%s1044 + $0x80] sm:$0xff]
      %v1062 = vld [vmem:[%s1044 + $0x88] sm:$0xff]
      %v1063 = vld [vmem:[%s1044 + $0x90] sm:$0xff]
      %v1064 = vld [vmem:[%s1044 + $0x98] sm:$0xff]
      %v1065 = vld [vmem:[%s1044 + $0xa0] sm:$0xff]
      %v1066 = vld [vmem:[%s1044 + $0xa8] sm:$0xff]
      %v1067 = vld [vmem:[%s1044 + $0xb0] sm:$0xff]
      %v1068 = vld [vmem:[%s1044 + $0xb8] sm:$0xff]
      %v1069 = vld [vmem:[%s1044 + $0xc0] sm:$0xff]
      %v1070 = vld [vmem:[%s1044 + $0xc8] sm:$0xff]
      %v1071 = vld [vmem:[%s1044 + $0xd0] sm:$0xff]
      %v1072 = vld [vmem:[%s1044 + $0xd8] sm:$0xff]
      %v1073 = vld [vmem:[%s1044 + $0xe0] sm:$0xff]
      %v1074 = vld [vmem:[%s1044 + $0xe8] sm:$0xff]
      %v1075 = vld [vmem:[%s1044 + $0xf0] sm:$0xff]
      %v1076 = vld [vmem:[%s1044 + $0xf8] sm:$0xff]
      %v1077 = vlaneseq
      %v1078 = vshrl.u32 %v1077, 7
      %v1079 = vsub.s32 3, %v1078
      %v1080 = vrot.slane %v424, %v1079
      %v1081 = vmul.f32 %v1045, %v1080
      %v1082 = vmul.f32 %v1046, %v1080
      %v1083 = vmul.f32 %v1047, %v1080
      %v1084 = vmul.f32 %v1048, %v1080
      %v1085 = vmul.f32 %v1049, %v1080
      %v1086 = vmul.f32 %v1050, %v1080
      %v1087 = vmul.f32 %v1051, %v1080
      %v1088 = vmul.f32 %v1052, %v1080
      %v1089 = vmul.f32 %v1053, %v1080
      %v1090 = vmul.f32 %v1054, %v1080
      %v1091 = vmul.f32 %v1055, %v1080
      %v1092 = vmul.f32 %v1056, %v1080
      %v1093 = vmul.f32 %v1057, %v1080
      %v1094 = vmul.f32 %v1058, %v1080
      %v1095 = vmul.f32 %v1059, %v1080
      %v1096 = vmul.f32 %v1060, %v1080
      %v1097 = vmul.f32 %v1061, %v1080
      %v1098 = vmul.f32 %v1062, %v1080
      %v1099 = vmul.f32 %v1063, %v1080
      %v1100 = vmul.f32 %v1064, %v1080
      %v1101 = vmul.f32 %v1065, %v1080
      %v1102 = vmul.f32 %v1066, %v1080
      %v1103 = vmul.f32 %v1067, %v1080
      %v1104 = vmul.f32 %v1068, %v1080
      %v1105 = vmul.f32 %v1069, %v1080
      %v1106 = vmul.f32 %v1070, %v1080
      %v1107 = vmul.f32 %v1071, %v1080
      %v1108 = vmul.f32 %v1072, %v1080
      %v1109 = vmul.f32 %v1073, %v1080
      %v1110 = vmul.f32 %v1074, %v1080
      %v1111 = vmul.f32 %v1075, %v1080
      %v1112 = vmul.f32 %v1076, %v1080
      %v1113 = vadd.f32 %v912, %v1081
      %v1114 = vadd.f32 %v913, %v1082
      %v1115 = vadd.f32 %v914, %v1083
      %v1116 = vadd.f32 %v915, %v1084
      %v1117 = vadd.f32 %v916, %v1085
      %v1118 = vadd.f32 %v917, %v1086
      %v1119 = vadd.f32 %v918, %v1087
      %v1120 = vadd.f32 %v919, %v1088
      %v1121 = vadd.f32 %v920, %v1089
      %v1122 = vadd.f32 %v921, %v1090
      %v1123 = vadd.f32 %v922, %v1091
      %v1124 = vadd.f32 %v923, %v1092
      %v1125 = vadd.f32 %v924, %v1093
      %v1126 = vadd.f32 %v925, %v1094
      %v1127 = vadd.f32 %v926, %v1095
      %v1128 = vadd.f32 %v927, %v1096
      %v1129 = vadd.f32 %v928, %v1097
      %v1130 = vadd.f32 %v929, %v1098
      %v1131 = vadd.f32 %v930, %v1099
      %v1132 = vadd.f32 %v931, %v1100
      %v1133 = vadd.f32 %v932, %v1101
      %v1134 = vadd.f32 %v933, %v1102
      %v1135 = vadd.f32 %v934, %v1103
      %v1136 = vadd.f32 %v935, %v1104
      %v1137 = vadd.f32 %v936, %v1105
      %v1138 = vadd.f32 %v937, %v1106
      %v1139 = vadd.f32 %v938, %v1107
      %v1140 = vadd.f32 %v939, %v1108
      %v1141 = vadd.f32 %v940, %v1109
      %v1142 = vadd.f32 %v941, %v1110
      %v1143 = vadd.f32 %v942, %v1111
      %v1144 = vadd.f32 %v943, %v1112
      %v1145 = vld [vmem:[%s393 + $0x3] sm:$0xff]
      %v1146 = vld [vmem:[%s393 + $0xb] sm:$0xff]
      %v1147 = vld [vmem:[%s393 + $0x23] sm:$0xff]
      %v1148 = vld [vmem:[%s393 + $0x2b] sm:$0xff]
      %v1149 = vld [vmem:[%s393 + $0x43] sm:$0xff]
      %v1150 = vld [vmem:[%s393 + $0x4b] sm:$0xff]
      %v1151 = vld [vmem:[%s393 + $0x63] sm:$0xff]
      %v1152 = vld [vmem:[%s393 + $0x6b] sm:$0xff]
      %v1153 = vld [vmem:[%s393 + $0x83] sm:$0xff]
      %v1154 = vld [vmem:[%s393 + $0x8b] sm:$0xff]
      %v1155 = vld [vmem:[%s393 + $0xa3] sm:$0xff]
      %v1156 = vld [vmem:[%s393 + $0xab] sm:$0xff]
      %v1157 = vld [vmem:[%s393 + $0xc3] sm:$0xff]
      %v1158 = vld [vmem:[%s393 + $0xcb] sm:$0xff]
      %v1159 = vld [vmem:[%s393 + $0xe3] sm:$0xff]
      %v1160 = vld [vmem:[%s393 + $0xeb] sm:$0xff]
      %v1161 = vld [vmem:[%s393 + $0x103] sm:$0xff]
      %v1162 = vld [vmem:[%s393 + $0x10b] sm:$0xff]
      %v1163 = vld [vmem:[%s393 + $0x123] sm:$0xff]
      %v1164 = vld [vmem:[%s393 + $0x12b] sm:$0xff]
      %v1165 = vld [vmem:[%s393 + $0x143] sm:$0xff]
      %v1166 = vld [vmem:[%s393 + $0x14b] sm:$0xff]
      %v1167 = vld [vmem:[%s393 + $0x163] sm:$0xff]
      %v1168 = vld [vmem:[%s393 + $0x16b] sm:$0xff]
      %v1169 = vld [vmem:[%s393 + $0x183] sm:$0xff]
      %v1170 = vld [vmem:[%s393 + $0x18b] sm:$0xff]
      %v1171 = vld [vmem:[%s393 + $0x1a3] sm:$0xff]
      %v1172 = vld [vmem:[%s393 + $0x1ab] sm:$0xff]
      %v1173 = vld [vmem:[%s393 + $0x1c3] sm:$0xff]
      %v1174 = vld [vmem:[%s393 + $0x1cb] sm:$0xff]
      %v1175 = vld [vmem:[%s393 + $0x1e3] sm:$0xff]
      %v1176 = vld [vmem:[%s393 + $0x1eb] sm:$0xff]
      %v1177 = vlaneseq
      %v1178 = vshrl.u32 %v1177, 7
      %v1179 = vsub.s32 3, %v1178
      %v1180 = vrot.slane %v426, %v1179
      %v1181 = vmul.f32 %v1145, %v1180
      %v1182 = vmul.f32 %v1146, %v1180
      %v1183 = vmul.f32 %v1147, %v1180
      %v1184 = vmul.f32 %v1148, %v1180
      %v1185 = vmul.f32 %v1149, %v1180
      %v1186 = vmul.f32 %v1150, %v1180
      %v1187 = vmul.f32 %v1151, %v1180
      %v1188 = vmul.f32 %v1152, %v1180
      %v1189 = vmul.f32 %v1153, %v1180
      %v1190 = vmul.f32 %v1154, %v1180
      %v1191 = vmul.f32 %v1155, %v1180
      %v1192 = vmul.f32 %v1156, %v1180
      %v1193 = vmul.f32 %v1157, %v1180
      %v1194 = vmul.f32 %v1158, %v1180
      %v1195 = vmul.f32 %v1159, %v1180
      %v1196 = vmul.f32 %v1160, %v1180
      %v1197 = vmul.f32 %v1161, %v1180
      %v1198 = vmul.f32 %v1162, %v1180
      %v1199 = vmul.f32 %v1163, %v1180
      %v1200 = vmul.f32 %v1164, %v1180
      %v1201 = vmul.f32 %v1165, %v1180
      %v1202 = vmul.f32 %v1166, %v1180
      %v1203 = vmul.f32 %v1167, %v1180
      %v1204 = vmul.f32 %v1168, %v1180
      %v1205 = vmul.f32 %v1169, %v1180
      %v1206 = vmul.f32 %v1170, %v1180
      %v1207 = vmul.f32 %v1171, %v1180
      %v1208 = vmul.f32 %v1172, %v1180
      %v1209 = vmul.f32 %v1173, %v1180
      %v1210 = vmul.f32 %v1174, %v1180
      %v1211 = vmul.f32 %v1175, %v1180
      %v1212 = vmul.f32 %v1176, %v1180
      %v1213 = vadd.f32 %v1012, %v1181
      %v1214 = vadd.f32 %v1013, %v1182
      %v1215 = vadd.f32 %v1014, %v1183
      %v1216 = vadd.f32 %v1015, %v1184
      %v1217 = vadd.f32 %v1016, %v1185
      %v1218 = vadd.f32 %v1017, %v1186
      %v1219 = vadd.f32 %v1018, %v1187
      %v1220 = vadd.f32 %v1019, %v1188
      %v1221 = vadd.f32 %v1020, %v1189
      %v1222 = vadd.f32 %v1021, %v1190
      %v1223 = vadd.f32 %v1022, %v1191
      %v1224 = vadd.f32 %v1023, %v1192
      %v1225 = vadd.f32 %v1024, %v1193
      %v1226 = vadd.f32 %v1025, %v1194
      %v1227 = vadd.f32 %v1026, %v1195
      %v1228 = vadd.f32 %v1027, %v1196
      %v1229 = vadd.f32 %v1028, %v1197
      %v1230 = vadd.f32 %v1029, %v1198
      %v1231 = vadd.f32 %v1030, %v1199
      %v1232 = vadd.f32 %v1031, %v1200
      %v1233 = vadd.f32 %v1032, %v1201
      %v1234 = vadd.f32 %v1033, %v1202
      %v1235 = vadd.f32 %v1034, %v1203
      %v1236 = vadd.f32 %v1035, %v1204
      %v1237 = vadd.f32 %v1036, %v1205
      %v1238 = vadd.f32 %v1037, %v1206
      %v1239 = vadd.f32 %v1038, %v1207
      %v1240 = vadd.f32 %v1039, %v1208
      %v1241 = vadd.f32 %v1040, %v1209
      %v1242 = vadd.f32 %v1041, %v1210
      %v1243 = vadd.f32 %v1042, %v1211
      %v1244 = vadd.f32 %v1043, %v1212
      %s1245 = scalar_lea.vmem %s385, 64
      %v1246 = vld [vmem:[%s1245] sm:$0xff]
      %v1247 = vld [vmem:[%s1245 + $0x8] sm:$0xff]
      %v1248 = vld [vmem:[%s1245 + $0x10] sm:$0xff]
      %v1249 = vld [vmem:[%s1245 + $0x18] sm:$0xff]
      %v1250 = vld [vmem:[%s1245 + $0x20] sm:$0xff]
      %v1251 = vld [vmem:[%s1245 + $0x28] sm:$0xff]
      %v1252 = vld [vmem:[%s1245 + $0x30] sm:$0xff]
      %v1253 = vld [vmem:[%s1245 + $0x38] sm:$0xff]
      %v1254 = vld [vmem:[%s1245 + $0x40] sm:$0xff]
      %v1255 = vld [vmem:[%s1245 + $0x48] sm:$0xff]
      %v1256 = vld [vmem:[%s1245 + $0x50] sm:$0xff]
      %v1257 = vld [vmem:[%s1245 + $0x58] sm:$0xff]
      %v1258 = vld [vmem:[%s1245 + $0x60] sm:$0xff]
      %v1259 = vld [vmem:[%s1245 + $0x68] sm:$0xff]
      %v1260 = vld [vmem:[%s1245 + $0x70] sm:$0xff]
      %v1261 = vld [vmem:[%s1245 + $0x78] sm:$0xff]
      %v1262 = vld [vmem:[%s1245 + $0x80] sm:$0xff]
      %v1263 = vld [vmem:[%s1245 + $0x88] sm:$0xff]
      %v1264 = vld [vmem:[%s1245 + $0x90] sm:$0xff]
      %v1265 = vld [vmem:[%s1245 + $0x98] sm:$0xff]
      %v1266 = vld [vmem:[%s1245 + $0xa0] sm:$0xff]
      %v1267 = vld [vmem:[%s1245 + $0xa8] sm:$0xff]
      %v1268 = vld [vmem:[%s1245 + $0xb0] sm:$0xff]
      %v1269 = vld [vmem:[%s1245 + $0xb8] sm:$0xff]
      %v1270 = vld [vmem:[%s1245 + $0xc0] sm:$0xff]
      %v1271 = vld [vmem:[%s1245 + $0xc8] sm:$0xff]
      %v1272 = vld [vmem:[%s1245 + $0xd0] sm:$0xff]
      %v1273 = vld [vmem:[%s1245 + $0xd8] sm:$0xff]
      %v1274 = vld [vmem:[%s1245 + $0xe0] sm:$0xff]
      %v1275 = vld [vmem:[%s1245 + $0xe8] sm:$0xff]
      %v1276 = vld [vmem:[%s1245 + $0xf0] sm:$0xff]
      %v1277 = vld [vmem:[%s1245 + $0xf8] sm:$0xff]
      %v1278 = vlaneseq
      %v1279 = vshrl.u32 %v1278, 7
      %v1280 = vsub.s32 4, %v1279
      %v1281 = vrot.slane %v424, %v1280
      %v1282 = vmul.f32 %v1246, %v1281
      %v1283 = vmul.f32 %v1247, %v1281
      %v1284 = vmul.f32 %v1248, %v1281
      %v1285 = vmul.f32 %v1249, %v1281
      %v1286 = vmul.f32 %v1250, %v1281
      %v1287 = vmul.f32 %v1251, %v1281
      %v1288 = vmul.f32 %v1252, %v1281
      %v1289 = vmul.f32 %v1253, %v1281
      %v1290 = vmul.f32 %v1254, %v1281
      %v1291 = vmul.f32 %v1255, %v1281
      %v1292 = vmul.f32 %v1256, %v1281
      %v1293 = vmul.f32 %v1257, %v1281
      %v1294 = vmul.f32 %v1258, %v1281
      %v1295 = vmul.f32 %v1259, %v1281
      %v1296 = vmul.f32 %v1260, %v1281
      %v1297 = vmul.f32 %v1261, %v1281
      %v1298 = vmul.f32 %v1262, %v1281
      %v1299 = vmul.f32 %v1263, %v1281
      %v1300 = vmul.f32 %v1264, %v1281
      %v1301 = vmul.f32 %v1265, %v1281
      %v1302 = vmul.f32 %v1266, %v1281
      %v1303 = vmul.f32 %v1267, %v1281
      %v1304 = vmul.f32 %v1268, %v1281
      %v1305 = vmul.f32 %v1269, %v1281
      %v1306 = vmul.f32 %v1270, %v1281
      %v1307 = vmul.f32 %v1271, %v1281
      %v1308 = vmul.f32 %v1272, %v1281
      %v1309 = vmul.f32 %v1273, %v1281
      %v1310 = vmul.f32 %v1274, %v1281
      %v1311 = vmul.f32 %v1275, %v1281
      %v1312 = vmul.f32 %v1276, %v1281
      %v1313 = vmul.f32 %v1277, %v1281
      %v1314 = vadd.f32 %v1113, %v1282
      %v1315 = vadd.f32 %v1114, %v1283
      %v1316 = vadd.f32 %v1115, %v1284
      %v1317 = vadd.f32 %v1116, %v1285
      %v1318 = vadd.f32 %v1117, %v1286
      %v1319 = vadd.f32 %v1118, %v1287
      %v1320 = vadd.f32 %v1119, %v1288
      %v1321 = vadd.f32 %v1120, %v1289
      %v1322 = vadd.f32 %v1121, %v1290
      %v1323 = vadd.f32 %v1122, %v1291
      %v1324 = vadd.f32 %v1123, %v1292
      %v1325 = vadd.f32 %v1124, %v1293
      %v1326 = vadd.f32 %v1125, %v1294
      %v1327 = vadd.f32 %v1126, %v1295
      %v1328 = vadd.f32 %v1127, %v1296
      %v1329 = vadd.f32 %v1128, %v1297
      %v1330 = vadd.f32 %v1129, %v1298
      %v1331 = vadd.f32 %v1130, %v1299
      %v1332 = vadd.f32 %v1131, %v1300
      %v1333 = vadd.f32 %v1132, %v1301
      %v1334 = vadd.f32 %v1133, %v1302
      %v1335 = vadd.f32 %v1134, %v1303
      %v1336 = vadd.f32 %v1135, %v1304
      %v1337 = vadd.f32 %v1136, %v1305
      %v1338 = vadd.f32 %v1137, %v1306
      %v1339 = vadd.f32 %v1138, %v1307
      %v1340 = vadd.f32 %v1139, %v1308
      %v1341 = vadd.f32 %v1140, %v1309
      %v1342 = vadd.f32 %v1141, %v1310
      %v1343 = vadd.f32 %v1142, %v1311
      %v1344 = vadd.f32 %v1143, %v1312
      %v1345 = vadd.f32 %v1144, %v1313
      %v1346 = vld [vmem:[%s393 + $0x4] sm:$0xff]
      %v1347 = vld [vmem:[%s393 + $0xc] sm:$0xff]
      %v1348 = vld [vmem:[%s393 + $0x24] sm:$0xff]
      %v1349 = vld [vmem:[%s393 + $0x2c] sm:$0xff]
      %v1350 = vld [vmem:[%s393 + $0x44] sm:$0xff]
      %v1351 = vld [vmem:[%s393 + $0x4c] sm:$0xff]
      %v1352 = vld [vmem:[%s393 + $0x64] sm:$0xff]
      %v1353 = vld [vmem:[%s393 + $0x6c] sm:$0xff]
      %v1354 = vld [vmem:[%s393 + $0x84] sm:$0xff]
      %v1355 = vld [vmem:[%s393 + $0x8c] sm:$0xff]
      %v1356 = vld [vmem:[%s393 + $0xa4] sm:$0xff]
      %v1357 = vld [vmem:[%s393 + $0xac] sm:$0xff]
      %v1358 = vld [vmem:[%s393 + $0xc4] sm:$0xff]
      %v1359 = vld [vmem:[%s393 + $0xcc] sm:$0xff]
      %v1360 = vld [vmem:[%s393 + $0xe4] sm:$0xff]
      %v1361 = vld [vmem:[%s393 + $0xec] sm:$0xff]
      %v1362 = vld [vmem:[%s393 + $0x104] sm:$0xff]
      %v1363 = vld [vmem:[%s393 + $0x10c] sm:$0xff]
      %v1364 = vld [vmem:[%s393 + $0x124] sm:$0xff]
      %v1365 = vld [vmem:[%s393 + $0x12c] sm:$0xff]
      %v1366 = vld [vmem:[%s393 + $0x144] sm:$0xff]
      %v1367 = vld [vmem:[%s393 + $0x14c] sm:$0xff]
      %v1368 = vld [vmem:[%s393 + $0x164] sm:$0xff]
      %v1369 = vld [vmem:[%s393 + $0x16c] sm:$0xff]
      %v1370 = vld [vmem:[%s393 + $0x184] sm:$0xff]
      %v1371 = vld [vmem:[%s393 + $0x18c] sm:$0xff]
      %v1372 = vld [vmem:[%s393 + $0x1a4] sm:$0xff]
      %v1373 = vld [vmem:[%s393 + $0x1ac] sm:$0xff]
      %v1374 = vld [vmem:[%s393 + $0x1c4] sm:$0xff]
      %v1375 = vld [vmem:[%s393 + $0x1cc] sm:$0xff]
      %v1376 = vld [vmem:[%s393 + $0x1e4] sm:$0xff]
      %v1377 = vld [vmem:[%s393 + $0x1ec] sm:$0xff]
      %v1378 = vlaneseq
      %v1379 = vshrl.u32 %v1378, 7
      %v1380 = vsub.s32 4, %v1379
      %v1381 = vrot.slane %v426, %v1380
      %v1382 = vmul.f32 %v1346, %v1381
      %v1383 = vmul.f32 %v1347, %v1381
      %v1384 = vmul.f32 %v1348, %v1381
      %v1385 = vmul.f32 %v1349, %v1381
      %v1386 = vmul.f32 %v1350, %v1381
      %v1387 = vmul.f32 %v1351, %v1381
      %v1388 = vmul.f32 %v1352, %v1381
      %v1389 = vmul.f32 %v1353, %v1381
      %v1390 = vmul.f32 %v1354, %v1381
      %v1391 = vmul.f32 %v1355, %v1381
      %v1392 = vmul.f32 %v1356, %v1381
      %v1393 = vmul.f32 %v1357, %v1381
      %v1394 = vmul.f32 %v1358, %v1381
      %v1395 = vmul.f32 %v1359, %v1381
      %v1396 = vmul.f32 %v1360, %v1381
      %v1397 = vmul.f32 %v1361, %v1381
      %v1398 = vmul.f32 %v1362, %v1381
      %v1399 = vmul.f32 %v1363, %v1381
      %v1400 = vmul.f32 %v1364, %v1381
      %v1401 = vmul.f32 %v1365, %v1381
      %v1402 = vmul.f32 %v1366, %v1381
      %v1403 = vmul.f32 %v1367, %v1381
      %v1404 = vmul.f32 %v1368, %v1381
      %v1405 = vmul.f32 %v1369, %v1381
      %v1406 = vmul.f32 %v1370, %v1381
      %v1407 = vmul.f32 %v1371, %v1381
      %v1408 = vmul.f32 %v1372, %v1381
      %v1409 = vmul.f32 %v1373, %v1381
      %v1410 = vmul.f32 %v1374, %v1381
      %v1411 = vmul.f32 %v1375, %v1381
      %v1412 = vmul.f32 %v1376, %v1381
      %v1413 = vmul.f32 %v1377, %v1381
      %v1414 = vadd.f32 %v1213, %v1382
      %v1415 = vadd.f32 %v1214, %v1383
      %v1416 = vadd.f32 %v1215, %v1384
      %v1417 = vadd.f32 %v1216, %v1385
      %v1418 = vadd.f32 %v1217, %v1386
      %v1419 = vadd.f32 %v1218, %v1387
      %v1420 = vadd.f32 %v1219, %v1388
      %v1421 = vadd.f32 %v1220, %v1389
      %v1422 = vadd.f32 %v1221, %v1390
      %v1423 = vadd.f32 %v1222, %v1391
      %v1424 = vadd.f32 %v1223, %v1392
      %v1425 = vadd.f32 %v1224, %v1393
      %v1426 = vadd.f32 %v1225, %v1394
      %v1427 = vadd.f32 %v1226, %v1395
      %v1428 = vadd.f32 %v1227, %v1396
      %v1429 = vadd.f32 %v1228, %v1397
      %v1430 = vadd.f32 %v1229, %v1398
      %v1431 = vadd.f32 %v1230, %v1399
      %v1432 = vadd.f32 %v1231, %v1400
      %v1433 = vadd.f32 %v1232, %v1401
      %v1434 = vadd.f32 %v1233, %v1402
      %v1435 = vadd.f32 %v1234, %v1403
      %v1436 = vadd.f32 %v1235, %v1404
      %v1437 = vadd.f32 %v1236, %v1405
      %v1438 = vadd.f32 %v1237, %v1406
      %v1439 = vadd.f32 %v1238, %v1407
      %v1440 = vadd.f32 %v1239, %v1408
      %v1441 = vadd.f32 %v1240, %v1409
      %v1442 = vadd.f32 %v1241, %v1410
      %v1443 = vadd.f32 %v1242, %v1411
      %v1444 = vadd.f32 %v1243, %v1412
      %v1445 = vadd.f32 %v1244, %v1413
      %s1446 = scalar_lea.vmem %s385, 80
      %v1447 = vld [vmem:[%s1446] sm:$0xff]
      %v1448 = vld [vmem:[%s1446 + $0x8] sm:$0xff]
      %v1449 = vld [vmem:[%s1446 + $0x10] sm:$0xff]
      %v1450 = vld [vmem:[%s1446 + $0x18] sm:$0xff]
      %v1451 = vld [vmem:[%s1446 + $0x20] sm:$0xff]
      %v1452 = vld [vmem:[%s1446 + $0x28] sm:$0xff]
      %v1453 = vld [vmem:[%s1446 + $0x30] sm:$0xff]
      %v1454 = vld [vmem:[%s1446 + $0x38] sm:$0xff]
      %v1455 = vld [vmem:[%s1446 + $0x40] sm:$0xff]
      %v1456 = vld [vmem:[%s1446 + $0x48] sm:$0xff]
      %v1457 = vld [vmem:[%s1446 + $0x50] sm:$0xff]
      %v1458 = vld [vmem:[%s1446 + $0x58] sm:$0xff]
      %v1459 = vld [vmem:[%s1446 + $0x60] sm:$0xff]
      %v1460 = vld [vmem:[%s1446 + $0x68] sm:$0xff]
      %v1461 = vld [vmem:[%s1446 + $0x70] sm:$0xff]
      %v1462 = vld [vmem:[%s1446 + $0x78] sm:$0xff]
      %v1463 = vld [vmem:[%s1446 + $0x80] sm:$0xff]
      %v1464 = vld [vmem:[%s1446 + $0x88] sm:$0xff]
      %v1465 = vld [vmem:[%s1446 + $0x90] sm:$0xff]
      %v1466 = vld [vmem:[%s1446 + $0x98] sm:$0xff]
      %v1467 = vld [vmem:[%s1446 + $0xa0] sm:$0xff]
      %v1468 = vld [vmem:[%s1446 + $0xa8] sm:$0xff]
      %v1469 = vld [vmem:[%s1446 + $0xb0] sm:$0xff]
      %v1470 = vld [vmem:[%s1446 + $0xb8] sm:$0xff]
      %v1471 = vld [vmem:[%s1446 + $0xc0] sm:$0xff]
      %v1472 = vld [vmem:[%s1446 + $0xc8] sm:$0xff]
      %v1473 = vld [vmem:[%s1446 + $0xd0] sm:$0xff]
      %v1474 = vld [vmem:[%s1446 + $0xd8] sm:$0xff]
      %v1475 = vld [vmem:[%s1446 + $0xe0] sm:$0xff]
      %v1476 = vld [vmem:[%s1446 + $0xe8] sm:$0xff]
      %v1477 = vld [vmem:[%s1446 + $0xf0] sm:$0xff]
      %v1478 = vld [vmem:[%s1446 + $0xf8] sm:$0xff]
      %v1479 = vlaneseq
      %v1480 = vshrl.u32 %v1479, 7
      %v1481 = vsub.s32 5, %v1480
      %v1482 = vrot.slane %v424, %v1481
      %v1483 = vmul.f32 %v1447, %v1482
      %v1484 = vmul.f32 %v1448, %v1482
      %v1485 = vmul.f32 %v1449, %v1482
      %v1486 = vmul.f32 %v1450, %v1482
      %v1487 = vmul.f32 %v1451, %v1482
      %v1488 = vmul.f32 %v1452, %v1482
      %v1489 = vmul.f32 %v1453, %v1482
      %v1490 = vmul.f32 %v1454, %v1482
      %v1491 = vmul.f32 %v1455, %v1482
      %v1492 = vmul.f32 %v1456, %v1482
      %v1493 = vmul.f32 %v1457, %v1482
      %v1494 = vmul.f32 %v1458, %v1482
      %v1495 = vmul.f32 %v1459, %v1482
      %v1496 = vmul.f32 %v1460, %v1482
      %v1497 = vmul.f32 %v1461, %v1482
      %v1498 = vmul.f32 %v1462, %v1482
      %v1499 = vmul.f32 %v1463, %v1482
      %v1500 = vmul.f32 %v1464, %v1482
      %v1501 = vmul.f32 %v1465, %v1482
      %v1502 = vmul.f32 %v1466, %v1482
      %v1503 = vmul.f32 %v1467, %v1482
      %v1504 = vmul.f32 %v1468, %v1482
      %v1505 = vmul.f32 %v1469, %v1482
      %v1506 = vmul.f32 %v1470, %v1482
      %v1507 = vmul.f32 %v1471, %v1482
      %v1508 = vmul.f32 %v1472, %v1482
      %v1509 = vmul.f32 %v1473, %v1482
      %v1510 = vmul.f32 %v1474, %v1482
      %v1511 = vmul.f32 %v1475, %v1482
      %v1512 = vmul.f32 %v1476, %v1482
      %v1513 = vmul.f32 %v1477, %v1482
      %v1514 = vmul.f32 %v1478, %v1482
      %v1515 = vadd.f32 %v1314, %v1483
      %v1516 = vadd.f32 %v1315, %v1484
      %v1517 = vadd.f32 %v1316, %v1485
      %v1518 = vadd.f32 %v1317, %v1486
      %v1519 = vadd.f32 %v1318, %v1487
      %v1520 = vadd.f32 %v1319, %v1488
      %v1521 = vadd.f32 %v1320, %v1489
      %v1522 = vadd.f32 %v1321, %v1490
      %v1523 = vadd.f32 %v1322, %v1491
      %v1524 = vadd.f32 %v1323, %v1492
      %v1525 = vadd.f32 %v1324, %v1493
      %v1526 = vadd.f32 %v1325, %v1494
      %v1527 = vadd.f32 %v1326, %v1495
      %v1528 = vadd.f32 %v1327, %v1496
      %v1529 = vadd.f32 %v1328, %v1497
      %v1530 = vadd.f32 %v1329, %v1498
      %v1531 = vadd.f32 %v1330, %v1499
      %v1532 = vadd.f32 %v1331, %v1500
      %v1533 = vadd.f32 %v1332, %v1501
      %v1534 = vadd.f32 %v1333, %v1502
      %v1535 = vadd.f32 %v1334, %v1503
      %v1536 = vadd.f32 %v1335, %v1504
      %v1537 = vadd.f32 %v1336, %v1505
      %v1538 = vadd.f32 %v1337, %v1506
      %v1539 = vadd.f32 %v1338, %v1507
      %v1540 = vadd.f32 %v1339, %v1508
      %v1541 = vadd.f32 %v1340, %v1509
      %v1542 = vadd.f32 %v1341, %v1510
      %v1543 = vadd.f32 %v1342, %v1511
      %v1544 = vadd.f32 %v1343, %v1512
      %v1545 = vadd.f32 %v1344, %v1513
      %v1546 = vadd.f32 %v1345, %v1514
      %v1547 = vld [vmem:[%s393 + $0x5] sm:$0xff]
      %v1548 = vld [vmem:[%s393 + $0xd] sm:$0xff]
      %v1549 = vld [vmem:[%s393 + $0x25] sm:$0xff]
      %v1550 = vld [vmem:[%s393 + $0x2d] sm:$0xff]
      %v1551 = vld [vmem:[%s393 + $0x45] sm:$0xff]
      %v1552 = vld [vmem:[%s393 + $0x4d] sm:$0xff]
      %v1553 = vld [vmem:[%s393 + $0x65] sm:$0xff]
      %v1554 = vld [vmem:[%s393 + $0x6d] sm:$0xff]
      %v1555 = vld [vmem:[%s393 + $0x85] sm:$0xff]
      %v1556 = vld [vmem:[%s393 + $0x8d] sm:$0xff]
      %v1557 = vld [vmem:[%s393 + $0xa5] sm:$0xff]
      %v1558 = vld [vmem:[%s393 + $0xad] sm:$0xff]
      %v1559 = vld [vmem:[%s393 + $0xc5] sm:$0xff]
      %v1560 = vld [vmem:[%s393 + $0xcd] sm:$0xff]
      %v1561 = vld [vmem:[%s393 + $0xe5] sm:$0xff]
      %v1562 = vld [vmem:[%s393 + $0xed] sm:$0xff]
      %v1563 = vld [vmem:[%s393 + $0x105] sm:$0xff]
      %v1564 = vld [vmem:[%s393 + $0x10d] sm:$0xff]
      %v1565 = vld [vmem:[%s393 + $0x125] sm:$0xff]
      %v1566 = vld [vmem:[%s393 + $0x12d] sm:$0xff]
      %v1567 = vld [vmem:[%s393 + $0x145] sm:$0xff]
      %v1568 = vld [vmem:[%s393 + $0x14d] sm:$0xff]
      %v1569 = vld [vmem:[%s393 + $0x165] sm:$0xff]
      %v1570 = vld [vmem:[%s393 + $0x16d] sm:$0xff]
      %v1571 = vld [vmem:[%s393 + $0x185] sm:$0xff]
      %v1572 = vld [vmem:[%s393 + $0x18d] sm:$0xff]
      %v1573 = vld [vmem:[%s393 + $0x1a5] sm:$0xff]
      %v1574 = vld [vmem:[%s393 + $0x1ad] sm:$0xff]
      %v1575 = vld [vmem:[%s393 + $0x1c5] sm:$0xff]
      %v1576 = vld [vmem:[%s393 + $0x1cd] sm:$0xff]
      %v1577 = vld [vmem:[%s393 + $0x1e5] sm:$0xff]
      %v1578 = vld [vmem:[%s393 + $0x1ed] sm:$0xff]
      %v1579 = vlaneseq
      %v1580 = vshrl.u32 %v1579, 7
      %v1581 = vsub.s32 5, %v1580
      %v1582 = vrot.slane %v426, %v1581
      %v1583 = vmul.f32 %v1547, %v1582
      %v1584 = vmul.f32 %v1548, %v1582
      %v1585 = vmul.f32 %v1549, %v1582
      %v1586 = vmul.f32 %v1550, %v1582
      %v1587 = vmul.f32 %v1551, %v1582
      %v1588 = vmul.f32 %v1552, %v1582
      %v1589 = vmul.f32 %v1553, %v1582
      %v1590 = vmul.f32 %v1554, %v1582
      %v1591 = vmul.f32 %v1555, %v1582
      %v1592 = vmul.f32 %v1556, %v1582
      %v1593 = vmul.f32 %v1557, %v1582
      %v1594 = vmul.f32 %v1558, %v1582
      %v1595 = vmul.f32 %v1559, %v1582
      %v1596 = vmul.f32 %v1560, %v1582
      %v1597 = vmul.f32 %v1561, %v1582
      %v1598 = vmul.f32 %v1562, %v1582
      %v1599 = vmul.f32 %v1563, %v1582
      %v1600 = vmul.f32 %v1564, %v1582
      %v1601 = vmul.f32 %v1565, %v1582
      %v1602 = vmul.f32 %v1566, %v1582
      %v1603 = vmul.f32 %v1567, %v1582
      %v1604 = vmul.f32 %v1568, %v1582
      %v1605 = vmul.f32 %v1569, %v1582
      %v1606 = vmul.f32 %v1570, %v1582
      %v1607 = vmul.f32 %v1571, %v1582
      %v1608 = vmul.f32 %v1572, %v1582
      %v1609 = vmul.f32 %v1573, %v1582
      %v1610 = vmul.f32 %v1574, %v1582
      %v1611 = vmul.f32 %v1575, %v1582
      %v1612 = vmul.f32 %v1576, %v1582
      %v1613 = vmul.f32 %v1577, %v1582
      %v1614 = vmul.f32 %v1578, %v1582
      %v1615 = vadd.f32 %v1414, %v1583
      %v1616 = vadd.f32 %v1415, %v1584
      %v1617 = vadd.f32 %v1416, %v1585
      %v1618 = vadd.f32 %v1417, %v1586
      %v1619 = vadd.f32 %v1418, %v1587
      %v1620 = vadd.f32 %v1419, %v1588
      %v1621 = vadd.f32 %v1420, %v1589
      %v1622 = vadd.f32 %v1421, %v1590
      %v1623 = vadd.f32 %v1422, %v1591
      %v1624 = vadd.f32 %v1423, %v1592
      %v1625 = vadd.f32 %v1424, %v1593
      %v1626 = vadd.f32 %v1425, %v1594
      %v1627 = vadd.f32 %v1426, %v1595
      %v1628 = vadd.f32 %v1427, %v1596
      %v1629 = vadd.f32 %v1428, %v1597
      %v1630 = vadd.f32 %v1429, %v1598
      %v1631 = vadd.f32 %v1430, %v1599
      %v1632 = vadd.f32 %v1431, %v1600
      %v1633 = vadd.f32 %v1432, %v1601
      %v1634 = vadd.f32 %v1433, %v1602
      %v1635 = vadd.f32 %v1434, %v1603
      %v1636 = vadd.f32 %v1435, %v1604
      %v1637 = vadd.f32 %v1436, %v1605
      %v1638 = vadd.f32 %v1437, %v1606
      %v1639 = vadd.f32 %v1438, %v1607
      %v1640 = vadd.f32 %v1439, %v1608
      %v1641 = vadd.f32 %v1440, %v1609
      %v1642 = vadd.f32 %v1441, %v1610
      %v1643 = vadd.f32 %v1442, %v1611
      %v1644 = vadd.f32 %v1443, %v1612
      %v1645 = vadd.f32 %v1444, %v1613
      %v1646 = vadd.f32 %v1445, %v1614
      %s1647 = scalar_lea.vmem %s385, 96
      %v1648 = vld [vmem:[%s1647] sm:$0xff]
      %v1649 = vld [vmem:[%s1647 + $0x8] sm:$0xff]
      %v1650 = vld [vmem:[%s1647 + $0x10] sm:$0xff]
      %v1651 = vld [vmem:[%s1647 + $0x18] sm:$0xff]
      %v1652 = vld [vmem:[%s1647 + $0x20] sm:$0xff]
      %v1653 = vld [vmem:[%s1647 + $0x28] sm:$0xff]
      %v1654 = vld [vmem:[%s1647 + $0x30] sm:$0xff]
      %v1655 = vld [vmem:[%s1647 + $0x38] sm:$0xff]
      %v1656 = vld [vmem:[%s1647 + $0x40] sm:$0xff]
      %v1657 = vld [vmem:[%s1647 + $0x48] sm:$0xff]
      %v1658 = vld [vmem:[%s1647 + $0x50] sm:$0xff]
      %v1659 = vld [vmem:[%s1647 + $0x58] sm:$0xff]
      %v1660 = vld [vmem:[%s1647 + $0x60] sm:$0xff]
      %v1661 = vld [vmem:[%s1647 + $0x68] sm:$0xff]
      %v1662 = vld [vmem:[%s1647 + $0x70] sm:$0xff]
      %v1663 = vld [vmem:[%s1647 + $0x78] sm:$0xff]
      %v1664 = vld [vmem:[%s1647 + $0x80] sm:$0xff]
      %v1665 = vld [vmem:[%s1647 + $0x88] sm:$0xff]
      %v1666 = vld [vmem:[%s1647 + $0x90] sm:$0xff]
      %v1667 = vld [vmem:[%s1647 + $0x98] sm:$0xff]
      %v1668 = vld [vmem:[%s1647 + $0xa0] sm:$0xff]
      %v1669 = vld [vmem:[%s1647 + $0xa8] sm:$0xff]
      %v1670 = vld [vmem:[%s1647 + $0xb0] sm:$0xff]
      %v1671 = vld [vmem:[%s1647 + $0xb8] sm:$0xff]
      %v1672 = vld [vmem:[%s1647 + $0xc0] sm:$0xff]
      %v1673 = vld [vmem:[%s1647 + $0xc8] sm:$0xff]
      %v1674 = vld [vmem:[%s1647 + $0xd0] sm:$0xff]
      %v1675 = vld [vmem:[%s1647 + $0xd8] sm:$0xff]
      %v1676 = vld [vmem:[%s1647 + $0xe0] sm:$0xff]
      %v1677 = vld [vmem:[%s1647 + $0xe8] sm:$0xff]
      %v1678 = vld [vmem:[%s1647 + $0xf0] sm:$0xff]
      %v1679 = vld [vmem:[%s1647 + $0xf8] sm:$0xff]
      %v1680 = vlaneseq
      %v1681 = vshrl.u32 %v1680, 7
      %v1682 = vsub.s32 6, %v1681
      %v1683 = vrot.slane %v424, %v1682
      %v1684 = vmul.f32 %v1648, %v1683
      %v1685 = vmul.f32 %v1649, %v1683
      %v1686 = vmul.f32 %v1650, %v1683
      %v1687 = vmul.f32 %v1651, %v1683
      %v1688 = vmul.f32 %v1652, %v1683
      %v1689 = vmul.f32 %v1653, %v1683
      %v1690 = vmul.f32 %v1654, %v1683
      %v1691 = vmul.f32 %v1655, %v1683
      %v1692 = vmul.f32 %v1656, %v1683
      %v1693 = vmul.f32 %v1657, %v1683
      %v1694 = vmul.f32 %v1658, %v1683
      %v1695 = vmul.f32 %v1659, %v1683
      %v1696 = vmul.f32 %v1660, %v1683
      %v1697 = vmul.f32 %v1661, %v1683
      %v1698 = vmul.f32 %v1662, %v1683
      %v1699 = vmul.f32 %v1663, %v1683
      %v1700 = vmul.f32 %v1664, %v1683
      %v1701 = vmul.f32 %v1665, %v1683
      %v1702 = vmul.f32 %v1666, %v1683
      %v1703 = vmul.f32 %v1667, %v1683
      %v1704 = vmul.f32 %v1668, %v1683
      %v1705 = vmul.f32 %v1669, %v1683
      %v1706 = vmul.f32 %v1670, %v1683
      %v1707 = vmul.f32 %v1671, %v1683
      %v1708 = vmul.f32 %v1672, %v1683
      %v1709 = vmul.f32 %v1673, %v1683
      %v1710 = vmul.f32 %v1674, %v1683
      %v1711 = vmul.f32 %v1675, %v1683
      %v1712 = vmul.f32 %v1676, %v1683
      %v1713 = vmul.f32 %v1677, %v1683
      %v1714 = vmul.f32 %v1678, %v1683
      %v1715 = vmul.f32 %v1679, %v1683
      %v1716 = vadd.f32 %v1515, %v1684
      %v1717 = vadd.f32 %v1516, %v1685
      %v1718 = vadd.f32 %v1517, %v1686
      %v1719 = vadd.f32 %v1518, %v1687
      %v1720 = vadd.f32 %v1519, %v1688
      %v1721 = vadd.f32 %v1520, %v1689
      %v1722 = vadd.f32 %v1521, %v1690
      %v1723 = vadd.f32 %v1522, %v1691
      %v1724 = vadd.f32 %v1523, %v1692
      %v1725 = vadd.f32 %v1524, %v1693
      %v1726 = vadd.f32 %v1525, %v1694
      %v1727 = vadd.f32 %v1526, %v1695
      %v1728 = vadd.f32 %v1527, %v1696
      %v1729 = vadd.f32 %v1528, %v1697
      %v1730 = vadd.f32 %v1529, %v1698
      %v1731 = vadd.f32 %v1530, %v1699
      %v1732 = vadd.f32 %v1531, %v1700
      %v1733 = vadd.f32 %v1532, %v1701
      %v1734 = vadd.f32 %v1533, %v1702
      %v1735 = vadd.f32 %v1534, %v1703
      %v1736 = vadd.f32 %v1535, %v1704
      %v1737 = vadd.f32 %v1536, %v1705
      %v1738 = vadd.f32 %v1537, %v1706
      %v1739 = vadd.f32 %v1538, %v1707
      %v1740 = vadd.f32 %v1539, %v1708
      %v1741 = vadd.f32 %v1540, %v1709
      %v1742 = vadd.f32 %v1541, %v1710
      %v1743 = vadd.f32 %v1542, %v1711
      %v1744 = vadd.f32 %v1543, %v1712
      %v1745 = vadd.f32 %v1544, %v1713
      %v1746 = vadd.f32 %v1545, %v1714
      %v1747 = vadd.f32 %v1546, %v1715
      %v1748 = vld [vmem:[%s393 + $0x6] sm:$0xff]
      %v1749 = vld [vmem:[%s393 + $0xe] sm:$0xff]
      %v1750 = vld [vmem:[%s393 + $0x26] sm:$0xff]
      %v1751 = vld [vmem:[%s393 + $0x2e] sm:$0xff]
      %v1752 = vld [vmem:[%s393 + $0x46] sm:$0xff]
      %v1753 = vld [vmem:[%s393 + $0x4e] sm:$0xff]
      %v1754 = vld [vmem:[%s393 + $0x66] sm:$0xff]
      %v1755 = vld [vmem:[%s393 + $0x6e] sm:$0xff]
      %v1756 = vld [vmem:[%s393 + $0x86] sm:$0xff]
      %v1757 = vld [vmem:[%s393 + $0x8e] sm:$0xff]
      %v1758 = vld [vmem:[%s393 + $0xa6] sm:$0xff]
      %v1759 = vld [vmem:[%s393 + $0xae] sm:$0xff]
      %v1760 = vld [vmem:[%s393 + $0xc6] sm:$0xff]
      %v1761 = vld [vmem:[%s393 + $0xce] sm:$0xff]
      %v1762 = vld [vmem:[%s393 + $0xe6] sm:$0xff]
      %v1763 = vld [vmem:[%s393 + $0xee] sm:$0xff]
      %v1764 = vld [vmem:[%s393 + $0x106] sm:$0xff]
      %v1765 = vld [vmem:[%s393 + $0x10e] sm:$0xff]
      %v1766 = vld [vmem:[%s393 + $0x126] sm:$0xff]
      %v1767 = vld [vmem:[%s393 + $0x12e] sm:$0xff]
      %v1768 = vld [vmem:[%s393 + $0x146] sm:$0xff]
      %v1769 = vld [vmem:[%s393 + $0x14e] sm:$0xff]
      %v1770 = vld [vmem:[%s393 + $0x166] sm:$0xff]
      %v1771 = vld [vmem:[%s393 + $0x16e] sm:$0xff]
      %v1772 = vld [vmem:[%s393 + $0x186] sm:$0xff]
      %v1773 = vld [vmem:[%s393 + $0x18e] sm:$0xff]
      %v1774 = vld [vmem:[%s393 + $0x1a6] sm:$0xff]
      %v1775 = vld [vmem:[%s393 + $0x1ae] sm:$0xff]
      %v1776 = vld [vmem:[%s393 + $0x1c6] sm:$0xff]
      %v1777 = vld [vmem:[%s393 + $0x1ce] sm:$0xff]
      %v1778 = vld [vmem:[%s393 + $0x1e6] sm:$0xff]
      %v1779 = vld [vmem:[%s393 + $0x1ee] sm:$0xff]
      %v1780 = vlaneseq
      %v1781 = vshrl.u32 %v1780, 7
      %v1782 = vsub.s32 6, %v1781
      %v1783 = vrot.slane %v426, %v1782
      %v1784 = vmul.f32 %v1748, %v1783
      %v1785 = vmul.f32 %v1749, %v1783
      %v1786 = vmul.f32 %v1750, %v1783
      %v1787 = vmul.f32 %v1751, %v1783
      %v1788 = vmul.f32 %v1752, %v1783
      %v1789 = vmul.f32 %v1753, %v1783
      %v1790 = vmul.f32 %v1754, %v1783
      %v1791 = vmul.f32 %v1755, %v1783
      %v1792 = vmul.f32 %v1756, %v1783
      %v1793 = vmul.f32 %v1757, %v1783
      %v1794 = vmul.f32 %v1758, %v1783
      %v1795 = vmul.f32 %v1759, %v1783
      %v1796 = vmul.f32 %v1760, %v1783
      %v1797 = vmul.f32 %v1761, %v1783
      %v1798 = vmul.f32 %v1762, %v1783
      %v1799 = vmul.f32 %v1763, %v1783
      %v1800 = vmul.f32 %v1764, %v1783
      %v1801 = vmul.f32 %v1765, %v1783
      %v1802 = vmul.f32 %v1766, %v1783
      %v1803 = vmul.f32 %v1767, %v1783
      %v1804 = vmul.f32 %v1768, %v1783
      %v1805 = vmul.f32 %v1769, %v1783
      %v1806 = vmul.f32 %v1770, %v1783
      %v1807 = vmul.f32 %v1771, %v1783
      %v1808 = vmul.f32 %v1772, %v1783
      %v1809 = vmul.f32 %v1773, %v1783
      %v1810 = vmul.f32 %v1774, %v1783
      %v1811 = vmul.f32 %v1775, %v1783
      %v1812 = vmul.f32 %v1776, %v1783
      %v1813 = vmul.f32 %v1777, %v1783
      %v1814 = vmul.f32 %v1778, %v1783
      %v1815 = vmul.f32 %v1779, %v1783
      %v1816 = vadd.f32 %v1615, %v1784
      %v1817 = vadd.f32 %v1616, %v1785
      %v1818 = vadd.f32 %v1617, %v1786
      %v1819 = vadd.f32 %v1618, %v1787
      %v1820 = vadd.f32 %v1619, %v1788
      %v1821 = vadd.f32 %v1620, %v1789
      %v1822 = vadd.f32 %v1621, %v1790
      %v1823 = vadd.f32 %v1622, %v1791
      %v1824 = vadd.f32 %v1623, %v1792
      %v1825 = vadd.f32 %v1624, %v1793
      %v1826 = vadd.f32 %v1625, %v1794
      %v1827 = vadd.f32 %v1626, %v1795
      %v1828 = vadd.f32 %v1627, %v1796
      %v1829 = vadd.f32 %v1628, %v1797
      %v1830 = vadd.f32 %v1629, %v1798
      %v1831 = vadd.f32 %v1630, %v1799
      %v1832 = vadd.f32 %v1631, %v1800
      %v1833 = vadd.f32 %v1632, %v1801
      %v1834 = vadd.f32 %v1633, %v1802
      %v1835 = vadd.f32 %v1634, %v1803
      %v1836 = vadd.f32 %v1635, %v1804
      %v1837 = vadd.f32 %v1636, %v1805
      %v1838 = vadd.f32 %v1637, %v1806
      %v1839 = vadd.f32 %v1638, %v1807
      %v1840 = vadd.f32 %v1639, %v1808
      %v1841 = vadd.f32 %v1640, %v1809
      %v1842 = vadd.f32 %v1641, %v1810
      %v1843 = vadd.f32 %v1642, %v1811
      %v1844 = vadd.f32 %v1643, %v1812
      %v1845 = vadd.f32 %v1644, %v1813
      %v1846 = vadd.f32 %v1645, %v1814
      %v1847 = vadd.f32 %v1646, %v1815
      %s1848 = scalar_lea.vmem %s385, 112
      %v1849 = vld [vmem:[%s1848] sm:$0xff]
      %v1850 = vld [vmem:[%s1848 + $0x8] sm:$0xff]
      %v1851 = vld [vmem:[%s1848 + $0x10] sm:$0xff]
      %v1852 = vld [vmem:[%s1848 + $0x18] sm:$0xff]
      %v1853 = vld [vmem:[%s1848 + $0x20] sm:$0xff]
      %v1854 = vld [vmem:[%s1848 + $0x28] sm:$0xff]
      %v1855 = vld [vmem:[%s1848 + $0x30] sm:$0xff]
      %v1856 = vld [vmem:[%s1848 + $0x38] sm:$0xff]
      %v1857 = vld [vmem:[%s1848 + $0x40] sm:$0xff]
      %v1858 = vld [vmem:[%s1848 + $0x48] sm:$0xff]
      %v1859 = vld [vmem:[%s1848 + $0x50] sm:$0xff]
      %v1860 = vld [vmem:[%s1848 + $0x58] sm:$0xff]
      %v1861 = vld [vmem:[%s1848 + $0x60] sm:$0xff]
      %v1862 = vld [vmem:[%s1848 + $0x68] sm:$0xff]
      %v1863 = vld [vmem:[%s1848 + $0x70] sm:$0xff]
      %v1864 = vld [vmem:[%s1848 + $0x78] sm:$0xff]
      %v1865 = vld [vmem:[%s1848 + $0x80] sm:$0xff]
      %v1866 = vld [vmem:[%s1848 + $0x88] sm:$0xff]
      %v1867 = vld [vmem:[%s1848 + $0x90] sm:$0xff]
      %v1868 = vld [vmem:[%s1848 + $0x98] sm:$0xff]
      %v1869 = vld [vmem:[%s1848 + $0xa0] sm:$0xff]
      %v1870 = vld [vmem:[%s1848 + $0xa8] sm:$0xff]
      %v1871 = vld [vmem:[%s1848 + $0xb0] sm:$0xff]
      %v1872 = vld [vmem:[%s1848 + $0xb8] sm:$0xff]
      %v1873 = vld [vmem:[%s1848 + $0xc0] sm:$0xff]
      %v1874 = vld [vmem:[%s1848 + $0xc8] sm:$0xff]
      %v1875 = vld [vmem:[%s1848 + $0xd0] sm:$0xff]
      %v1876 = vld [vmem:[%s1848 + $0xd8] sm:$0xff]
      %v1877 = vld [vmem:[%s1848 + $0xe0] sm:$0xff]
      %v1878 = vld [vmem:[%s1848 + $0xe8] sm:$0xff]
      %v1879 = vld [vmem:[%s1848 + $0xf0] sm:$0xff]
      %v1880 = vld [vmem:[%s1848 + $0xf8] sm:$0xff]
      %v1881 = vlaneseq
      %v1882 = vshrl.u32 %v1881, 7
      %v1883 = vsub.s32 7, %v1882
      %v1884 = vrot.slane %v424, %v1883
      %v1885 = vmul.f32 %v1849, %v1884
      %v1886 = vmul.f32 %v1850, %v1884
      %v1887 = vmul.f32 %v1851, %v1884
      %v1888 = vmul.f32 %v1852, %v1884
      %v1889 = vmul.f32 %v1853, %v1884
      %v1890 = vmul.f32 %v1854, %v1884
      %v1891 = vmul.f32 %v1855, %v1884
      %v1892 = vmul.f32 %v1856, %v1884
      %v1893 = vmul.f32 %v1857, %v1884
      %v1894 = vmul.f32 %v1858, %v1884
      %v1895 = vmul.f32 %v1859, %v1884
      %v1896 = vmul.f32 %v1860, %v1884
      %v1897 = vmul.f32 %v1861, %v1884
      %v1898 = vmul.f32 %v1862, %v1884
      %v1899 = vmul.f32 %v1863, %v1884
      %v1900 = vmul.f32 %v1864, %v1884
      %v1901 = vmul.f32 %v1865, %v1884
      %v1902 = vmul.f32 %v1866, %v1884
      %v1903 = vmul.f32 %v1867, %v1884
      %v1904 = vmul.f32 %v1868, %v1884
      %v1905 = vmul.f32 %v1869, %v1884
      %v1906 = vmul.f32 %v1870, %v1884
      %v1907 = vmul.f32 %v1871, %v1884
      %v1908 = vmul.f32 %v1872, %v1884
      %v1909 = vmul.f32 %v1873, %v1884
      %v1910 = vmul.f32 %v1874, %v1884
      %v1911 = vmul.f32 %v1875, %v1884
      %v1912 = vmul.f32 %v1876, %v1884
      %v1913 = vmul.f32 %v1877, %v1884
      %v1914 = vmul.f32 %v1878, %v1884
      %v1915 = vmul.f32 %v1879, %v1884
      %v1916 = vmul.f32 %v1880, %v1884
      %v1917 = vadd.f32 %v1716, %v1885
      %v1918 = vadd.f32 %v1717, %v1886
      %v1919 = vadd.f32 %v1718, %v1887
      %v1920 = vadd.f32 %v1719, %v1888
      %v1921 = vadd.f32 %v1720, %v1889
      %v1922 = vadd.f32 %v1721, %v1890
      %v1923 = vadd.f32 %v1722, %v1891
      %v1924 = vadd.f32 %v1723, %v1892
      %v1925 = vadd.f32 %v1724, %v1893
      %v1926 = vadd.f32 %v1725, %v1894
      %v1927 = vadd.f32 %v1726, %v1895
      %v1928 = vadd.f32 %v1727, %v1896
      %v1929 = vadd.f32 %v1728, %v1897
      %v1930 = vadd.f32 %v1729, %v1898
      %v1931 = vadd.f32 %v1730, %v1899
      %v1932 = vadd.f32 %v1731, %v1900
      %v1933 = vadd.f32 %v1732, %v1901
      %v1934 = vadd.f32 %v1733, %v1902
      %v1935 = vadd.f32 %v1734, %v1903
      %v1936 = vadd.f32 %v1735, %v1904
      %v1937 = vadd.f32 %v1736, %v1905
      %v1938 = vadd.f32 %v1737, %v1906
      %v1939 = vadd.f32 %v1738, %v1907
      %v1940 = vadd.f32 %v1739, %v1908
      %v1941 = vadd.f32 %v1740, %v1909
      %v1942 = vadd.f32 %v1741, %v1910
      %v1943 = vadd.f32 %v1742, %v1911
      %v1944 = vadd.f32 %v1743, %v1912
      %v1945 = vadd.f32 %v1744, %v1913
      %v1946 = vadd.f32 %v1745, %v1914
      %v1947 = vadd.f32 %v1746, %v1915
      %v1948 = vadd.f32 %v1747, %v1916
      %v1949 = vld [vmem:[%s393 + $0x7] sm:$0xff]
      %v1950 = vld [vmem:[%s393 + $0xf] sm:$0xff]
      %v1951 = vld [vmem:[%s393 + $0x27] sm:$0xff]
      %v1952 = vld [vmem:[%s393 + $0x2f] sm:$0xff]
      %v1953 = vld [vmem:[%s393 + $0x47] sm:$0xff]
      %v1954 = vld [vmem:[%s393 + $0x4f] sm:$0xff]
      %v1955 = vld [vmem:[%s393 + $0x67] sm:$0xff]
      %v1956 = vld [vmem:[%s393 + $0x6f] sm:$0xff]
      %v1957 = vld [vmem:[%s393 + $0x87] sm:$0xff]
      %v1958 = vld [vmem:[%s393 + $0x8f] sm:$0xff]
      %v1959 = vld [vmem:[%s393 + $0xa7] sm:$0xff]
      %v1960 = vld [vmem:[%s393 + $0xaf] sm:$0xff]
      %v1961 = vld [vmem:[%s393 + $0xc7] sm:$0xff]
      %v1962 = vld [vmem:[%s393 + $0xcf] sm:$0xff]
      %v1963 = vld [vmem:[%s393 + $0xe7] sm:$0xff]
      %v1964 = vld [vmem:[%s393 + $0xef] sm:$0xff]
      %v1965 = vld [vmem:[%s393 + $0x107] sm:$0xff]
      %v1966 = vld [vmem:[%s393 + $0x10f] sm:$0xff]
      %v1967 = vld [vmem:[%s393 + $0x127] sm:$0xff]
      %v1968 = vld [vmem:[%s393 + $0x12f] sm:$0xff]
      %v1969 = vld [vmem:[%s393 + $0x147] sm:$0xff]
      %v1970 = vld [vmem:[%s393 + $0x14f] sm:$0xff]
      %v1971 = vld [vmem:[%s393 + $0x167] sm:$0xff]
      %v1972 = vld [vmem:[%s393 + $0x16f] sm:$0xff]
      %v1973 = vld [vmem:[%s393 + $0x187] sm:$0xff]
      %v1974 = vld [vmem:[%s393 + $0x18f] sm:$0xff]
      %v1975 = vld [vmem:[%s393 + $0x1a7] sm:$0xff]
      %v1976 = vld [vmem:[%s393 + $0x1af] sm:$0xff]
      %v1977 = vld [vmem:[%s393 + $0x1c7] sm:$0xff]
      %v1978 = vld [vmem:[%s393 + $0x1cf] sm:$0xff]
      %v1979 = vld [vmem:[%s393 + $0x1e7] sm:$0xff]
      %v1980 = vld [vmem:[%s393 + $0x1ef] sm:$0xff]
      %v1981 = vlaneseq
      %v1982 = vshrl.u32 %v1981, 7
      %v1983 = vsub.s32 7, %v1982
      %v1984 = vrot.slane %v426, %v1983
      %v1985 = vmul.f32 %v1949, %v1984
      %v1986 = vmul.f32 %v1950, %v1984
      %v1987 = vmul.f32 %v1951, %v1984
      %v1988 = vmul.f32 %v1952, %v1984
      %v1989 = vmul.f32 %v1953, %v1984
      %v1990 = vmul.f32 %v1954, %v1984
      %v1991 = vmul.f32 %v1955, %v1984
      %v1992 = vmul.f32 %v1956, %v1984
      %v1993 = vmul.f32 %v1957, %v1984
      %v1994 = vmul.f32 %v1958, %v1984
      %v1995 = vmul.f32 %v1959, %v1984
      %v1996 = vmul.f32 %v1960, %v1984
      %v1997 = vmul.f32 %v1961, %v1984
      %v1998 = vmul.f32 %v1962, %v1984
      %v1999 = vmul.f32 %v1963, %v1984
      %v2000 = vmul.f32 %v1964, %v1984
      %v2001 = vmul.f32 %v1965, %v1984
      %v2002 = vmul.f32 %v1966, %v1984
      %v2003 = vmul.f32 %v1967, %v1984
      %v2004 = vmul.f32 %v1968, %v1984
      %v2005 = vmul.f32 %v1969, %v1984
      %v2006 = vmul.f32 %v1970, %v1984
      %v2007 = vmul.f32 %v1971, %v1984
      %v2008 = vmul.f32 %v1972, %v1984
      %v2009 = vmul.f32 %v1973, %v1984
      %v2010 = vmul.f32 %v1974, %v1984
      %v2011 = vmul.f32 %v1975, %v1984
      %v2012 = vmul.f32 %v1976, %v1984
      %v2013 = vmul.f32 %v1977, %v1984
      %v2014 = vmul.f32 %v1978, %v1984
      %v2015 = vmul.f32 %v1979, %v1984
      %v2016 = vmul.f32 %v1980, %v1984
      %v2017 = vadd.f32 %v1816, %v1985
      %v2018 = vadd.f32 %v1817, %v1986
      %v2019 = vadd.f32 %v1818, %v1987
      %v2020 = vadd.f32 %v1819, %v1988
      %v2021 = vadd.f32 %v1820, %v1989
      %v2022 = vadd.f32 %v1821, %v1990
      %v2023 = vadd.f32 %v1822, %v1991
      %v2024 = vadd.f32 %v1823, %v1992
      %v2025 = vadd.f32 %v1824, %v1993
      %v2026 = vadd.f32 %v1825, %v1994
      %v2027 = vadd.f32 %v1826, %v1995
      %v2028 = vadd.f32 %v1827, %v1996
      %v2029 = vadd.f32 %v1828, %v1997
      %v2030 = vadd.f32 %v1829, %v1998
      %v2031 = vadd.f32 %v1830, %v1999
      %v2032 = vadd.f32 %v1831, %v2000
      %v2033 = vadd.f32 %v1832, %v2001
      %v2034 = vadd.f32 %v1833, %v2002
      %v2035 = vadd.f32 %v1834, %v2003
      %v2036 = vadd.f32 %v1835, %v2004
      %v2037 = vadd.f32 %v1836, %v2005
      %v2038 = vadd.f32 %v1837, %v2006
      %v2039 = vadd.f32 %v1838, %v2007
      %v2040 = vadd.f32 %v1839, %v2008
      %v2041 = vadd.f32 %v1840, %v2009
      %v2042 = vadd.f32 %v1841, %v2010
      %v2043 = vadd.f32 %v1842, %v2011
      %v2044 = vadd.f32 %v1843, %v2012
      %v2045 = vadd.f32 %v1844, %v2013
      %v2046 = vadd.f32 %v1845, %v2014
      %v2047 = vadd.f32 %v1846, %v2015
      %v2048 = vadd.f32 %v1847, %v2016
      %s2049 = scalar_lea.vmem %s385, 128
      %v2050 = vld [vmem:[%s2049] sm:$0xff]
      %v2051 = vld [vmem:[%s2049 + $0x8] sm:$0xff]
      %v2052 = vld [vmem:[%s2049 + $0x10] sm:$0xff]
      %v2053 = vld [vmem:[%s2049 + $0x18] sm:$0xff]
      %v2054 = vld [vmem:[%s2049 + $0x20] sm:$0xff]
      %v2055 = vld [vmem:[%s2049 + $0x28] sm:$0xff]
      %v2056 = vld [vmem:[%s2049 + $0x30] sm:$0xff]
      %v2057 = vld [vmem:[%s2049 + $0x38] sm:$0xff]
      %v2058 = vld [vmem:[%s2049 + $0x40] sm:$0xff]
      %v2059 = vld [vmem:[%s2049 + $0x48] sm:$0xff]
      %v2060 = vld [vmem:[%s2049 + $0x50] sm:$0xff]
      %v2061 = vld [vmem:[%s2049 + $0x58] sm:$0xff]
      %v2062 = vld [vmem:[%s2049 + $0x60] sm:$0xff]
      %v2063 = vld [vmem:[%s2049 + $0x68] sm:$0xff]
      %v2064 = vld [vmem:[%s2049 + $0x70] sm:$0xff]
      %v2065 = vld [vmem:[%s2049 + $0x78] sm:$0xff]
      %v2066 = vld [vmem:[%s2049 + $0x80] sm:$0xff]
      %v2067 = vld [vmem:[%s2049 + $0x88] sm:$0xff]
      %v2068 = vld [vmem:[%s2049 + $0x90] sm:$0xff]
      %v2069 = vld [vmem:[%s2049 + $0x98] sm:$0xff]
      %v2070 = vld [vmem:[%s2049 + $0xa0] sm:$0xff]
      %v2071 = vld [vmem:[%s2049 + $0xa8] sm:$0xff]
      %v2072 = vld [vmem:[%s2049 + $0xb0] sm:$0xff]
      %v2073 = vld [vmem:[%s2049 + $0xb8] sm:$0xff]
      %v2074 = vld [vmem:[%s2049 + $0xc0] sm:$0xff]
      %v2075 = vld [vmem:[%s2049 + $0xc8] sm:$0xff]
      %v2076 = vld [vmem:[%s2049 + $0xd0] sm:$0xff]
      %v2077 = vld [vmem:[%s2049 + $0xd8] sm:$0xff]
      %v2078 = vld [vmem:[%s2049 + $0xe0] sm:$0xff]
      %v2079 = vld [vmem:[%s2049 + $0xe8] sm:$0xff]
      %v2080 = vld [vmem:[%s2049 + $0xf0] sm:$0xff]
      %v2081 = vld [vmem:[%s2049 + $0xf8] sm:$0xff]
      %v2082 = vlaneseq
      %v2083 = vshrl.u32 %v2082, 7
      %v2084 = vsub.s32 0, %v2083
      %v2085 = vrot.slane %v425, %v2084
      %v2086 = vmul.f32 %v2050, %v2085
      %v2087 = vmul.f32 %v2051, %v2085
      %v2088 = vmul.f32 %v2052, %v2085
      %v2089 = vmul.f32 %v2053, %v2085
      %v2090 = vmul.f32 %v2054, %v2085
      %v2091 = vmul.f32 %v2055, %v2085
      %v2092 = vmul.f32 %v2056, %v2085
      %v2093 = vmul.f32 %v2057, %v2085
      %v2094 = vmul.f32 %v2058, %v2085
      %v2095 = vmul.f32 %v2059, %v2085
      %v2096 = vmul.f32 %v2060, %v2085
      %v2097 = vmul.f32 %v2061, %v2085
      %v2098 = vmul.f32 %v2062, %v2085
      %v2099 = vmul.f32 %v2063, %v2085
      %v2100 = vmul.f32 %v2064, %v2085
      %v2101 = vmul.f32 %v2065, %v2085
      %v2102 = vmul.f32 %v2066, %v2085
      %v2103 = vmul.f32 %v2067, %v2085
      %v2104 = vmul.f32 %v2068, %v2085
      %v2105 = vmul.f32 %v2069, %v2085
      %v2106 = vmul.f32 %v2070, %v2085
      %v2107 = vmul.f32 %v2071, %v2085
      %v2108 = vmul.f32 %v2072, %v2085
      %v2109 = vmul.f32 %v2073, %v2085
      %v2110 = vmul.f32 %v2074, %v2085
      %v2111 = vmul.f32 %v2075, %v2085
      %v2112 = vmul.f32 %v2076, %v2085
      %v2113 = vmul.f32 %v2077, %v2085
      %v2114 = vmul.f32 %v2078, %v2085
      %v2115 = vmul.f32 %v2079, %v2085
      %v2116 = vmul.f32 %v2080, %v2085
      %v2117 = vmul.f32 %v2081, %v2085
      %v2118 = vadd.f32 %v1917, %v2086
      %v2119 = vadd.f32 %v1918, %v2087
      %v2120 = vadd.f32 %v1919, %v2088
      %v2121 = vadd.f32 %v1920, %v2089
      %v2122 = vadd.f32 %v1921, %v2090
      %v2123 = vadd.f32 %v1922, %v2091
      %v2124 = vadd.f32 %v1923, %v2092
      %v2125 = vadd.f32 %v1924, %v2093
      %v2126 = vadd.f32 %v1925, %v2094
      %v2127 = vadd.f32 %v1926, %v2095
      %v2128 = vadd.f32 %v1927, %v2096
      %v2129 = vadd.f32 %v1928, %v2097
      %v2130 = vadd.f32 %v1929, %v2098
      %v2131 = vadd.f32 %v1930, %v2099
      %v2132 = vadd.f32 %v1931, %v2100
      %v2133 = vadd.f32 %v1932, %v2101
      %v2134 = vadd.f32 %v1933, %v2102
      %v2135 = vadd.f32 %v1934, %v2103
      %v2136 = vadd.f32 %v1935, %v2104
      %v2137 = vadd.f32 %v1936, %v2105
      %v2138 = vadd.f32 %v1937, %v2106
      %v2139 = vadd.f32 %v1938, %v2107
      %v2140 = vadd.f32 %v1939, %v2108
      %v2141 = vadd.f32 %v1940, %v2109
      %v2142 = vadd.f32 %v1941, %v2110
      %v2143 = vadd.f32 %v1942, %v2111
      %v2144 = vadd.f32 %v1943, %v2112
      %v2145 = vadd.f32 %v1944, %v2113
      %v2146 = vadd.f32 %v1945, %v2114
      %v2147 = vadd.f32 %v1946, %v2115
      %v2148 = vadd.f32 %v1947, %v2116
      %v2149 = vadd.f32 %v1948, %v2117
      %v2150 = vld [vmem:[%s393 + $0x10] sm:$0xff]
      %v2151 = vld [vmem:[%s393 + $0x30] sm:$0xff]
      %v2152 = vld [vmem:[%s393 + $0x50] sm:$0xff]
      %v2153 = vld [vmem:[%s393 + $0x70] sm:$0xff]
      %v2154 = vld [vmem:[%s393 + $0x90] sm:$0xff]
      %v2155 = vld [vmem:[%s393 + $0xb0] sm:$0xff]
      %v2156 = vld [vmem:[%s393 + $0xd0] sm:$0xff]
      %v2157 = vld [vmem:[%s393 + $0xf0] sm:$0xff]
      %v2158 = vld [vmem:[%s393 + $0x110] sm:$0xff]
      %v2159 = vld [vmem:[%s393 + $0x130] sm:$0xff]
      %v2160 = vld [vmem:[%s393 + $0x150] sm:$0xff]
      %v2161 = vld [vmem:[%s393 + $0x170] sm:$0xff]
      %v2162 = vld [vmem:[%s393 + $0x190] sm:$0xff]
      %v2163 = vld [vmem:[%s393 + $0x1b0] sm:$0xff]
      %v2164 = vld [vmem:[%s393 + $0x1d0] sm:$0xff]
      %v2165 = vld [vmem:[%s393 + $0x1f0] sm:$0xff]
      %v2166 = vlaneseq
      %v2167 = vshrl.u32 %v2166, 7
      %v2168 = vsub.s32 0, %v2167
      %v2169 = vrot.slane %v427, %v2168
      %v2170 = vmul.f32 %v537, %v2169
      %v2171 = vmul.f32 %v2150, %v2169
      %v2172 = vmul.f32 %v539, %v2169
      %v2173 = vmul.f32 %v2151, %v2169
      %v2174 = vmul.f32 %v541, %v2169
      %v2175 = vmul.f32 %v2152, %v2169
      %v2176 = vmul.f32 %v543, %v2169
      %v2177 = vmul.f32 %v2153, %v2169
      %v2178 = vmul.f32 %v545, %v2169
      %v2179 = vmul.f32 %v2154, %v2169
      %v2180 = vmul.f32 %v547, %v2169
      %v2181 = vmul.f32 %v2155, %v2169
      %v2182 = vmul.f32 %v549, %v2169
      %v2183 = vmul.f32 %v2156, %v2169
      %v2184 = vmul.f32 %v551, %v2169
      %v2185 = vmul.f32 %v2157, %v2169
      %v2186 = vmul.f32 %v553, %v2169
      %v2187 = vmul.f32 %v2158, %v2169
      %v2188 = vmul.f32 %v555, %v2169
      %v2189 = vmul.f32 %v2159, %v2169
      %v2190 = vmul.f32 %v557, %v2169
      %v2191 = vmul.f32 %v2160, %v2169
      %v2192 = vmul.f32 %v559, %v2169
      %v2193 = vmul.f32 %v2161, %v2169
      %v2194 = vmul.f32 %v561, %v2169
      %v2195 = vmul.f32 %v2162, %v2169
      %v2196 = vmul.f32 %v563, %v2169
      %v2197 = vmul.f32 %v2163, %v2169
      %v2198 = vmul.f32 %v565, %v2169
      %v2199 = vmul.f32 %v2164, %v2169
      %v2200 = vmul.f32 %v567, %v2169
      %v2201 = vmul.f32 %v2165, %v2169
      %v2202 = vadd.f32 %v2017, %v2170
      %v2203 = vadd.f32 %v2018, %v2171
      %v2204 = vadd.f32 %v2019, %v2172
      %v2205 = vadd.f32 %v2020, %v2173
      %v2206 = vadd.f32 %v2021, %v2174
      %v2207 = vadd.f32 %v2022, %v2175
      %v2208 = vadd.f32 %v2023, %v2176
      %v2209 = vadd.f32 %v2024, %v2177
      %v2210 = vadd.f32 %v2025, %v2178
      %v2211 = vadd.f32 %v2026, %v2179
      %v2212 = vadd.f32 %v2027, %v2180
      %v2213 = vadd.f32 %v2028, %v2181
      %v2214 = vadd.f32 %v2029, %v2182
      %v2215 = vadd.f32 %v2030, %v2183
      %v2216 = vadd.f32 %v2031, %v2184
      %v2217 = vadd.f32 %v2032, %v2185
      %v2218 = vadd.f32 %v2033, %v2186
      %v2219 = vadd.f32 %v2034, %v2187
      %v2220 = vadd.f32 %v2035, %v2188
      %v2221 = vadd.f32 %v2036, %v2189
      %v2222 = vadd.f32 %v2037, %v2190
      %v2223 = vadd.f32 %v2038, %v2191
      %v2224 = vadd.f32 %v2039, %v2192
      %v2225 = vadd.f32 %v2040, %v2193
      %v2226 = vadd.f32 %v2041, %v2194
      %v2227 = vadd.f32 %v2042, %v2195
      %v2228 = vadd.f32 %v2043, %v2196
      %v2229 = vadd.f32 %v2044, %v2197
      %v2230 = vadd.f32 %v2045, %v2198
      %v2231 = vadd.f32 %v2046, %v2199
      %v2232 = vadd.f32 %v2047, %v2200
      %v2233 = vadd.f32 %v2048, %v2201
      %s2234 = scalar_lea.vmem %s385, 144
      %v2235 = vld [vmem:[%s2234] sm:$0xff]
      %v2236 = vld [vmem:[%s2234 + $0x8] sm:$0xff]
      %v2237 = vld [vmem:[%s2234 + $0x10] sm:$0xff]
      %v2238 = vld [vmem:[%s2234 + $0x18] sm:$0xff]
      %v2239 = vld [vmem:[%s2234 + $0x20] sm:$0xff]
      %v2240 = vld [vmem:[%s2234 + $0x28] sm:$0xff]
      %v2241 = vld [vmem:[%s2234 + $0x30] sm:$0xff]
      %v2242 = vld [vmem:[%s2234 + $0x38] sm:$0xff]
      %v2243 = vld [vmem:[%s2234 + $0x40] sm:$0xff]
      %v2244 = vld [vmem:[%s2234 + $0x48] sm:$0xff]
      %v2245 = vld [vmem:[%s2234 + $0x50] sm:$0xff]
      %v2246 = vld [vmem:[%s2234 + $0x58] sm:$0xff]
      %v2247 = vld [vmem:[%s2234 + $0x60] sm:$0xff]
      %v2248 = vld [vmem:[%s2234 + $0x68] sm:$0xff]
      %v2249 = vld [vmem:[%s2234 + $0x70] sm:$0xff]
      %v2250 = vld [vmem:[%s2234 + $0x78] sm:$0xff]
      %v2251 = vld [vmem:[%s2234 + $0x80] sm:$0xff]
      %v2252 = vld [vmem:[%s2234 + $0x88] sm:$0xff]
      %v2253 = vld [vmem:[%s2234 + $0x90] sm:$0xff]
      %v2254 = vld [vmem:[%s2234 + $0x98] sm:$0xff]
      %v2255 = vld [vmem:[%s2234 + $0xa0] sm:$0xff]
      %v2256 = vld [vmem:[%s2234 + $0xa8] sm:$0xff]
      %v2257 = vld [vmem:[%s2234 + $0xb0] sm:$0xff]
      %v2258 = vld [vmem:[%s2234 + $0xb8] sm:$0xff]
      %v2259 = vld [vmem:[%s2234 + $0xc0] sm:$0xff]
      %v2260 = vld [vmem:[%s2234 + $0xc8] sm:$0xff]
      %v2261 = vld [vmem:[%s2234 + $0xd0] sm:$0xff]
      %v2262 = vld [vmem:[%s2234 + $0xd8] sm:$0xff]
      %v2263 = vld [vmem:[%s2234 + $0xe0] sm:$0xff]
      %v2264 = vld [vmem:[%s2234 + $0xe8] sm:$0xff]
      %v2265 = vld [vmem:[%s2234 + $0xf0] sm:$0xff]
      %v2266 = vld [vmem:[%s2234 + $0xf8] sm:$0xff]
      %v2267 = vlaneseq
      %v2268 = vshrl.u32 %v2267, 7
      %v2269 = vsub.s32 1, %v2268
      %v2270 = vrot.slane %v425, %v2269
      %v2271 = vmul.f32 %v2235, %v2270
      %v2272 = vmul.f32 %v2236, %v2270
      %v2273 = vmul.f32 %v2237, %v2270
      %v2274 = vmul.f32 %v2238, %v2270
      %v2275 = vmul.f32 %v2239, %v2270
      %v2276 = vmul.f32 %v2240, %v2270
      %v2277 = vmul.f32 %v2241, %v2270
      %v2278 = vmul.f32 %v2242, %v2270
      %v2279 = vmul.f32 %v2243, %v2270
      %v2280 = vmul.f32 %v2244, %v2270
      %v2281 = vmul.f32 %v2245, %v2270
      %v2282 = vmul.f32 %v2246, %v2270
      %v2283 = vmul.f32 %v2247, %v2270
      %v2284 = vmul.f32 %v2248, %v2270
      %v2285 = vmul.f32 %v2249, %v2270
      %v2286 = vmul.f32 %v2250, %v2270
      %v2287 = vmul.f32 %v2251, %v2270
      %v2288 = vmul.f32 %v2252, %v2270
      %v2289 = vmul.f32 %v2253, %v2270
      %v2290 = vmul.f32 %v2254, %v2270
      %v2291 = vmul.f32 %v2255, %v2270
      %v2292 = vmul.f32 %v2256, %v2270
      %v2293 = vmul.f32 %v2257, %v2270
      %v2294 = vmul.f32 %v2258, %v2270
      %v2295 = vmul.f32 %v2259, %v2270
      %v2296 = vmul.f32 %v2260, %v2270
      %v2297 = vmul.f32 %v2261, %v2270
      %v2298 = vmul.f32 %v2262, %v2270
      %v2299 = vmul.f32 %v2263, %v2270
      %v2300 = vmul.f32 %v2264, %v2270
      %v2301 = vmul.f32 %v2265, %v2270
      %v2302 = vmul.f32 %v2266, %v2270
      %v2303 = vadd.f32 %v2118, %v2271
      %v2304 = vadd.f32 %v2119, %v2272
      %v2305 = vadd.f32 %v2120, %v2273
      %v2306 = vadd.f32 %v2121, %v2274
      %v2307 = vadd.f32 %v2122, %v2275
      %v2308 = vadd.f32 %v2123, %v2276
      %v2309 = vadd.f32 %v2124, %v2277
      %v2310 = vadd.f32 %v2125, %v2278
      %v2311 = vadd.f32 %v2126, %v2279
      %v2312 = vadd.f32 %v2127, %v2280
      %v2313 = vadd.f32 %v2128, %v2281
      %v2314 = vadd.f32 %v2129, %v2282
      %v2315 = vadd.f32 %v2130, %v2283
      %v2316 = vadd.f32 %v2131, %v2284
      %v2317 = vadd.f32 %v2132, %v2285
      %v2318 = vadd.f32 %v2133, %v2286
      %v2319 = vadd.f32 %v2134, %v2287
      %v2320 = vadd.f32 %v2135, %v2288
      %v2321 = vadd.f32 %v2136, %v2289
      %v2322 = vadd.f32 %v2137, %v2290
      %v2323 = vadd.f32 %v2138, %v2291
      %v2324 = vadd.f32 %v2139, %v2292
      %v2325 = vadd.f32 %v2140, %v2293
      %v2326 = vadd.f32 %v2141, %v2294
      %v2327 = vadd.f32 %v2142, %v2295
      %v2328 = vadd.f32 %v2143, %v2296
      %v2329 = vadd.f32 %v2144, %v2297
      %v2330 = vadd.f32 %v2145, %v2298
      %v2331 = vadd.f32 %v2146, %v2299
      %v2332 = vadd.f32 %v2147, %v2300
      %v2333 = vadd.f32 %v2148, %v2301
      %v2334 = vadd.f32 %v2149, %v2302
      %v2335 = vld [vmem:[%s393 + $0x11] sm:$0xff]
      %v2336 = vld [vmem:[%s393 + $0x31] sm:$0xff]
      %v2337 = vld [vmem:[%s393 + $0x51] sm:$0xff]
      %v2338 = vld [vmem:[%s393 + $0x71] sm:$0xff]
      %v2339 = vld [vmem:[%s393 + $0x91] sm:$0xff]
      %v2340 = vld [vmem:[%s393 + $0xb1] sm:$0xff]
      %v2341 = vld [vmem:[%s393 + $0xd1] sm:$0xff]
      %v2342 = vld [vmem:[%s393 + $0xf1] sm:$0xff]
      %v2343 = vld [vmem:[%s393 + $0x111] sm:$0xff]
      %v2344 = vld [vmem:[%s393 + $0x131] sm:$0xff]
      %v2345 = vld [vmem:[%s393 + $0x151] sm:$0xff]
      %v2346 = vld [vmem:[%s393 + $0x171] sm:$0xff]
      %v2347 = vld [vmem:[%s393 + $0x191] sm:$0xff]
      %v2348 = vld [vmem:[%s393 + $0x1b1] sm:$0xff]
      %v2349 = vld [vmem:[%s393 + $0x1d1] sm:$0xff]
      %v2350 = vld [vmem:[%s393 + $0x1f1] sm:$0xff]
      %v2351 = vlaneseq
      %v2352 = vshrl.u32 %v2351, 7
      %v2353 = vsub.s32 1, %v2352
      %v2354 = vrot.slane %v427, %v2353
      %v2355 = vmul.f32 %v744, %v2354
      %v2356 = vmul.f32 %v2335, %v2354
      %v2357 = vmul.f32 %v746, %v2354
      %v2358 = vmul.f32 %v2336, %v2354
      %v2359 = vmul.f32 %v748, %v2354
      %v2360 = vmul.f32 %v2337, %v2354
      %v2361 = vmul.f32 %v750, %v2354
      %v2362 = vmul.f32 %v2338, %v2354
      %v2363 = vmul.f32 %v752, %v2354
      %v2364 = vmul.f32 %v2339, %v2354
      %v2365 = vmul.f32 %v754, %v2354
      %v2366 = vmul.f32 %v2340, %v2354
      %v2367 = vmul.f32 %v756, %v2354
      %v2368 = vmul.f32 %v2341, %v2354
      %v2369 = vmul.f32 %v758, %v2354
      %v2370 = vmul.f32 %v2342, %v2354
      %v2371 = vmul.f32 %v760, %v2354
      %v2372 = vmul.f32 %v2343, %v2354
      %v2373 = vmul.f32 %v762, %v2354
      %v2374 = vmul.f32 %v2344, %v2354
      %v2375 = vmul.f32 %v764, %v2354
      %v2376 = vmul.f32 %v2345, %v2354
      %v2377 = vmul.f32 %v766, %v2354
      %v2378 = vmul.f32 %v2346, %v2354
      %v2379 = vmul.f32 %v768, %v2354
      %v2380 = vmul.f32 %v2347, %v2354
      %v2381 = vmul.f32 %v770, %v2354
      %v2382 = vmul.f32 %v2348, %v2354
      %v2383 = vmul.f32 %v772, %v2354
      %v2384 = vmul.f32 %v2349, %v2354
      %v2385 = vmul.f32 %v774, %v2354
      %v2386 = vmul.f32 %v2350, %v2354
      %v2387 = vadd.f32 %v2202, %v2355
      %v2388 = vadd.f32 %v2203, %v2356
      %v2389 = vadd.f32 %v2204, %v2357
      %v2390 = vadd.f32 %v2205, %v2358
      %v2391 = vadd.f32 %v2206, %v2359
      %v2392 = vadd.f32 %v2207, %v2360
      %v2393 = vadd.f32 %v2208, %v2361
      %v2394 = vadd.f32 %v2209, %v2362
      %v2395 = vadd.f32 %v2210, %v2363
      %v2396 = vadd.f32 %v2211, %v2364
      %v2397 = vadd.f32 %v2212, %v2365
      %v2398 = vadd.f32 %v2213, %v2366
      %v2399 = vadd.f32 %v2214, %v2367
      %v2400 = vadd.f32 %v2215, %v2368
      %v2401 = vadd.f32 %v2216, %v2369
      %v2402 = vadd.f32 %v2217, %v2370
      %v2403 = vadd.f32 %v2218, %v2371
      %v2404 = vadd.f32 %v2219, %v2372
      %v2405 = vadd.f32 %v2220, %v2373
      %v2406 = vadd.f32 %v2221, %v2374
      %v2407 = vadd.f32 %v2222, %v2375
      %v2408 = vadd.f32 %v2223, %v2376
      %v2409 = vadd.f32 %v2224, %v2377
      %v2410 = vadd.f32 %v2225, %v2378
      %v2411 = vadd.f32 %v2226, %v2379
      %v2412 = vadd.f32 %v2227, %v2380
      %v2413 = vadd.f32 %v2228, %v2381
      %v2414 = vadd.f32 %v2229, %v2382
      %v2415 = vadd.f32 %v2230, %v2383
      %v2416 = vadd.f32 %v2231, %v2384
      %v2417 = vadd.f32 %v2232, %v2385
      %v2418 = vadd.f32 %v2233, %v2386
      %s2419 = scalar_lea.vmem %s385, 160
      %v2420 = vld [vmem:[%s2419] sm:$0xff]
      %v2421 = vld [vmem:[%s2419 + $0x8] sm:$0xff]
      %v2422 = vld [vmem:[%s2419 + $0x10] sm:$0xff]
      %v2423 = vld [vmem:[%s2419 + $0x18] sm:$0xff]
      %v2424 = vld [vmem:[%s2419 + $0x20] sm:$0xff]
      %v2425 = vld [vmem:[%s2419 + $0x28] sm:$0xff]
      %v2426 = vld [vmem:[%s2419 + $0x30] sm:$0xff]
      %v2427 = vld [vmem:[%s2419 + $0x38] sm:$0xff]
      %v2428 = vld [vmem:[%s2419 + $0x40] sm:$0xff]
      %v2429 = vld [vmem:[%s2419 + $0x48] sm:$0xff]
      %v2430 = vld [vmem:[%s2419 + $0x50] sm:$0xff]
      %v2431 = vld [vmem:[%s2419 + $0x58] sm:$0xff]
      %v2432 = vld [vmem:[%s2419 + $0x60] sm:$0xff]
      %v2433 = vld [vmem:[%s2419 + $0x68] sm:$0xff]
      %v2434 = vld [vmem:[%s2419 + $0x70] sm:$0xff]
      %v2435 = vld [vmem:[%s2419 + $0x78] sm:$0xff]
      %v2436 = vld [vmem:[%s2419 + $0x80] sm:$0xff]
      %v2437 = vld [vmem:[%s2419 + $0x88] sm:$0xff]
      %v2438 = vld [vmem:[%s2419 + $0x90] sm:$0xff]
      %v2439 = vld [vmem:[%s2419 + $0x98] sm:$0xff]
      %v2440 = vld [vmem:[%s2419 + $0xa0] sm:$0xff]
      %v2441 = vld [vmem:[%s2419 + $0xa8] sm:$0xff]
      %v2442 = vld [vmem:[%s2419 + $0xb0] sm:$0xff]
      %v2443 = vld [vmem:[%s2419 + $0xb8] sm:$0xff]
      %v2444 = vld [vmem:[%s2419 + $0xc0] sm:$0xff]
      %v2445 = vld [vmem:[%s2419 + $0xc8] sm:$0xff]
      %v2446 = vld [vmem:[%s2419 + $0xd0] sm:$0xff]
      %v2447 = vld [vmem:[%s2419 + $0xd8] sm:$0xff]
      %v2448 = vld [vmem:[%s2419 + $0xe0] sm:$0xff]
      %v2449 = vld [vmem:[%s2419 + $0xe8] sm:$0xff]
      %v2450 = vld [vmem:[%s2419 + $0xf0] sm:$0xff]
      %v2451 = vld [vmem:[%s2419 + $0xf8] sm:$0xff]
      %v2452 = vlaneseq
      %v2453 = vshrl.u32 %v2452, 7
      %v2454 = vsub.s32 2, %v2453
      %v2455 = vrot.slane %v425, %v2454
      %v2456 = vmul.f32 %v2420, %v2455
      %v2457 = vmul.f32 %v2421, %v2455
      %v2458 = vmul.f32 %v2422, %v2455
      %v2459 = vmul.f32 %v2423, %v2455
      %v2460 = vmul.f32 %v2424, %v2455
      %v2461 = vmul.f32 %v2425, %v2455
      %v2462 = vmul.f32 %v2426, %v2455
      %v2463 = vmul.f32 %v2427, %v2455
      %v2464 = vmul.f32 %v2428, %v2455
      %v2465 = vmul.f32 %v2429, %v2455
      %v2466 = vmul.f32 %v2430, %v2455
      %v2467 = vmul.f32 %v2431, %v2455
      %v2468 = vmul.f32 %v2432, %v2455
      %v2469 = vmul.f32 %v2433, %v2455
      %v2470 = vmul.f32 %v2434, %v2455
      %v2471 = vmul.f32 %v2435, %v2455
      %v2472 = vmul.f32 %v2436, %v2455
      %v2473 = vmul.f32 %v2437, %v2455
      %v2474 = vmul.f32 %v2438, %v2455
      %v2475 = vmul.f32 %v2439, %v2455
      %v2476 = vmul.f32 %v2440, %v2455
      %v2477 = vmul.f32 %v2441, %v2455
      %v2478 = vmul.f32 %v2442, %v2455
      %v2479 = vmul.f32 %v2443, %v2455
      %v2480 = vmul.f32 %v2444, %v2455
      %v2481 = vmul.f32 %v2445, %v2455
      %v2482 = vmul.f32 %v2446, %v2455
      %v2483 = vmul.f32 %v2447, %v2455
      %v2484 = vmul.f32 %v2448, %v2455
      %v2485 = vmul.f32 %v2449, %v2455
      %v2486 = vmul.f32 %v2450, %v2455
      %v2487 = vmul.f32 %v2451, %v2455
      %v2488 = vadd.f32 %v2303, %v2456
      %v2489 = vadd.f32 %v2304, %v2457
      %v2490 = vadd.f32 %v2305, %v2458
      %v2491 = vadd.f32 %v2306, %v2459
      %v2492 = vadd.f32 %v2307, %v2460
      %v2493 = vadd.f32 %v2308, %v2461
      %v2494 = vadd.f32 %v2309, %v2462
      %v2495 = vadd.f32 %v2310, %v2463
      %v2496 = vadd.f32 %v2311, %v2464
      %v2497 = vadd.f32 %v2312, %v2465
      %v2498 = vadd.f32 %v2313, %v2466
      %v2499 = vadd.f32 %v2314, %v2467
      %v2500 = vadd.f32 %v2315, %v2468
      %v2501 = vadd.f32 %v2316, %v2469
      %v2502 = vadd.f32 %v2317, %v2470
      %v2503 = vadd.f32 %v2318, %v2471
      %v2504 = vadd.f32 %v2319, %v2472
      %v2505 = vadd.f32 %v2320, %v2473
      %v2506 = vadd.f32 %v2321, %v2474
      %v2507 = vadd.f32 %v2322, %v2475
      %v2508 = vadd.f32 %v2323, %v2476
      %v2509 = vadd.f32 %v2324, %v2477
      %v2510 = vadd.f32 %v2325, %v2478
      %v2511 = vadd.f32 %v2326, %v2479
      %v2512 = vadd.f32 %v2327, %v2480
      %v2513 = vadd.f32 %v2328, %v2481
      %v2514 = vadd.f32 %v2329, %v2482
      %v2515 = vadd.f32 %v2330, %v2483
      %v2516 = vadd.f32 %v2331, %v2484
      %v2517 = vadd.f32 %v2332, %v2485
      %v2518 = vadd.f32 %v2333, %v2486
      %v2519 = vadd.f32 %v2334, %v2487
      %v2520 = vld [vmem:[%s393 + $0x12] sm:$0xff]
      %v2521 = vld [vmem:[%s393 + $0x32] sm:$0xff]
      %v2522 = vld [vmem:[%s393 + $0x52] sm:$0xff]
      %v2523 = vld [vmem:[%s393 + $0x72] sm:$0xff]
      %v2524 = vld [vmem:[%s393 + $0x92] sm:$0xff]
      %v2525 = vld [vmem:[%s393 + $0xb2] sm:$0xff]
      %v2526 = vld [vmem:[%s393 + $0xd2] sm:$0xff]
      %v2527 = vld [vmem:[%s393 + $0xf2] sm:$0xff]
      %v2528 = vld [vmem:[%s393 + $0x112] sm:$0xff]
      %v2529 = vld [vmem:[%s393 + $0x132] sm:$0xff]
      %v2530 = vld [vmem:[%s393 + $0x152] sm:$0xff]
      %v2531 = vld [vmem:[%s393 + $0x172] sm:$0xff]
      %v2532 = vld [vmem:[%s393 + $0x192] sm:$0xff]
      %v2533 = vld [vmem:[%s393 + $0x1b2] sm:$0xff]
      %v2534 = vld [vmem:[%s393 + $0x1d2] sm:$0xff]
      %v2535 = vld [vmem:[%s393 + $0x1f2] sm:$0xff]
      %v2536 = vlaneseq
      %v2537 = vshrl.u32 %v2536, 7
      %v2538 = vsub.s32 2, %v2537
      %v2539 = vrot.slane %v427, %v2538
      %v2540 = vmul.f32 %v945, %v2539
      %v2541 = vmul.f32 %v2520, %v2539
      %v2542 = vmul.f32 %v947, %v2539
      %v2543 = vmul.f32 %v2521, %v2539
      %v2544 = vmul.f32 %v949, %v2539
      %v2545 = vmul.f32 %v2522, %v2539
      %v2546 = vmul.f32 %v951, %v2539
      %v2547 = vmul.f32 %v2523, %v2539
      %v2548 = vmul.f32 %v953, %v2539
      %v2549 = vmul.f32 %v2524, %v2539
      %v2550 = vmul.f32 %v955, %v2539
      %v2551 = vmul.f32 %v2525, %v2539
      %v2552 = vmul.f32 %v957, %v2539
      %v2553 = vmul.f32 %v2526, %v2539
      %v2554 = vmul.f32 %v959, %v2539
      %v2555 = vmul.f32 %v2527, %v2539
      %v2556 = vmul.f32 %v961, %v2539
      %v2557 = vmul.f32 %v2528, %v2539
      %v2558 = vmul.f32 %v963, %v2539
      %v2559 = vmul.f32 %v2529, %v2539
      %v2560 = vmul.f32 %v965, %v2539
      %v2561 = vmul.f32 %v2530, %v2539
      %v2562 = vmul.f32 %v967, %v2539
      %v2563 = vmul.f32 %v2531, %v2539
      %v2564 = vmul.f32 %v969, %v2539
      %v2565 = vmul.f32 %v2532, %v2539
      %v2566 = vmul.f32 %v971, %v2539
      %v2567 = vmul.f32 %v2533, %v2539
      %v2568 = vmul.f32 %v973, %v2539
      %v2569 = vmul.f32 %v2534, %v2539
      %v2570 = vmul.f32 %v975, %v2539
      %v2571 = vmul.f32 %v2535, %v2539
      %v2572 = vadd.f32 %v2387, %v2540
      %v2573 = vadd.f32 %v2388, %v2541
      %v2574 = vadd.f32 %v2389, %v2542
      %v2575 = vadd.f32 %v2390, %v2543
      %v2576 = vadd.f32 %v2391, %v2544
      %v2577 = vadd.f32 %v2392, %v2545
      %v2578 = vadd.f32 %v2393, %v2546
      %v2579 = vadd.f32 %v2394, %v2547
      %v2580 = vadd.f32 %v2395, %v2548
      %v2581 = vadd.f32 %v2396, %v2549
      %v2582 = vadd.f32 %v2397, %v2550
      %v2583 = vadd.f32 %v2398, %v2551
      %v2584 = vadd.f32 %v2399, %v2552
      %v2585 = vadd.f32 %v2400, %v2553
      %v2586 = vadd.f32 %v2401, %v2554
      %v2587 = vadd.f32 %v2402, %v2555
      %v2588 = vadd.f32 %v2403, %v2556
      %v2589 = vadd.f32 %v2404, %v2557
      %v2590 = vadd.f32 %v2405, %v2558
      %v2591 = vadd.f32 %v2406, %v2559
      %v2592 = vadd.f32 %v2407, %v2560
      %v2593 = vadd.f32 %v2408, %v2561
      %v2594 = vadd.f32 %v2409, %v2562
      %v2595 = vadd.f32 %v2410, %v2563
      %v2596 = vadd.f32 %v2411, %v2564
      %v2597 = vadd.f32 %v2412, %v2565
      %v2598 = vadd.f32 %v2413, %v2566
      %v2599 = vadd.f32 %v2414, %v2567
      %v2600 = vadd.f32 %v2415, %v2568
      %v2601 = vadd.f32 %v2416, %v2569
      %v2602 = vadd.f32 %v2417, %v2570
      %v2603 = vadd.f32 %v2418, %v2571
      %s2604 = scalar_lea.vmem %s385, 176
      %v2605 = vld [vmem:[%s2604] sm:$0xff]
      %v2606 = vld [vmem:[%s2604 + $0x8] sm:$0xff]
      %v2607 = vld [vmem:[%s2604 + $0x10] sm:$0xff]
      %v2608 = vld [vmem:[%s2604 + $0x18] sm:$0xff]
      %v2609 = vld [vmem:[%s2604 + $0x20] sm:$0xff]
      %v2610 = vld [vmem:[%s2604 + $0x28] sm:$0xff]
      %v2611 = vld [vmem:[%s2604 + $0x30] sm:$0xff]
      %v2612 = vld [vmem:[%s2604 + $0x38] sm:$0xff]
      %v2613 = vld [vmem:[%s2604 + $0x40] sm:$0xff]
      %v2614 = vld [vmem:[%s2604 + $0x48] sm:$0xff]
      %v2615 = vld [vmem:[%s2604 + $0x50] sm:$0xff]
      %v2616 = vld [vmem:[%s2604 + $0x58] sm:$0xff]
      %v2617 = vld [vmem:[%s2604 + $0x60] sm:$0xff]
      %v2618 = vld [vmem:[%s2604 + $0x68] sm:$0xff]
      %v2619 = vld [vmem:[%s2604 + $0x70] sm:$0xff]
      %v2620 = vld [vmem:[%s2604 + $0x78] sm:$0xff]
      %v2621 = vld [vmem:[%s2604 + $0x80] sm:$0xff]
      %v2622 = vld [vmem:[%s2604 + $0x88] sm:$0xff]
      %v2623 = vld [vmem:[%s2604 + $0x90] sm:$0xff]
      %v2624 = vld [vmem:[%s2604 + $0x98] sm:$0xff]
      %v2625 = vld [vmem:[%s2604 + $0xa0] sm:$0xff]
      %v2626 = vld [vmem:[%s2604 + $0xa8] sm:$0xff]
      %v2627 = vld [vmem:[%s2604 + $0xb0] sm:$0xff]
      %v2628 = vld [vmem:[%s2604 + $0xb8] sm:$0xff]
      %v2629 = vld [vmem:[%s2604 + $0xc0] sm:$0xff]
      %v2630 = vld [vmem:[%s2604 + $0xc8] sm:$0xff]
      %v2631 = vld [vmem:[%s2604 + $0xd0] sm:$0xff]
      %v2632 = vld [vmem:[%s2604 + $0xd8] sm:$0xff]
      %v2633 = vld [vmem:[%s2604 + $0xe0] sm:$0xff]
      %v2634 = vld [vmem:[%s2604 + $0xe8] sm:$0xff]
      %v2635 = vld [vmem:[%s2604 + $0xf0] sm:$0xff]
      %v2636 = vld [vmem:[%s2604 + $0xf8] sm:$0xff]
      %v2637 = vlaneseq
      %v2638 = vshrl.u32 %v2637, 7
      %v2639 = vsub.s32 3, %v2638
      %v2640 = vrot.slane %v425, %v2639
      %v2641 = vmul.f32 %v2605, %v2640
      %v2642 = vmul.f32 %v2606, %v2640
      %v2643 = vmul.f32 %v2607, %v2640
      %v2644 = vmul.f32 %v2608, %v2640
      %v2645 = vmul.f32 %v2609, %v2640
      %v2646 = vmul.f32 %v2610, %v2640
      %v2647 = vmul.f32 %v2611, %v2640
      %v2648 = vmul.f32 %v2612, %v2640
      %v2649 = vmul.f32 %v2613, %v2640
      %v2650 = vmul.f32 %v2614, %v2640
      %v2651 = vmul.f32 %v2615, %v2640
      %v2652 = vmul.f32 %v2616, %v2640
      %v2653 = vmul.f32 %v2617, %v2640
      %v2654 = vmul.f32 %v2618, %v2640
      %v2655 = vmul.f32 %v2619, %v2640
      %v2656 = vmul.f32 %v2620, %v2640
      %v2657 = vmul.f32 %v2621, %v2640
      %v2658 = vmul.f32 %v2622, %v2640
      %v2659 = vmul.f32 %v2623, %v2640
      %v2660 = vmul.f32 %v2624, %v2640
      %v2661 = vmul.f32 %v2625, %v2640
      %v2662 = vmul.f32 %v2626, %v2640
      %v2663 = vmul.f32 %v2627, %v2640
      %v2664 = vmul.f32 %v2628, %v2640
      %v2665 = vmul.f32 %v2629, %v2640
      %v2666 = vmul.f32 %v2630, %v2640
      %v2667 = vmul.f32 %v2631, %v2640
      %v2668 = vmul.f32 %v2632, %v2640
      %v2669 = vmul.f32 %v2633, %v2640
      %v2670 = vmul.f32 %v2634, %v2640
      %v2671 = vmul.f32 %v2635, %v2640
      %v2672 = vmul.f32 %v2636, %v2640
      %v2673 = vadd.f32 %v2488, %v2641
      %v2674 = vadd.f32 %v2489, %v2642
      %v2675 = vadd.f32 %v2490, %v2643
      %v2676 = vadd.f32 %v2491, %v2644
      %v2677 = vadd.f32 %v2492, %v2645
      %v2678 = vadd.f32 %v2493, %v2646
      %v2679 = vadd.f32 %v2494, %v2647
      %v2680 = vadd.f32 %v2495, %v2648
      %v2681 = vadd.f32 %v2496, %v2649
      %v2682 = vadd.f32 %v2497, %v2650
      %v2683 = vadd.f32 %v2498, %v2651
      %v2684 = vadd.f32 %v2499, %v2652
      %v2685 = vadd.f32 %v2500, %v2653
      %v2686 = vadd.f32 %v2501, %v2654
      %v2687 = vadd.f32 %v2502, %v2655
      %v2688 = vadd.f32 %v2503, %v2656
      %v2689 = vadd.f32 %v2504, %v2657
      %v2690 = vadd.f32 %v2505, %v2658
      %v2691 = vadd.f32 %v2506, %v2659
      %v2692 = vadd.f32 %v2507, %v2660
      %v2693 = vadd.f32 %v2508, %v2661
      %v2694 = vadd.f32 %v2509, %v2662
      %v2695 = vadd.f32 %v2510, %v2663
      %v2696 = vadd.f32 %v2511, %v2664
      %v2697 = vadd.f32 %v2512, %v2665
      %v2698 = vadd.f32 %v2513, %v2666
      %v2699 = vadd.f32 %v2514, %v2667
      %v2700 = vadd.f32 %v2515, %v2668
      %v2701 = vadd.f32 %v2516, %v2669
      %v2702 = vadd.f32 %v2517, %v2670
      %v2703 = vadd.f32 %v2518, %v2671
      %v2704 = vadd.f32 %v2519, %v2672
      %v2705 = vld [vmem:[%s393 + $0x13] sm:$0xff]
      %v2706 = vld [vmem:[%s393 + $0x33] sm:$0xff]
      %v2707 = vld [vmem:[%s393 + $0x53] sm:$0xff]
      %v2708 = vld [vmem:[%s393 + $0x73] sm:$0xff]
      %v2709 = vld [vmem:[%s393 + $0x93] sm:$0xff]
      %v2710 = vld [vmem:[%s393 + $0xb3] sm:$0xff]
      %v2711 = vld [vmem:[%s393 + $0xd3] sm:$0xff]
      %v2712 = vld [vmem:[%s393 + $0xf3] sm:$0xff]
      %v2713 = vld [vmem:[%s393 + $0x113] sm:$0xff]
      %v2714 = vld [vmem:[%s393 + $0x133] sm:$0xff]
      %v2715 = vld [vmem:[%s393 + $0x153] sm:$0xff]
      %v2716 = vld [vmem:[%s393 + $0x173] sm:$0xff]
      %v2717 = vld [vmem:[%s393 + $0x193] sm:$0xff]
      %v2718 = vld [vmem:[%s393 + $0x1b3] sm:$0xff]
      %v2719 = vld [vmem:[%s393 + $0x1d3] sm:$0xff]
      %v2720 = vld [vmem:[%s393 + $0x1f3] sm:$0xff]
      %v2721 = vlaneseq
      %v2722 = vshrl.u32 %v2721, 7
      %v2723 = vsub.s32 3, %v2722
      %v2724 = vrot.slane %v427, %v2723
      %v2725 = vmul.f32 %v1146, %v2724
      %v2726 = vmul.f32 %v2705, %v2724
      %v2727 = vmul.f32 %v1148, %v2724
      %v2728 = vmul.f32 %v2706, %v2724
      %v2729 = vmul.f32 %v1150, %v2724
      %v2730 = vmul.f32 %v2707, %v2724
      %v2731 = vmul.f32 %v1152, %v2724
      %v2732 = vmul.f32 %v2708, %v2724
      %v2733 = vmul.f32 %v1154, %v2724
      %v2734 = vmul.f32 %v2709, %v2724
      %v2735 = vmul.f32 %v1156, %v2724
      %v2736 = vmul.f32 %v2710, %v2724
      %v2737 = vmul.f32 %v1158, %v2724
      %v2738 = vmul.f32 %v2711, %v2724
      %v2739 = vmul.f32 %v1160, %v2724
      %v2740 = vmul.f32 %v2712, %v2724
      %v2741 = vmul.f32 %v1162, %v2724
      %v2742 = vmul.f32 %v2713, %v2724
      %v2743 = vmul.f32 %v1164, %v2724
      %v2744 = vmul.f32 %v2714, %v2724
      %v2745 = vmul.f32 %v1166, %v2724
      %v2746 = vmul.f32 %v2715, %v2724
      %v2747 = vmul.f32 %v1168, %v2724
      %v2748 = vmul.f32 %v2716, %v2724
      %v2749 = vmul.f32 %v1170, %v2724
      %v2750 = vmul.f32 %v2717, %v2724
      %v2751 = vmul.f32 %v1172, %v2724
      %v2752 = vmul.f32 %v2718, %v2724
      %v2753 = vmul.f32 %v1174, %v2724
      %v2754 = vmul.f32 %v2719, %v2724
      %v2755 = vmul.f32 %v1176, %v2724
      %v2756 = vmul.f32 %v2720, %v2724
      %v2757 = vadd.f32 %v2572, %v2725
      %v2758 = vadd.f32 %v2573, %v2726
      %v2759 = vadd.f32 %v2574, %v2727
      %v2760 = vadd.f32 %v2575, %v2728
      %v2761 = vadd.f32 %v2576, %v2729
      %v2762 = vadd.f32 %v2577, %v2730
      %v2763 = vadd.f32 %v2578, %v2731
      %v2764 = vadd.f32 %v2579, %v2732
      %v2765 = vadd.f32 %v2580, %v2733
      %v2766 = vadd.f32 %v2581, %v2734
      %v2767 = vadd.f32 %v2582, %v2735
      %v2768 = vadd.f32 %v2583, %v2736
      %v2769 = vadd.f32 %v2584, %v2737
      %v2770 = vadd.f32 %v2585, %v2738
      %v2771 = vadd.f32 %v2586, %v2739
      %v2772 = vadd.f32 %v2587, %v2740
      %v2773 = vadd.f32 %v2588, %v2741
      %v2774 = vadd.f32 %v2589, %v2742
      %v2775 = vadd.f32 %v2590, %v2743
      %v2776 = vadd.f32 %v2591, %v2744
      %v2777 = vadd.f32 %v2592, %v2745
      %v2778 = vadd.f32 %v2593, %v2746
      %v2779 = vadd.f32 %v2594, %v2747
      %v2780 = vadd.f32 %v2595, %v2748
      %v2781 = vadd.f32 %v2596, %v2749
      %v2782 = vadd.f32 %v2597, %v2750
      %v2783 = vadd.f32 %v2598, %v2751
      %v2784 = vadd.f32 %v2599, %v2752
      %v2785 = vadd.f32 %v2600, %v2753
      %v2786 = vadd.f32 %v2601, %v2754
      %v2787 = vadd.f32 %v2602, %v2755
      %v2788 = vadd.f32 %v2603, %v2756
      %s2789 = scalar_lea.vmem %s385, 192
      %v2790 = vld [vmem:[%s2789] sm:$0xff]
      %v2791 = vld [vmem:[%s2789 + $0x8] sm:$0xff]
      %v2792 = vld [vmem:[%s2789 + $0x10] sm:$0xff]
      %v2793 = vld [vmem:[%s2789 + $0x18] sm:$0xff]
      %v2794 = vld [vmem:[%s2789 + $0x20] sm:$0xff]
      %v2795 = vld [vmem:[%s2789 + $0x28] sm:$0xff]
      %v2796 = vld [vmem:[%s2789 + $0x30] sm:$0xff]
      %v2797 = vld [vmem:[%s2789 + $0x38] sm:$0xff]
      %v2798 = vld [vmem:[%s2789 + $0x40] sm:$0xff]
      %v2799 = vld [vmem:[%s2789 + $0x48] sm:$0xff]
      %v2800 = vld [vmem:[%s2789 + $0x50] sm:$0xff]
      %v2801 = vld [vmem:[%s2789 + $0x58] sm:$0xff]
      %v2802 = vld [vmem:[%s2789 + $0x60] sm:$0xff]
      %v2803 = vld [vmem:[%s2789 + $0x68] sm:$0xff]
      %v2804 = vld [vmem:[%s2789 + $0x70] sm:$0xff]
      %v2805 = vld [vmem:[%s2789 + $0x78] sm:$0xff]
      %v2806 = vld [vmem:[%s2789 + $0x80] sm:$0xff]
      %v2807 = vld [vmem:[%s2789 + $0x88] sm:$0xff]
      %v2808 = vld [vmem:[%s2789 + $0x90] sm:$0xff]
      %v2809 = vld [vmem:[%s2789 + $0x98] sm:$0xff]
      %v2810 = vld [vmem:[%s2789 + $0xa0] sm:$0xff]
      %v2811 = vld [vmem:[%s2789 + $0xa8] sm:$0xff]
      %v2812 = vld [vmem:[%s2789 + $0xb0] sm:$0xff]
      %v2813 = vld [vmem:[%s2789 + $0xb8] sm:$0xff]
      %v2814 = vld [vmem:[%s2789 + $0xc0] sm:$0xff]
      %v2815 = vld [vmem:[%s2789 + $0xc8] sm:$0xff]
      %v2816 = vld [vmem:[%s2789 + $0xd0] sm:$0xff]
      %v2817 = vld [vmem:[%s2789 + $0xd8] sm:$0xff]
      %v2818 = vld [vmem:[%s2789 + $0xe0] sm:$0xff]
      %v2819 = vld [vmem:[%s2789 + $0xe8] sm:$0xff]
      %v2820 = vld [vmem:[%s2789 + $0xf0] sm:$0xff]
      %v2821 = vld [vmem:[%s2789 + $0xf8] sm:$0xff]
      %v2822 = vlaneseq
      %v2823 = vshrl.u32 %v2822, 7
      %v2824 = vsub.s32 4, %v2823
      %v2825 = vrot.slane %v425, %v2824
      %v2826 = vmul.f32 %v2790, %v2825
      %v2827 = vmul.f32 %v2791, %v2825
      %v2828 = vmul.f32 %v2792, %v2825
      %v2829 = vmul.f32 %v2793, %v2825
      %v2830 = vmul.f32 %v2794, %v2825
      %v2831 = vmul.f32 %v2795, %v2825
      %v2832 = vmul.f32 %v2796, %v2825
      %v2833 = vmul.f32 %v2797, %v2825
      %v2834 = vmul.f32 %v2798, %v2825
      %v2835 = vmul.f32 %v2799, %v2825
      %v2836 = vmul.f32 %v2800, %v2825
      %v2837 = vmul.f32 %v2801, %v2825
      %v2838 = vmul.f32 %v2802, %v2825
      %v2839 = vmul.f32 %v2803, %v2825
      %v2840 = vmul.f32 %v2804, %v2825
      %v2841 = vmul.f32 %v2805, %v2825
      %v2842 = vmul.f32 %v2806, %v2825
      %v2843 = vmul.f32 %v2807, %v2825
      %v2844 = vmul.f32 %v2808, %v2825
      %v2845 = vmul.f32 %v2809, %v2825
      %v2846 = vmul.f32 %v2810, %v2825
      %v2847 = vmul.f32 %v2811, %v2825
      %v2848 = vmul.f32 %v2812, %v2825
      %v2849 = vmul.f32 %v2813, %v2825
      %v2850 = vmul.f32 %v2814, %v2825
      %v2851 = vmul.f32 %v2815, %v2825
      %v2852 = vmul.f32 %v2816, %v2825
      %v2853 = vmul.f32 %v2817, %v2825
      %v2854 = vmul.f32 %v2818, %v2825
      %v2855 = vmul.f32 %v2819, %v2825
      %v2856 = vmul.f32 %v2820, %v2825
      %v2857 = vmul.f32 %v2821, %v2825
      %v2858 = vadd.f32 %v2673, %v2826
      %v2859 = vadd.f32 %v2674, %v2827
      %v2860 = vadd.f32 %v2675, %v2828
      %v2861 = vadd.f32 %v2676, %v2829
      %v2862 = vadd.f32 %v2677, %v2830
      %v2863 = vadd.f32 %v2678, %v2831
      %v2864 = vadd.f32 %v2679, %v2832
      %v2865 = vadd.f32 %v2680, %v2833
      %v2866 = vadd.f32 %v2681, %v2834
      %v2867 = vadd.f32 %v2682, %v2835
      %v2868 = vadd.f32 %v2683, %v2836
      %v2869 = vadd.f32 %v2684, %v2837
      %v2870 = vadd.f32 %v2685, %v2838
      %v2871 = vadd.f32 %v2686, %v2839
      %v2872 = vadd.f32 %v2687, %v2840
      %v2873 = vadd.f32 %v2688, %v2841
      %v2874 = vadd.f32 %v2689, %v2842
      %v2875 = vadd.f32 %v2690, %v2843
      %v2876 = vadd.f32 %v2691, %v2844
      %v2877 = vadd.f32 %v2692, %v2845
      %v2878 = vadd.f32 %v2693, %v2846
      %v2879 = vadd.f32 %v2694, %v2847
      %v2880 = vadd.f32 %v2695, %v2848
      %v2881 = vadd.f32 %v2696, %v2849
      %v2882 = vadd.f32 %v2697, %v2850
      %v2883 = vadd.f32 %v2698, %v2851
      %v2884 = vadd.f32 %v2699, %v2852
      %v2885 = vadd.f32 %v2700, %v2853
      %v2886 = vadd.f32 %v2701, %v2854
      %v2887 = vadd.f32 %v2702, %v2855
      %v2888 = vadd.f32 %v2703, %v2856
      %v2889 = vadd.f32 %v2704, %v2857
      %v2890 = vld [vmem:[%s393 + $0x14] sm:$0xff]
      %v2891 = vld [vmem:[%s393 + $0x34] sm:$0xff]
      %v2892 = vld [vmem:[%s393 + $0x54] sm:$0xff]
      %v2893 = vld [vmem:[%s393 + $0x74] sm:$0xff]
      %v2894 = vld [vmem:[%s393 + $0x94] sm:$0xff]
      %v2895 = vld [vmem:[%s393 + $0xb4] sm:$0xff]
      %v2896 = vld [vmem:[%s393 + $0xd4] sm:$0xff]
      %v2897 = vld [vmem:[%s393 + $0xf4] sm:$0xff]
      %v2898 = vld [vmem:[%s393 + $0x114] sm:$0xff]
      %v2899 = vld [vmem:[%s393 + $0x134] sm:$0xff]
      %v2900 = vld [vmem:[%s393 + $0x154] sm:$0xff]
      %v2901 = vld [vmem:[%s393 + $0x174] sm:$0xff]
      %v2902 = vld [vmem:[%s393 + $0x194] sm:$0xff]
      %v2903 = vld [vmem:[%s393 + $0x1b4] sm:$0xff]
      %v2904 = vld [vmem:[%s393 + $0x1d4] sm:$0xff]
      %v2905 = vld [vmem:[%s393 + $0x1f4] sm:$0xff]
      %v2906 = vlaneseq
      %v2907 = vshrl.u32 %v2906, 7
      %v2908 = vsub.s32 4, %v2907
      %v2909 = vrot.slane %v427, %v2908
      %v2910 = vmul.f32 %v1347, %v2909
      %v2911 = vmul.f32 %v2890, %v2909
      %v2912 = vmul.f32 %v1349, %v2909
      %v2913 = vmul.f32 %v2891, %v2909
      %v2914 = vmul.f32 %v1351, %v2909
      %v2915 = vmul.f32 %v2892, %v2909
      %v2916 = vmul.f32 %v1353, %v2909
      %v2917 = vmul.f32 %v2893, %v2909
      %v2918 = vmul.f32 %v1355, %v2909
      %v2919 = vmul.f32 %v2894, %v2909
      %v2920 = vmul.f32 %v1357, %v2909
      %v2921 = vmul.f32 %v2895, %v2909
      %v2922 = vmul.f32 %v1359, %v2909
      %v2923 = vmul.f32 %v2896, %v2909
      %v2924 = vmul.f32 %v1361, %v2909
      %v2925 = vmul.f32 %v2897, %v2909
      %v2926 = vmul.f32 %v1363, %v2909
      %v2927 = vmul.f32 %v2898, %v2909
      %v2928 = vmul.f32 %v1365, %v2909
      %v2929 = vmul.f32 %v2899, %v2909
      %v2930 = vmul.f32 %v1367, %v2909
      %v2931 = vmul.f32 %v2900, %v2909
      %v2932 = vmul.f32 %v1369, %v2909
      %v2933 = vmul.f32 %v2901, %v2909
      %v2934 = vmul.f32 %v1371, %v2909
      %v2935 = vmul.f32 %v2902, %v2909
      %v2936 = vmul.f32 %v1373, %v2909
      %v2937 = vmul.f32 %v2903, %v2909
      %v2938 = vmul.f32 %v1375, %v2909
      %v2939 = vmul.f32 %v2904, %v2909
      %v2940 = vmul.f32 %v1377, %v2909
      %v2941 = vmul.f32 %v2905, %v2909
      %v2942 = vadd.f32 %v2757, %v2910
      %v2943 = vadd.f32 %v2758, %v2911
      %v2944 = vadd.f32 %v2759, %v2912
      %v2945 = vadd.f32 %v2760, %v2913
      %v2946 = vadd.f32 %v2761, %v2914
      %v2947 = vadd.f32 %v2762, %v2915
      %v2948 = vadd.f32 %v2763, %v2916
      %v2949 = vadd.f32 %v2764, %v2917
      %v2950 = vadd.f32 %v2765, %v2918
      %v2951 = vadd.f32 %v2766, %v2919
      %v2952 = vadd.f32 %v2767, %v2920
      %v2953 = vadd.f32 %v2768, %v2921
      %v2954 = vadd.f32 %v2769, %v2922
      %v2955 = vadd.f32 %v2770, %v2923
      %v2956 = vadd.f32 %v2771, %v2924
      %v2957 = vadd.f32 %v2772, %v2925
      %v2958 = vadd.f32 %v2773, %v2926
      %v2959 = vadd.f32 %v2774, %v2927
      %v2960 = vadd.f32 %v2775, %v2928
      %v2961 = vadd.f32 %v2776, %v2929
      %v2962 = vadd.f32 %v2777, %v2930
      %v2963 = vadd.f32 %v2778, %v2931
      %v2964 = vadd.f32 %v2779, %v2932
      %v2965 = vadd.f32 %v2780, %v2933
      %v2966 = vadd.f32 %v2781, %v2934
      %v2967 = vadd.f32 %v2782, %v2935
      %v2968 = vadd.f32 %v2783, %v2936
      %v2969 = vadd.f32 %v2784, %v2937
      %v2970 = vadd.f32 %v2785, %v2938
      %v2971 = vadd.f32 %v2786, %v2939
      %v2972 = vadd.f32 %v2787, %v2940
      %v2973 = vadd.f32 %v2788, %v2941
      %v2974 = vpack.c.bf16 %v2859, %v2858
      %v2975 = vpack.c.bf16 %v2861, %v2860
      %v2976 = vpack.c.bf16 %v2863, %v2862
      %v2977 = vpack.c.bf16 %v2865, %v2864
      %v2978 = vpack.c.bf16 %v2867, %v2866
      %v2979 = vpack.c.bf16 %v2869, %v2868
      %v2980 = vpack.c.bf16 %v2871, %v2870
      %v2981 = vpack.c.bf16 %v2873, %v2872
      %v2982 = vpack.c.bf16 %v2875, %v2874
      %v2983 = vpack.c.bf16 %v2877, %v2876
      %v2984 = vpack.c.bf16 %v2879, %v2878
      %v2985 = vpack.c.bf16 %v2881, %v2880
      %v2986 = vpack.c.bf16 %v2883, %v2882
      %v2987 = vpack.c.bf16 %v2885, %v2884
      %v2988 = vpack.c.bf16 %v2887, %v2886
      %v2989 = vpack.c.bf16 %v2889, %v2888
      %v3006 = vunpack.c.l.b16 %v2974
      %v3007 = vunpack.c.h.b16 %v2974
      %v3008 = vunpack.c.l.b16 %v2975
      %v3009 = vunpack.c.h.b16 %v2975
      %v3010 = vunpack.c.l.b16 %v2976
      %v3011 = vunpack.c.h.b16 %v2976
      %v3012 = vunpack.c.l.b16 %v2977
      %v3013 = vunpack.c.h.b16 %v2977
      %v3014 = vunpack.c.l.b16 %v2978
      %v3015 = vunpack.c.h.b16 %v2978
      %v3016 = vunpack.c.l.b16 %v2979
      %v3017 = vunpack.c.h.b16 %v2979
      %v3018 = vunpack.c.l.b16 %v2980
      %v3019 = vunpack.c.h.b16 %v2980
      %v3020 = vunpack.c.l.b16 %v2981
      %v3021 = vunpack.c.h.b16 %v2981
      %v3022 = vunpack.c.l.b16 %v2982
      %v3023 = vunpack.c.h.b16 %v2982
      %v3024 = vunpack.c.l.b16 %v2983
      %v3025 = vunpack.c.h.b16 %v2983
      %v3026 = vunpack.c.l.b16 %v2984
      %v3027 = vunpack.c.h.b16 %v2984
      %v3028 = vunpack.c.l.b16 %v2985
      %v3029 = vunpack.c.h.b16 %v2985
      %v3030 = vunpack.c.l.b16 %v2986
      %v3031 = vunpack.c.h.b16 %v2986
      %v3032 = vunpack.c.l.b16 %v2987
      %v3033 = vunpack.c.h.b16 %v2987
      %v3034 = vunpack.c.l.b16 %v2988
      %v3035 = vunpack.c.h.b16 %v2988
      %v3036 = vunpack.c.l.b16 %v2989
      %v3037 = vunpack.c.h.b16 %v2989
      %v3038 = vpack.c.b16 %v3006, %v3006
      %v3039 = vpack.c.b16 %v3007, %v3007
      %v3040 = vpack.c.b16 %v3008, %v3008
      %v3041 = vpack.c.b16 %v3009, %v3009
      %v3042 = vpack.c.b16 %v3010, %v3010
      %v3043 = vpack.c.b16 %v3011, %v3011
      %v3044 = vpack.c.b16 %v3012, %v3012
      %v3045 = vpack.c.b16 %v3013, %v3013
      %v3046 = vpack.c.b16 %v3014, %v3014
      %v3047 = vpack.c.b16 %v3015, %v3015
      %v3048 = vpack.c.b16 %v3016, %v3016
      %v3049 = vpack.c.b16 %v3017, %v3017
      %v3050 = vpack.c.b16 %v3018, %v3018
      %v3051 = vpack.c.b16 %v3019, %v3019
      %v3052 = vpack.c.b16 %v3020, %v3020
      %v3053 = vpack.c.b16 %v3021, %v3021
      %v3054 = vpack.c.b16 %v3022, %v3022
      %v3055 = vpack.c.b16 %v3023, %v3023
      %v3056 = vpack.c.b16 %v3024, %v3024
      %v3057 = vpack.c.b16 %v3025, %v3025
      %v3058 = vpack.c.b16 %v3026, %v3026
      %v3059 = vpack.c.b16 %v3027, %v3027
      %v3060 = vpack.c.b16 %v3028, %v3028
      %v3061 = vpack.c.b16 %v3029, %v3029
      %v3062 = vpack.c.b16 %v3030, %v3030
      %v3063 = vpack.c.b16 %v3031, %v3031
      %v3064 = vpack.c.b16 %v3032, %v3032
      %v3065 = vpack.c.b16 %v3033, %v3033
      %v3066 = vpack.c.b16 %v3034, %v3034
      %v3067 = vpack.c.b16 %v3035, %v3035
      %v3068 = vpack.c.b16 %v3036, %v3036
      %v3069 = vpack.c.b16 %v3037, %v3037
      %vm3102 = vcmask 27648
      %3103 = vst.msk [vmem:[%s415] sm:$0xf] %vm3102, %v3038
      %3104 = vst.msk [vmem:[%s415 + $0x4] sm:$0xf] %vm3102, %v3039
      %3105 = vst.msk [vmem:[%s415 + $0x8] sm:$0xf] %vm3102, %v3040
      %3106 = vst.msk [vmem:[%s415 + $0xc] sm:$0xf] %vm3102, %v3041
      %3107 = vst.msk [vmem:[%s415 + $0x10] sm:$0xf] %vm3102, %v3042
      %3108 = vst.msk [vmem:[%s415 + $0x14] sm:$0xf] %vm3102, %v3043
      %3109 = vst.msk [vmem:[%s415 + $0x18] sm:$0xf] %vm3102, %v3044
      %3110 = vst.msk [vmem:[%s415 + $0x1c] sm:$0xf] %vm3102, %v3045
      %3111 = vst.msk [vmem:[%s415 + $0x20] sm:$0xf] %vm3102, %v3046
      %3112 = vst.msk [vmem:[%s415 + $0x24] sm:$0xf] %vm3102, %v3047
      %3113 = vst.msk [vmem:[%s415 + $0x28] sm:$0xf] %vm3102, %v3048
      %3114 = vst.msk [vmem:[%s415 + $0x2c] sm:$0xf] %vm3102, %v3049
      %3115 = vst.msk [vmem:[%s415 + $0x30] sm:$0xf] %vm3102, %v3050
      %3116 = vst.msk [vmem:[%s415 + $0x34] sm:$0xf] %vm3102, %v3051
      %3117 = vst.msk [vmem:[%s415 + $0x38] sm:$0xf] %vm3102, %v3052
      %3118 = vst.msk [vmem:[%s415 + $0x3c] sm:$0xf] %vm3102, %v3053
      %3119 = vst.msk [vmem:[%s415 + $0x40] sm:$0xf] %vm3102, %v3054
      %3120 = vst.msk [vmem:[%s415 + $0x44] sm:$0xf] %vm3102, %v3055
      %3121 = vst.msk [vmem:[%s415 + $0x48] sm:$0xf] %vm3102, %v3056
      %3122 = vst.msk [vmem:[%s415 + $0x4c] sm:$0xf] %vm3102, %v3057
      %3123 = vst.msk [vmem:[%s415 + $0x50] sm:$0xf] %vm3102, %v3058
      %3124 = vst.msk [vmem:[%s415 + $0x54] sm:$0xf] %vm3102, %v3059
      %3125 = vst.msk [vmem:[%s415 + $0x58] sm:$0xf] %vm3102, %v3060
      %3126 = vst.msk [vmem:[%s415 + $0x5c] sm:$0xf] %vm3102, %v3061
      %3127 = vst.msk [vmem:[%s415 + $0x60] sm:$0xf] %vm3102, %v3062
      %3128 = vst.msk [vmem:[%s415 + $0x64] sm:$0xf] %vm3102, %v3063
      %3129 = vst.msk [vmem:[%s415 + $0x68] sm:$0xf] %vm3102, %v3064
      %3130 = vst.msk [vmem:[%s415 + $0x6c] sm:$0xf] %vm3102, %v3065
      %3131 = vst.msk [vmem:[%s415 + $0x70] sm:$0xf] %vm3102, %v3066
      %3132 = vst.msk [vmem:[%s415 + $0x74] sm:$0xf] %vm3102, %v3067
      %3133 = vst.msk [vmem:[%s415 + $0x78] sm:$0xf] %vm3102, %v3068
      %3134 = vst.msk [vmem:[%s415 + $0x7c] sm:$0xf] %vm3102, %v3069
      %v3135 = vpack.c.bf16 %v2943, %v2942
      %v3136 = vpack.c.bf16 %v2945, %v2944
      %v3137 = vpack.c.bf16 %v2947, %v2946
      %v3138 = vpack.c.bf16 %v2949, %v2948
      %v3139 = vpack.c.bf16 %v2951, %v2950
      %v3140 = vpack.c.bf16 %v2953, %v2952
      %v3141 = vpack.c.bf16 %v2955, %v2954
      %v3142 = vpack.c.bf16 %v2957, %v2956
      %v3143 = vpack.c.bf16 %v2959, %v2958
      %v3144 = vpack.c.bf16 %v2961, %v2960
      %v3145 = vpack.c.bf16 %v2963, %v2962
      %v3146 = vpack.c.bf16 %v2965, %v2964
      %v3147 = vpack.c.bf16 %v2967, %v2966
      %v3148 = vpack.c.bf16 %v2969, %v2968
      %v3149 = vpack.c.bf16 %v2971, %v2970
      %v3150 = vpack.c.bf16 %v2973, %v2972
      %v3167 = vunpack.c.l.b16 %v3135
      %v3168 = vunpack.c.h.b16 %v3135
      %v3169 = vunpack.c.l.b16 %v3136
      %v3170 = vunpack.c.h.b16 %v3136
      %v3171 = vunpack.c.l.b16 %v3137
      %v3172 = vunpack.c.h.b16 %v3137
      %v3173 = vunpack.c.l.b16 %v3138
      %v3174 = vunpack.c.h.b16 %v3138
      %v3175 = vunpack.c.l.b16 %v3139
      %v3176 = vunpack.c.h.b16 %v3139
      %v3177 = vunpack.c.l.b16 %v3140
      %v3178 = vunpack.c.h.b16 %v3140
      %v3179 = vunpack.c.l.b16 %v3141
      %v3180 = vunpack.c.h.b16 %v3141
      %v3181 = vunpack.c.l.b16 %v3142
      %v3182 = vunpack.c.h.b16 %v3142
      %v3183 = vunpack.c.l.b16 %v3143
      %v3184 = vunpack.c.h.b16 %v3143
      %v3185 = vunpack.c.l.b16 %v3144
      %v3186 = vunpack.c.h.b16 %v3144
      %v3187 = vunpack.c.l.b16 %v3145
      %v3188 = vunpack.c.h.b16 %v3145
      %v3189 = vunpack.c.l.b16 %v3146
      %v3190 = vunpack.c.h.b16 %v3146
      %v3191 = vunpack.c.l.b16 %v3147
      %v3192 = vunpack.c.h.b16 %v3147
      %v3193 = vunpack.c.l.b16 %v3148
      %v3194 = vunpack.c.h.b16 %v3148
      %v3195 = vunpack.c.l.b16 %v3149
      %v3196 = vunpack.c.h.b16 %v3149
      %v3197 = vunpack.c.l.b16 %v3150
      %v3198 = vunpack.c.h.b16 %v3150
      %v3199 = vpack.c.b16 %v3167, %v3167
      %v3200 = vpack.c.b16 %v3168, %v3168
      %v3201 = vpack.c.b16 %v3169, %v3169
      %v3202 = vpack.c.b16 %v3170, %v3170
      %v3203 = vpack.c.b16 %v3171, %v3171
      %v3204 = vpack.c.b16 %v3172, %v3172
      %v3205 = vpack.c.b16 %v3173, %v3173
      %v3206 = vpack.c.b16 %v3174, %v3174
      %v3207 = vpack.c.b16 %v3175, %v3175
      %v3208 = vpack.c.b16 %v3176, %v3176
      %v3209 = vpack.c.b16 %v3177, %v3177
      %v3210 = vpack.c.b16 %v3178, %v3178
      %v3211 = vpack.c.b16 %v3179, %v3179
      %v3212 = vpack.c.b16 %v3180, %v3180
      %v3213 = vpack.c.b16 %v3181, %v3181
      %v3214 = vpack.c.b16 %v3182, %v3182
      %v3215 = vpack.c.b16 %v3183, %v3183
      %v3216 = vpack.c.b16 %v3184, %v3184
      %v3217 = vpack.c.b16 %v3185, %v3185
      %v3218 = vpack.c.b16 %v3186, %v3186
      %v3219 = vpack.c.b16 %v3187, %v3187
      %v3220 = vpack.c.b16 %v3188, %v3188
      %v3221 = vpack.c.b16 %v3189, %v3189
      %v3222 = vpack.c.b16 %v3190, %v3190
      %v3223 = vpack.c.b16 %v3191, %v3191
      %v3224 = vpack.c.b16 %v3192, %v3192
      %v3225 = vpack.c.b16 %v3193, %v3193
      %v3226 = vpack.c.b16 %v3194, %v3194
      %v3227 = vpack.c.b16 %v3195, %v3195
      %v3228 = vpack.c.b16 %v3196, %v3196
      %v3229 = vpack.c.b16 %v3197, %v3197
      %v3230 = vpack.c.b16 %v3198, %v3198
      %3263 = vst.msk [vmem:[%s423] sm:$0xf] %vm3102, %v3199
      %3264 = vst.msk [vmem:[%s423 + $0x4] sm:$0xf] %vm3102, %v3200
      %3265 = vst.msk [vmem:[%s423 + $0x8] sm:$0xf] %vm3102, %v3201
      %3266 = vst.msk [vmem:[%s423 + $0xc] sm:$0xf] %vm3102, %v3202
      %3267 = vst.msk [vmem:[%s423 + $0x10] sm:$0xf] %vm3102, %v3203
      %3268 = vst.msk [vmem:[%s423 + $0x14] sm:$0xf] %vm3102, %v3204
      %3269 = vst.msk [vmem:[%s423 + $0x18] sm:$0xf] %vm3102, %v3205
      %3270 = vst.msk [vmem:[%s423 + $0x1c] sm:$0xf] %vm3102, %v3206
      %3271 = vst.msk [vmem:[%s423 + $0x20] sm:$0xf] %vm3102, %v3207
      %3272 = vst.msk [vmem:[%s423 + $0x24] sm:$0xf] %vm3102, %v3208
      %3273 = vst.msk [vmem:[%s423 + $0x28] sm:$0xf] %vm3102, %v3209
      %3274 = vst.msk [vmem:[%s423 + $0x2c] sm:$0xf] %vm3102, %v3210
      %3275 = vst.msk [vmem:[%s423 + $0x30] sm:$0xf] %vm3102, %v3211
      %3276 = vst.msk [vmem:[%s423 + $0x34] sm:$0xf] %vm3102, %v3212
      %3277 = vst.msk [vmem:[%s423 + $0x38] sm:$0xf] %vm3102, %v3213
      %3278 = vst.msk [vmem:[%s423 + $0x3c] sm:$0xf] %vm3102, %v3214
      %3279 = vst.msk [vmem:[%s423 + $0x40] sm:$0xf] %vm3102, %v3215
      %3280 = vst.msk [vmem:[%s423 + $0x44] sm:$0xf] %vm3102, %v3216
      %3281 = vst.msk [vmem:[%s423 + $0x48] sm:$0xf] %vm3102, %v3217
      %3282 = vst.msk [vmem:[%s423 + $0x4c] sm:$0xf] %vm3102, %v3218
      %3283 = vst.msk [vmem:[%s423 + $0x50] sm:$0xf] %vm3102, %v3219
      %3284 = vst.msk [vmem:[%s423 + $0x54] sm:$0xf] %vm3102, %v3220
      %3285 = vst.msk [vmem:[%s423 + $0x58] sm:$0xf] %vm3102, %v3221
      %3286 = vst.msk [vmem:[%s423 + $0x5c] sm:$0xf] %vm3102, %v3222
      %3287 = vst.msk [vmem:[%s423 + $0x60] sm:$0xf] %vm3102, %v3223
      %3288 = vst.msk [vmem:[%s423 + $0x64] sm:$0xf] %vm3102, %v3224
      %3289 = vst.msk [vmem:[%s423 + $0x68] sm:$0xf] %vm3102, %v3225
      %3290 = vst.msk [vmem:[%s423 + $0x6c] sm:$0xf] %vm3102, %v3226
      %3291 = vst.msk [vmem:[%s423 + $0x70] sm:$0xf] %vm3102, %v3227
      %3292 = vst.msk [vmem:[%s423 + $0x74] sm:$0xf] %vm3102, %v3228
      %3293 = vst.msk [vmem:[%s423 + $0x78] sm:$0xf] %vm3102, %v3229
      %3294 = vst.msk [vmem:[%s423 + $0x7c] sm:$0xf] %vm3102, %v3230
      %p3295 = scmp.lt.s32.totalorder %s23, 1
      %s3296 = scalar_select %p3295, %s23, 1
      %p3297 = scmp.lt.s32.totalorder %s24, 0
      %s3298 = scalar_select %p3297, %s24, 0
      %s3299 = smul.addr %s3296, 32
      %s3300 = sadd.s32 %s3298, %s3299
      %s3301 = smul.addr %s3300, 4
      %s3302 = scalar_lea.vmem %s6, %s3301
      %p3303 = scmp.lt.s32.totalorder %s23, 1
      %s3304 = scalar_select %p3303, %s23, 1
      %p3305 = scmp.lt.s32.totalorder %s24, 0
      %s3306 = scalar_select %p3305, %s24, 0
      %s3307 = smul.addr %s3304, 32
      %s3308 = sadd.s32 %s3306, %s3307
      %s3309 = smul.addr %s3308, 4
      %s3310 = scalar_lea.vmem %s7, %s3309
      // Predicated region
      $region45: #{convnext_gc_block.2} parent=43 // pred_check
        %p3311 = pneg %p211
      $region46: #{convnext_gc_block.2} parent=43 // pred_check_branch
        %3313 = sbr.rel (%p3311) target = $region48
      $region47: #{convnext_gc_block.2} parent=43 // pred_region
        _
      $region48: #{convnext_gc_block.2} parent=43 // pred_fallthru
        _
      // Predicated region
      $region49: #{convnext_gc_block.2} parent=43 // pred_check
        %p3314 = pneg %p239
      $region50: #{convnext_gc_block.2} parent=43 // pred_check_branch
        %3316 = sbr.rel (%p3314) target = $region52
      $region51: #{convnext_gc_block.2} parent=43 // pred_region
        _
      $region52: #{convnext_gc_block.2} parent=43 // pred_fallthru
        _
    $region44: #{convnext_gc_block.2} parent=5 // pred_fallthru
      _
    %p3317 = scmp.le.s32.totalorder 2, %s14
    // Predicated region
    $region53: #{convnext_gc_block.2} parent=5 // pred_check
      %p3318 = pneg %p3317
    $region54: #{convnext_gc_block.2} parent=5 // pred_check_branch
      %3320 = sbr.rel (%p3318) target = $region56
    $region55: #{convnext_gc_block.2} parent=5 // pred_region
      %s3321 = ssub.s32 %s14, 2
      // Predicated region
      $region57: #{convnext_gc_block.2} parent=55 // pred_check
        %p3322 = pneg %p217
      $region58: #{convnext_gc_block.2} parent=55 // pred_check_branch
        %3324 = sbr.rel (%p3322) target = $region60
      $region59: #{convnext_gc_block.2} parent=55 // pred_region
        %p3325 = scmp.lt.s32.totalorder %s25, 1
        %s3326 = scalar_select %p3325, %s25, 1
        %p3327 = scmp.lt.s32.totalorder %s26, 0
        %s3328 = scalar_select %p3327, %s26, 0
        %s3329 = smul.addr %s3326, 32
        %s3330 = sadd.s32 %s3328, %s3329
        %s3331 = smul.addr %s3330, 4
        %s3332 = scalar_lea.vmem %s6, %s3331
      $region60: #{convnext_gc_block.2} parent=55 // pred_fallthru
        _
      // Predicated region
      $region61: #{convnext_gc_block.2} parent=55 // pred_check
        %p3333 = pneg %p245
      $region62: #{convnext_gc_block.2} parent=55 // pred_check_branch
        %3335 = sbr.rel (%p3333) target = $region64
      $region63: #{convnext_gc_block.2} parent=55 // pred_region
        %p3336 = scmp.lt.s32.totalorder %s25, 1
        %s3337 = scalar_select %p3336, %s25, 1
        %p3338 = scmp.lt.s32.totalorder %s26, 0
        %s3339 = scalar_select %p3338, %s26, 0
        %s3340 = smul.addr %s3337, 32
        %s3341 = sadd.s32 %s3339, %s3340
        %s3342 = smul.addr %s3341, 4
        %s3343 = scalar_lea.vmem %s7, %s3342
      $region64: #{convnext_gc_block.2} parent=55 // pred_fallthru
        _
    $region56: #{convnext_gc_block.2} parent=5 // pred_fallthru
      _
  $region6: #{convnext_gc_block.2} parent=0 // loop_footer
    %s18 = sadd.s32 1, %s14
  $region7: #{convnext_gc_block.2} parent=0 // loop_footer_branch
    %13 = sbr.rel target = $region3
  $region8: #{convnext_gc_block.2} parent=0 // loop_exit
    _

</llo_original>
